<compile_context>
chip_gen: v7x
topology: tpu7x:2x2x1
jax: 0.10.0
libtpu: 0.0.40
codegen_flags: <defaults>
</compile_context>

<pallas_src>
import functools
from collections import namedtuple

import numpy as np
import jax
import jax.numpy as jnp
from jax import lax
from jax.experimental import pallas as pl
from jax.experimental.pallas import tpu as pltpu

IMG_SIZE = 100
CENTER_SIZE = int(IMG_SIZE + IMG_SIZE * 0.2)   # 120, as in the PyTorch module
CATEGORY_SIZE = 5                              # ['car','motorcycle','person','plane','truck']
FINAL_CH = 64
VMEM_LIMIT = 32 * 1024 * 1024                  # safe even on v7x's 64 MiB physical VMEM

# ------------------------------- geometry ---------------------------------- #

Geom = namedtuple("Geom", "Hin Win Hp Wp WF HF LP MG")


def make_geom(hin, win):
    ho, wo = hin - 2, win - 2            # 3x3 valid conv
    hp, wp = ho // 2, wo // 2            # MaxPool2d(2,2) floors
    wf = wp + 1                          # flat row pitch of a phase (1 junk col)
    hf = hp + 2                          # phase rows: Hp+1 real + 1 zero row
    return Geom(hin, win, hp, wp, wf, hf, hf * wf, hp * wf)


GEOM1 = make_geom(CENTER_SIZE, CENTER_SIZE)   # 120 -> 59
GEOM2 = make_geom(GEOM1.Hp, GEOM1.Wp)         # 59  -> 28
GEOM3 = make_geom(GEOM2.Hp, GEOM2.Wp)         # 28  -> 13
FEAT = FINAL_CH * GEOM3.Hp * GEOM3.Wp         # 10816


# ----------------------------- Pallas kernels ------------------------------ #

def _conv_relu_pool(slab, wt, bias, g, cin):
    """conv3x3(valid) + bias + ReLU + maxpool2x2/2, all on VMEM values.

    slab : (4*cin, LP) bf16  -- stride-2 phases of the layer input, phase-major
           rows (phase p = 2a+b occupies rows [p*cin, (p+1)*cin)), each phase
           stored flat row-major with row pitch WF (last col of a row is junk).
    wt   : (cout, 9*cin) bf16 -- conv weight, columns ordered (kh, kw, ci).
    bias : (cout, 1) f32
    Returns (cout, MG) f32 pooled activation (channel-major, flat spatial on
    lanes; col px == Wp of each flat row is junk and is dropped downstream).
    """
    # 16 distinct (phase, offset) lane-slices, hoisted & reused (manual CSE).
    tbl = {}
    for p in range(4):
        ph = slab[p * cin:(p + 1) * cin]                       # static sublane slice
        for off in (0, 1, g.WF, g.WF + 1):
            tbl[(p, off)] = ph[:, off:off + g.MG]              # (cin, MG) bf16
    mx = None
    for dy in range(2):                   # the 4 pool taps (static unroll)
        for dx in range(2):
            parts = []
            for kh in range(3):           # im2col patch, kept in (K, M) layout
                a, u = (dy + kh) % 2, (dy + kh) // 2
                for kw in range(3):
                    b, v = (dx + kw) % 2, (dx + kw) // 2
                    parts.append(tbl[(2 * a + b, u * g.WF + v)])
            patch = jnp.concatenate(parts, axis=0)             # (9*cin, MG) bf16
            acc = jnp.dot(wt, patch,                           # (cout, MG) f32, MXU
                          preferred_element_type=jnp.float32)
            mx = acc if mx is None else jnp.maximum(mx, acc)
    # maxpool(relu(conv+b)) == relu(maxpool(conv)+b): per-channel bias, monotone relu
    return jnp.maximum(mx + bias, 0.0)


def _conv_pool_kernel(slab_ref, w_ref, b_ref, o_ref, *, g, cin):
    act = _conv_relu_pool(slab_ref[0], w_ref[...], b_ref[...], g, cin)
    o_ref[0] = act.astype(o_ref.dtype)


def _conv_pool_fc_kernel(slab_ref, w_ref, b_ref, wfc_ref, bfc_ref, o_ref, *, g, cin):
    act = _conv_relu_pool(slab_ref[0], w_ref[...], b_ref[...], g, cin)  # (64, MG) f32
    prod = wfc_ref[...].astype(jnp.float32) * act[None, :, :]           # (5, 64, MG)
    logits = jnp.sum(jnp.sum(prod, axis=2), axis=1, keepdims=True)      # (5, 1)
    o_ref[0] = logits + bfc_ref[...]


# ------------------------------ wrappers ------------------------------------ #

def conv_layer(slab, wt, bias, g, cin, cout):
    """Fused conv+ReLU+pool layer; returns (N, cout, MG) bf16 channel-major."""
    n = slab.shape[0]
    kern = functools.partial(_conv_pool_kernel, g=g, cin=cin)
    return pl.pallas_call(
        kern,
        out_shape=jax.ShapeDtypeStruct((n, cout, g.MG), jnp.bfloat16),
        grid=(n,),
        in_specs=[
            pl.BlockSpec((1, 4 * cin, g.LP), lambda i: (i, 0, 0)),
            pl.BlockSpec((cout, 9 * cin), lambda i: (0, 0)),
            pl.BlockSpec((cout, 1), lambda i: (0, 0)),
        ],
        out_specs=pl.BlockSpec((1, cout, g.MG), lambda i: (i, 0, 0)),
        compiler_params=pltpu.CompilerParams(
            dimension_semantics=("parallel",),
            vmem_limit_bytes=VMEM_LIMIT),
    )(slab, wt, bias)


def conv_fc_layer(slab, wt, bias, wfc, bfc, g, cin):
    """Fused conv+ReLU+pool + final Linear; returns (N, 5) f32 logits."""
    n = slab.shape[0]
    kern = functools.partial(_conv_pool_fc_kernel, g=g, cin=cin)
    out = pl.pallas_call(
        kern,
        out_shape=jax.ShapeDtypeStruct((n, CATEGORY_SIZE, 1), jnp.float32),
        grid=(n,),
        in_specs=[
            pl.BlockSpec((1, 4 * cin, g.LP), lambda i: (i, 0, 0)),
            pl.BlockSpec((FINAL_CH, 9 * cin), lambda i: (0, 0)),
            pl.BlockSpec((FINAL_CH, 1), lambda i: (0, 0)),
            pl.BlockSpec((CATEGORY_SIZE, FINAL_CH, g.MG), lambda i: (0, 0, 0)),
            pl.BlockSpec((CATEGORY_SIZE, 1), lambda i: (0, 0)),
        ],
        out_specs=pl.BlockSpec((1, CATEGORY_SIZE, 1), lambda i: (i, 0, 0)),
        compiler_params=pltpu.CompilerParams(
            dimension_semantics=("parallel",),
            vmem_limit_bytes=VMEM_LIMIT),
    )(slab, wt, bias, wfc, bfc)
    return out[:, :, 0]


# -------------------------- XLA-side phase glue ----------------------------- #

def _phase_slab(img, g):
    """(N, C, Hin, Win) -> (N, 4*C, LP) bf16 stride-2 phase slab, phase-major rows."""
    n, c = img.shape[0], img.shape[1]
    parts = []
    for a in range(2):
        for b in range(2):
            ph = img[:, :, a::2, b::2][:, :, :g.Hp + 1, :g.Wp + 1]
            ph = jnp.pad(ph, ((0, 0), (0, 0),
                              (0, g.HF - ph.shape[2]), (0, g.WF - ph.shape[3])))
            parts.append(ph.reshape(n, c, g.LP))
    return jnp.concatenate(parts, axis=1).astype(jnp.bfloat16)


def split_image(x, g, cpad):
    """Original image (N, 3, H, W) -> padded-channel phase slab (N, 4*cpad, LP)."""
    x = jnp.pad(x, ((0, 0), (0, cpad - x.shape[1]), (0, 0), (0, 0)))
    return _phase_slab(x, g)


def split_act(act_flat, g_prev, g_next):
    """Kernel output (N, C, MG_prev) -> next layer's phase slab (N, 4*C, LP_next)."""
    n, c = act_flat.shape[0], act_flat.shape[1]
    img = act_flat.reshape(n, c, g_prev.Hp, g_prev.WF)[:, :, :, :g_prev.Wp]
    return _phase_slab(img, g_next)


# ------------------------------ parameters --------------------------------- #

def init_params(key):
    """Deterministic synthetic parameters, stored in PyTorch layouts."""
    ks = jax.random.split(key, 8)

    def conv_w(k, cout, cin):
        return (jax.random.normal(k, (cout, cin, 3, 3), jnp.float32)
                * np.sqrt(2.0 / (cin * 9)))

    return {
        "w1": conv_w(ks[0], 16, 3),  "b1": jax.random.normal(ks[1], (16,)) * 0.01,
        "w2": conv_w(ks[2], 32, 16), "b2": jax.random.normal(ks[3], (32,)) * 0.01,
        "w3": conv_w(ks[4], 64, 32), "b3": jax.random.normal(ks[5], (64,)) * 0.01,
        "w_fc": (jax.random.normal(ks[6], (CATEGORY_SIZE, FEAT), jnp.float32)
                 * np.sqrt(1.0 / FEAT)),
        "b_fc": jax.random.normal(ks[7], (CATEGORY_SIZE,)) * 0.01,
    }


def prepare_params(params):
    """One-time weight re-layout (done OUTSIDE the jitted forward), bf16 MXU operands."""
    def conv_mat(w):
        cout, cin = w.shape[0], w.shape[1]
        cpad = (-cin) % 8
        wt = jnp.transpose(w, (2, 3, 1, 0))                   # (kh, kw, ci, co)
        wt = jnp.pad(wt, ((0, 0), (0, 0), (0, cpad), (0, 0)))
        wt = wt.reshape(9 * (cin + cpad), cout)               # rows (kh, kw, ci)
        return jnp.transpose(wt, (1, 0)).astype(jnp.bfloat16)  # (co, 9*ci_pad)

    g = GEOM3
    # PyTorch flatten order is (c, py, px); re-index to (c, py*WF+px) and
    # zero-weight the junk column px == Wp so it never contributes.
    wfc = params["w_fc"].reshape(CATEGORY_SIZE, FINAL_CH, g.Hp, g.Wp)
    wfc = jnp.pad(wfc, ((0, 0), (0, 0), (0, 0), (0, g.WF - g.Wp)))
    wfc = wfc.reshape(CATEGORY_SIZE, FINAL_CH, g.MG).astype(jnp.bfloat16)

    return {
        "w1": conv_mat(params["w1"]), "b1": params["b1"].reshape(-1, 1),
        "w2": conv_mat(params["w2"]), "b2": params["b2"].reshape(-1, 1),
        "w3": conv_mat(params["w3"]), "b3": params["b3"].reshape(-1, 1),
        "w_fc": wfc,
        "b_fc": params["b_fc"].reshape(-1, 1),
    }


# ------------------------------ forward pass -------------------------------- #

@jax.jit
def cnn_forward(x_nchw, kp):
    s1 = split_image(x_nchw, GEOM1, 8)                        # (N,  32, 3660) bf16
    a1 = conv_layer(s1, kp["w1"], kp["b1"], GEOM1, 8, 16)     # (N,  16, 3540) bf16
    s2 = split_act(a1, GEOM1, GEOM2)                          # (N,  64,  870) bf16
    a2 = conv_layer(s2, kp["w2"], kp["b2"], GEOM2, 16, 32)    # (N,  32,  812) bf16
    s3 = split_act(a2, GEOM2, GEOM3)                          # (N, 128,  210) bf16
    return conv_fc_layer(s3, kp["w3"], kp["b3"],
                         kp["w_fc"], kp["b_fc"], GEOM3, 32)   # (N, 5) f32


def cnn_reference(x_nchw, params):
    """Pure-JAX mirror of the PyTorch forward (NCHW, torch flatten order)."""
    x = x_nchw
    for w, b in [(params["w1"], params["b1"]),
                 (params["w2"], params["b2"]),
                 (params["w3"], params["b3"])]:
        x = lax.conv_general_dilated(x, w, (1, 1), "VALID",
                                     dimension_numbers=("NCHW", "OIHW", "NCHW"))
        x = jnp.maximum(x + b[None, :, None, None], 0.0)
        x = lax.reduce_window(x, -jnp.inf, lax.max,
                              (1, 1, 2, 2), (1, 1, 2, 2), "VALID")
    x = x.reshape(x.shape[0], -1)
    return x @ params["w_fc"].T + params["b_fc"]


if __name__ == "__main__":
    key = jax.random.PRNGKey(0)
    k_x, k_p = jax.random.split(key)
    batch = 2
    # forward() implies a 3x120x120 input (CENTER_SIZE) so fc1 shapes line up
    x = jax.random.normal(k_x, (batch, 3, CENTER_SIZE, CENTER_SIZE), jnp.float32)
    params = init_params(k_p)
    kparams = prepare_params(params)      # weight re-layout done once, outside jit

    out = jax.block_until_ready(cnn_forward(x, kparams))
    assert out.shape == (batch, CATEGORY_SIZE), out.shape

    ref = jax.block_until_ready(cnn_reference(x, params))
    np.testing.assert_allclose(np.asarray(out), np.asarray(ref),
                               rtol=5e-2, atol=5e-2)
    print("KERNEL_OK")
</pallas_src>

<mosaic_0001>
module attributes {stable_mosaic.version = 11 : i64} {
  func.func @_conv_pool_kernel(%arg0: i32, %arg1: memref<1x32x3660xbf16, #tpu.memory_space<vmem>>, %arg2: memref<16x72xbf16, #tpu.memory_space<vmem>>, %arg3: memref<16x1xf32, #tpu.memory_space<vmem>>, %arg4: memref<1x16x3540xbf16, #tpu.memory_space<vmem>>) attributes {dimension_semantics = [#tpu.dimension_semantics<parallel>], iteration_bounds = array<i64: 2>, scalar_prefetch = 0 : i64, scratch_operands = 0 : i64, tpu.core_type = #tpu.core_type<tc>, window_params = [{transform_indices = @transform_0, window_bounds = array<i64: 1, 32, 3660>}, {pipeline_mode = #tpu.pipeline_mode<synchronous>, transform_indices = @transform_1, window_bounds = array<i64: 16, 72>}, {pipeline_mode = #tpu.pipeline_mode<synchronous>, transform_indices = @transform_2, window_bounds = array<i64: 16, 1>}, {transform_indices = @transform_3, window_bounds = array<i64: 1, 16, 3540>}]} {
    %c0 = arith.constant 0 : index
    %c0_0 = arith.constant 0 : index
    %c0_1 = arith.constant 0 : index
    %0 = vector.load %arg1[%c0, %c0_0, %c0_1] : memref<1x32x3660xbf16, #tpu.memory_space<vmem>>, vector<1x32x3660xbf16>
    %1 = vector.shape_cast %0 : vector<1x32x3660xbf16> to vector<32x3660xbf16>
    %c0_2 = arith.constant 0 : index
    %c0_3 = arith.constant 0 : index
    %2 = vector.load %arg2[%c0_2, %c0_3] : memref<16x72xbf16, #tpu.memory_space<vmem>>, vector<16x72xbf16>
    %c0_4 = arith.constant 0 : index
    %c0_5 = arith.constant 0 : index
    %3 = vector.load %arg3[%c0_4, %c0_5] : memref<16x1xf32, #tpu.memory_space<vmem>>, vector<16x1xf32>
    %4 = vector.extract_strided_slice %1 {offsets = [0, 0], sizes = [8, 3660], strides = [1, 1]} : vector<32x3660xbf16> to vector<8x3660xbf16>
    %5 = vector.extract_strided_slice %4 {offsets = [0, 0], sizes = [8, 3540], strides = [1, 1]} : vector<8x3660xbf16> to vector<8x3540xbf16>
    %6 = vector.extract_strided_slice %4 {offsets = [0, 1], sizes = [8, 3540], strides = [1, 1]} : vector<8x3660xbf16> to vector<8x3540xbf16>
    %7 = vector.extract_strided_slice %4 {offsets = [0, 60], sizes = [8, 3540], strides = [1, 1]} : vector<8x3660xbf16> to vector<8x3540xbf16>
    %8 = vector.extract_strided_slice %4 {offsets = [0, 61], sizes = [8, 3540], strides = [1, 1]} : vector<8x3660xbf16> to vector<8x3540xbf16>
    %9 = vector.extract_strided_slice %1 {offsets = [8, 0], sizes = [8, 3660], strides = [1, 1]} : vector<32x3660xbf16> to vector<8x3660xbf16>
    %10 = vector.extract_strided_slice %9 {offsets = [0, 0], sizes = [8, 3540], strides = [1, 1]} : vector<8x3660xbf16> to vector<8x3540xbf16>
    %11 = vector.extract_strided_slice %9 {offsets = [0, 1], sizes = [8, 3540], strides = [1, 1]} : vector<8x3660xbf16> to vector<8x3540xbf16>
    %12 = vector.extract_strided_slice %9 {offsets = [0, 60], sizes = [8, 3540], strides = [1, 1]} : vector<8x3660xbf16> to vector<8x3540xbf16>
    %13 = vector.extract_strided_slice %9 {offsets = [0, 61], sizes = [8, 3540], strides = [1, 1]} : vector<8x3660xbf16> to vector<8x3540xbf16>
    %14 = vector.extract_strided_slice %1 {offsets = [16, 0], sizes = [8, 3660], strides = [1, 1]} : vector<32x3660xbf16> to vector<8x3660xbf16>
    %15 = vector.extract_strided_slice %14 {offsets = [0, 0], sizes = [8, 3540], strides = [1, 1]} : vector<8x3660xbf16> to vector<8x3540xbf16>
    %16 = vector.extract_strided_slice %14 {offsets = [0, 1], sizes = [8, 3540], strides = [1, 1]} : vector<8x3660xbf16> to vector<8x3540xbf16>
    %17 = vector.extract_strided_slice %14 {offsets = [0, 60], sizes = [8, 3540], strides = [1, 1]} : vector<8x3660xbf16> to vector<8x3540xbf16>
    %18 = vector.extract_strided_slice %14 {offsets = [0, 61], sizes = [8, 3540], strides = [1, 1]} : vector<8x3660xbf16> to vector<8x3540xbf16>
    %19 = vector.extract_strided_slice %1 {offsets = [24, 0], sizes = [8, 3660], strides = [1, 1]} : vector<32x3660xbf16> to vector<8x3660xbf16>
    %20 = vector.extract_strided_slice %19 {offsets = [0, 0], sizes = [8, 3540], strides = [1, 1]} : vector<8x3660xbf16> to vector<8x3540xbf16>
    %21 = vector.extract_strided_slice %19 {offsets = [0, 1], sizes = [8, 3540], strides = [1, 1]} : vector<8x3660xbf16> to vector<8x3540xbf16>
    %22 = vector.extract_strided_slice %19 {offsets = [0, 60], sizes = [8, 3540], strides = [1, 1]} : vector<8x3660xbf16> to vector<8x3540xbf16>
    %23 = vector.extract_strided_slice %19 {offsets = [0, 61], sizes = [8, 3540], strides = [1, 1]} : vector<8x3660xbf16> to vector<8x3540xbf16>
    %24 = tpu.concatenate %5, %10, %6, %15, %20, %16, %7, %12, %8 in 0 : vector<8x3540xbf16>, vector<8x3540xbf16>, vector<8x3540xbf16>, vector<8x3540xbf16>, vector<8x3540xbf16>, vector<8x3540xbf16>, vector<8x3540xbf16>, vector<8x3540xbf16>, vector<8x3540xbf16> -> vector<72x3540xbf16>
    %cst = arith.constant dense<0.000000e+00> : vector<16x3540xf32>
    %25 = tpu.matmul %2, %24, %cst {dimension_numbers = #tpu.dot_dimension_numbers<[1], [0], [0], [1], [0, 0, 1, 1], [], []>} : vector<16x72xbf16>, vector<72x3540xbf16>, vector<16x3540xf32> -> vector<16x3540xf32>
    %26 = tpu.concatenate %10, %6, %11, %20, %16, %21, %12, %8, %13 in 0 : vector<8x3540xbf16>, vector<8x3540xbf16>, vector<8x3540xbf16>, vector<8x3540xbf16>, vector<8x3540xbf16>, vector<8x3540xbf16>, vector<8x3540xbf16>, vector<8x3540xbf16>, vector<8x3540xbf16> -> vector<72x3540xbf16>
    %cst_6 = arith.constant dense<0.000000e+00> : vector<16x3540xf32>
    %27 = tpu.matmul %2, %26, %cst_6 {dimension_numbers = #tpu.dot_dimension_numbers<[1], [0], [0], [1], [0, 0, 1, 1], [], []>} : vector<16x72xbf16>, vector<72x3540xbf16>, vector<16x3540xf32> -> vector<16x3540xf32>
    %28 = arith.maximumf %25, %27 : vector<16x3540xf32>
    %29 = tpu.concatenate %15, %20, %16, %7, %12, %8, %17, %22, %18 in 0 : vector<8x3540xbf16>, vector<8x3540xbf16>, vector<8x3540xbf16>, vector<8x3540xbf16>, vector<8x3540xbf16>, vector<8x3540xbf16>, vector<8x3540xbf16>, vector<8x3540xbf16>, vector<8x3540xbf16> -> vector<72x3540xbf16>
    %cst_7 = arith.constant dense<0.000000e+00> : vector<16x3540xf32>
    %30 = tpu.matmul %2, %29, %cst_7 {dimension_numbers = #tpu.dot_dimension_numbers<[1], [0], [0], [1], [0, 0, 1, 1], [], []>} : vector<16x72xbf16>, vector<72x3540xbf16>, vector<16x3540xf32> -> vector<16x3540xf32>
    %31 = arith.maximumf %28, %30 : vector<16x3540xf32>
    %32 = tpu.concatenate %20, %16, %21, %12, %8, %13, %22, %18, %23 in 0 : vector<8x3540xbf16>, vector<8x3540xbf16>, vector<8x3540xbf16>, vector<8x3540xbf16>, vector<8x3540xbf16>, vector<8x3540xbf16>, vector<8x3540xbf16>, vector<8x3540xbf16>, vector<8x3540xbf16> -> vector<72x3540xbf16>
    %cst_8 = arith.constant dense<0.000000e+00> : vector<16x3540xf32>
    %33 = tpu.matmul %2, %32, %cst_8 {dimension_numbers = #tpu.dot_dimension_numbers<[1], [0], [0], [1], [0, 0, 1, 1], [], []>} : vector<16x72xbf16>, vector<72x3540xbf16>, vector<16x3540xf32> -> vector<16x3540xf32>
    %34 = arith.maximumf %31, %33 : vector<16x3540xf32>
    %35 = vector.broadcast %3 : vector<16x1xf32> to vector<16x3540xf32>
    %36 = arith.addf %34, %35 : vector<16x3540xf32>
    %cst_9 = arith.constant 0.000000e+00 : f32
    %37 = vector.broadcast %cst_9 : f32 to vector<16x3540xf32>
    %38 = arith.maximumf %36, %37 : vector<16x3540xf32>
    %39 = arith.truncf %38 : vector<16x3540xf32> to vector<16x3540xbf16>
    %c0_10 = arith.constant 0 : index
    %c0_11 = arith.constant 0 : index
    %c0_12 = arith.constant 0 : index
    %40 = vector.load %arg4[%c0_10, %c0_11, %c0_12] : memref<1x16x3540xbf16, #tpu.memory_space<vmem>>, vector<1x16x3540xbf16>
    %41 = vector.shape_cast %40 : vector<1x16x3540xbf16> to vector<16x3540xbf16>
    %42 = vector.shape_cast %39 : vector<16x3540xbf16> to vector<1x16x3540xbf16>
    tpu.vector_store %arg4[%c0_10, %c0_11, %c0_12], %42 {strides = array<i32>} : memref<1x16x3540xbf16, #tpu.memory_space<vmem>>, vector<1x16x3540xbf16>,
    return
  }
  func.func @transform_0(%arg0: i32) -> (i32, i32, i32) {
    %c0_i32 = arith.constant 0 : i32
    %c0_i32_0 = arith.constant 0 : i32
    %c0_i32_1 = arith.constant 0 : i32
    return %arg0, %c0_i32, %c0_i32_0 : i32, i32, i32
  }
  func.func @transform_1(%arg0: i32) -> (i32, i32) {
    %c0_i32 = arith.constant 0 : i32
    %c0_i32_0 = arith.constant 0 : i32
    %c0_i32_1 = arith.constant 0 : i32
    return %c0_i32, %c0_i32_0 : i32, i32
  }
  func.func @transform_2(%arg0: i32) -> (i32, i32) {
    %c0_i32 = arith.constant 0 : i32
    %c0_i32_0 = arith.constant 0 : i32
    %c0_i32_1 = arith.constant 0 : i32
    return %c0_i32, %c0_i32_0 : i32, i32
  }
  func.func @transform_3(%arg0: i32) -> (i32, i32, i32) {
    %c0_i32 = arith.constant 0 : i32
    %c0_i32_0 = arith.constant 0 : i32
    %c0_i32_1 = arith.constant 0 : i32
    return %arg0, %c0_i32, %c0_i32_0 : i32, i32, i32
  }
}

module attributes {stable_mosaic.version = 11 : i64} {
  func.func @_conv_pool_kernel(%arg0: i32, %arg1: memref<1x64x870xbf16, #tpu.memory_space<vmem>>, %arg2: memref<32x144xbf16, #tpu.memory_space<vmem>>, %arg3: memref<32x1xf32, #tpu.memory_space<vmem>>, %arg4: memref<1x32x812xbf16, #tpu.memory_space<vmem>>) attributes {dimension_semantics = [#tpu.dimension_semantics<parallel>], iteration_bounds = array<i64: 2>, scalar_prefetch = 0 : i64, scratch_operands = 0 : i64, tpu.core_type = #tpu.core_type<tc>, window_params = [{transform_indices = @transform_0, window_bounds = array<i64: 1, 64, 870>}, {pipeline_mode = #tpu.pipeline_mode<synchronous>, transform_indices = @transform_1, window_bounds = array<i64: 32, 144>}, {pipeline_mode = #tpu.pipeline_mode<synchronous>, transform_indices = @transform_2, window_bounds = array<i64: 32, 1>}, {transform_indices = @transform_3, window_bounds = array<i64: 1, 32, 812>}]} {
    %c0 = arith.constant 0 : index
    %c0_0 = arith.constant 0 : index
    %c0_1 = arith.constant 0 : index
    %0 = vector.load %arg1[%c0, %c0_0, %c0_1] : memref<1x64x870xbf16, #tpu.memory_space<vmem>>, vector<1x64x870xbf16>
    %1 = vector.shape_cast %0 : vector<1x64x870xbf16> to vector<64x870xbf16>
    %c0_2 = arith.constant 0 : index
    %c0_3 = arith.constant 0 : index
    %2 = vector.load %arg2[%c0_2, %c0_3] : memref<32x144xbf16, #tpu.memory_space<vmem>>, vector<32x144xbf16>
    %c0_4 = arith.constant 0 : index
    %c0_5 = arith.constant 0 : index
    %3 = vector.load %arg3[%c0_4, %c0_5] : memref<32x1xf32, #tpu.memory_space<vmem>>, vector<32x1xf32>
    %4 = vector.extract_strided_slice %1 {offsets = [0, 0], sizes = [16, 870], strides = [1, 1]} : vector<64x870xbf16> to vector<16x870xbf16>
    %5 = vector.extract_strided_slice %4 {offsets = [0, 0], sizes = [16, 812], strides = [1, 1]} : vector<16x870xbf16> to vector<16x812xbf16>
    %6 = vector.extract_strided_slice %4 {offsets = [0, 1], sizes = [16, 812], strides = [1, 1]} : vector<16x870xbf16> to vector<16x812xbf16>
    %7 = vector.extract_strided_slice %4 {offsets = [0, 29], sizes = [16, 812], strides = [1, 1]} : vector<16x870xbf16> to vector<16x812xbf16>
    %8 = vector.extract_strided_slice %4 {offsets = [0, 30], sizes = [16, 812], strides = [1, 1]} : vector<16x870xbf16> to vector<16x812xbf16>
    %9 = vector.extract_strided_slice %1 {offsets = [16, 0], sizes = [16, 870], strides = [1, 1]} : vector<64x870xbf16> to vector<16x870xbf16>
    %10 = vector.extract_strided_slice %9 {offsets = [0, 0], sizes = [16, 812], strides = [1, 1]} : vector<16x870xbf16> to vector<16x812xbf16>
    %11 = vector.extract_strided_slice %9 {offsets = [0, 1], sizes = [16, 812], strides = [1, 1]} : vector<16x870xbf16> to vector<16x812xbf16>
    %12 = vector.extract_strided_slice %9 {offsets = [0, 29], sizes = [16, 812], strides = [1, 1]} : vector<16x870xbf16> to vector<16x812xbf16>
    %13 = vector.extract_strided_slice %9 {offsets = [0, 30], sizes = [16, 812], strides = [1, 1]} : vector<16x870xbf16> to vector<16x812xbf16>
    %14 = vector.extract_strided_slice %1 {offsets = [32, 0], sizes = [16, 870], strides = [1, 1]} : vector<64x870xbf16> to vector<16x870xbf16>
    %15 = vector.extract_strided_slice %14 {offsets = [0, 0], sizes = [16, 812], strides = [1, 1]} : vector<16x870xbf16> to vector<16x812xbf16>
    %16 = vector.extract_strided_slice %14 {offsets = [0, 1], sizes = [16, 812], strides = [1, 1]} : vector<16x870xbf16> to vector<16x812xbf16>
    %17 = vector.extract_strided_slice %14 {offsets = [0, 29], sizes = [16, 812], strides = [1, 1]} : vector<16x870xbf16> to vector<16x812xbf16>
    %18 = vector.extract_strided_slice %14 {offsets = [0, 30], sizes = [16, 812], strides = [1, 1]} : vector<16x870xbf16> to vector<16x812xbf16>
    %19 = vector.extract_strided_slice %1 {offsets = [48, 0], sizes = [16, 870], strides = [1, 1]} : vector<64x870xbf16> to vector<16x870xbf16>
    %20 = vector.extract_strided_slice %19 {offsets = [0, 0], sizes = [16, 812], strides = [1, 1]} : vector<16x870xbf16> to vector<16x812xbf16>
    %21 = vector.extract_strided_slice %19 {offsets = [0, 1], sizes = [16, 812], strides = [1, 1]} : vector<16x870xbf16> to vector<16x812xbf16>
    %22 = vector.extract_strided_slice %19 {offsets = [0, 29], sizes = [16, 812], strides = [1, 1]} : vector<16x870xbf16> to vector<16x812xbf16>
    %23 = vector.extract_strided_slice %19 {offsets = [0, 30], sizes = [16, 812], strides = [1, 1]} : vector<16x870xbf16> to vector<16x812xbf16>
    %24 = tpu.concatenate %5, %10, %6, %15, %20, %16, %7, %12, %8 in 0 : vector<16x812xbf16>, vector<16x812xbf16>, vector<16x812xbf16>, vector<16x812xbf16>, vector<16x812xbf16>, vector<16x812xbf16>, vector<16x812xbf16>, vector<16x812xbf16>, vector<16x812xbf16> -> vector<144x812xbf16>
    %cst = arith.constant dense<0.000000e+00> : vector<32x812xf32>
    %25 = tpu.matmul %2, %24, %cst {dimension_numbers = #tpu.dot_dimension_numbers<[1], [0], [0], [1], [0, 0, 1, 1], [], []>} : vector<32x144xbf16>, vector<144x812xbf16>, vector<32x812xf32> -> vector<32x812xf32>
    %26 = tpu.concatenate %10, %6, %11, %20, %16, %21, %12, %8, %13 in 0 : vector<16x812xbf16>, vector<16x812xbf16>, vector<16x812xbf16>, vector<16x812xbf16>, vector<16x812xbf16>, vector<16x812xbf16>, vector<16x812xbf16>, vector<16x812xbf16>, vector<16x812xbf16> -> vector<144x812xbf16>
    %cst_6 = arith.constant dense<0.000000e+00> : vector<32x812xf32>
    %27 = tpu.matmul %2, %26, %cst_6 {dimension_numbers = #tpu.dot_dimension_numbers<[1], [0], [0], [1], [0, 0, 1, 1], [], []>} : vector<32x144xbf16>, vector<144x812xbf16>, vector<32x812xf32> -> vector<32x812xf32>
    %28 = arith.maximumf %25, %27 : vector<32x812xf32>
    %29 = tpu.concatenate %15, %20, %16, %7, %12, %8, %17, %22, %18 in 0 : vector<16x812xbf16>, vector<16x812xbf16>, vector<16x812xbf16>, vector<16x812xbf16>, vector<16x812xbf16>, vector<16x812xbf16>, vector<16x812xbf16>, vector<16x812xbf16>, vector<16x812xbf16> -> vector<144x812xbf16>
    %cst_7 = arith.constant dense<0.000000e+00> : vector<32x812xf32>
    %30 = tpu.matmul %2, %29, %cst_7 {dimension_numbers = #tpu.dot_dimension_numbers<[1], [0], [0], [1], [0, 0, 1, 1], [], []>} : vector<32x144xbf16>, vector<144x812xbf16>, vector<32x812xf32> -> vector<32x812xf32>
    %31 = arith.maximumf %28, %30 : vector<32x812xf32>
    %32 = tpu.concatenate %20, %16, %21, %12, %8, %13, %22, %18, %23 in 0 : vector<16x812xbf16>, vector<16x812xbf16>, vector<16x812xbf16>, vector<16x812xbf16>, vector<16x812xbf16>, vector<16x812xbf16>, vector<16x812xbf16>, vector<16x812xbf16>, vector<16x812xbf16> -> vector<144x812xbf16>
    %cst_8 = arith.constant dense<0.000000e+00> : vector<32x812xf32>
    %33 = tpu.matmul %2, %32, %cst_8 {dimension_numbers = #tpu.dot_dimension_numbers<[1], [0], [0], [1], [0, 0, 1, 1], [], []>} : vector<32x144xbf16>, vector<144x812xbf16>, vector<32x812xf32> -> vector<32x812xf32>
    %34 = arith.maximumf %31, %33 : vector<32x812xf32>
    %35 = vector.broadcast %3 : vector<32x1xf32> to vector<32x812xf32>
    %36 = arith.addf %34, %35 : vector<32x812xf32>
    %cst_9 = arith.constant 0.000000e+00 : f32
    %37 = vector.broadcast %cst_9 : f32 to vector<32x812xf32>
    %38 = arith.maximumf %36, %37 : vector<32x812xf32>
    %39 = arith.truncf %38 : vector<32x812xf32> to vector<32x812xbf16>
    %c0_10 = arith.constant 0 : index
    %c0_11 = arith.constant 0 : index
    %c0_12 = arith.constant 0 : index
    %40 = vector.load %arg4[%c0_10, %c0_11, %c0_12] : memref<1x32x812xbf16, #tpu.memory_space<vmem>>, vector<1x32x812xbf16>
    %41 = vector.shape_cast %40 : vector<1x32x812xbf16> to vector<32x812xbf16>
    %42 = vector.shape_cast %39 : vector<32x812xbf16> to vector<1x32x812xbf16>
    tpu.vector_store %arg4[%c0_10, %c0_11, %c0_12], %42 {strides = array<i32>} : memref<1x32x812xbf16, #tpu.memory_space<vmem>>, vector<1x32x812xbf16>,
    return
  }
  func.func @transform_0(%arg0: i32) -> (i32, i32, i32) {
    %c0_i32 = arith.constant 0 : i32
    %c0_i32_0 = arith.constant 0 : i32
    %c0_i32_1 = arith.constant 0 : i32
    return %arg0, %c0_i32, %c0_i32_0 : i32, i32, i32
  }
  func.func @transform_1(%arg0: i32) -> (i32, i32) {
    %c0_i32 = arith.constant 0 : i32
    %c0_i32_0 = arith.constant 0 : i32
    %c0_i32_1 = arith.constant 0 : i32
    return %c0_i32, %c0_i32_0 : i32, i32
  }
  func.func @transform_2(%arg0: i32) -> (i32, i32) {
    %c0_i32 = arith.constant 0 : i32
    %c0_i32_0 = arith.constant 0 : i32
    %c0_i32_1 = arith.constant 0 : i32
    return %c0_i32, %c0_i32_0 : i32, i32
  }
  func.func @transform_3(%arg0: i32) -> (i32, i32, i32) {
    %c0_i32 = arith.constant 0 : i32
    %c0_i32_0 = arith.constant 0 : i32
    %c0_i32_1 = arith.constant 0 : i32
    return %arg0, %c0_i32, %c0_i32_0 : i32, i32, i32
  }
}

module attributes {stable_mosaic.version = 11 : i64} {
  func.func @_conv_pool_fc_kernel(%arg0: i32, %arg1: memref<1x128x210xbf16, #tpu.memory_space<vmem>>, %arg2: memref<64x288xbf16, #tpu.memory_space<vmem>>, %arg3: memref<64x1xf32, #tpu.memory_space<vmem>>, %arg4: memref<5x64x182xbf16, #tpu.memory_space<vmem>>, %arg5: memref<5x1xf32, #tpu.memory_space<vmem>>, %arg6: memref<1x5x1xf32, #tpu.memory_space<vmem>>) attributes {dimension_semantics = [#tpu.dimension_semantics<parallel>], iteration_bounds = array<i64: 2>, scalar_prefetch = 0 : i64, scratch_operands = 0 : i64, tpu.core_type = #tpu.core_type<tc>, window_params = [{transform_indices = @transform_0, window_bounds = array<i64: 1, 128, 210>}, {pipeline_mode = #tpu.pipeline_mode<synchronous>, transform_indices = @transform_1, window_bounds = array<i64: 64, 288>}, {pipeline_mode = #tpu.pipeline_mode<synchronous>, transform_indices = @transform_2, window_bounds = array<i64: 64, 1>}, {pipeline_mode = #tpu.pipeline_mode<synchronous>, transform_indices = @transform_3, window_bounds = array<i64: 5, 64, 182>}, {pipeline_mode = #tpu.pipeline_mode<synchronous>, transform_indices = @transform_4, window_bounds = array<i64: 5, 1>}, {transform_indices = @transform_5, window_bounds = array<i64: 1, 5, 1>}]} {
    %c0 = arith.constant 0 : index
    %c0_0 = arith.constant 0 : index
    %c0_1 = arith.constant 0 : index
    %0 = vector.load %arg1[%c0, %c0_0, %c0_1] : memref<1x128x210xbf16, #tpu.memory_space<vmem>>, vector<1x128x210xbf16>
    %1 = vector.shape_cast %0 : vector<1x128x210xbf16> to vector<128x210xbf16>
    %c0_2 = arith.constant 0 : index
    %c0_3 = arith.constant 0 : index
    %2 = vector.load %arg2[%c0_2, %c0_3] : memref<64x288xbf16, #tpu.memory_space<vmem>>, vector<64x288xbf16>
    %c0_4 = arith.constant 0 : index
    %c0_5 = arith.constant 0 : index
    %3 = vector.load %arg3[%c0_4, %c0_5] : memref<64x1xf32, #tpu.memory_space<vmem>>, vector<64x1xf32>
    %4 = vector.extract_strided_slice %1 {offsets = [0, 0], sizes = [32, 210], strides = [1, 1]} : vector<128x210xbf16> to vector<32x210xbf16>
    %5 = vector.extract_strided_slice %4 {offsets = [0, 0], sizes = [32, 182], strides = [1, 1]} : vector<32x210xbf16> to vector<32x182xbf16>
    %6 = vector.extract_strided_slice %4 {offsets = [0, 1], sizes = [32, 182], strides = [1, 1]} : vector<32x210xbf16> to vector<32x182xbf16>
    %7 = vector.extract_strided_slice %4 {offsets = [0, 14], sizes = [32, 182], strides = [1, 1]} : vector<32x210xbf16> to vector<32x182xbf16>
    %8 = vector.extract_strided_slice %4 {offsets = [0, 15], sizes = [32, 182], strides = [1, 1]} : vector<32x210xbf16> to vector<32x182xbf16>
    %9 = vector.extract_strided_slice %1 {offsets = [32, 0], sizes = [32, 210], strides = [1, 1]} : vector<128x210xbf16> to vector<32x210xbf16>
    %10 = vector.extract_strided_slice %9 {offsets = [0, 0], sizes = [32, 182], strides = [1, 1]} : vector<32x210xbf16> to vector<32x182xbf16>
    %11 = vector.extract_strided_slice %9 {offsets = [0, 1], sizes = [32, 182], strides = [1, 1]} : vector<32x210xbf16> to vector<32x182xbf16>
    %12 = vector.extract_strided_slice %9 {offsets = [0, 14], sizes = [32, 182], strides = [1, 1]} : vector<32x210xbf16> to vector<32x182xbf16>
    %13 = vector.extract_strided_slice %9 {offsets = [0, 15], sizes = [32, 182], strides = [1, 1]} : vector<32x210xbf16> to vector<32x182xbf16>
    %14 = vector.extract_strided_slice %1 {offsets = [64, 0], sizes = [32, 210], strides = [1, 1]} : vector<128x210xbf16> to vector<32x210xbf16>
    %15 = vector.extract_strided_slice %14 {offsets = [0, 0], sizes = [32, 182], strides = [1, 1]} : vector<32x210xbf16> to vector<32x182xbf16>
    %16 = vector.extract_strided_slice %14 {offsets = [0, 1], sizes = [32, 182], strides = [1, 1]} : vector<32x210xbf16> to vector<32x182xbf16>
    %17 = vector.extract_strided_slice %14 {offsets = [0, 14], sizes = [32, 182], strides = [1, 1]} : vector<32x210xbf16> to vector<32x182xbf16>
    %18 = vector.extract_strided_slice %14 {offsets = [0, 15], sizes = [32, 182], strides = [1, 1]} : vector<32x210xbf16> to vector<32x182xbf16>
    %19 = vector.extract_strided_slice %1 {offsets = [96, 0], sizes = [32, 210], strides = [1, 1]} : vector<128x210xbf16> to vector<32x210xbf16>
    %20 = vector.extract_strided_slice %19 {offsets = [0, 0], sizes = [32, 182], strides = [1, 1]} : vector<32x210xbf16> to vector<32x182xbf16>
    %21 = vector.extract_strided_slice %19 {offsets = [0, 1], sizes = [32, 182], strides = [1, 1]} : vector<32x210xbf16> to vector<32x182xbf16>
    %22 = vector.extract_strided_slice %19 {offsets = [0, 14], sizes = [32, 182], strides = [1, 1]} : vector<32x210xbf16> to vector<32x182xbf16>
    %23 = vector.extract_strided_slice %19 {offsets = [0, 15], sizes = [32, 182], strides = [1, 1]} : vector<32x210xbf16> to vector<32x182xbf16>
    %24 = tpu.concatenate %5, %10, %6, %15, %20, %16, %7, %12, %8 in 0 : vector<32x182xbf16>, vector<32x182xbf16>, vector<32x182xbf16>, vector<32x182xbf16>, vector<32x182xbf16>, vector<32x182xbf16>, vector<32x182xbf16>, vector<32x182xbf16>, vector<32x182xbf16> -> vector<288x182xbf16>
    %cst = arith.constant dense<0.000000e+00> : vector<64x182xf32>
    %25 = tpu.matmul %2, %24, %cst {dimension_numbers = #tpu.dot_dimension_numbers<[1], [0], [0], [1], [0, 0, 1, 1], [], []>} : vector<64x288xbf16>, vector<288x182xbf16>, vector<64x182xf32> -> vector<64x182xf32>
    %26 = tpu.concatenate %10, %6, %11, %20, %16, %21, %12, %8, %13 in 0 : vector<32x182xbf16>, vector<32x182xbf16>, vector<32x182xbf16>, vector<32x182xbf16>, vector<32x182xbf16>, vector<32x182xbf16>, vector<32x182xbf16>, vector<32x182xbf16>, vector<32x182xbf16> -> vector<288x182xbf16>
    %cst_6 = arith.constant dense<0.000000e+00> : vector<64x182xf32>
    %27 = tpu.matmul %2, %26, %cst_6 {dimension_numbers = #tpu.dot_dimension_numbers<[1], [0], [0], [1], [0, 0, 1, 1], [], []>} : vector<64x288xbf16>, vector<288x182xbf16>, vector<64x182xf32> -> vector<64x182xf32>
    %28 = arith.maximumf %25, %27 : vector<64x182xf32>
    %29 = tpu.concatenate %15, %20, %16, %7, %12, %8, %17, %22, %18 in 0 : vector<32x182xbf16>, vector<32x182xbf16>, vector<32x182xbf16>, vector<32x182xbf16>, vector<32x182xbf16>, vector<32x182xbf16>, vector<32x182xbf16>, vector<32x182xbf16>, vector<32x182xbf16> -> vector<288x182xbf16>
    %cst_7 = arith.constant dense<0.000000e+00> : vector<64x182xf32>
    %30 = tpu.matmul %2, %29, %cst_7 {dimension_numbers = #tpu.dot_dimension_numbers<[1], [0], [0], [1], [0, 0, 1, 1], [], []>} : vector<64x288xbf16>, vector<288x182xbf16>, vector<64x182xf32> -> vector<64x182xf32>
    %31 = arith.maximumf %28, %30 : vector<64x182xf32>
    %32 = tpu.concatenate %20, %16, %21, %12, %8, %13, %22, %18, %23 in 0 : vector<32x182xbf16>, vector<32x182xbf16>, vector<32x182xbf16>, vector<32x182xbf16>, vector<32x182xbf16>, vector<32x182xbf16>, vector<32x182xbf16>, vector<32x182xbf16>, vector<32x182xbf16> -> vector<288x182xbf16>
    %cst_8 = arith.constant dense<0.000000e+00> : vector<64x182xf32>
    %33 = tpu.matmul %2, %32, %cst_8 {dimension_numbers = #tpu.dot_dimension_numbers<[1], [0], [0], [1], [0, 0, 1, 1], [], []>} : vector<64x288xbf16>, vector<288x182xbf16>, vector<64x182xf32> -> vector<64x182xf32>
    %34 = arith.maximumf %31, %33 : vector<64x182xf32>
    %35 = vector.broadcast %3 : vector<64x1xf32> to vector<64x182xf32>
    %36 = arith.addf %34, %35 : vector<64x182xf32>
    %cst_9 = arith.constant 0.000000e+00 : f32
    %37 = vector.broadcast %cst_9 : f32 to vector<64x182xf32>
    %38 = arith.maximumf %36, %37 : vector<64x182xf32>
    %c0_10 = arith.constant 0 : index
    %c0_11 = arith.constant 0 : index
    %c0_12 = arith.constant 0 : index
    %39 = vector.load %arg4[%c0_10, %c0_11, %c0_12] : memref<5x64x182xbf16, #tpu.memory_space<vmem>>, vector<5x64x182xbf16>
    %40 = arith.extf %39 : vector<5x64x182xbf16> to vector<5x64x182xf32>
    %41 = vector.shape_cast %38 : vector<64x182xf32> to vector<1x64x182xf32>
    %42 = vector.broadcast %41 : vector<1x64x182xf32> to vector<5x64x182xf32>
    %43 = arith.mulf %40, %42 : vector<5x64x182xf32>
    %cst_13 = arith.constant dense<0.000000e+00> : vector<5x64xf32>
    %44 = vector.multi_reduction <add>, %43, %cst_13 [2] : vector<5x64x182xf32> to vector<5x64xf32>
    %cst_14 = arith.constant dense<0.000000e+00> : vector<5xf32>
    %45 = vector.multi_reduction <add>, %44, %cst_14 [1] : vector<5x64xf32> to vector<5xf32>
    %46 = vector.shape_cast %45 : vector<5xf32> to vector<5x1xf32>
    %c0_15 = arith.constant 0 : index
    %c0_16 = arith.constant 0 : index
    %47 = vector.load %arg5[%c0_15, %c0_16] : memref<5x1xf32, #tpu.memory_space<vmem>>, vector<5x1xf32>
    %48 = arith.addf %46, %47 : vector<5x1xf32>
    %c0_17 = arith.constant 0 : index
    %c0_18 = arith.constant 0 : index
    %c0_19 = arith.constant 0 : index
    %49 = vector.load %arg6[%c0_17, %c0_18, %c0_19] : memref<1x5x1xf32, #tpu.memory_space<vmem>>, vector<1x5x1xf32>
    %50 = vector.shape_cast %49 : vector<1x5x1xf32> to vector<5x1xf32>
    %51 = vector.shape_cast %48 : vector<5x1xf32> to vector<1x5x1xf32>
    tpu.vector_store %arg6[%c0_17, %c0_18, %c0_19], %51 {strides = array<i32>} : memref<1x5x1xf32, #tpu.memory_space<vmem>>, vector<1x5x1xf32>,
    return
  }
  func.func @transform_0(%arg0: i32) -> (i32, i32, i32) {
    %c0_i32 = arith.constant 0 : i32
    %c0_i32_0 = arith.constant 0 : i32
    %c0_i32_1 = arith.constant 0 : i32
    return %arg0, %c0_i32, %c0_i32_0 : i32, i32, i32
  }
  func.func @transform_1(%arg0: i32) -> (i32, i32) {
    %c0_i32 = arith.constant 0 : i32
    %c0_i32_0 = arith.constant 0 : i32
    %c0_i32_1 = arith.constant 0 : i32
    return %c0_i32, %c0_i32_0 : i32, i32
  }
  func.func @transform_2(%arg0: i32) -> (i32, i32) {
    %c0_i32 = arith.constant 0 : i32
    %c0_i32_0 = arith.constant 0 : i32
    %c0_i32_1 = arith.constant 0 : i32
    return %c0_i32, %c0_i32_0 : i32, i32
  }
  func.func @transform_3(%arg0: i32) -> (i32, i32, i32) {
    %c0_i32 = arith.constant 0 : i32
    %c0_i32_0 = arith.constant 0 : i32
    %c0_i32_1 = arith.constant 0 : i32
    %c0_i32_2 = arith.constant 0 : i32
    return %c0_i32, %c0_i32_0, %c0_i32_1 : i32, i32, i32
  }
  func.func @transform_4(%arg0: i32) -> (i32, i32) {
    %c0_i32 = arith.constant 0 : i32
    %c0_i32_0 = arith.constant 0 : i32
    %c0_i32_1 = arith.constant 0 : i32
    return %c0_i32, %c0_i32_0 : i32, i32
  }
  func.func @transform_5(%arg0: i32) -> (i32, i32, i32) {
    %c0_i32 = arith.constant 0 : i32
    %c0_i32_0 = arith.constant 0 : i32
    %c0_i32_1 = arith.constant 0 : i32
    return %arg0, %c0_i32, %c0_i32_0 : i32, i32, i32
  }
}

</mosaic_0001>

<llo_original>
// kernel: cnn_forward.3
$region0: #{cnn_forward.3}
  #allocation0 [shape = 'u32[]', space=smem, size = 0x4, offset = 0x4, fixed_abs, tag = 'smem constant byte address 0x4 - core index']
  #allocation1 [shape = 'u32[144,128]{1,0:T(1,128)}', space=vmem, size = 0x12000, scoped, tag = 'internal scratch']
  %s0 = inlined_call_operand.vmem [shape: bf16[2,32,3660], index: 0, kind: input, shape index: {}]
  %s1 = inlined_call_operand.vmem [shape: bf16[16,72], index: 1, kind: input, shape index: {}]
  %s2 = inlined_call_operand.vmem [shape: f32[16,1], index: 2, kind: input, shape index: {}]
  %s3 = inlined_call_operand.vmem [shape: bf16[2,16,3540], index: 3, kind: output, shape index: {}]
  %s4 = sld [smem:[#allocation0]]
  $region45: #{cnn_forward.3} parent=0
    _
  %s6 = ssub.s32 1, %s4
  %s7 = scalar_select 0, %s6, %s4
  loop: start=0, step=1, limit=4
  $region2: #{cnn_forward.3} parent=0 // loop_pre_header
    _
  $region3: #{cnn_forward.3} parent=0 // loop_header
    %s9 = sphi 0, %s13
    %p10 = scmp.ge.s32.totalorder %s9, 4
    %s19 = sphi 0, %s21
    %s22 = sphi 0, %s19
    %s23 = sphi 0, %s22
    %s39 = sphi 0, %s23
    %s43 = sphi 0, %s43
    %s45 = sphi 0, %s43
    %s46 = sphi 0, %s45
    %s60 = sphi 0, %s46
    %s64 = sphi 0, %s64
    %s66 = sphi 0, %s64
    %s67 = sphi 0, %s66
    %s81 = sphi 0, %s67
    %s87 = sphi 0, %s89
    %s90 = sphi 0, %s87
    %s91 = sphi 0, %s90
    %s107 = sphi 0, %s91
  $region4: #{cnn_forward.3} parent=0 // loop_header_branch
    %12 = sbr.rel (%p10) target = $region8
  $region5: #{cnn_forward.3} parent=0 // loop_body
    %s14 = ssub.s32 %s9, 1
    %s15 = ssub.s32 %s9, 2
    %s16 = sadd.s32 %s9, 1
    %s17 = ssub.s32 %s9, %s16
    %p18 = scmp.eq.s32.totalorder %s17, 0
    %s20 = sadd.s32 %s19, 1
    %s21 = scalar_select %p18, %s19, %s20
    %p24 = pneg %p18
    %p25 = scmp.eq.s32.totalorder %s9, 1
    %p26 = por %p24, %p25
    %p27 = scmp.ne.s32.totalorder %s19, %s22
    %p28 = scmp.eq.s32.totalorder %s9, 0
    %p29 = por %p27, %p28
    %p30 = scmp.ne.s32.totalorder %s19, %s22
    %p31 = scmp.eq.s32.totalorder %s14, 1
    %p32 = por %p30, %p31
    %p33 = scmp.ne.s32.totalorder %s22, %s23
    %p34 = scmp.eq.s32.totalorder %s14, 0
    %p35 = por %p33, %p34
    %p36 = scmp.ne.s32.totalorder %s22, %s23
    %p37 = scmp.eq.s32.totalorder %s15, 1
    %p38 = por %p36, %p37
    %p40 = scmp.ne.s32.totalorder %s23, %s39
    %p41 = scmp.eq.s32.totalorder %s15, 0
    %p42 = por %p40, %p41
    %s44 = sadd.s32 %s43, 1
    %p47 = scmp.eq.s32.totalorder %s9, 1
    %p48 = scmp.ne.s32.totalorder %s43, %s45
    %p49 = scmp.eq.s32.totalorder %s9, 0
    %p50 = por %p48, %p49
    %p51 = scmp.ne.s32.totalorder %s43, %s45
    %p52 = scmp.eq.s32.totalorder %s14, 1
    %p53 = por %p51, %p52
    %p54 = scmp.ne.s32.totalorder %s45, %s46
    %p55 = scmp.eq.s32.totalorder %s14, 0
    %p56 = por %p54, %p55
    %p57 = scmp.ne.s32.totalorder %s45, %s46
    %p58 = scmp.eq.s32.totalorder %s15, 1
    %p59 = por %p57, %p58
    %p61 = scmp.ne.s32.totalorder %s46, %s60
    %p62 = scmp.eq.s32.totalorder %s15, 0
    %p63 = por %p61, %p62
    %s65 = sadd.s32 %s64, 1
    %p68 = scmp.eq.s32.totalorder %s9, 1
    %p69 = scmp.ne.s32.totalorder %s64, %s66
    %p70 = scmp.eq.s32.totalorder %s9, 0
    %p71 = por %p69, %p70
    %p72 = scmp.ne.s32.totalorder %s64, %s66
    %p73 = scmp.eq.s32.totalorder %s14, 1
    %p74 = por %p72, %p73
    %p75 = scmp.ne.s32.totalorder %s66, %s67
    %p76 = scmp.eq.s32.totalorder %s14, 0
    %p77 = por %p75, %p76
    %p78 = scmp.ne.s32.totalorder %s66, %s67
    %p79 = scmp.eq.s32.totalorder %s15, 1
    %p80 = por %p78, %p79
    %p82 = scmp.ne.s32.totalorder %s67, %s81
    %p83 = scmp.eq.s32.totalorder %s15, 0
    %p84 = por %p82, %p83
    %s85 = ssub.s32 %s9, %s16
    %p86 = scmp.eq.s32.totalorder %s85, 0
    %s88 = sadd.s32 %s87, 1
    %s89 = scalar_select %p86, %s87, %s88
    %p92 = pneg %p86
    %p93 = scmp.eq.s32.totalorder %s9, 1
    %p94 = por %p92, %p93
    %p95 = scmp.ne.s32.totalorder %s87, %s90
    %p96 = scmp.eq.s32.totalorder %s9, 0
    %p97 = por %p95, %p96
    %p98 = scmp.ne.s32.totalorder %s87, %s90
    %p99 = scmp.eq.s32.totalorder %s14, 1
    %p100 = por %p98, %p99
    %p101 = scmp.ne.s32.totalorder %s90, %s91
    %p102 = scmp.eq.s32.totalorder %s14, 0
    %p103 = por %p101, %p102
    %p104 = scmp.ne.s32.totalorder %s90, %s91
    %p105 = scmp.eq.s32.totalorder %s15, 1
    %p106 = por %p104, %p105
    %p108 = scmp.ne.s32.totalorder %s91, %s107
    %p109 = scmp.eq.s32.totalorder %s15, 0
    %p110 = por %p108, %p109
    %p111 = scmp.le.s32.totalorder 1, %s9
    %p112 = scmp.lt.s32.totalorder %s9, 3
    %p113 = pnand %p111, %p112
    %p114 = pneg %p113
    // Predicated region
    $region9: #{cnn_forward.3} parent=5 // pred_check
      _
    $region10: #{cnn_forward.3} parent=5 // pred_check_branch
      %116 = sbr.rel (%p113) target = $region12
    $region11: #{cnn_forward.3} parent=5 // pred_region
      %s117 = ssub.s32 %s9, 1
      // Predicated region
      $region13: #{cnn_forward.3} parent=11 // pred_check
        %p118 = pneg %p56
      $region14: #{cnn_forward.3} parent=11 // pred_check_branch
        %120 = sbr.rel (%p118) target = $region16
      $region15: #{cnn_forward.3} parent=11 // pred_region
        _
      $region16: #{cnn_forward.3} parent=11 // pred_fallthru
        _
      // Predicated region
      $region17: #{cnn_forward.3} parent=11 // pred_check
        %p121 = pneg %p77
      $region18: #{cnn_forward.3} parent=11 // pred_check_branch
        %123 = sbr.rel (%p121) target = $region20
      $region19: #{cnn_forward.3} parent=11 // pred_region
        _
      $region20: #{cnn_forward.3} parent=11 // pred_fallthru
        _
    $region12: #{cnn_forward.3} parent=5 // pred_fallthru
      _
    %p124 = scmp.lt.s32.totalorder %s9, 2
    // Predicated region
    $region21: #{cnn_forward.3} parent=5 // pred_check
      %p125 = pneg %p124
    $region22: #{cnn_forward.3} parent=5 // pred_check_branch
      %127 = sbr.rel (%p125) target = $region24
    $region23: #{cnn_forward.3} parent=5 // pred_region
      // Predicated region
      $region25: #{cnn_forward.3} parent=23 // pred_check
        %p128 = pneg %p29
      $region26: #{cnn_forward.3} parent=23 // pred_check_branch
        %130 = sbr.rel (%p128) target = $region28
      $region27: #{cnn_forward.3} parent=23 // pred_region
        %p131 = scmp.lt.s32.totalorder %s9, 1
        %s132 = scalar_select %p131, %s9, 1
        %s133 = smul.addr %s132, 116
        %s134 = smul.addr %s133, 4
        %s135 = scalar_lea.vmem %s0, %s134
      $region28: #{cnn_forward.3} parent=23 // pred_fallthru
        _
    $region24: #{cnn_forward.3} parent=5 // pred_fallthru
      _
    %p136 = scmp.le.s32.totalorder 1, %s9
    %p137 = scmp.lt.s32.totalorder %s9, 3
    %p138 = pnand %p136, %p137
    %p139 = pneg %p138
    // Predicated region
    $region29: #{cnn_forward.3} parent=5 // pred_check
      _
    $region30: #{cnn_forward.3} parent=5 // pred_check_branch
      %141 = sbr.rel (%p138) target = $region32
    $region31: #{cnn_forward.3} parent=5 // pred_region
      %s142 = ssub.s32 %s9, 1
      %p143 = scmp.lt.s32.totalorder %s14, 1
      %s144 = scalar_select %p143, %s14, 1
      %s145 = smul.addr %s144, 116
      %s146 = smul.addr %s145, 4
      %s147 = scalar_lea.vmem %s0, %s146
      %p148 = pneg %p35
      %p149 = pneg %p32
      %p150 = pneg %p56
      %p151 = pneg %p53
      %p152 = pneg %p77
      %p153 = pneg %p74
      %p154 = pneg %p103
      %p155 = pneg %p100
      %p156 = scmp.lt.s32.totalorder %s14, 1
      %s157 = scalar_select %p156, %s14, 1
      %s158 = smul.addr %s157, 56
      %s159 = smul.addr %s158, 4
      %s160 = scalar_lea.vmem %s3, %s159
      %p161 = scmp.lt.s32.totalorder %s14, 1
      %s162 = scalar_select %p161, %s14, 1
      %s163 = smul.addr %s162, 116
      %s164 = smul.addr %s163, 4
      %s165 = scalar_lea.vmem %s0, %s164
      %p166 = scmp.lt.s32.totalorder %s14, 1
      %s167 = scalar_select %p166, %s14, 1
      %s168 = smul.addr %s167, 56
      %s169 = smul.addr %s168, 4
      %s170 = scalar_lea.vmem %s3, %s169
      %v172 = vld [vmem:[%s165] sm:$0xff]
      %v173 = vld [vmem:[%s165 + $0x8] sm:$0xff]
      %v174 = vld [vmem:[%s165 + $0x10] sm:$0xff]
      %v175 = vld [vmem:[%s165 + $0x18] sm:$0xff]
      %v176 = vld [vmem:[%s165 + $0x20] sm:$0xff]
      %v177 = vld [vmem:[%s165 + $0x28] sm:$0xff]
      %v178 = vld [vmem:[%s165 + $0x30] sm:$0xff]
      %v179 = vld [vmem:[%s165 + $0x38] sm:$0xff]
      %v180 = vld [vmem:[%s165 + $0x40] sm:$0xff]
      %v181 = vld [vmem:[%s165 + $0x48] sm:$0xff]
      %v182 = vld [vmem:[%s165 + $0x50] sm:$0xff]
      %v183 = vld [vmem:[%s165 + $0x58] sm:$0xff]
      %v184 = vld [vmem:[%s165 + $0x60] sm:$0xff]
      %v185 = vld [vmem:[%s165 + $0x68] sm:$0xff]
      %v186 = vld [vmem:[%s165 + $0x70] sm:$0xf]
      %v187 = vld [vmem:[%s165 + $0x74] sm:$0xff]
      %v188 = vld [vmem:[%s165 + $0x7c] sm:$0xff]
      %v189 = vld [vmem:[%s165 + $0x84] sm:$0xff]
      %v190 = vld [vmem:[%s165 + $0x8c] sm:$0xff]
      %v191 = vld [vmem:[%s165 + $0x94] sm:$0xff]
      %v192 = vld [vmem:[%s165 + $0x9c] sm:$0xff]
      %v193 = vld [vmem:[%s165 + $0xa4] sm:$0xff]
      %v194 = vld [vmem:[%s165 + $0xac] sm:$0xff]
      %v195 = vld [vmem:[%s165 + $0xb4] sm:$0xff]
      %v196 = vld [vmem:[%s165 + $0xbc] sm:$0xff]
      %v197 = vld [vmem:[%s165 + $0xc4] sm:$0xff]
      %v198 = vld [vmem:[%s165 + $0xcc] sm:$0xff]
      %v199 = vld [vmem:[%s165 + $0xd4] sm:$0xff]
      %v200 = vld [vmem:[%s165 + $0xdc] sm:$0xff]
      %v201 = vld [vmem:[%s165 + $0xe4] sm:$0xf]
      %v202 = vld [vmem:[%s165 + $0xe8] sm:$0xff]
      %v203 = vld [vmem:[%s165 + $0xf0] sm:$0xff]
      %v204 = vld [vmem:[%s165 + $0xf8] sm:$0xff]
      %v205 = vld [vmem:[%s165 + $0x100] sm:$0xff]
      %v206 = vld [vmem:[%s165 + $0x108] sm:$0xff]
      %v207 = vld [vmem:[%s165 + $0x110] sm:$0xff]
      %v208 = vld [vmem:[%s165 + $0x118] sm:$0xff]
      %v209 = vld [vmem:[%s165 + $0x120] sm:$0xff]
      %v210 = vld [vmem:[%s165 + $0x128] sm:$0xff]
      %v211 = vld [vmem:[%s165 + $0x130] sm:$0xff]
      %v212 = vld [vmem:[%s165 + $0x138] sm:$0xff]
      %v213 = vld [vmem:[%s165 + $0x140] sm:$0xff]
      %v214 = vld [vmem:[%s165 + $0x148] sm:$0xff]
      %v215 = vld [vmem:[%s165 + $0x150] sm:$0xff]
      %v216 = vld [vmem:[%s165 + $0x158] sm:$0xf]
      %v217 = vld [vmem:[%s165 + $0x15c] sm:$0xff]
      %v218 = vld [vmem:[%s165 + $0x164] sm:$0xff]
      %v219 = vld [vmem:[%s165 + $0x16c] sm:$0xff]
      %v220 = vld [vmem:[%s165 + $0x174] sm:$0xff]
      %v221 = vld [vmem:[%s165 + $0x17c] sm:$0xff]
      %v222 = vld [vmem:[%s165 + $0x184] sm:$0xff]
      %v223 = vld [vmem:[%s165 + $0x18c] sm:$0xff]
      %v224 = vld [vmem:[%s165 + $0x194] sm:$0xff]
      %v225 = vld [vmem:[%s165 + $0x19c] sm:$0xff]
      %v226 = vld [vmem:[%s165 + $0x1a4] sm:$0xff]
      %v227 = vld [vmem:[%s165 + $0x1ac] sm:$0xff]
      %v228 = vld [vmem:[%s165 + $0x1b4] sm:$0xff]
      %v229 = vld [vmem:[%s165 + $0x1bc] sm:$0xff]
      %v230 = vld [vmem:[%s165 + $0x1c4] sm:$0xff]
      %v231 = vld [vmem:[%s165 + $0x1cc] sm:$0xf]
      %v232 = vld [vmem:[%s1] sm:$0xf]
      %v233 = vld [vmem:[%s1 + $0x4] sm:$0xf]
      %v234 = vld [vmem:[%s2] sm:$0xff]
      %v235 = vld [vmem:[%s2 + $0x8] sm:$0xff]
      %v250 = vunpack.c.l.b16 %v172
      %v251 = vunpack.c.h.b16 %v172
      %v252 = vunpack.c.l.b16 %v173
      %v253 = vunpack.c.h.b16 %v173
      %v254 = vunpack.c.l.b16 %v174
      %v255 = vunpack.c.h.b16 %v174
      %v256 = vunpack.c.l.b16 %v175
      %v257 = vunpack.c.h.b16 %v175
      %v258 = vunpack.c.l.b16 %v176
      %v259 = vunpack.c.h.b16 %v176
      %v260 = vunpack.c.l.b16 %v177
      %v261 = vunpack.c.h.b16 %v177
      %v262 = vunpack.c.l.b16 %v178
      %v263 = vunpack.c.h.b16 %v178
      %v264 = vunpack.c.l.b16 %v179
      %v265 = vunpack.c.h.b16 %v179
      %v266 = vunpack.c.l.b16 %v180
      %v267 = vunpack.c.h.b16 %v180
      %v268 = vunpack.c.l.b16 %v181
      %v269 = vunpack.c.h.b16 %v181
      %v270 = vunpack.c.l.b16 %v182
      %v271 = vunpack.c.h.b16 %v182
      %v272 = vunpack.c.l.b16 %v183
      %v273 = vunpack.c.h.b16 %v183
      %v274 = vunpack.c.l.b16 %v184
      %v275 = vunpack.c.h.b16 %v184
      %v276 = vunpack.c.l.b16 %v185
      %v277 = vunpack.c.h.b16 %v185
      %v278 = vpack.c.b16 %v250, %v250
      %v279 = vpack.c.b16 %v251, %v251
      %v280 = vpack.c.b16 %v252, %v252
      %v281 = vpack.c.b16 %v253, %v253
      %v282 = vpack.c.b16 %v254, %v254
      %v283 = vpack.c.b16 %v255, %v255
      %v284 = vpack.c.b16 %v256, %v256
      %v285 = vpack.c.b16 %v257, %v257
      %v286 = vpack.c.b16 %v258, %v258
      %v287 = vpack.c.b16 %v259, %v259
      %v288 = vpack.c.b16 %v260, %v260
      %v289 = vpack.c.b16 %v261, %v261
      %v290 = vpack.c.b16 %v262, %v262
      %v291 = vpack.c.b16 %v263, %v263
      %v292 = vpack.c.b16 %v264, %v264
      %v293 = vpack.c.b16 %v265, %v265
      %v294 = vpack.c.b16 %v266, %v266
      %v295 = vpack.c.b16 %v267, %v267
      %v296 = vpack.c.b16 %v268, %v268
      %v297 = vpack.c.b16 %v269, %v269
      %v298 = vpack.c.b16 %v270, %v270
      %v299 = vpack.c.b16 %v271, %v271
      %v300 = vpack.c.b16 %v272, %v272
      %v301 = vpack.c.b16 %v273, %v273
      %v302 = vpack.c.b16 %v274, %v274
      %v303 = vpack.c.b16 %v275, %v275
      %v304 = vpack.c.b16 %v276, %v276
      %v305 = vpack.c.b16 %v277, %v277
      %v320 = vunpack.c.l.b16 %v187
      %v321 = vunpack.c.h.b16 %v187
      %v322 = vunpack.c.l.b16 %v188
      %v323 = vunpack.c.h.b16 %v188
      %v324 = vunpack.c.l.b16 %v189
      %v325 = vunpack.c.h.b16 %v189
      %v326 = vunpack.c.l.b16 %v190
      %v327 = vunpack.c.h.b16 %v190
      %v328 = vunpack.c.l.b16 %v191
      %v329 = vunpack.c.h.b16 %v191
      %v330 = vunpack.c.l.b16 %v192
      %v331 = vunpack.c.h.b16 %v192
      %v332 = vunpack.c.l.b16 %v193
      %v333 = vunpack.c.h.b16 %v193
      %v334 = vunpack.c.l.b16 %v194
      %v335 = vunpack.c.h.b16 %v194
      %v336 = vunpack.c.l.b16 %v195
      %v337 = vunpack.c.h.b16 %v195
      %v338 = vunpack.c.l.b16 %v196
      %v339 = vunpack.c.h.b16 %v196
      %v340 = vunpack.c.l.b16 %v197
      %v341 = vunpack.c.h.b16 %v197
      %v342 = vunpack.c.l.b16 %v198
      %v343 = vunpack.c.h.b16 %v198
      %v344 = vunpack.c.l.b16 %v199
      %v345 = vunpack.c.h.b16 %v199
      %v346 = vunpack.c.l.b16 %v200
      %v347 = vunpack.c.h.b16 %v200
      %v348 = vpack.c.b16 %v320, %v320
      %v349 = vpack.c.b16 %v321, %v321
      %v350 = vpack.c.b16 %v322, %v322
      %v351 = vpack.c.b16 %v323, %v323
      %v352 = vpack.c.b16 %v324, %v324
      %v353 = vpack.c.b16 %v325, %v325
      %v354 = vpack.c.b16 %v326, %v326
      %v355 = vpack.c.b16 %v327, %v327
      %v356 = vpack.c.b16 %v328, %v328
      %v357 = vpack.c.b16 %v329, %v329
      %v358 = vpack.c.b16 %v330, %v330
      %v359 = vpack.c.b16 %v331, %v331
      %v360 = vpack.c.b16 %v332, %v332
      %v361 = vpack.c.b16 %v333, %v333
      %v362 = vpack.c.b16 %v334, %v334
      %v363 = vpack.c.b16 %v335, %v335
      %v364 = vpack.c.b16 %v336, %v336
      %v365 = vpack.c.b16 %v337, %v337
      %v366 = vpack.c.b16 %v338, %v338
      %v367 = vpack.c.b16 %v339, %v339
      %v368 = vpack.c.b16 %v340, %v340
      %v369 = vpack.c.b16 %v341, %v341
      %v370 = vpack.c.b16 %v342, %v342
      %v371 = vpack.c.b16 %v343, %v343
      %v372 = vpack.c.b16 %v344, %v344
      %v373 = vpack.c.b16 %v345, %v345
      %v374 = vpack.c.b16 %v346, %v346
      %v375 = vpack.c.b16 %v347, %v347
      %376 = vrot.lane.b32.xlu0 %v278, 127
      %v377 = vpop.permute.xlu0 %376
      %378 = vrot.lane.b32.xlu0 %v279, 127
      %v379 = vpop.permute.xlu0 %378
      %380 = vrot.lane.b32.xlu0 %v280, 127
      %v381 = vpop.permute.xlu0 %380
      %382 = vrot.lane.b32.xlu0 %v281, 127
      %v383 = vpop.permute.xlu0 %382
      %384 = vrot.lane.b32.xlu0 %v282, 127
      %v385 = vpop.permute.xlu0 %384
      %386 = vrot.lane.b32.xlu0 %v283, 127
      %v387 = vpop.permute.xlu0 %386
      %388 = vrot.lane.b32.xlu0 %v284, 127
      %v389 = vpop.permute.xlu0 %388
      %390 = vrot.lane.b32.xlu0 %v285, 127
      %v391 = vpop.permute.xlu0 %390
      %392 = vrot.lane.b32.xlu0 %v286, 127
      %v393 = vpop.permute.xlu0 %392
      %394 = vrot.lane.b32.xlu0 %v287, 127
      %v395 = vpop.permute.xlu0 %394
      %396 = vrot.lane.b32.xlu0 %v288, 127
      %v397 = vpop.permute.xlu0 %396
      %398 = vrot.lane.b32.xlu0 %v289, 127
      %v399 = vpop.permute.xlu0 %398
      %400 = vrot.lane.b32.xlu0 %v290, 127
      %v401 = vpop.permute.xlu0 %400
      %402 = vrot.lane.b32.xlu0 %v291, 127
      %v403 = vpop.permute.xlu0 %402
      %404 = vrot.lane.b32.xlu0 %v292, 127
      %v405 = vpop.permute.xlu0 %404
      %406 = vrot.lane.b32.xlu0 %v293, 127
      %v407 = vpop.permute.xlu0 %406
      %408 = vrot.lane.b32.xlu0 %v294, 127
      %v409 = vpop.permute.xlu0 %408
      %410 = vrot.lane.b32.xlu0 %v295, 127
      %v411 = vpop.permute.xlu0 %410
      %412 = vrot.lane.b32.xlu0 %v296, 127
      %v413 = vpop.permute.xlu0 %412
      %414 = vrot.lane.b32.xlu0 %v297, 127
      %v415 = vpop.permute.xlu0 %414
      %416 = vrot.lane.b32.xlu0 %v298, 127
      %v417 = vpop.permute.xlu0 %416
      %418 = vrot.lane.b32.xlu0 %v299, 127
      %v419 = vpop.permute.xlu0 %418
      %420 = vrot.lane.b32.xlu0 %v300, 127
      %v421 = vpop.permute.xlu0 %420
      %422 = vrot.lane.b32.xlu0 %v301, 127
      %v423 = vpop.permute.xlu0 %422
      %424 = vrot.lane.b32.xlu0 %v302, 127
      %v425 = vpop.permute.xlu0 %424
      %426 = vrot.lane.b32.xlu0 %v303, 127
      %v427 = vpop.permute.xlu0 %426
      %428 = vrot.lane.b32.xlu0 %v304, 127
      %v429 = vpop.permute.xlu0 %428
      %430 = vrot.lane.b32.xlu0 %v305, 127
      %v431 = vpop.permute.xlu0 %430
      %vm432 = vcmask 1039360
      %v433 = vsel %vm432, %v377, %v379
      %v434 = vsel %vm432, %v379, %v381
      %v435 = vsel %vm432, %v381, %v383
      %v436 = vsel %vm432, %v383, %v385
      %v437 = vsel %vm432, %v385, %v387
      %v438 = vsel %vm432, %v387, %v389
      %v439 = vsel %vm432, %v389, %v391
      %v440 = vsel %vm432, %v391, %v393
      %v441 = vsel %vm432, %v393, %v395
      %v442 = vsel %vm432, %v395, %v397
      %v443 = vsel %vm432, %v397, %v399
      %v444 = vsel %vm432, %v399, %v401
      %v445 = vsel %vm432, %v401, %v403
      %v446 = vsel %vm432, %v403, %v405
      %v447 = vsel %vm432, %v405, %v407
      %v448 = vsel %vm432, %v407, %v409
      %v449 = vsel %vm432, %v409, %v411
      %v450 = vsel %vm432, %v411, %v413
      %v451 = vsel %vm432, %v413, %v415
      %v452 = vsel %vm432, %v415, %v417
      %v453 = vsel %vm432, %v417, %v419
      %v454 = vsel %vm432, %v419, %v421
      %v455 = vsel %vm432, %v421, %v423
      %v456 = vsel %vm432, %v423, %v425
      %v457 = vsel %vm432, %v425, %v427
      %v458 = vsel %vm432, %v427, %v429
      %v459 = vsel %vm432, %v429, %v431
      %v474 = vunpack.c.l.b16 %v202
      %v475 = vunpack.c.h.b16 %v202
      %v476 = vunpack.c.l.b16 %v203
      %v477 = vunpack.c.h.b16 %v203
      %v478 = vunpack.c.l.b16 %v204
      %v479 = vunpack.c.h.b16 %v204
      %v480 = vunpack.c.l.b16 %v205
      %v481 = vunpack.c.h.b16 %v205
      %v482 = vunpack.c.l.b16 %v206
      %v483 = vunpack.c.h.b16 %v206
      %v484 = vunpack.c.l.b16 %v207
      %v485 = vunpack.c.h.b16 %v207
      %v486 = vunpack.c.l.b16 %v208
      %v487 = vunpack.c.h.b16 %v208
      %v488 = vunpack.c.l.b16 %v209
      %v489 = vunpack.c.h.b16 %v209
      %v490 = vunpack.c.l.b16 %v210
      %v491 = vunpack.c.h.b16 %v210
      %v492 = vunpack.c.l.b16 %v211
      %v493 = vunpack.c.h.b16 %v211
      %v494 = vunpack.c.l.b16 %v212
      %v495 = vunpack.c.h.b16 %v212
      %v496 = vunpack.c.l.b16 %v213
      %v497 = vunpack.c.h.b16 %v213
      %v498 = vunpack.c.l.b16 %v214
      %v499 = vunpack.c.h.b16 %v214
      %v500 = vunpack.c.l.b16 %v215
      %v501 = vunpack.c.h.b16 %v215
      %v502 = vpack.c.b16 %v474, %v474
      %v503 = vpack.c.b16 %v475, %v475
      %v504 = vpack.c.b16 %v476, %v476
      %v505 = vpack.c.b16 %v477, %v477
      %v506 = vpack.c.b16 %v478, %v478
      %v507 = vpack.c.b16 %v479, %v479
      %v508 = vpack.c.b16 %v480, %v480
      %v509 = vpack.c.b16 %v481, %v481
      %v510 = vpack.c.b16 %v482, %v482
      %v511 = vpack.c.b16 %v483, %v483
      %v512 = vpack.c.b16 %v484, %v484
      %v513 = vpack.c.b16 %v485, %v485
      %v514 = vpack.c.b16 %v486, %v486
      %v515 = vpack.c.b16 %v487, %v487
      %v516 = vpack.c.b16 %v488, %v488
      %v517 = vpack.c.b16 %v489, %v489
      %v518 = vpack.c.b16 %v490, %v490
      %v519 = vpack.c.b16 %v491, %v491
      %v520 = vpack.c.b16 %v492, %v492
      %v521 = vpack.c.b16 %v493, %v493
      %v522 = vpack.c.b16 %v494, %v494
      %v523 = vpack.c.b16 %v495, %v495
      %v524 = vpack.c.b16 %v496, %v496
      %v525 = vpack.c.b16 %v497, %v497
      %v526 = vpack.c.b16 %v498, %v498
      %v527 = vpack.c.b16 %v499, %v499
      %v528 = vpack.c.b16 %v500, %v500
      %v529 = vpack.c.b16 %v501, %v501
      %v544 = vunpack.c.l.b16 %v217
      %v545 = vunpack.c.h.b16 %v217
      %v546 = vunpack.c.l.b16 %v218
      %v547 = vunpack.c.h.b16 %v218
      %v548 = vunpack.c.l.b16 %v219
      %v549 = vunpack.c.h.b16 %v219
      %v550 = vunpack.c.l.b16 %v220
      %v551 = vunpack.c.h.b16 %v220
      %v552 = vunpack.c.l.b16 %v221
      %v553 = vunpack.c.h.b16 %v221
      %v554 = vunpack.c.l.b16 %v222
      %v555 = vunpack.c.h.b16 %v222
      %v556 = vunpack.c.l.b16 %v223
      %v557 = vunpack.c.h.b16 %v223
      %v558 = vunpack.c.l.b16 %v224
      %v559 = vunpack.c.h.b16 %v224
      %v560 = vunpack.c.l.b16 %v225
      %v561 = vunpack.c.h.b16 %v225
      %v562 = vunpack.c.l.b16 %v226
      %v563 = vunpack.c.h.b16 %v226
      %v564 = vunpack.c.l.b16 %v227
      %v565 = vunpack.c.h.b16 %v227
      %v566 = vunpack.c.l.b16 %v228
      %v567 = vunpack.c.h.b16 %v228
      %v568 = vunpack.c.l.b16 %v229
      %v569 = vunpack.c.h.b16 %v229
      %v570 = vunpack.c.l.b16 %v230
      %v571 = vunpack.c.h.b16 %v230
      %v572 = vpack.c.b16 %v544, %v544
      %v573 = vpack.c.b16 %v545, %v545
      %v574 = vpack.c.b16 %v546, %v546
      %v575 = vpack.c.b16 %v547, %v547
      %v576 = vpack.c.b16 %v548, %v548
      %v577 = vpack.c.b16 %v549, %v549
      %v578 = vpack.c.b16 %v550, %v550
      %v579 = vpack.c.b16 %v551, %v551
      %v580 = vpack.c.b16 %v552, %v552
      %v581 = vpack.c.b16 %v553, %v553
      %v582 = vpack.c.b16 %v554, %v554
      %v583 = vpack.c.b16 %v555, %v555
      %v584 = vpack.c.b16 %v556, %v556
      %v585 = vpack.c.b16 %v557, %v557
      %v586 = vpack.c.b16 %v558, %v558
      %v587 = vpack.c.b16 %v559, %v559
      %v588 = vpack.c.b16 %v560, %v560
      %v589 = vpack.c.b16 %v561, %v561
      %v590 = vpack.c.b16 %v562, %v562
      %v591 = vpack.c.b16 %v563, %v563
      %v592 = vpack.c.b16 %v564, %v564
      %v593 = vpack.c.b16 %v565, %v565
      %v594 = vpack.c.b16 %v566, %v566
      %v595 = vpack.c.b16 %v567, %v567
      %v596 = vpack.c.b16 %v568, %v568
      %v597 = vpack.c.b16 %v569, %v569
      %v598 = vpack.c.b16 %v570, %v570
      %v599 = vpack.c.b16 %v571, %v571
      %600 = vrot.lane.b32.xlu0 %v502, 127
      %v601 = vpop.permute.xlu0 %600
      %602 = vrot.lane.b32.xlu0 %v503, 127
      %v603 = vpop.permute.xlu0 %602
      %604 = vrot.lane.b32.xlu0 %v504, 127
      %v605 = vpop.permute.xlu0 %604
      %606 = vrot.lane.b32.xlu0 %v505, 127
      %v607 = vpop.permute.xlu0 %606
      %608 = vrot.lane.b32.xlu0 %v506, 127
      %v609 = vpop.permute.xlu0 %608
      %610 = vrot.lane.b32.xlu0 %v507, 127
      %v611 = vpop.permute.xlu0 %610
      %612 = vrot.lane.b32.xlu0 %v508, 127
      %v613 = vpop.permute.xlu0 %612
      %614 = vrot.lane.b32.xlu0 %v509, 127
      %v615 = vpop.permute.xlu0 %614
      %616 = vrot.lane.b32.xlu0 %v510, 127
      %v617 = vpop.permute.xlu0 %616
      %618 = vrot.lane.b32.xlu0 %v511, 127
      %v619 = vpop.permute.xlu0 %618
      %620 = vrot.lane.b32.xlu0 %v512, 127
      %v621 = vpop.permute.xlu0 %620
      %622 = vrot.lane.b32.xlu0 %v513, 127
      %v623 = vpop.permute.xlu0 %622
      %624 = vrot.lane.b32.xlu0 %v514, 127
      %v625 = vpop.permute.xlu0 %624
      %626 = vrot.lane.b32.xlu0 %v515, 127
      %v627 = vpop.permute.xlu0 %626
      %628 = vrot.lane.b32.xlu0 %v516, 127
      %v629 = vpop.permute.xlu0 %628
      %630 = vrot.lane.b32.xlu0 %v517, 127
      %v631 = vpop.permute.xlu0 %630
      %632 = vrot.lane.b32.xlu0 %v518, 127
      %v633 = vpop.permute.xlu0 %632
      %634 = vrot.lane.b32.xlu0 %v519, 127
      %v635 = vpop.permute.xlu0 %634
      %636 = vrot.lane.b32.xlu0 %v520, 127
      %v637 = vpop.permute.xlu0 %636
      %638 = vrot.lane.b32.xlu0 %v521, 127
      %v639 = vpop.permute.xlu0 %638
      %640 = vrot.lane.b32.xlu0 %v522, 127
      %v641 = vpop.permute.xlu0 %640
      %642 = vrot.lane.b32.xlu0 %v523, 127
      %v643 = vpop.permute.xlu0 %642
      %644 = vrot.lane.b32.xlu0 %v524, 127
      %v645 = vpop.permute.xlu0 %644
      %646 = vrot.lane.b32.xlu0 %v525, 127
      %v647 = vpop.permute.xlu0 %646
      %648 = vrot.lane.b32.xlu0 %v526, 127
      %v649 = vpop.permute.xlu0 %648
      %650 = vrot.lane.b32.xlu0 %v527, 127
      %v651 = vpop.permute.xlu0 %650
      %652 = vrot.lane.b32.xlu0 %v528, 127
      %v653 = vpop.permute.xlu0 %652
      %654 = vrot.lane.b32.xlu0 %v529, 127
      %v655 = vpop.permute.xlu0 %654
      %v656 = vsel %vm432, %v601, %v603
      %v657 = vsel %vm432, %v603, %v605
      %v658 = vsel %vm432, %v605, %v607
      %v659 = vsel %vm432, %v607, %v609
      %v660 = vsel %vm432, %v609, %v611
      %v661 = vsel %vm432, %v611, %v613
      %v662 = vsel %vm432, %v613, %v615
      %v663 = vsel %vm432, %v615, %v617
      %v664 = vsel %vm432, %v617, %v619
      %v665 = vsel %vm432, %v619, %v621
      %v666 = vsel %vm432, %v621, %v623
      %v667 = vsel %vm432, %v623, %v625
      %v668 = vsel %vm432, %v625, %v627
      %v669 = vsel %vm432, %v627, %v629
      %v670 = vsel %vm432, %v629, %v631
      %v671 = vsel %vm432, %v631, %v633
      %v672 = vsel %vm432, %v633, %v635
      %v673 = vsel %vm432, %v635, %v637
      %v674 = vsel %vm432, %v637, %v639
      %v675 = vsel %vm432, %v639, %v641
      %v676 = vsel %vm432, %v641, %v643
      %v677 = vsel %vm432, %v643, %v645
      %v678 = vsel %vm432, %v645, %v647
      %v679 = vsel %vm432, %v647, %v649
      %v680 = vsel %vm432, %v649, %v651
      %v681 = vsel %vm432, %v651, %v653
      %v682 = vsel %vm432, %v653, %v655
      %v684 = vunpack.c.l.b16 %v186
      %v685 = vpack.c.b16 %v684, %v684
      %686 = vrot.lane.b32.xlu0 %v278, 68
      %v687 = vpop.permute.xlu0 %686
      %688 = vrot.lane.b32.xlu0 %v279, 68
      %v689 = vpop.permute.xlu0 %688
      %690 = vrot.lane.b32.xlu0 %v280, 68
      %v691 = vpop.permute.xlu0 %690
      %692 = vrot.lane.b32.xlu0 %v281, 68
      %v693 = vpop.permute.xlu0 %692
      %694 = vrot.lane.b32.xlu0 %v282, 68
      %v695 = vpop.permute.xlu0 %694
      %696 = vrot.lane.b32.xlu0 %v283, 68
      %v697 = vpop.permute.xlu0 %696
      %698 = vrot.lane.b32.xlu0 %v284, 68
      %v699 = vpop.permute.xlu0 %698
      %700 = vrot.lane.b32.xlu0 %v285, 68
      %v701 = vpop.permute.xlu0 %700
      %702 = vrot.lane.b32.xlu0 %v286, 68
      %v703 = vpop.permute.xlu0 %702
      %704 = vrot.lane.b32.xlu0 %v287, 68
      %v705 = vpop.permute.xlu0 %704
      %706 = vrot.lane.b32.xlu0 %v288, 68
      %v707 = vpop.permute.xlu0 %706
      %708 = vrot.lane.b32.xlu0 %v289, 68
      %v709 = vpop.permute.xlu0 %708
      %710 = vrot.lane.b32.xlu0 %v290, 68
      %v711 = vpop.permute.xlu0 %710
      %712 = vrot.lane.b32.xlu0 %v291, 68
      %v713 = vpop.permute.xlu0 %712
      %714 = vrot.lane.b32.xlu0 %v292, 68
      %v715 = vpop.permute.xlu0 %714
      %716 = vrot.lane.b32.xlu0 %v293, 68
      %v717 = vpop.permute.xlu0 %716
      %718 = vrot.lane.b32.xlu0 %v294, 68
      %v719 = vpop.permute.xlu0 %718
      %720 = vrot.lane.b32.xlu0 %v295, 68
      %v721 = vpop.permute.xlu0 %720
      %722 = vrot.lane.b32.xlu0 %v296, 68
      %v723 = vpop.permute.xlu0 %722
      %724 = vrot.lane.b32.xlu0 %v297, 68
      %v725 = vpop.permute.xlu0 %724
      %726 = vrot.lane.b32.xlu0 %v298, 68
      %v727 = vpop.permute.xlu0 %726
      %728 = vrot.lane.b32.xlu0 %v299, 68
      %v729 = vpop.permute.xlu0 %728
      %730 = vrot.lane.b32.xlu0 %v300, 68
      %v731 = vpop.permute.xlu0 %730
      %732 = vrot.lane.b32.xlu0 %v301, 68
      %v733 = vpop.permute.xlu0 %732
      %734 = vrot.lane.b32.xlu0 %v302, 68
      %v735 = vpop.permute.xlu0 %734
      %736 = vrot.lane.b32.xlu0 %v303, 68
      %v737 = vpop.permute.xlu0 %736
      %738 = vrot.lane.b32.xlu0 %v304, 68
      %v739 = vpop.permute.xlu0 %738
      %740 = vrot.lane.b32.xlu0 %v305, 68
      %v741 = vpop.permute.xlu0 %740
      %742 = vrot.lane.b32.xlu0 %v685, 68
      %v743 = vpop.permute.xlu0 %742
      %vm744 = vcmask 556032
      %v745 = vsel %vm744, %v687, %v689
      %v746 = vsel %vm744, %v689, %v691
      %v747 = vsel %vm744, %v691, %v693
      %v748 = vsel %vm744, %v693, %v695
      %v749 = vsel %vm744, %v695, %v697
      %v750 = vsel %vm744, %v697, %v699
      %v751 = vsel %vm744, %v699, %v701
      %v752 = vsel %vm744, %v701, %v703
      %v753 = vsel %vm744, %v703, %v705
      %v754 = vsel %vm744, %v705, %v707
      %v755 = vsel %vm744, %v707, %v709
      %v756 = vsel %vm744, %v709, %v711
      %v757 = vsel %vm744, %v711, %v713
      %v758 = vsel %vm744, %v713, %v715
      %v759 = vsel %vm744, %v715, %v717
      %v760 = vsel %vm744, %v717, %v719
      %v761 = vsel %vm744, %v719, %v721
      %v762 = vsel %vm744, %v721, %v723
      %v763 = vsel %vm744, %v723, %v725
      %v764 = vsel %vm744, %v725, %v727
      %v765 = vsel %vm744, %v727, %v729
      %v766 = vsel %vm744, %v729, %v731
      %v767 = vsel %vm744, %v731, %v733
      %v768 = vsel %vm744, %v733, %v735
      %v769 = vsel %vm744, %v735, %v737
      %v770 = vsel %vm744, %v737, %v739
      %v771 = vsel %vm744, %v739, %v741
      %v772 = vsel %vm744, %v741, %v743
      %v774 = vunpack.c.l.b16 %v201
      %v775 = vpack.c.b16 %v774, %v774
      %776 = vrot.lane.b32.xlu0 %v348, 68
      %v777 = vpop.permute.xlu0 %776
      %778 = vrot.lane.b32.xlu0 %v349, 68
      %v779 = vpop.permute.xlu0 %778
      %780 = vrot.lane.b32.xlu0 %v350, 68
      %v781 = vpop.permute.xlu0 %780
      %782 = vrot.lane.b32.xlu0 %v351, 68
      %v783 = vpop.permute.xlu0 %782
      %784 = vrot.lane.b32.xlu0 %v352, 68
      %v785 = vpop.permute.xlu0 %784
      %786 = vrot.lane.b32.xlu0 %v353, 68
      %v787 = vpop.permute.xlu0 %786
      %788 = vrot.lane.b32.xlu0 %v354, 68
      %v789 = vpop.permute.xlu0 %788
      %790 = vrot.lane.b32.xlu0 %v355, 68
      %v791 = vpop.permute.xlu0 %790
      %792 = vrot.lane.b32.xlu0 %v356, 68
      %v793 = vpop.permute.xlu0 %792
      %794 = vrot.lane.b32.xlu0 %v357, 68
      %v795 = vpop.permute.xlu0 %794
      %796 = vrot.lane.b32.xlu0 %v358, 68
      %v797 = vpop.permute.xlu0 %796
      %798 = vrot.lane.b32.xlu0 %v359, 68
      %v799 = vpop.permute.xlu0 %798
      %800 = vrot.lane.b32.xlu0 %v360, 68
      %v801 = vpop.permute.xlu0 %800
      %802 = vrot.lane.b32.xlu0 %v361, 68
      %v803 = vpop.permute.xlu0 %802
      %804 = vrot.lane.b32.xlu0 %v362, 68
      %v805 = vpop.permute.xlu0 %804
      %806 = vrot.lane.b32.xlu0 %v363, 68
      %v807 = vpop.permute.xlu0 %806
      %808 = vrot.lane.b32.xlu0 %v364, 68
      %v809 = vpop.permute.xlu0 %808
      %810 = vrot.lane.b32.xlu0 %v365, 68
      %v811 = vpop.permute.xlu0 %810
      %812 = vrot.lane.b32.xlu0 %v366, 68
      %v813 = vpop.permute.xlu0 %812
      %814 = vrot.lane.b32.xlu0 %v367, 68
      %v815 = vpop.permute.xlu0 %814
      %816 = vrot.lane.b32.xlu0 %v368, 68
      %v817 = vpop.permute.xlu0 %816
      %818 = vrot.lane.b32.xlu0 %v369, 68
      %v819 = vpop.permute.xlu0 %818
      %820 = vrot.lane.b32.xlu0 %v370, 68
      %v821 = vpop.permute.xlu0 %820
      %822 = vrot.lane.b32.xlu0 %v371, 68
      %v823 = vpop.permute.xlu0 %822
      %824 = vrot.lane.b32.xlu0 %v372, 68
      %v825 = vpop.permute.xlu0 %824
      %826 = vrot.lane.b32.xlu0 %v373, 68
      %v827 = vpop.permute.xlu0 %826
      %828 = vrot.lane.b32.xlu0 %v374, 68
      %v829 = vpop.permute.xlu0 %828
      %830 = vrot.lane.b32.xlu0 %v375, 68
      %v831 = vpop.permute.xlu0 %830
      %832 = vrot.lane.b32.xlu0 %v775, 68
      %v833 = vpop.permute.xlu0 %832
      %v834 = vsel %vm744, %v777, %v779
      %v835 = vsel %vm744, %v779, %v781
      %v836 = vsel %vm744, %v781, %v783
      %v837 = vsel %vm744, %v783, %v785
      %v838 = vsel %vm744, %v785, %v787
      %v839 = vsel %vm744, %v787, %v789
      %v840 = vsel %vm744, %v789, %v791
      %v841 = vsel %vm744, %v791, %v793
      %v842 = vsel %vm744, %v793, %v795
      %v843 = vsel %vm744, %v795, %v797
      %v844 = vsel %vm744, %v797, %v799
      %v845 = vsel %vm744, %v799, %v801
      %v846 = vsel %vm744, %v801, %v803
      %v847 = vsel %vm744, %v803, %v805
      %v848 = vsel %vm744, %v805, %v807
      %v849 = vsel %vm744, %v807, %v809
      %v850 = vsel %vm744, %v809, %v811
      %v851 = vsel %vm744, %v811, %v813
      %v852 = vsel %vm744, %v813, %v815
      %v853 = vsel %vm744, %v815, %v817
      %v854 = vsel %vm744, %v817, %v819
      %v855 = vsel %vm744, %v819, %v821
      %v856 = vsel %vm744, %v821, %v823
      %v857 = vsel %vm744, %v823, %v825
      %v858 = vsel %vm744, %v825, %v827
      %v859 = vsel %vm744, %v827, %v829
      %v860 = vsel %vm744, %v829, %v831
      %v861 = vsel %vm744, %v831, %v833
      %862 = vrot.lane.b32.xlu0 %v278, 67
      %v863 = vpop.permute.xlu0 %862
      %864 = vrot.lane.b32.xlu0 %v279, 67
      %v865 = vpop.permute.xlu0 %864
      %866 = vrot.lane.b32.xlu0 %v280, 67
      %v867 = vpop.permute.xlu0 %866
      %868 = vrot.lane.b32.xlu0 %v281, 67
      %v869 = vpop.permute.xlu0 %868
      %870 = vrot.lane.b32.xlu0 %v282, 67
      %v871 = vpop.permute.xlu0 %870
      %872 = vrot.lane.b32.xlu0 %v283, 67
      %v873 = vpop.permute.xlu0 %872
      %874 = vrot.lane.b32.xlu0 %v284, 67
      %v875 = vpop.permute.xlu0 %874
      %876 = vrot.lane.b32.xlu0 %v285, 67
      %v877 = vpop.permute.xlu0 %876
      %878 = vrot.lane.b32.xlu0 %v286, 67
      %v879 = vpop.permute.xlu0 %878
      %880 = vrot.lane.b32.xlu0 %v287, 67
      %v881 = vpop.permute.xlu0 %880
      %882 = vrot.lane.b32.xlu0 %v288, 67
      %v883 = vpop.permute.xlu0 %882
      %884 = vrot.lane.b32.xlu0 %v289, 67
      %v885 = vpop.permute.xlu0 %884
      %886 = vrot.lane.b32.xlu0 %v290, 67
      %v887 = vpop.permute.xlu0 %886
      %888 = vrot.lane.b32.xlu0 %v291, 67
      %v889 = vpop.permute.xlu0 %888
      %890 = vrot.lane.b32.xlu0 %v292, 67
      %v891 = vpop.permute.xlu0 %890
      %892 = vrot.lane.b32.xlu0 %v293, 67
      %v893 = vpop.permute.xlu0 %892
      %894 = vrot.lane.b32.xlu0 %v294, 67
      %v895 = vpop.permute.xlu0 %894
      %896 = vrot.lane.b32.xlu0 %v295, 67
      %v897 = vpop.permute.xlu0 %896
      %898 = vrot.lane.b32.xlu0 %v296, 67
      %v899 = vpop.permute.xlu0 %898
      %900 = vrot.lane.b32.xlu0 %v297, 67
      %v901 = vpop.permute.xlu0 %900
      %902 = vrot.lane.b32.xlu0 %v298, 67
      %v903 = vpop.permute.xlu0 %902
      %904 = vrot.lane.b32.xlu0 %v299, 67
      %v905 = vpop.permute.xlu0 %904
      %906 = vrot.lane.b32.xlu0 %v300, 67
      %v907 = vpop.permute.xlu0 %906
      %908 = vrot.lane.b32.xlu0 %v301, 67
      %v909 = vpop.permute.xlu0 %908
      %910 = vrot.lane.b32.xlu0 %v302, 67
      %v911 = vpop.permute.xlu0 %910
      %912 = vrot.lane.b32.xlu0 %v303, 67
      %v913 = vpop.permute.xlu0 %912
      %914 = vrot.lane.b32.xlu0 %v304, 67
      %v915 = vpop.permute.xlu0 %914
      %916 = vrot.lane.b32.xlu0 %v305, 67
      %v917 = vpop.permute.xlu0 %916
      %918 = vrot.lane.b32.xlu0 %v685, 67
      %v919 = vpop.permute.xlu0 %918
      %vm920 = vcmask 547840
      %v921 = vsel %vm920, %v863, %v865
      %v922 = vsel %vm920, %v865, %v867
      %v923 = vsel %vm920, %v867, %v869
      %v924 = vsel %vm920, %v869, %v871
      %v925 = vsel %vm920, %v871, %v873
      %v926 = vsel %vm920, %v873, %v875
      %v927 = vsel %vm920, %v875, %v877
      %v928 = vsel %vm920, %v877, %v879
      %v929 = vsel %vm920, %v879, %v881
      %v930 = vsel %vm920, %v881, %v883
      %v931 = vsel %vm920, %v883, %v885
      %v932 = vsel %vm920, %v885, %v887
      %v933 = vsel %vm920, %v887, %v889
      %v934 = vsel %vm920, %v889, %v891
      %v935 = vsel %vm920, %v891, %v893
      %v936 = vsel %vm920, %v893, %v895
      %v937 = vsel %vm920, %v895, %v897
      %v938 = vsel %vm920, %v897, %v899
      %v939 = vsel %vm920, %v899, %v901
      %v940 = vsel %vm920, %v901, %v903
      %v941 = vsel %vm920, %v903, %v905
      %v942 = vsel %vm920, %v905, %v907
      %v943 = vsel %vm920, %v907, %v909
      %v944 = vsel %vm920, %v909, %v911
      %v945 = vsel %vm920, %v911, %v913
      %v946 = vsel %vm920, %v913, %v915
      %v947 = vsel %vm920, %v915, %v917
      %v948 = vsel %vm920, %v917, %v919
      %vm949 = vcmask 1043456
      %v952 = vsel %vm949, %v278, %v348
      %v956 = vsel %vm949, %v279, %v349
      %v960 = vsel %vm949, %v280, %v350
      %v964 = vsel %vm949, %v281, %v351
      %v968 = vsel %vm949, %v282, %v352
      %v972 = vsel %vm949, %v283, %v353
      %v976 = vsel %vm949, %v284, %v354
      %v980 = vsel %vm949, %v285, %v355
      %v984 = vsel %vm949, %v286, %v356
      %v988 = vsel %vm949, %v287, %v357
      %v992 = vsel %vm949, %v288, %v358
      %v996 = vsel %vm949, %v289, %v359
      %v1000 = vsel %vm949, %v290, %v360
      %v1004 = vsel %vm949, %v291, %v361
      %v1008 = vsel %vm949, %v292, %v362
      %v1012 = vsel %vm949, %v293, %v363
      %v1016 = vsel %vm949, %v294, %v364
      %v1020 = vsel %vm949, %v295, %v365
      %v1024 = vsel %vm949, %v296, %v366
      %v1028 = vsel %vm949, %v297, %v367
      %v1032 = vsel %vm949, %v298, %v368
      %v1036 = vsel %vm949, %v299, %v369
      %v1040 = vsel %vm949, %v300, %v370
      %v1044 = vsel %vm949, %v301, %v371
      %v1048 = vsel %vm949, %v302, %v372
      %v1052 = vsel %vm949, %v303, %v373
      %v1056 = vsel %vm949, %v304, %v374
      %v1060 = vsel %vm949, %v305, %v375
      %v1064 = vsel %vm949, %v433, %v502
      %v1068 = vsel %vm949, %v434, %v503
      %v1072 = vsel %vm949, %v435, %v504
      %v1076 = vsel %vm949, %v436, %v505
      %v1080 = vsel %vm949, %v437, %v506
      %v1084 = vsel %vm949, %v438, %v507
      %v1088 = vsel %vm949, %v439, %v508
      %v1092 = vsel %vm949, %v440, %v509
      %v1096 = vsel %vm949, %v441, %v510
      %v1100 = vsel %vm949, %v442, %v511
      %v1104 = vsel %vm949, %v443, %v512
      %v1108 = vsel %vm949, %v444, %v513
      %v1112 = vsel %vm949, %v445, %v514
      %v1116 = vsel %vm949, %v446, %v515
      %v1120 = vsel %vm949, %v447, %v516
      %v1124 = vsel %vm949, %v448, %v517
      %v1128 = vsel %vm949, %v449, %v518
      %v1132 = vsel %vm949, %v450, %v519
      %v1136 = vsel %vm949, %v451, %v520
      %v1140 = vsel %vm949, %v452, %v521
      %v1144 = vsel %vm949, %v453, %v522
      %v1148 = vsel %vm949, %v454, %v523
      %v1152 = vsel %vm949, %v455, %v524
      %v1156 = vsel %vm949, %v456, %v525
      %v1160 = vsel %vm949, %v457, %v526
      %v1164 = vsel %vm949, %v458, %v527
      %v1168 = vsel %vm949, %v459, %v528
      %v1172 = vsel %vm949, %v431, %v529
      %v1176 = vsel %vm949, %v572, %v656
      %v1180 = vsel %vm949, %v573, %v657
      %v1184 = vsel %vm949, %v574, %v658
      %v1188 = vsel %vm949, %v575, %v659
      %v1192 = vsel %vm949, %v576, %v660
      %v1196 = vsel %vm949, %v577, %v661
      %v1200 = vsel %vm949, %v578, %v662
      %v1204 = vsel %vm949, %v579, %v663
      %v1208 = vsel %vm949, %v580, %v664
      %v1212 = vsel %vm949, %v581, %v665
      %v1216 = vsel %vm949, %v582, %v666
      %v1220 = vsel %vm949, %v583, %v667
      %v1224 = vsel %vm949, %v584, %v668
      %v1228 = vsel %vm949, %v585, %v669
      %v1232 = vsel %vm949, %v586, %v670
      %v1236 = vsel %vm949, %v587, %v671
      %v1240 = vsel %vm949, %v588, %v672
      %v1244 = vsel %vm949, %v589, %v673
      %v1248 = vsel %vm949, %v590, %v674
      %v1252 = vsel %vm949, %v591, %v675
      %v1256 = vsel %vm949, %v592, %v676
      %v1260 = vsel %vm949, %v593, %v677
      %v1264 = vsel %vm949, %v594, %v678
      %v1268 = vsel %vm949, %v595, %v679
      %v1272 = vsel %vm949, %v596, %v680
      %v1276 = vsel %vm949, %v597, %v681
      %v1280 = vsel %vm949, %v598, %v682
      %v1284 = vsel %vm949, %v599, %v655
      %v1288 = vsel %vm949, %v745, %v834
      %v1292 = vsel %vm949, %v746, %v835
      %v1296 = vsel %vm949, %v747, %v836
      %v1300 = vsel %vm949, %v748, %v837
      %v1304 = vsel %vm949, %v749, %v838
      %v1308 = vsel %vm949, %v750, %v839
      %v1312 = vsel %vm949, %v751, %v840
      %v1316 = vsel %vm949, %v752, %v841
      %v1320 = vsel %vm949, %v753, %v842
      %v1324 = vsel %vm949, %v754, %v843
      %v1328 = vsel %vm949, %v755, %v844
      %v1332 = vsel %vm949, %v756, %v845
      %v1336 = vsel %vm949, %v757, %v846
      %v1340 = vsel %vm949, %v758, %v847
      %v1344 = vsel %vm949, %v759, %v848
      %v1348 = vsel %vm949, %v760, %v849
      %v1352 = vsel %vm949, %v761, %v850
      %v1356 = vsel %vm949, %v762, %v851
      %v1360 = vsel %vm949, %v763, %v852
      %v1364 = vsel %vm949, %v764, %v853
      %v1368 = vsel %vm949, %v765, %v854
      %v1372 = vsel %vm949, %v766, %v855
      %v1376 = vsel %vm949, %v767, %v856
      %v1380 = vsel %vm949, %v768, %v857
      %v1384 = vsel %vm949, %v769, %v858
      %v1388 = vsel %vm949, %v770, %v859
      %v1392 = vsel %vm949, %v771, %v860
      %v1396 = vsel %vm949, %v772, %v861
      %v1400 = vunpack.c.l.b16 %v232
      %v1401 = vunpack.c.l.b16 %v233
      %v1402 = vpack.c.b16 %v1401, %v1400
      %vm1403 = vcmask 588800
      %v1405 = vsel %vm1403, %v1402, 0
      %v1408 = vsel %vm949, %v921, 0
      %v1411 = vsel %vm949, %v922, 0
      %v1414 = vsel %vm949, %v923, 0
      %v1417 = vsel %vm949, %v924, 0
      %v1420 = vsel %vm949, %v925, 0
      %v1423 = vsel %vm949, %v926, 0
      %v1426 = vsel %vm949, %v927, 0
      %v1429 = vsel %vm949, %v928, 0
      %v1432 = vsel %vm949, %v929, 0
      %v1435 = vsel %vm949, %v930, 0
      %v1438 = vsel %vm949, %v931, 0
      %v1441 = vsel %vm949, %v932, 0
      %v1444 = vsel %vm949, %v933, 0
      %v1447 = vsel %vm949, %v934, 0
      %v1450 = vsel %vm949, %v935, 0
      %v1453 = vsel %vm949, %v936, 0
      %v1456 = vsel %vm949, %v937, 0
      %v1459 = vsel %vm949, %v938, 0
      %v1462 = vsel %vm949, %v939, 0
      %v1465 = vsel %vm949, %v940, 0
      %v1468 = vsel %vm949, %v941, 0
      %v1471 = vsel %vm949, %v942, 0
      %v1474 = vsel %vm949, %v943, 0
      %v1477 = vsel %vm949, %v944, 0
      %v1480 = vsel %vm949, %v945, 0
      %v1483 = vsel %vm949, %v946, 0
      %v1486 = vsel %vm949, %v947, 0
      %v1489 = vsel %vm949, %v948, 0
      %1491 = vmatprep.subr.bf16.mxu0 %v956
      %1492 = vmatpush1.bf16.msra.mxu0 %v952
      %1493 = vmatprep.subr.bf16.mxu0 %v1068
      %1494 = vmatpush1.bf16.msra.mxu0 %v1064
      %1495 = vmatprep.subr.bf16.mxu0 %v1180
      %1496 = vmatpush1.bf16.msra.mxu0 %v1176
      %1497 = vmatprep.subr.bf16.mxu0 %v1292
      %1498 = vmatpush1.bf16.msra.mxu0 %v1288
      %1499 = vmatprep.subr.bf16.mxu0 %v1411
      %1500 = vmatpush1.bf16.msra.mxu0 %v1408
      %1501 = vmatprep.subr.bf16.mxu0 0
      %1502 = vmatpush1.bf16.msra.mxu0 0
      %1503 = vmatprep.subr.bf16.mxu0 0
      %1504 = vmatpush1.bf16.msra.mxu0 0
      %1505 = vmatprep.subr.bf16.mxu0 0
      %1506 = vmatpush1.bf16.msra.mxu0 0
      %1507 = vmatprep.subr.bf16.mxu0 0
      %1508 = vmatpush1.bf16.msra.mxu0 0
      %1509 = vmatprep.subr.bf16.mxu0 0
      %1510 = vmatpush1.bf16.msra.mxu0 0
      %1511 = vmatprep.subr.bf16.mxu0 0
      %1512 = vmatpush1.bf16.msra.mxu0 0
      %1513 = vmatprep.subr.bf16.mxu0 0
      %1514 = vmatpush1.bf16.msra.mxu0 0
      %1515 = vmatprep.subr.bf16.mxu0 0
      %1516 = vmatpush1.bf16.msra.mxu0 0
      %1517 = vmatprep.subr.bf16.mxu0 0
      %1518 = vmatpush1.bf16.msra.mxu0 0
      %1519 = vmatprep.subr.bf16.mxu0 0
      %1520 = vmatpush1.bf16.msra.mxu0 0
      %1521 = vmatprep.subr.bf16.mxu0 0
      %1522 = vmatpush1.bf16.msra.mxu0 0
      %1523 = vmatprep.mubr.bf16.mxu0 0
      %1524 = vmatmul.mubr.bf16.gmra.mrb[0].mxu0 %v1405
      %v1525 = vpop.f32.mrb[0].mxu0
      %v1526 = vadd.f32 0.0, %v1525
      %v1527 = vpop.f32.mrb[0].mxu0
      %v1528 = vadd.f32 0.0, %v1527
      %v1529 = vpop.f32.mrb[0].mxu0
      %v1530 = vadd.f32 0.0, %v1529
      %v1531 = vpop.f32.mrb[0].mxu0
      %v1532 = vadd.f32 0.0, %v1531
      %1533 = vdwg.mxu0
      %1534 = vmatprep.subr.bf16.mxu0 %v964
      %1535 = vmatpush1.bf16.msra.mxu0 %v960
      %1536 = vmatprep.subr.bf16.mxu0 %v1076
      %1537 = vmatpush1.bf16.msra.mxu0 %v1072
      %1538 = vmatprep.subr.bf16.mxu0 %v1188
      %1539 = vmatpush1.bf16.msra.mxu0 %v1184
      %1540 = vmatprep.subr.bf16.mxu0 %v1300
      %1541 = vmatpush1.bf16.msra.mxu0 %v1296
      %1542 = vmatprep.subr.bf16.mxu0 %v1417
      %1543 = vmatpush1.bf16.msra.mxu0 %v1414
      %1544 = vmatprep.subr.bf16.mxu0 0
      %1545 = vmatpush1.bf16.msra.mxu0 0
      %1546 = vmatprep.subr.bf16.mxu0 0
      %1547 = vmatpush1.bf16.msra.mxu0 0
      %1548 = vmatprep.subr.bf16.mxu0 0
      %1549 = vmatpush1.bf16.msra.mxu0 0
      %1550 = vmatprep.subr.bf16.mxu0 0
      %1551 = vmatpush1.bf16.msra.mxu0 0
      %1552 = vmatprep.subr.bf16.mxu0 0
      %1553 = vmatpush1.bf16.msra.mxu0 0
      %1554 = vmatprep.subr.bf16.mxu0 0
      %1555 = vmatpush1.bf16.msra.mxu0 0
      %1556 = vmatprep.subr.bf16.mxu0 0
      %1557 = vmatpush1.bf16.msra.mxu0 0
      %1558 = vmatprep.subr.bf16.mxu0 0
      %1559 = vmatpush1.bf16.msra.mxu0 0
      %1560 = vmatprep.subr.bf16.mxu0 0
      %1561 = vmatpush1.bf16.msra.mxu0 0
      %1562 = vmatprep.subr.bf16.mxu0 0
      %1563 = vmatpush1.bf16.msra.mxu0 0
      %1564 = vmatprep.subr.bf16.mxu0 0
      %1565 = vmatpush1.bf16.msra.mxu0 0
      %1566 = vmatprep.mubr.bf16.mxu0 0
      %1567 = vmatmul.mubr.bf16.gmra.mrb[0].mxu0 %v1405
      %v1568 = vpop.f32.mrb[0].mxu0
      %v1569 = vadd.f32 0.0, %v1568
      %v1570 = vpop.f32.mrb[0].mxu0
      %v1571 = vadd.f32 0.0, %v1570
      %v1572 = vpop.f32.mrb[0].mxu0
      %v1573 = vadd.f32 0.0, %v1572
      %v1574 = vpop.f32.mrb[0].mxu0
      %v1575 = vadd.f32 0.0, %v1574
      %1576 = vdwg.mxu0
      %1577 = vmatprep.subr.bf16.mxu0 %v972
      %1578 = vmatpush1.bf16.msra.mxu0 %v968
      %1579 = vmatprep.subr.bf16.mxu0 %v1084
      %1580 = vmatpush1.bf16.msra.mxu0 %v1080
      %1581 = vmatprep.subr.bf16.mxu0 %v1196
      %1582 = vmatpush1.bf16.msra.mxu0 %v1192
      %1583 = vmatprep.subr.bf16.mxu0 %v1308
      %1584 = vmatpush1.bf16.msra.mxu0 %v1304
      %1585 = vmatprep.subr.bf16.mxu0 %v1423
      %1586 = vmatpush1.bf16.msra.mxu0 %v1420
      %1587 = vmatprep.subr.bf16.mxu0 0
      %1588 = vmatpush1.bf16.msra.mxu0 0
      %1589 = vmatprep.subr.bf16.mxu0 0
      %1590 = vmatpush1.bf16.msra.mxu0 0
      %1591 = vmatprep.subr.bf16.mxu0 0
      %1592 = vmatpush1.bf16.msra.mxu0 0
      %1593 = vmatprep.subr.bf16.mxu0 0
      %1594 = vmatpush1.bf16.msra.mxu0 0
      %1595 = vmatprep.subr.bf16.mxu0 0
      %1596 = vmatpush1.bf16.msra.mxu0 0
      %1597 = vmatprep.subr.bf16.mxu0 0
      %1598 = vmatpush1.bf16.msra.mxu0 0
      %1599 = vmatprep.subr.bf16.mxu0 0
      %1600 = vmatpush1.bf16.msra.mxu0 0
      %1601 = vmatprep.subr.bf16.mxu0 0
      %1602 = vmatpush1.bf16.msra.mxu0 0
      %1603 = vmatprep.subr.bf16.mxu0 0
      %1604 = vmatpush1.bf16.msra.mxu0 0
      %1605 = vmatprep.subr.bf16.mxu0 0
      %1606 = vmatpush1.bf16.msra.mxu0 0
      %1607 = vmatprep.subr.bf16.mxu0 0
      %1608 = vmatpush1.bf16.msra.mxu0 0
      %1609 = vmatprep.mubr.bf16.mxu0 0
      %1610 = vmatmul.mubr.bf16.gmra.mrb[0].mxu0 %v1405
      %v1611 = vpop.f32.mrb[0].mxu0
      %v1612 = vadd.f32 0.0, %v1611
      %v1613 = vpop.f32.mrb[0].mxu0
      %v1614 = vadd.f32 0.0, %v1613
      %v1615 = vpop.f32.mrb[0].mxu0
      %v1616 = vadd.f32 0.0, %v1615
      %v1617 = vpop.f32.mrb[0].mxu0
      %v1618 = vadd.f32 0.0, %v1617
      %1619 = vdwg.mxu0
      %1620 = vmatprep.subr.bf16.mxu0 %v980
      %1621 = vmatpush1.bf16.msra.mxu0 %v976
      %1622 = vmatprep.subr.bf16.mxu0 %v1092
      %1623 = vmatpush1.bf16.msra.mxu0 %v1088
      %1624 = vmatprep.subr.bf16.mxu0 %v1204
      %1625 = vmatpush1.bf16.msra.mxu0 %v1200
      %1626 = vmatprep.subr.bf16.mxu0 %v1316
      %1627 = vmatpush1.bf16.msra.mxu0 %v1312
      %1628 = vmatprep.subr.bf16.mxu0 %v1429
      %1629 = vmatpush1.bf16.msra.mxu0 %v1426
      %1630 = vmatprep.subr.bf16.mxu0 0
      %1631 = vmatpush1.bf16.msra.mxu0 0
      %1632 = vmatprep.subr.bf16.mxu0 0
      %1633 = vmatpush1.bf16.msra.mxu0 0
      %1634 = vmatprep.subr.bf16.mxu0 0
      %1635 = vmatpush1.bf16.msra.mxu0 0
      %1636 = vmatprep.subr.bf16.mxu0 0
      %1637 = vmatpush1.bf16.msra.mxu0 0
      %1638 = vmatprep.subr.bf16.mxu0 0
      %1639 = vmatpush1.bf16.msra.mxu0 0
      %1640 = vmatprep.subr.bf16.mxu0 0
      %1641 = vmatpush1.bf16.msra.mxu0 0
      %1642 = vmatprep.subr.bf16.mxu0 0
      %1643 = vmatpush1.bf16.msra.mxu0 0
      %1644 = vmatprep.subr.bf16.mxu0 0
      %1645 = vmatpush1.bf16.msra.mxu0 0
      %1646 = vmatprep.subr.bf16.mxu0 0
      %1647 = vmatpush1.bf16.msra.mxu0 0
      %1648 = vmatprep.subr.bf16.mxu0 0
      %1649 = vmatpush1.bf16.msra.mxu0 0
      %1650 = vmatprep.subr.bf16.mxu0 0
      %1651 = vmatpush1.bf16.msra.mxu0 0
      %1652 = vmatprep.mubr.bf16.mxu0 0
      %1653 = vmatmul.mubr.bf16.gmra.mrb[0].mxu0 %v1405
      %v1654 = vpop.f32.mrb[0].mxu0
      %v1655 = vadd.f32 0.0, %v1654
      %v1656 = vpop.f32.mrb[0].mxu0
      %v1657 = vadd.f32 0.0, %v1656
      %v1658 = vpop.f32.mrb[0].mxu0
      %v1659 = vadd.f32 0.0, %v1658
      %v1660 = vpop.f32.mrb[0].mxu0
      %v1661 = vadd.f32 0.0, %v1660
      %1662 = vdwg.mxu0
      %1663 = vmatprep.subr.bf16.mxu0 %v988
      %1664 = vmatpush1.bf16.msra.mxu0 %v984
      %1665 = vmatprep.subr.bf16.mxu0 %v1100
      %1666 = vmatpush1.bf16.msra.mxu0 %v1096
      %1667 = vmatprep.subr.bf16.mxu0 %v1212
      %1668 = vmatpush1.bf16.msra.mxu0 %v1208
      %1669 = vmatprep.subr.bf16.mxu0 %v1324
      %1670 = vmatpush1.bf16.msra.mxu0 %v1320
      %1671 = vmatprep.subr.bf16.mxu0 %v1435
      %1672 = vmatpush1.bf16.msra.mxu0 %v1432
      %1673 = vmatprep.subr.bf16.mxu0 0
      %1674 = vmatpush1.bf16.msra.mxu0 0
      %1675 = vmatprep.subr.bf16.mxu0 0
      %1676 = vmatpush1.bf16.msra.mxu0 0
      %1677 = vmatprep.subr.bf16.mxu0 0
      %1678 = vmatpush1.bf16.msra.mxu0 0
      %1679 = vmatprep.subr.bf16.mxu0 0
      %1680 = vmatpush1.bf16.msra.mxu0 0
      %1681 = vmatprep.subr.bf16.mxu0 0
      %1682 = vmatpush1.bf16.msra.mxu0 0
      %1683 = vmatprep.subr.bf16.mxu0 0
      %1684 = vmatpush1.bf16.msra.mxu0 0
      %1685 = vmatprep.subr.bf16.mxu0 0
      %1686 = vmatpush1.bf16.msra.mxu0 0
      %1687 = vmatprep.subr.bf16.mxu0 0
      %1688 = vmatpush1.bf16.msra.mxu0 0
      %1689 = vmatprep.subr.bf16.mxu0 0
      %1690 = vmatpush1.bf16.msra.mxu0 0
      %1691 = vmatprep.subr.bf16.mxu0 0
      %1692 = vmatpush1.bf16.msra.mxu0 0
      %1693 = vmatprep.subr.bf16.mxu0 0
      %1694 = vmatpush1.bf16.msra.mxu0 0
      %1695 = vmatprep.mubr.bf16.mxu0 0
      %1696 = vmatmul.mubr.bf16.gmra.mrb[0].mxu0 %v1405
      %v1697 = vpop.f32.mrb[0].mxu0
      %v1698 = vadd.f32 0.0, %v1697
      %v1699 = vpop.f32.mrb[0].mxu0
      %v1700 = vadd.f32 0.0, %v1699
      %v1701 = vpop.f32.mrb[0].mxu0
      %v1702 = vadd.f32 0.0, %v1701
      %v1703 = vpop.f32.mrb[0].mxu0
      %v1704 = vadd.f32 0.0, %v1703
      %1705 = vdwg.mxu0
      %1706 = vmatprep.subr.bf16.mxu0 %v996
      %1707 = vmatpush1.bf16.msra.mxu0 %v992
      %1708 = vmatprep.subr.bf16.mxu0 %v1108
      %1709 = vmatpush1.bf16.msra.mxu0 %v1104
      %1710 = vmatprep.subr.bf16.mxu0 %v1220
      %1711 = vmatpush1.bf16.msra.mxu0 %v1216
      %1712 = vmatprep.subr.bf16.mxu0 %v1332
      %1713 = vmatpush1.bf16.msra.mxu0 %v1328
      %1714 = vmatprep.subr.bf16.mxu0 %v1441
      %1715 = vmatpush1.bf16.msra.mxu0 %v1438
      %1716 = vmatprep.subr.bf16.mxu0 0
      %1717 = vmatpush1.bf16.msra.mxu0 0
      %1718 = vmatprep.subr.bf16.mxu0 0
      %1719 = vmatpush1.bf16.msra.mxu0 0
      %1720 = vmatprep.subr.bf16.mxu0 0
      %1721 = vmatpush1.bf16.msra.mxu0 0
      %1722 = vmatprep.subr.bf16.mxu0 0
      %1723 = vmatpush1.bf16.msra.mxu0 0
      %1724 = vmatprep.subr.bf16.mxu0 0
      %1725 = vmatpush1.bf16.msra.mxu0 0
      %1726 = vmatprep.subr.bf16.mxu0 0
      %1727 = vmatpush1.bf16.msra.mxu0 0
      %1728 = vmatprep.subr.bf16.mxu0 0
      %1729 = vmatpush1.bf16.msra.mxu0 0
      %1730 = vmatprep.subr.bf16.mxu0 0
      %1731 = vmatpush1.bf16.msra.mxu0 0
      %1732 = vmatprep.subr.bf16.mxu0 0
      %1733 = vmatpush1.bf16.msra.mxu0 0
      %1734 = vmatprep.subr.bf16.mxu0 0
      %1735 = vmatpush1.bf16.msra.mxu0 0
      %1736 = vmatprep.subr.bf16.mxu0 0
      %1737 = vmatpush1.bf16.msra.mxu0 0
      %1738 = vmatprep.mubr.bf16.mxu0 0
      %1739 = vmatmul.mubr.bf16.gmra.mrb[0].mxu0 %v1405
      %v1740 = vpop.f32.mrb[0].mxu0
      %v1741 = vadd.f32 0.0, %v1740
      %v1742 = vpop.f32.mrb[0].mxu0
      %v1743 = vadd.f32 0.0, %v1742
      %v1744 = vpop.f32.mrb[0].mxu0
      %v1745 = vadd.f32 0.0, %v1744
      %v1746 = vpop.f32.mrb[0].mxu0
      %v1747 = vadd.f32 0.0, %v1746
      %1748 = vdwg.mxu0
      %1749 = vmatprep.subr.bf16.mxu0 %v1004
      %1750 = vmatpush1.bf16.msra.mxu0 %v1000
      %1751 = vmatprep.subr.bf16.mxu0 %v1116
      %1752 = vmatpush1.bf16.msra.mxu0 %v1112
      %1753 = vmatprep.subr.bf16.mxu0 %v1228
      %1754 = vmatpush1.bf16.msra.mxu0 %v1224
      %1755 = vmatprep.subr.bf16.mxu0 %v1340
      %1756 = vmatpush1.bf16.msra.mxu0 %v1336
      %1757 = vmatprep.subr.bf16.mxu0 %v1447
      %1758 = vmatpush1.bf16.msra.mxu0 %v1444
      %1759 = vmatprep.subr.bf16.mxu0 0
      %1760 = vmatpush1.bf16.msra.mxu0 0
      %1761 = vmatprep.subr.bf16.mxu0 0
      %1762 = vmatpush1.bf16.msra.mxu0 0
      %1763 = vmatprep.subr.bf16.mxu0 0
      %1764 = vmatpush1.bf16.msra.mxu0 0
      %1765 = vmatprep.subr.bf16.mxu0 0
      %1766 = vmatpush1.bf16.msra.mxu0 0
      %1767 = vmatprep.subr.bf16.mxu0 0
      %1768 = vmatpush1.bf16.msra.mxu0 0
      %1769 = vmatprep.subr.bf16.mxu0 0
      %1770 = vmatpush1.bf16.msra.mxu0 0
      %1771 = vmatprep.subr.bf16.mxu0 0
      %1772 = vmatpush1.bf16.msra.mxu0 0
      %1773 = vmatprep.subr.bf16.mxu0 0
      %1774 = vmatpush1.bf16.msra.mxu0 0
      %1775 = vmatprep.subr.bf16.mxu0 0
      %1776 = vmatpush1.bf16.msra.mxu0 0
      %1777 = vmatprep.subr.bf16.mxu0 0
      %1778 = vmatpush1.bf16.msra.mxu0 0
      %1779 = vmatprep.subr.bf16.mxu0 0
      %1780 = vmatpush1.bf16.msra.mxu0 0
      %1781 = vmatprep.mubr.bf16.mxu0 0
      %1782 = vmatmul.mubr.bf16.gmra.mrb[0].mxu0 %v1405
      %v1783 = vpop.f32.mrb[0].mxu0
      %v1784 = vadd.f32 0.0, %v1783
      %v1785 = vpop.f32.mrb[0].mxu0
      %v1786 = vadd.f32 0.0, %v1785
      %v1787 = vpop.f32.mrb[0].mxu0
      %v1788 = vadd.f32 0.0, %v1787
      %v1789 = vpop.f32.mrb[0].mxu0
      %v1790 = vadd.f32 0.0, %v1789
      %1791 = vdwg.mxu0
      %1792 = vmatprep.subr.bf16.mxu0 %v1012
      %1793 = vmatpush1.bf16.msra.mxu0 %v1008
      %1794 = vmatprep.subr.bf16.mxu0 %v1124
      %1795 = vmatpush1.bf16.msra.mxu0 %v1120
      %1796 = vmatprep.subr.bf16.mxu0 %v1236
      %1797 = vmatpush1.bf16.msra.mxu0 %v1232
      %1798 = vmatprep.subr.bf16.mxu0 %v1348
      %1799 = vmatpush1.bf16.msra.mxu0 %v1344
      %1800 = vmatprep.subr.bf16.mxu0 %v1453
      %1801 = vmatpush1.bf16.msra.mxu0 %v1450
      %1802 = vmatprep.subr.bf16.mxu0 0
      %1803 = vmatpush1.bf16.msra.mxu0 0
      %1804 = vmatprep.subr.bf16.mxu0 0
      %1805 = vmatpush1.bf16.msra.mxu0 0
      %1806 = vmatprep.subr.bf16.mxu0 0
      %1807 = vmatpush1.bf16.msra.mxu0 0
      %1808 = vmatprep.subr.bf16.mxu0 0
      %1809 = vmatpush1.bf16.msra.mxu0 0
      %1810 = vmatprep.subr.bf16.mxu0 0
      %1811 = vmatpush1.bf16.msra.mxu0 0
      %1812 = vmatprep.subr.bf16.mxu0 0
      %1813 = vmatpush1.bf16.msra.mxu0 0
      %1814 = vmatprep.subr.bf16.mxu0 0
      %1815 = vmatpush1.bf16.msra.mxu0 0
      %1816 = vmatprep.subr.bf16.mxu0 0
      %1817 = vmatpush1.bf16.msra.mxu0 0
      %1818 = vmatprep.subr.bf16.mxu0 0
      %1819 = vmatpush1.bf16.msra.mxu0 0
      %1820 = vmatprep.subr.bf16.mxu0 0
      %1821 = vmatpush1.bf16.msra.mxu0 0
      %1822 = vmatprep.subr.bf16.mxu0 0
      %1823 = vmatpush1.bf16.msra.mxu0 0
      %1824 = vmatprep.mubr.bf16.mxu0 0
      %1825 = vmatmul.mubr.bf16.gmra.mrb[0].mxu0 %v1405
      %v1826 = vpop.f32.mrb[0].mxu0
      %v1827 = vadd.f32 0.0, %v1826
      %v1828 = vpop.f32.mrb[0].mxu0
      %v1829 = vadd.f32 0.0, %v1828
      %v1830 = vpop.f32.mrb[0].mxu0
      %v1831 = vadd.f32 0.0, %v1830
      %v1832 = vpop.f32.mrb[0].mxu0
      %v1833 = vadd.f32 0.0, %v1832
      %1834 = vdwg.mxu0
      %1835 = vmatprep.subr.bf16.mxu0 %v1020
      %1836 = vmatpush1.bf16.msra.mxu0 %v1016
      %1837 = vmatprep.subr.bf16.mxu0 %v1132
      %1838 = vmatpush1.bf16.msra.mxu0 %v1128
      %1839 = vmatprep.subr.bf16.mxu0 %v1244
      %1840 = vmatpush1.bf16.msra.mxu0 %v1240
      %1841 = vmatprep.subr.bf16.mxu0 %v1356
      %1842 = vmatpush1.bf16.msra.mxu0 %v1352
      %1843 = vmatprep.subr.bf16.mxu0 %v1459
      %1844 = vmatpush1.bf16.msra.mxu0 %v1456
      %1845 = vmatprep.subr.bf16.mxu0 0
      %1846 = vmatpush1.bf16.msra.mxu0 0
      %1847 = vmatprep.subr.bf16.mxu0 0
      %1848 = vmatpush1.bf16.msra.mxu0 0
      %1849 = vmatprep.subr.bf16.mxu0 0
      %1850 = vmatpush1.bf16.msra.mxu0 0
      %1851 = vmatprep.subr.bf16.mxu0 0
      %1852 = vmatpush1.bf16.msra.mxu0 0
      %1853 = vmatprep.subr.bf16.mxu0 0
      %1854 = vmatpush1.bf16.msra.mxu0 0
      %1855 = vmatprep.subr.bf16.mxu0 0
      %1856 = vmatpush1.bf16.msra.mxu0 0
      %1857 = vmatprep.subr.bf16.mxu0 0
      %1858 = vmatpush1.bf16.msra.mxu0 0
      %1859 = vmatprep.subr.bf16.mxu0 0
      %1860 = vmatpush1.bf16.msra.mxu0 0
      %1861 = vmatprep.subr.bf16.mxu0 0
      %1862 = vmatpush1.bf16.msra.mxu0 0
      %1863 = vmatprep.subr.bf16.mxu0 0
      %1864 = vmatpush1.bf16.msra.mxu0 0
      %1865 = vmatprep.subr.bf16.mxu0 0
      %1866 = vmatpush1.bf16.msra.mxu0 0
      %1867 = vmatprep.mubr.bf16.mxu0 0
      %1868 = vmatmul.mubr.bf16.gmra.mrb[0].mxu0 %v1405
      %v1869 = vpop.f32.mrb[0].mxu0
      %v1870 = vadd.f32 0.0, %v1869
      %v1871 = vpop.f32.mrb[0].mxu0
      %v1872 = vadd.f32 0.0, %v1871
      %v1873 = vpop.f32.mrb[0].mxu0
      %v1874 = vadd.f32 0.0, %v1873
      %v1875 = vpop.f32.mrb[0].mxu0
      %v1876 = vadd.f32 0.0, %v1875
      %1877 = vdwg.mxu0
      %1878 = vmatprep.subr.bf16.mxu0 %v1028
      %1879 = vmatpush1.bf16.msra.mxu0 %v1024
      %1880 = vmatprep.subr.bf16.mxu0 %v1140
      %1881 = vmatpush1.bf16.msra.mxu0 %v1136
      %1882 = vmatprep.subr.bf16.mxu0 %v1252
      %1883 = vmatpush1.bf16.msra.mxu0 %v1248
      %1884 = vmatprep.subr.bf16.mxu0 %v1364
      %1885 = vmatpush1.bf16.msra.mxu0 %v1360
      %1886 = vmatprep.subr.bf16.mxu0 %v1465
      %1887 = vmatpush1.bf16.msra.mxu0 %v1462
      %1888 = vmatprep.subr.bf16.mxu0 0
      %1889 = vmatpush1.bf16.msra.mxu0 0
      %1890 = vmatprep.subr.bf16.mxu0 0
      %1891 = vmatpush1.bf16.msra.mxu0 0
      %1892 = vmatprep.subr.bf16.mxu0 0
      %1893 = vmatpush1.bf16.msra.mxu0 0
      %1894 = vmatprep.subr.bf16.mxu0 0
      %1895 = vmatpush1.bf16.msra.mxu0 0
      %1896 = vmatprep.subr.bf16.mxu0 0
      %1897 = vmatpush1.bf16.msra.mxu0 0
      %1898 = vmatprep.subr.bf16.mxu0 0
      %1899 = vmatpush1.bf16.msra.mxu0 0
      %1900 = vmatprep.subr.bf16.mxu0 0
      %1901 = vmatpush1.bf16.msra.mxu0 0
      %1902 = vmatprep.subr.bf16.mxu0 0
      %1903 = vmatpush1.bf16.msra.mxu0 0
      %1904 = vmatprep.subr.bf16.mxu0 0
      %1905 = vmatpush1.bf16.msra.mxu0 0
      %1906 = vmatprep.subr.bf16.mxu0 0
      %1907 = vmatpush1.bf16.msra.mxu0 0
      %1908 = vmatprep.subr.bf16.mxu0 0
      %1909 = vmatpush1.bf16.msra.mxu0 0
      %1910 = vmatprep.mubr.bf16.mxu0 0
      %1911 = vmatmul.mubr.bf16.gmra.mrb[0].mxu0 %v1405
      %v1912 = vpop.f32.mrb[0].mxu0
      %v1913 = vadd.f32 0.0, %v1912
      %v1914 = vpop.f32.mrb[0].mxu0
      %v1915 = vadd.f32 0.0, %v1914
      %v1916 = vpop.f32.mrb[0].mxu0
      %v1917 = vadd.f32 0.0, %v1916
      %v1918 = vpop.f32.mrb[0].mxu0
      %v1919 = vadd.f32 0.0, %v1918
      %1920 = vdwg.mxu0
      %1921 = vmatprep.subr.bf16.mxu0 %v1036
      %1922 = vmatpush1.bf16.msra.mxu0 %v1032
      %1923 = vmatprep.subr.bf16.mxu0 %v1148
      %1924 = vmatpush1.bf16.msra.mxu0 %v1144
      %1925 = vmatprep.subr.bf16.mxu0 %v1260
      %1926 = vmatpush1.bf16.msra.mxu0 %v1256
      %1927 = vmatprep.subr.bf16.mxu0 %v1372
      %1928 = vmatpush1.bf16.msra.mxu0 %v1368
      %1929 = vmatprep.subr.bf16.mxu0 %v1471
      %1930 = vmatpush1.bf16.msra.mxu0 %v1468
      %1931 = vmatprep.subr.bf16.mxu0 0
      %1932 = vmatpush1.bf16.msra.mxu0 0
      %1933 = vmatprep.subr.bf16.mxu0 0
      %1934 = vmatpush1.bf16.msra.mxu0 0
      %1935 = vmatprep.subr.bf16.mxu0 0
      %1936 = vmatpush1.bf16.msra.mxu0 0
      %1937 = vmatprep.subr.bf16.mxu0 0
      %1938 = vmatpush1.bf16.msra.mxu0 0
      %1939 = vmatprep.subr.bf16.mxu0 0
      %1940 = vmatpush1.bf16.msra.mxu0 0
      %1941 = vmatprep.subr.bf16.mxu0 0
      %1942 = vmatpush1.bf16.msra.mxu0 0
      %1943 = vmatprep.subr.bf16.mxu0 0
      %1944 = vmatpush1.bf16.msra.mxu0 0
      %1945 = vmatprep.subr.bf16.mxu0 0
      %1946 = vmatpush1.bf16.msra.mxu0 0
      %1947 = vmatprep.subr.bf16.mxu0 0
      %1948 = vmatpush1.bf16.msra.mxu0 0
      %1949 = vmatprep.subr.bf16.mxu0 0
      %1950 = vmatpush1.bf16.msra.mxu0 0
      %1951 = vmatprep.subr.bf16.mxu0 0
      %1952 = vmatpush1.bf16.msra.mxu0 0
      %1953 = vmatprep.mubr.bf16.mxu0 0
      %1954 = vmatmul.mubr.bf16.gmra.mrb[0].mxu0 %v1405
      %v1955 = vpop.f32.mrb[0].mxu0
      %v1956 = vadd.f32 0.0, %v1955
      %v1957 = vpop.f32.mrb[0].mxu0
      %v1958 = vadd.f32 0.0, %v1957
      %v1959 = vpop.f32.mrb[0].mxu0
      %v1960 = vadd.f32 0.0, %v1959
      %v1961 = vpop.f32.mrb[0].mxu0
      %v1962 = vadd.f32 0.0, %v1961
      %1963 = vdwg.mxu0
      %1964 = vmatprep.subr.bf16.mxu0 %v1044
      %1965 = vmatpush1.bf16.msra.mxu0 %v1040
      %1966 = vmatprep.subr.bf16.mxu0 %v1156
      %1967 = vmatpush1.bf16.msra.mxu0 %v1152
      %1968 = vmatprep.subr.bf16.mxu0 %v1268
      %1969 = vmatpush1.bf16.msra.mxu0 %v1264
      %1970 = vmatprep.subr.bf16.mxu0 %v1380
      %1971 = vmatpush1.bf16.msra.mxu0 %v1376
      %1972 = vmatprep.subr.bf16.mxu0 %v1477
      %1973 = vmatpush1.bf16.msra.mxu0 %v1474
      %1974 = vmatprep.subr.bf16.mxu0 0
      %1975 = vmatpush1.bf16.msra.mxu0 0
      %1976 = vmatprep.subr.bf16.mxu0 0
      %1977 = vmatpush1.bf16.msra.mxu0 0
      %1978 = vmatprep.subr.bf16.mxu0 0
      %1979 = vmatpush1.bf16.msra.mxu0 0
      %1980 = vmatprep.subr.bf16.mxu0 0
      %1981 = vmatpush1.bf16.msra.mxu0 0
      %1982 = vmatprep.subr.bf16.mxu0 0
      %1983 = vmatpush1.bf16.msra.mxu0 0
      %1984 = vmatprep.subr.bf16.mxu0 0
      %1985 = vmatpush1.bf16.msra.mxu0 0
      %1986 = vmatprep.subr.bf16.mxu0 0
      %1987 = vmatpush1.bf16.msra.mxu0 0
      %1988 = vmatprep.subr.bf16.mxu0 0
      %1989 = vmatpush1.bf16.msra.mxu0 0
      %1990 = vmatprep.subr.bf16.mxu0 0
      %1991 = vmatpush1.bf16.msra.mxu0 0
      %1992 = vmatprep.subr.bf16.mxu0 0
      %1993 = vmatpush1.bf16.msra.mxu0 0
      %1994 = vmatprep.subr.bf16.mxu0 0
      %1995 = vmatpush1.bf16.msra.mxu0 0
      %1996 = vmatprep.mubr.bf16.mxu0 0
      %1997 = vmatmul.mubr.bf16.gmra.mrb[0].mxu0 %v1405
      %v1998 = vpop.f32.mrb[0].mxu0
      %v1999 = vadd.f32 0.0, %v1998
      %v2000 = vpop.f32.mrb[0].mxu0
      %v2001 = vadd.f32 0.0, %v2000
      %v2002 = vpop.f32.mrb[0].mxu0
      %v2003 = vadd.f32 0.0, %v2002
      %v2004 = vpop.f32.mrb[0].mxu0
      %v2005 = vadd.f32 0.0, %v2004
      %2006 = vdwg.mxu0
      %2007 = vmatprep.subr.bf16.mxu0 %v1052
      %2008 = vmatpush1.bf16.msra.mxu0 %v1048
      %2009 = vmatprep.subr.bf16.mxu0 %v1164
      %2010 = vmatpush1.bf16.msra.mxu0 %v1160
      %2011 = vmatprep.subr.bf16.mxu0 %v1276
      %2012 = vmatpush1.bf16.msra.mxu0 %v1272
      %2013 = vmatprep.subr.bf16.mxu0 %v1388
      %2014 = vmatpush1.bf16.msra.mxu0 %v1384
      %2015 = vmatprep.subr.bf16.mxu0 %v1483
      %2016 = vmatpush1.bf16.msra.mxu0 %v1480
      %2017 = vmatprep.subr.bf16.mxu0 0
      %2018 = vmatpush1.bf16.msra.mxu0 0
      %2019 = vmatprep.subr.bf16.mxu0 0
      %2020 = vmatpush1.bf16.msra.mxu0 0
      %2021 = vmatprep.subr.bf16.mxu0 0
      %2022 = vmatpush1.bf16.msra.mxu0 0
      %2023 = vmatprep.subr.bf16.mxu0 0
      %2024 = vmatpush1.bf16.msra.mxu0 0
      %2025 = vmatprep.subr.bf16.mxu0 0
      %2026 = vmatpush1.bf16.msra.mxu0 0
      %2027 = vmatprep.subr.bf16.mxu0 0
      %2028 = vmatpush1.bf16.msra.mxu0 0
      %2029 = vmatprep.subr.bf16.mxu0 0
      %2030 = vmatpush1.bf16.msra.mxu0 0
      %2031 = vmatprep.subr.bf16.mxu0 0
      %2032 = vmatpush1.bf16.msra.mxu0 0
      %2033 = vmatprep.subr.bf16.mxu0 0
      %2034 = vmatpush1.bf16.msra.mxu0 0
      %2035 = vmatprep.subr.bf16.mxu0 0
      %2036 = vmatpush1.bf16.msra.mxu0 0
      %2037 = vmatprep.subr.bf16.mxu0 0
      %2038 = vmatpush1.bf16.msra.mxu0 0
      %2039 = vmatprep.mubr.bf16.mxu0 0
      %2040 = vmatmul.mubr.bf16.gmra.mrb[0].mxu0 %v1405
      %v2041 = vpop.f32.mrb[0].mxu0
      %v2042 = vadd.f32 0.0, %v2041
      %v2043 = vpop.f32.mrb[0].mxu0
      %v2044 = vadd.f32 0.0, %v2043
      %v2045 = vpop.f32.mrb[0].mxu0
      %v2046 = vadd.f32 0.0, %v2045
      %v2047 = vpop.f32.mrb[0].mxu0
      %v2048 = vadd.f32 0.0, %v2047
      %2049 = vdwg.mxu0
      %2050 = vmatprep.subr.bf16.mxu0 %v1060
      %2051 = vmatpush1.bf16.msra.mxu0 %v1056
      %2052 = vmatprep.subr.bf16.mxu0 %v1172
      %2053 = vmatpush1.bf16.msra.mxu0 %v1168
      %2054 = vmatprep.subr.bf16.mxu0 %v1284
      %2055 = vmatpush1.bf16.msra.mxu0 %v1280
      %2056 = vmatprep.subr.bf16.mxu0 %v1396
      %2057 = vmatpush1.bf16.msra.mxu0 %v1392
      %2058 = vmatprep.subr.bf16.mxu0 %v1489
      %2059 = vmatpush1.bf16.msra.mxu0 %v1486
      %2060 = vmatprep.subr.bf16.mxu0 0
      %2061 = vmatpush1.bf16.msra.mxu0 0
      %2062 = vmatprep.subr.bf16.mxu0 0
      %2063 = vmatpush1.bf16.msra.mxu0 0
      %2064 = vmatprep.subr.bf16.mxu0 0
      %2065 = vmatpush1.bf16.msra.mxu0 0
      %2066 = vmatprep.subr.bf16.mxu0 0
      %2067 = vmatpush1.bf16.msra.mxu0 0
      %2068 = vmatprep.subr.bf16.mxu0 0
      %2069 = vmatpush1.bf16.msra.mxu0 0
      %2070 = vmatprep.subr.bf16.mxu0 0
      %2071 = vmatpush1.bf16.msra.mxu0 0
      %2072 = vmatprep.subr.bf16.mxu0 0
      %2073 = vmatpush1.bf16.msra.mxu0 0
      %2074 = vmatprep.subr.bf16.mxu0 0
      %2075 = vmatpush1.bf16.msra.mxu0 0
      %2076 = vmatprep.subr.bf16.mxu0 0
      %2077 = vmatpush1.bf16.msra.mxu0 0
      %2078 = vmatprep.subr.bf16.mxu0 0
      %2079 = vmatpush1.bf16.msra.mxu0 0
      %2080 = vmatprep.subr.bf16.mxu0 0
      %2081 = vmatpush1.bf16.msra.mxu0 0
      %2082 = vmatprep.mubr.bf16.mxu0 0
      %2083 = vmatmul.mubr.bf16.gmra.mrb[0].mxu0 %v1405
      %v2084 = vpop.f32.mrb[0].mxu0
      %v2085 = vadd.f32 0.0, %v2084
      %v2086 = vpop.f32.mrb[0].mxu0
      %v2087 = vadd.f32 0.0, %v2086
      %v2088 = vpop.f32.mrb[0].mxu0
      %v2089 = vadd.f32 0.0, %v2088
      %v2090 = vpop.f32.mrb[0].mxu0
      %v2091 = vadd.f32 0.0, %v2090
      %2092 = vdwg.mxu0
      %2093 = vrot.lane.b32.xlu0 %v348, 127
      %v2094 = vpop.permute.xlu0 %2093
      %2095 = vrot.lane.b32.xlu0 %v349, 127
      %v2096 = vpop.permute.xlu0 %2095
      %2097 = vrot.lane.b32.xlu0 %v350, 127
      %v2098 = vpop.permute.xlu0 %2097
      %2099 = vrot.lane.b32.xlu0 %v351, 127
      %v2100 = vpop.permute.xlu0 %2099
      %2101 = vrot.lane.b32.xlu0 %v352, 127
      %v2102 = vpop.permute.xlu0 %2101
      %2103 = vrot.lane.b32.xlu0 %v353, 127
      %v2104 = vpop.permute.xlu0 %2103
      %2105 = vrot.lane.b32.xlu0 %v354, 127
      %v2106 = vpop.permute.xlu0 %2105
      %2107 = vrot.lane.b32.xlu0 %v355, 127
      %v2108 = vpop.permute.xlu0 %2107
      %2109 = vrot.lane.b32.xlu0 %v356, 127
      %v2110 = vpop.permute.xlu0 %2109
      %2111 = vrot.lane.b32.xlu0 %v357, 127
      %v2112 = vpop.permute.xlu0 %2111
      %2113 = vrot.lane.b32.xlu0 %v358, 127
      %v2114 = vpop.permute.xlu0 %2113
      %2115 = vrot.lane.b32.xlu0 %v359, 127
      %v2116 = vpop.permute.xlu0 %2115
      %2117 = vrot.lane.b32.xlu0 %v360, 127
      %v2118 = vpop.permute.xlu0 %2117
      %2119 = vrot.lane.b32.xlu0 %v361, 127
      %v2120 = vpop.permute.xlu0 %2119
      %2121 = vrot.lane.b32.xlu0 %v362, 127
      %v2122 = vpop.permute.xlu0 %2121
      %2123 = vrot.lane.b32.xlu0 %v363, 127
      %v2124 = vpop.permute.xlu0 %2123
      %2125 = vrot.lane.b32.xlu0 %v364, 127
      %v2126 = vpop.permute.xlu0 %2125
      %2127 = vrot.lane.b32.xlu0 %v365, 127
      %v2128 = vpop.permute.xlu0 %2127
      %2129 = vrot.lane.b32.xlu0 %v366, 127
      %v2130 = vpop.permute.xlu0 %2129
      %2131 = vrot.lane.b32.xlu0 %v367, 127
      %v2132 = vpop.permute.xlu0 %2131
      %2133 = vrot.lane.b32.xlu0 %v368, 127
      %v2134 = vpop.permute.xlu0 %2133
      %2135 = vrot.lane.b32.xlu0 %v369, 127
      %v2136 = vpop.permute.xlu0 %2135
      %2137 = vrot.lane.b32.xlu0 %v370, 127
      %v2138 = vpop.permute.xlu0 %2137
      %2139 = vrot.lane.b32.xlu0 %v371, 127
      %v2140 = vpop.permute.xlu0 %2139
      %2141 = vrot.lane.b32.xlu0 %v372, 127
      %v2142 = vpop.permute.xlu0 %2141
      %2143 = vrot.lane.b32.xlu0 %v373, 127
      %v2144 = vpop.permute.xlu0 %2143
      %2145 = vrot.lane.b32.xlu0 %v374, 127
      %v2146 = vpop.permute.xlu0 %2145
      %2147 = vrot.lane.b32.xlu0 %v375, 127
      %v2148 = vpop.permute.xlu0 %2147
      %v2149 = vsel %vm432, %v2094, %v2096
      %v2150 = vsel %vm432, %v2096, %v2098
      %v2151 = vsel %vm432, %v2098, %v2100
      %v2152 = vsel %vm432, %v2100, %v2102
      %v2153 = vsel %vm432, %v2102, %v2104
      %v2154 = vsel %vm432, %v2104, %v2106
      %v2155 = vsel %vm432, %v2106, %v2108
      %v2156 = vsel %vm432, %v2108, %v2110
      %v2157 = vsel %vm432, %v2110, %v2112
      %v2158 = vsel %vm432, %v2112, %v2114
      %v2159 = vsel %vm432, %v2114, %v2116
      %v2160 = vsel %vm432, %v2116, %v2118
      %v2161 = vsel %vm432, %v2118, %v2120
      %v2162 = vsel %vm432, %v2120, %v2122
      %v2163 = vsel %vm432, %v2122, %v2124
      %v2164 = vsel %vm432, %v2124, %v2126
      %v2165 = vsel %vm432, %v2126, %v2128
      %v2166 = vsel %vm432, %v2128, %v2130
      %v2167 = vsel %vm432, %v2130, %v2132
      %v2168 = vsel %vm432, %v2132, %v2134
      %v2169 = vsel %vm432, %v2134, %v2136
      %v2170 = vsel %vm432, %v2136, %v2138
      %v2171 = vsel %vm432, %v2138, %v2140
      %v2172 = vsel %vm432, %v2140, %v2142
      %v2173 = vsel %vm432, %v2142, %v2144
      %v2174 = vsel %vm432, %v2144, %v2146
      %v2175 = vsel %vm432, %v2146, %v2148
      %2176 = vrot.lane.b32.xlu0 %v572, 127
      %v2177 = vpop.permute.xlu0 %2176
      %2178 = vrot.lane.b32.xlu0 %v573, 127
      %v2179 = vpop.permute.xlu0 %2178
      %2180 = vrot.lane.b32.xlu0 %v574, 127
      %v2181 = vpop.permute.xlu0 %2180
      %2182 = vrot.lane.b32.xlu0 %v575, 127
      %v2183 = vpop.permute.xlu0 %2182
      %2184 = vrot.lane.b32.xlu0 %v576, 127
      %v2185 = vpop.permute.xlu0 %2184
      %2186 = vrot.lane.b32.xlu0 %v577, 127
      %v2187 = vpop.permute.xlu0 %2186
      %2188 = vrot.lane.b32.xlu0 %v578, 127
      %v2189 = vpop.permute.xlu0 %2188
      %2190 = vrot.lane.b32.xlu0 %v579, 127
      %v2191 = vpop.permute.xlu0 %2190
      %2192 = vrot.lane.b32.xlu0 %v580, 127
      %v2193 = vpop.permute.xlu0 %2192
      %2194 = vrot.lane.b32.xlu0 %v581, 127
      %v2195 = vpop.permute.xlu0 %2194
      %2196 = vrot.lane.b32.xlu0 %v582, 127
      %v2197 = vpop.permute.xlu0 %2196
      %2198 = vrot.lane.b32.xlu0 %v583, 127
      %v2199 = vpop.permute.xlu0 %2198
      %2200 = vrot.lane.b32.xlu0 %v584, 127
      %v2201 = vpop.permute.xlu0 %2200
      %2202 = vrot.lane.b32.xlu0 %v585, 127
      %v2203 = vpop.permute.xlu0 %2202
      %2204 = vrot.lane.b32.xlu0 %v586, 127
      %v2205 = vpop.permute.xlu0 %2204
      %2206 = vrot.lane.b32.xlu0 %v587, 127
      %v2207 = vpop.permute.xlu0 %2206
      %2208 = vrot.lane.b32.xlu0 %v588, 127
      %v2209 = vpop.permute.xlu0 %2208
      %2210 = vrot.lane.b32.xlu0 %v589, 127
      %v2211 = vpop.permute.xlu0 %2210
      %2212 = vrot.lane.b32.xlu0 %v590, 127
      %v2213 = vpop.permute.xlu0 %2212
      %2214 = vrot.lane.b32.xlu0 %v591, 127
      %v2215 = vpop.permute.xlu0 %2214
      %2216 = vrot.lane.b32.xlu0 %v592, 127
      %v2217 = vpop.permute.xlu0 %2216
      %2218 = vrot.lane.b32.xlu0 %v593, 127
      %v2219 = vpop.permute.xlu0 %2218
      %2220 = vrot.lane.b32.xlu0 %v594, 127
      %v2221 = vpop.permute.xlu0 %2220
      %2222 = vrot.lane.b32.xlu0 %v595, 127
      %v2223 = vpop.permute.xlu0 %2222
      %2224 = vrot.lane.b32.xlu0 %v596, 127
      %v2225 = vpop.permute.xlu0 %2224
      %2226 = vrot.lane.b32.xlu0 %v597, 127
      %v2227 = vpop.permute.xlu0 %2226
      %2228 = vrot.lane.b32.xlu0 %v598, 127
      %v2229 = vpop.permute.xlu0 %2228
      %2230 = vrot.lane.b32.xlu0 %v599, 127
      %v2231 = vpop.permute.xlu0 %2230
      %v2232 = vsel %vm432, %v2177, %v2179
      %v2233 = vsel %vm432, %v2179, %v2181
      %v2234 = vsel %vm432, %v2181, %v2183
      %v2235 = vsel %vm432, %v2183, %v2185
      %v2236 = vsel %vm432, %v2185, %v2187
      %v2237 = vsel %vm432, %v2187, %v2189
      %v2238 = vsel %vm432, %v2189, %v2191
      %v2239 = vsel %vm432, %v2191, %v2193
      %v2240 = vsel %vm432, %v2193, %v2195
      %v2241 = vsel %vm432, %v2195, %v2197
      %v2242 = vsel %vm432, %v2197, %v2199
      %v2243 = vsel %vm432, %v2199, %v2201
      %v2244 = vsel %vm432, %v2201, %v2203
      %v2245 = vsel %vm432, %v2203, %v2205
      %v2246 = vsel %vm432, %v2205, %v2207
      %v2247 = vsel %vm432, %v2207, %v2209
      %v2248 = vsel %vm432, %v2209, %v2211
      %v2249 = vsel %vm432, %v2211, %v2213
      %v2250 = vsel %vm432, %v2213, %v2215
      %v2251 = vsel %vm432, %v2215, %v2217
      %v2252 = vsel %vm432, %v2217, %v2219
      %v2253 = vsel %vm432, %v2219, %v2221
      %v2254 = vsel %vm432, %v2221, %v2223
      %v2255 = vsel %vm432, %v2223, %v2225
      %v2256 = vsel %vm432, %v2225, %v2227
      %v2257 = vsel %vm432, %v2227, %v2229
      %v2258 = vsel %vm432, %v2229, %v2231
      %2259 = vrot.lane.b32.xlu0 %v348, 67
      %v2260 = vpop.permute.xlu0 %2259
      %2261 = vrot.lane.b32.xlu0 %v349, 67
      %v2262 = vpop.permute.xlu0 %2261
      %2263 = vrot.lane.b32.xlu0 %v350, 67
      %v2264 = vpop.permute.xlu0 %2263
      %2265 = vrot.lane.b32.xlu0 %v351, 67
      %v2266 = vpop.permute.xlu0 %2265
      %2267 = vrot.lane.b32.xlu0 %v352, 67
      %v2268 = vpop.permute.xlu0 %2267
      %2269 = vrot.lane.b32.xlu0 %v353, 67
      %v2270 = vpop.permute.xlu0 %2269
      %2271 = vrot.lane.b32.xlu0 %v354, 67
      %v2272 = vpop.permute.xlu0 %2271
      %2273 = vrot.lane.b32.xlu0 %v355, 67
      %v2274 = vpop.permute.xlu0 %2273
      %2275 = vrot.lane.b32.xlu0 %v356, 67
      %v2276 = vpop.permute.xlu0 %2275
      %2277 = vrot.lane.b32.xlu0 %v357, 67
      %v2278 = vpop.permute.xlu0 %2277
      %2279 = vrot.lane.b32.xlu0 %v358, 67
      %v2280 = vpop.permute.xlu0 %2279
      %2281 = vrot.lane.b32.xlu0 %v359, 67
      %v2282 = vpop.permute.xlu0 %2281
      %2283 = vrot.lane.b32.xlu0 %v360, 67
      %v2284 = vpop.permute.xlu0 %2283
      %2285 = vrot.lane.b32.xlu0 %v361, 67
      %v2286 = vpop.permute.xlu0 %2285
      %2287 = vrot.lane.b32.xlu0 %v362, 67
      %v2288 = vpop.permute.xlu0 %2287
      %2289 = vrot.lane.b32.xlu0 %v363, 67
      %v2290 = vpop.permute.xlu0 %2289
      %2291 = vrot.lane.b32.xlu0 %v364, 67
      %v2292 = vpop.permute.xlu0 %2291
      %2293 = vrot.lane.b32.xlu0 %v365, 67
      %v2294 = vpop.permute.xlu0 %2293
      %2295 = vrot.lane.b32.xlu0 %v366, 67
      %v2296 = vpop.permute.xlu0 %2295
      %2297 = vrot.lane.b32.xlu0 %v367, 67
      %v2298 = vpop.permute.xlu0 %2297
      %2299 = vrot.lane.b32.xlu0 %v368, 67
      %v2300 = vpop.permute.xlu0 %2299
      %2301 = vrot.lane.b32.xlu0 %v369, 67
      %v2302 = vpop.permute.xlu0 %2301
      %2303 = vrot.lane.b32.xlu0 %v370, 67
      %v2304 = vpop.permute.xlu0 %2303
      %2305 = vrot.lane.b32.xlu0 %v371, 67
      %v2306 = vpop.permute.xlu0 %2305
      %2307 = vrot.lane.b32.xlu0 %v372, 67
      %v2308 = vpop.permute.xlu0 %2307
      %2309 = vrot.lane.b32.xlu0 %v373, 67
      %v2310 = vpop.permute.xlu0 %2309
      %2311 = vrot.lane.b32.xlu0 %v374, 67
      %v2312 = vpop.permute.xlu0 %2311
      %2313 = vrot.lane.b32.xlu0 %v375, 67
      %v2314 = vpop.permute.xlu0 %2313
      %2315 = vrot.lane.b32.xlu0 %v775, 67
      %v2316 = vpop.permute.xlu0 %2315
      %v2317 = vsel %vm920, %v2260, %v2262
      %v2318 = vsel %vm920, %v2262, %v2264
      %v2319 = vsel %vm920, %v2264, %v2266
      %v2320 = vsel %vm920, %v2266, %v2268
      %v2321 = vsel %vm920, %v2268, %v2270
      %v2322 = vsel %vm920, %v2270, %v2272
      %v2323 = vsel %vm920, %v2272, %v2274
      %v2324 = vsel %vm920, %v2274, %v2276
      %v2325 = vsel %vm920, %v2276, %v2278
      %v2326 = vsel %vm920, %v2278, %v2280
      %v2327 = vsel %vm920, %v2280, %v2282
      %v2328 = vsel %vm920, %v2282, %v2284
      %v2329 = vsel %vm920, %v2284, %v2286
      %v2330 = vsel %vm920, %v2286, %v2288
      %v2331 = vsel %vm920, %v2288, %v2290
      %v2332 = vsel %vm920, %v2290, %v2292
      %v2333 = vsel %vm920, %v2292, %v2294
      %v2334 = vsel %vm920, %v2294, %v2296
      %v2335 = vsel %vm920, %v2296, %v2298
      %v2336 = vsel %vm920, %v2298, %v2300
      %v2337 = vsel %vm920, %v2300, %v2302
      %v2338 = vsel %vm920, %v2302, %v2304
      %v2339 = vsel %vm920, %v2304, %v2306
      %v2340 = vsel %vm920, %v2306, %v2308
      %v2341 = vsel %vm920, %v2308, %v2310
      %v2342 = vsel %vm920, %v2310, %v2312
      %v2343 = vsel %vm920, %v2312, %v2314
      %v2344 = vsel %vm920, %v2314, %v2316
      %v2345 = vsel %vm949, %v348, %v433
      %v2347 = vsel %vm949, %v349, %v434
      %v2349 = vsel %vm949, %v350, %v435
      %v2351 = vsel %vm949, %v351, %v436
      %v2353 = vsel %vm949, %v352, %v437
      %v2355 = vsel %vm949, %v353, %v438
      %v2357 = vsel %vm949, %v354, %v439
      %v2359 = vsel %vm949, %v355, %v440
      %v2361 = vsel %vm949, %v356, %v441
      %v2363 = vsel %vm949, %v357, %v442
      %v2365 = vsel %vm949, %v358, %v443
      %v2367 = vsel %vm949, %v359, %v444
      %v2369 = vsel %vm949, %v360, %v445
      %v2371 = vsel %vm949, %v361, %v446
      %v2373 = vsel %vm949, %v362, %v447
      %v2375 = vsel %vm949, %v363, %v448
      %v2377 = vsel %vm949, %v364, %v449
      %v2379 = vsel %vm949, %v365, %v450
      %v2381 = vsel %vm949, %v366, %v451
      %v2383 = vsel %vm949, %v367, %v452
      %v2385 = vsel %vm949, %v368, %v453
      %v2387 = vsel %vm949, %v369, %v454
      %v2389 = vsel %vm949, %v370, %v455
      %v2391 = vsel %vm949, %v371, %v456
      %v2393 = vsel %vm949, %v372, %v457
      %v2395 = vsel %vm949, %v373, %v458
      %v2397 = vsel %vm949, %v374, %v459
      %v2399 = vsel %vm949, %v375, %v431
      %v2402 = vsel %vm949, %v2149, %v572
      %v2405 = vsel %vm949, %v2150, %v573
      %v2408 = vsel %vm949, %v2151, %v574
      %v2411 = vsel %vm949, %v2152, %v575
      %v2414 = vsel %vm949, %v2153, %v576
      %v2417 = vsel %vm949, %v2154, %v577
      %v2420 = vsel %vm949, %v2155, %v578
      %v2423 = vsel %vm949, %v2156, %v579
      %v2426 = vsel %vm949, %v2157, %v580
      %v2429 = vsel %vm949, %v2158, %v581
      %v2432 = vsel %vm949, %v2159, %v582
      %v2435 = vsel %vm949, %v2160, %v583
      %v2438 = vsel %vm949, %v2161, %v584
      %v2441 = vsel %vm949, %v2162, %v585
      %v2444 = vsel %vm949, %v2163, %v586
      %v2447 = vsel %vm949, %v2164, %v587
      %v2450 = vsel %vm949, %v2165, %v588
      %v2453 = vsel %vm949, %v2166, %v589
      %v2456 = vsel %vm949, %v2167, %v590
      %v2459 = vsel %vm949, %v2168, %v591
      %v2462 = vsel %vm949, %v2169, %v592
      %v2465 = vsel %vm949, %v2170, %v593
      %v2468 = vsel %vm949, %v2171, %v594
      %v2471 = vsel %vm949, %v2172, %v595
      %v2474 = vsel %vm949, %v2173, %v596
      %v2477 = vsel %vm949, %v2174, %v597
      %v2480 = vsel %vm949, %v2175, %v598
      %v2483 = vsel %vm949, %v2148, %v599
      %v2486 = vsel %vm949, %v656, %v2232
      %v2489 = vsel %vm949, %v657, %v2233
      %v2492 = vsel %vm949, %v658, %v2234
      %v2495 = vsel %vm949, %v659, %v2235
      %v2498 = vsel %vm949, %v660, %v2236
      %v2501 = vsel %vm949, %v661, %v2237
      %v2504 = vsel %vm949, %v662, %v2238
      %v2507 = vsel %vm949, %v663, %v2239
      %v2510 = vsel %vm949, %v664, %v2240
      %v2513 = vsel %vm949, %v665, %v2241
      %v2516 = vsel %vm949, %v666, %v2242
      %v2519 = vsel %vm949, %v667, %v2243
      %v2522 = vsel %vm949, %v668, %v2244
      %v2525 = vsel %vm949, %v669, %v2245
      %v2528 = vsel %vm949, %v670, %v2246
      %v2531 = vsel %vm949, %v671, %v2247
      %v2534 = vsel %vm949, %v672, %v2248
      %v2537 = vsel %vm949, %v673, %v2249
      %v2540 = vsel %vm949, %v674, %v2250
      %v2543 = vsel %vm949, %v675, %v2251
      %v2546 = vsel %vm949, %v676, %v2252
      %v2549 = vsel %vm949, %v677, %v2253
      %v2552 = vsel %vm949, %v678, %v2254
      %v2555 = vsel %vm949, %v679, %v2255
      %v2558 = vsel %vm949, %v680, %v2256
      %v2561 = vsel %vm949, %v681, %v2257
      %v2564 = vsel %vm949, %v682, %v2258
      %v2567 = vsel %vm949, %v655, %v2231
      %v2569 = vsel %vm949, %v834, %v921
      %v2571 = vsel %vm949, %v835, %v922
      %v2573 = vsel %vm949, %v836, %v923
      %v2575 = vsel %vm949, %v837, %v924
      %v2577 = vsel %vm949, %v838, %v925
      %v2579 = vsel %vm949, %v839, %v926
      %v2581 = vsel %vm949, %v840, %v927
      %v2583 = vsel %vm949, %v841, %v928
      %v2585 = vsel %vm949, %v842, %v929
      %v2587 = vsel %vm949, %v843, %v930
      %v2589 = vsel %vm949, %v844, %v931
      %v2591 = vsel %vm949, %v845, %v932
      %v2593 = vsel %vm949, %v846, %v933
      %v2595 = vsel %vm949, %v847, %v934
      %v2597 = vsel %vm949, %v848, %v935
      %v2599 = vsel %vm949, %v849, %v936
      %v2601 = vsel %vm949, %v850, %v937
      %v2603 = vsel %vm949, %v851, %v938
      %v2605 = vsel %vm949, %v852, %v939
      %v2607 = vsel %vm949, %v853, %v940
      %v2609 = vsel %vm949, %v854, %v941
      %v2611 = vsel %vm949, %v855, %v942
      %v2613 = vsel %vm949, %v856, %v943
      %v2615 = vsel %vm949, %v857, %v944
      %v2617 = vsel %vm949, %v858, %v945
      %v2619 = vsel %vm949, %v859, %v946
      %v2621 = vsel %vm949, %v860, %v947
      %v2623 = vsel %vm949, %v861, %v948
      %v2626 = vsel %vm949, %v2317, 0
      %v2629 = vsel %vm949, %v2318, 0
      %v2632 = vsel %vm949, %v2319, 0
      %v2635 = vsel %vm949, %v2320, 0
      %v2638 = vsel %vm949, %v2321, 0
      %v2641 = vsel %vm949, %v2322, 0
      %v2644 = vsel %vm949, %v2323, 0
      %v2647 = vsel %vm949, %v2324, 0
      %v2650 = vsel %vm949, %v2325, 0
      %v2653 = vsel %vm949, %v2326, 0
      %v2656 = vsel %vm949, %v2327, 0
      %v2659 = vsel %vm949, %v2328, 0
      %v2662 = vsel %vm949, %v2329, 0
      %v2665 = vsel %vm949, %v2330, 0
      %v2668 = vsel %vm949, %v2331, 0
      %v2671 = vsel %vm949, %v2332, 0
      %v2674 = vsel %vm949, %v2333, 0
      %v2677 = vsel %vm949, %v2334, 0
      %v2680 = vsel %vm949, %v2335, 0
      %v2683 = vsel %vm949, %v2336, 0
      %v2686 = vsel %vm949, %v2337, 0
      %v2689 = vsel %vm949, %v2338, 0
      %v2692 = vsel %vm949, %v2339, 0
      %v2695 = vsel %vm949, %v2340, 0
      %v2698 = vsel %vm949, %v2341, 0
      %v2701 = vsel %vm949, %v2342, 0
      %v2704 = vsel %vm949, %v2343, 0
      %v2707 = vsel %vm949, %v2344, 0
      %2709 = vmatprep.subr.bf16.mxu0 %v2347
      %2710 = vmatpush1.bf16.msra.mxu0 %v2345
      %2711 = vmatprep.subr.bf16.mxu0 %v2405
      %2712 = vmatpush1.bf16.msra.mxu0 %v2402
      %2713 = vmatprep.subr.bf16.mxu0 %v2489
      %2714 = vmatpush1.bf16.msra.mxu0 %v2486
      %2715 = vmatprep.subr.bf16.mxu0 %v2571
      %2716 = vmatpush1.bf16.msra.mxu0 %v2569
      %2717 = vmatprep.subr.bf16.mxu0 %v2629
      %2718 = vmatpush1.bf16.msra.mxu0 %v2626
      %2719 = vmatprep.subr.bf16.mxu0 0
      %2720 = vmatpush1.bf16.msra.mxu0 0
      %2721 = vmatprep.subr.bf16.mxu0 0
      %2722 = vmatpush1.bf16.msra.mxu0 0
      %2723 = vmatprep.subr.bf16.mxu0 0
      %2724 = vmatpush1.bf16.msra.mxu0 0
      %2725 = vmatprep.subr.bf16.mxu0 0
      %2726 = vmatpush1.bf16.msra.mxu0 0
      %2727 = vmatprep.subr.bf16.mxu0 0
      %2728 = vmatpush1.bf16.msra.mxu0 0
      %2729 = vmatprep.subr.bf16.mxu0 0
      %2730 = vmatpush1.bf16.msra.mxu0 0
      %2731 = vmatprep.subr.bf16.mxu0 0
      %2732 = vmatpush1.bf16.msra.mxu0 0
      %2733 = vmatprep.subr.bf16.mxu0 0
      %2734 = vmatpush1.bf16.msra.mxu0 0
      %2735 = vmatprep.subr.bf16.mxu0 0
      %2736 = vmatpush1.bf16.msra.mxu0 0
      %2737 = vmatprep.subr.bf16.mxu0 0
      %2738 = vmatpush1.bf16.msra.mxu0 0
      %2739 = vmatprep.subr.bf16.mxu0 0
      %2740 = vmatpush1.bf16.msra.mxu0 0
      %2741 = vmatprep.mubr.bf16.mxu0 0
      %2742 = vmatmul.mubr.bf16.gmra.mrb[0].mxu0 %v1405
      %v2743 = vpop.f32.mrb[0].mxu0
      %v2744 = vadd.f32 0.0, %v2743
      %v2745 = vpop.f32.mrb[0].mxu0
      %v2746 = vadd.f32 0.0, %v2745
      %v2747 = vpop.f32.mrb[0].mxu0
      %v2748 = vadd.f32 0.0, %v2747
      %v2749 = vpop.f32.mrb[0].mxu0
      %v2750 = vadd.f32 0.0, %v2749
      %2751 = vdwg.mxu0
      %2752 = vmatprep.subr.bf16.mxu0 %v2351
      %2753 = vmatpush1.bf16.msra.mxu0 %v2349
      %2754 = vmatprep.subr.bf16.mxu0 %v2411
      %2755 = vmatpush1.bf16.msra.mxu0 %v2408
      %2756 = vmatprep.subr.bf16.mxu0 %v2495
      %2757 = vmatpush1.bf16.msra.mxu0 %v2492
      %2758 = vmatprep.subr.bf16.mxu0 %v2575
      %2759 = vmatpush1.bf16.msra.mxu0 %v2573
      %2760 = vmatprep.subr.bf16.mxu0 %v2635
      %2761 = vmatpush1.bf16.msra.mxu0 %v2632
      %2762 = vmatprep.subr.bf16.mxu0 0
      %2763 = vmatpush1.bf16.msra.mxu0 0
      %2764 = vmatprep.subr.bf16.mxu0 0
      %2765 = vmatpush1.bf16.msra.mxu0 0
      %2766 = vmatprep.subr.bf16.mxu0 0
      %2767 = vmatpush1.bf16.msra.mxu0 0
      %2768 = vmatprep.subr.bf16.mxu0 0
      %2769 = vmatpush1.bf16.msra.mxu0 0
      %2770 = vmatprep.subr.bf16.mxu0 0
      %2771 = vmatpush1.bf16.msra.mxu0 0
      %2772 = vmatprep.subr.bf16.mxu0 0
      %2773 = vmatpush1.bf16.msra.mxu0 0
      %2774 = vmatprep.subr.bf16.mxu0 0
      %2775 = vmatpush1.bf16.msra.mxu0 0
      %2776 = vmatprep.subr.bf16.mxu0 0
      %2777 = vmatpush1.bf16.msra.mxu0 0
      %2778 = vmatprep.subr.bf16.mxu0 0
      %2779 = vmatpush1.bf16.msra.mxu0 0
      %2780 = vmatprep.subr.bf16.mxu0 0
      %2781 = vmatpush1.bf16.msra.mxu0 0
      %2782 = vmatprep.subr.bf16.mxu0 0
      %2783 = vmatpush1.bf16.msra.mxu0 0
      %2784 = vmatprep.mubr.bf16.mxu0 0
      %2785 = vmatmul.mubr.bf16.gmra.mrb[0].mxu0 %v1405
      %v2786 = vpop.f32.mrb[0].mxu0
      %v2787 = vadd.f32 0.0, %v2786
      %v2788 = vpop.f32.mrb[0].mxu0
      %v2789 = vadd.f32 0.0, %v2788
      %v2790 = vpop.f32.mrb[0].mxu0
      %v2791 = vadd.f32 0.0, %v2790
      %v2792 = vpop.f32.mrb[0].mxu0
      %v2793 = vadd.f32 0.0, %v2792
      %2794 = vdwg.mxu0
      %2795 = vmatprep.subr.bf16.mxu0 %v2355
      %2796 = vmatpush1.bf16.msra.mxu0 %v2353
      %2797 = vmatprep.subr.bf16.mxu0 %v2417
      %2798 = vmatpush1.bf16.msra.mxu0 %v2414
      %2799 = vmatprep.subr.bf16.mxu0 %v2501
      %2800 = vmatpush1.bf16.msra.mxu0 %v2498
      %2801 = vmatprep.subr.bf16.mxu0 %v2579
      %2802 = vmatpush1.bf16.msra.mxu0 %v2577
      %2803 = vmatprep.subr.bf16.mxu0 %v2641
      %2804 = vmatpush1.bf16.msra.mxu0 %v2638
      %2805 = vmatprep.subr.bf16.mxu0 0
      %2806 = vmatpush1.bf16.msra.mxu0 0
      %2807 = vmatprep.subr.bf16.mxu0 0
      %2808 = vmatpush1.bf16.msra.mxu0 0
      %2809 = vmatprep.subr.bf16.mxu0 0
      %2810 = vmatpush1.bf16.msra.mxu0 0
      %2811 = vmatprep.subr.bf16.mxu0 0
      %2812 = vmatpush1.bf16.msra.mxu0 0
      %2813 = vmatprep.subr.bf16.mxu0 0
      %2814 = vmatpush1.bf16.msra.mxu0 0
      %2815 = vmatprep.subr.bf16.mxu0 0
      %2816 = vmatpush1.bf16.msra.mxu0 0
      %2817 = vmatprep.subr.bf16.mxu0 0
      %2818 = vmatpush1.bf16.msra.mxu0 0
      %2819 = vmatprep.subr.bf16.mxu0 0
      %2820 = vmatpush1.bf16.msra.mxu0 0
      %2821 = vmatprep.subr.bf16.mxu0 0
      %2822 = vmatpush1.bf16.msra.mxu0 0
      %2823 = vmatprep.subr.bf16.mxu0 0
      %2824 = vmatpush1.bf16.msra.mxu0 0
      %2825 = vmatprep.subr.bf16.mxu0 0
      %2826 = vmatpush1.bf16.msra.mxu0 0
      %2827 = vmatprep.mubr.bf16.mxu0 0
      %2828 = vmatmul.mubr.bf16.gmra.mrb[0].mxu0 %v1405
      %v2829 = vpop.f32.mrb[0].mxu0
      %v2830 = vadd.f32 0.0, %v2829
      %v2831 = vpop.f32.mrb[0].mxu0
      %v2832 = vadd.f32 0.0, %v2831
      %v2833 = vpop.f32.mrb[0].mxu0
      %v2834 = vadd.f32 0.0, %v2833
      %v2835 = vpop.f32.mrb[0].mxu0
      %v2836 = vadd.f32 0.0, %v2835
      %2837 = vdwg.mxu0
      %2838 = vmatprep.subr.bf16.mxu0 %v2359
      %2839 = vmatpush1.bf16.msra.mxu0 %v2357
      %2840 = vmatprep.subr.bf16.mxu0 %v2423
      %2841 = vmatpush1.bf16.msra.mxu0 %v2420
      %2842 = vmatprep.subr.bf16.mxu0 %v2507
      %2843 = vmatpush1.bf16.msra.mxu0 %v2504
      %2844 = vmatprep.subr.bf16.mxu0 %v2583
      %2845 = vmatpush1.bf16.msra.mxu0 %v2581
      %2846 = vmatprep.subr.bf16.mxu0 %v2647
      %2847 = vmatpush1.bf16.msra.mxu0 %v2644
      %2848 = vmatprep.subr.bf16.mxu0 0
      %2849 = vmatpush1.bf16.msra.mxu0 0
      %2850 = vmatprep.subr.bf16.mxu0 0
      %2851 = vmatpush1.bf16.msra.mxu0 0
      %2852 = vmatprep.subr.bf16.mxu0 0
      %2853 = vmatpush1.bf16.msra.mxu0 0
      %2854 = vmatprep.subr.bf16.mxu0 0
      %2855 = vmatpush1.bf16.msra.mxu0 0
      %2856 = vmatprep.subr.bf16.mxu0 0
      %2857 = vmatpush1.bf16.msra.mxu0 0
      %2858 = vmatprep.subr.bf16.mxu0 0
      %2859 = vmatpush1.bf16.msra.mxu0 0
      %2860 = vmatprep.subr.bf16.mxu0 0
      %2861 = vmatpush1.bf16.msra.mxu0 0
      %2862 = vmatprep.subr.bf16.mxu0 0
      %2863 = vmatpush1.bf16.msra.mxu0 0
      %2864 = vmatprep.subr.bf16.mxu0 0
      %2865 = vmatpush1.bf16.msra.mxu0 0
      %2866 = vmatprep.subr.bf16.mxu0 0
      %2867 = vmatpush1.bf16.msra.mxu0 0
      %2868 = vmatprep.subr.bf16.mxu0 0
      %2869 = vmatpush1.bf16.msra.mxu0 0
      %2870 = vmatprep.mubr.bf16.mxu0 0
      %2871 = vmatmul.mubr.bf16.gmra.mrb[0].mxu0 %v1405
      %v2872 = vpop.f32.mrb[0].mxu0
      %v2873 = vadd.f32 0.0, %v2872
      %v2874 = vpop.f32.mrb[0].mxu0
      %v2875 = vadd.f32 0.0, %v2874
      %v2876 = vpop.f32.mrb[0].mxu0
      %v2877 = vadd.f32 0.0, %v2876
      %v2878 = vpop.f32.mrb[0].mxu0
      %v2879 = vadd.f32 0.0, %v2878
      %2880 = vdwg.mxu0
      %2881 = vmatprep.subr.bf16.mxu0 %v2363
      %2882 = vmatpush1.bf16.msra.mxu0 %v2361
      %2883 = vmatprep.subr.bf16.mxu0 %v2429
      %2884 = vmatpush1.bf16.msra.mxu0 %v2426
      %2885 = vmatprep.subr.bf16.mxu0 %v2513
      %2886 = vmatpush1.bf16.msra.mxu0 %v2510
      %2887 = vmatprep.subr.bf16.mxu0 %v2587
      %2888 = vmatpush1.bf16.msra.mxu0 %v2585
      %2889 = vmatprep.subr.bf16.mxu0 %v2653
      %2890 = vmatpush1.bf16.msra.mxu0 %v2650
      %2891 = vmatprep.subr.bf16.mxu0 0
      %2892 = vmatpush1.bf16.msra.mxu0 0
      %2893 = vmatprep.subr.bf16.mxu0 0
      %2894 = vmatpush1.bf16.msra.mxu0 0
      %2895 = vmatprep.subr.bf16.mxu0 0
      %2896 = vmatpush1.bf16.msra.mxu0 0
      %2897 = vmatprep.subr.bf16.mxu0 0
      %2898 = vmatpush1.bf16.msra.mxu0 0
      %2899 = vmatprep.subr.bf16.mxu0 0
      %2900 = vmatpush1.bf16.msra.mxu0 0
      %2901 = vmatprep.subr.bf16.mxu0 0
      %2902 = vmatpush1.bf16.msra.mxu0 0
      %2903 = vmatprep.subr.bf16.mxu0 0
      %2904 = vmatpush1.bf16.msra.mxu0 0
      %2905 = vmatprep.subr.bf16.mxu0 0
      %2906 = vmatpush1.bf16.msra.mxu0 0
      %2907 = vmatprep.subr.bf16.mxu0 0
      %2908 = vmatpush1.bf16.msra.mxu0 0
      %2909 = vmatprep.subr.bf16.mxu0 0
      %2910 = vmatpush1.bf16.msra.mxu0 0
      %2911 = vmatprep.subr.bf16.mxu0 0
      %2912 = vmatpush1.bf16.msra.mxu0 0
      %2913 = vmatprep.mubr.bf16.mxu0 0
      %2914 = vmatmul.mubr.bf16.gmra.mrb[0].mxu0 %v1405
      %v2915 = vpop.f32.mrb[0].mxu0
      %v2916 = vadd.f32 0.0, %v2915
      %v2917 = vpop.f32.mrb[0].mxu0
      %v2918 = vadd.f32 0.0, %v2917
      %v2919 = vpop.f32.mrb[0].mxu0
      %v2920 = vadd.f32 0.0, %v2919
      %v2921 = vpop.f32.mrb[0].mxu0
      %v2922 = vadd.f32 0.0, %v2921
      %2923 = vdwg.mxu0
      %2924 = vmatprep.subr.bf16.mxu0 %v2367
      %2925 = vmatpush1.bf16.msra.mxu0 %v2365
      %2926 = vmatprep.subr.bf16.mxu0 %v2435
      %2927 = vmatpush1.bf16.msra.mxu0 %v2432
      %2928 = vmatprep.subr.bf16.mxu0 %v2519
      %2929 = vmatpush1.bf16.msra.mxu0 %v2516
      %2930 = vmatprep.subr.bf16.mxu0 %v2591
      %2931 = vmatpush1.bf16.msra.mxu0 %v2589
      %2932 = vmatprep.subr.bf16.mxu0 %v2659
      %2933 = vmatpush1.bf16.msra.mxu0 %v2656
      %2934 = vmatprep.subr.bf16.mxu0 0
      %2935 = vmatpush1.bf16.msra.mxu0 0
      %2936 = vmatprep.subr.bf16.mxu0 0
      %2937 = vmatpush1.bf16.msra.mxu0 0
      %2938 = vmatprep.subr.bf16.mxu0 0
      %2939 = vmatpush1.bf16.msra.mxu0 0
      %2940 = vmatprep.subr.bf16.mxu0 0
      %2941 = vmatpush1.bf16.msra.mxu0 0
      %2942 = vmatprep.subr.bf16.mxu0 0
      %2943 = vmatpush1.bf16.msra.mxu0 0
      %2944 = vmatprep.subr.bf16.mxu0 0
      %2945 = vmatpush1.bf16.msra.mxu0 0
      %2946 = vmatprep.subr.bf16.mxu0 0
      %2947 = vmatpush1.bf16.msra.mxu0 0
      %2948 = vmatprep.subr.bf16.mxu0 0
      %2949 = vmatpush1.bf16.msra.mxu0 0
      %2950 = vmatprep.subr.bf16.mxu0 0
      %2951 = vmatpush1.bf16.msra.mxu0 0
      %2952 = vmatprep.subr.bf16.mxu0 0
      %2953 = vmatpush1.bf16.msra.mxu0 0
      %2954 = vmatprep.subr.bf16.mxu0 0
      %2955 = vmatpush1.bf16.msra.mxu0 0
      %2956 = vmatprep.mubr.bf16.mxu0 0
      %2957 = vmatmul.mubr.bf16.gmra.mrb[0].mxu0 %v1405
      %v2958 = vpop.f32.mrb[0].mxu0
      %v2959 = vadd.f32 0.0, %v2958
      %v2960 = vpop.f32.mrb[0].mxu0
      %v2961 = vadd.f32 0.0, %v2960
      %v2962 = vpop.f32.mrb[0].mxu0
      %v2963 = vadd.f32 0.0, %v2962
      %v2964 = vpop.f32.mrb[0].mxu0
      %v2965 = vadd.f32 0.0, %v2964
      %2966 = vdwg.mxu0
      %2967 = vmatprep.subr.bf16.mxu0 %v2371
      %2968 = vmatpush1.bf16.msra.mxu0 %v2369
      %2969 = vmatprep.subr.bf16.mxu0 %v2441
      %2970 = vmatpush1.bf16.msra.mxu0 %v2438
      %2971 = vmatprep.subr.bf16.mxu0 %v2525
      %2972 = vmatpush1.bf16.msra.mxu0 %v2522
      %2973 = vmatprep.subr.bf16.mxu0 %v2595
      %2974 = vmatpush1.bf16.msra.mxu0 %v2593
      %2975 = vmatprep.subr.bf16.mxu0 %v2665
      %2976 = vmatpush1.bf16.msra.mxu0 %v2662
      %2977 = vmatprep.subr.bf16.mxu0 0
      %2978 = vmatpush1.bf16.msra.mxu0 0
      %2979 = vmatprep.subr.bf16.mxu0 0
      %2980 = vmatpush1.bf16.msra.mxu0 0
      %2981 = vmatprep.subr.bf16.mxu0 0
      %2982 = vmatpush1.bf16.msra.mxu0 0
      %2983 = vmatprep.subr.bf16.mxu0 0
      %2984 = vmatpush1.bf16.msra.mxu0 0
      %2985 = vmatprep.subr.bf16.mxu0 0
      %2986 = vmatpush1.bf16.msra.mxu0 0
      %2987 = vmatprep.subr.bf16.mxu0 0
      %2988 = vmatpush1.bf16.msra.mxu0 0
      %2989 = vmatprep.subr.bf16.mxu0 0
      %2990 = vmatpush1.bf16.msra.mxu0 0
      %2991 = vmatprep.subr.bf16.mxu0 0
      %2992 = vmatpush1.bf16.msra.mxu0 0
      %2993 = vmatprep.subr.bf16.mxu0 0
      %2994 = vmatpush1.bf16.msra.mxu0 0
      %2995 = vmatprep.subr.bf16.mxu0 0
      %2996 = vmatpush1.bf16.msra.mxu0 0
      %2997 = vmatprep.subr.bf16.mxu0 0
      %2998 = vmatpush1.bf16.msra.mxu0 0
      %2999 = vmatprep.mubr.bf16.mxu0 0
      %3000 = vmatmul.mubr.bf16.gmra.mrb[0].mxu0 %v1405
      %v3001 = vpop.f32.mrb[0].mxu0
      %v3002 = vadd.f32 0.0, %v3001
      %v3003 = vpop.f32.mrb[0].mxu0
      %v3004 = vadd.f32 0.0, %v3003
      %v3005 = vpop.f32.mrb[0].mxu0
      %v3006 = vadd.f32 0.0, %v3005
      %v3007 = vpop.f32.mrb[0].mxu0
      %v3008 = vadd.f32 0.0, %v3007
      %3009 = vdwg.mxu0
      %3010 = vmatprep.subr.bf16.mxu0 %v2375
      %3011 = vmatpush1.bf16.msra.mxu0 %v2373
      %3012 = vmatprep.subr.bf16.mxu0 %v2447
      %3013 = vmatpush1.bf16.msra.mxu0 %v2444
      %3014 = vmatprep.subr.bf16.mxu0 %v2531
      %3015 = vmatpush1.bf16.msra.mxu0 %v2528
      %3016 = vmatprep.subr.bf16.mxu0 %v2599
      %3017 = vmatpush1.bf16.msra.mxu0 %v2597
      %3018 = vmatprep.subr.bf16.mxu0 %v2671
      %3019 = vmatpush1.bf16.msra.mxu0 %v2668
      %3020 = vmatprep.subr.bf16.mxu0 0
      %3021 = vmatpush1.bf16.msra.mxu0 0
      %3022 = vmatprep.subr.bf16.mxu0 0
      %3023 = vmatpush1.bf16.msra.mxu0 0
      %3024 = vmatprep.subr.bf16.mxu0 0
      %3025 = vmatpush1.bf16.msra.mxu0 0
      %3026 = vmatprep.subr.bf16.mxu0 0
      %3027 = vmatpush1.bf16.msra.mxu0 0
      %3028 = vmatprep.subr.bf16.mxu0 0
      %3029 = vmatpush1.bf16.msra.mxu0 0
      %3030 = vmatprep.subr.bf16.mxu0 0
      %3031 = vmatpush1.bf16.msra.mxu0 0
      %3032 = vmatprep.subr.bf16.mxu0 0
      %3033 = vmatpush1.bf16.msra.mxu0 0
      %3034 = vmatprep.subr.bf16.mxu0 0
      %3035 = vmatpush1.bf16.msra.mxu0 0
      %3036 = vmatprep.subr.bf16.mxu0 0
      %3037 = vmatpush1.bf16.msra.mxu0 0
      %3038 = vmatprep.subr.bf16.mxu0 0
      %3039 = vmatpush1.bf16.msra.mxu0 0
      %3040 = vmatprep.subr.bf16.mxu0 0
      %3041 = vmatpush1.bf16.msra.mxu0 0
      %3042 = vmatprep.mubr.bf16.mxu0 0
      %3043 = vmatmul.mubr.bf16.gmra.mrb[0].mxu0 %v1405
      %v3044 = vpop.f32.mrb[0].mxu0
      %v3045 = vadd.f32 0.0, %v3044
      %v3046 = vpop.f32.mrb[0].mxu0
      %v3047 = vadd.f32 0.0, %v3046
      %v3048 = vpop.f32.mrb[0].mxu0
      %v3049 = vadd.f32 0.0, %v3048
      %v3050 = vpop.f32.mrb[0].mxu0
      %v3051 = vadd.f32 0.0, %v3050
      %3052 = vdwg.mxu0
      %3053 = vmatprep.subr.bf16.mxu0 %v2379
      %3054 = vmatpush1.bf16.msra.mxu0 %v2377
      %3055 = vmatprep.subr.bf16.mxu0 %v2453
      %3056 = vmatpush1.bf16.msra.mxu0 %v2450
      %3057 = vmatprep.subr.bf16.mxu0 %v2537
      %3058 = vmatpush1.bf16.msra.mxu0 %v2534
      %3059 = vmatprep.subr.bf16.mxu0 %v2603
      %3060 = vmatpush1.bf16.msra.mxu0 %v2601
      %3061 = vmatprep.subr.bf16.mxu0 %v2677
      %3062 = vmatpush1.bf16.msra.mxu0 %v2674
      %3063 = vmatprep.subr.bf16.mxu0 0
      %3064 = vmatpush1.bf16.msra.mxu0 0
      %3065 = vmatprep.subr.bf16.mxu0 0
      %3066 = vmatpush1.bf16.msra.mxu0 0
      %3067 = vmatprep.subr.bf16.mxu0 0
      %3068 = vmatpush1.bf16.msra.mxu0 0
      %3069 = vmatprep.subr.bf16.mxu0 0
      %3070 = vmatpush1.bf16.msra.mxu0 0
      %3071 = vmatprep.subr.bf16.mxu0 0
      %3072 = vmatpush1.bf16.msra.mxu0 0
      %3073 = vmatprep.subr.bf16.mxu0 0
      %3074 = vmatpush1.bf16.msra.mxu0 0
      %3075 = vmatprep.subr.bf16.mxu0 0
      %3076 = vmatpush1.bf16.msra.mxu0 0
      %3077 = vmatprep.subr.bf16.mxu0 0
      %3078 = vmatpush1.bf16.msra.mxu0 0
      %3079 = vmatprep.subr.bf16.mxu0 0
      %3080 = vmatpush1.bf16.msra.mxu0 0
      %3081 = vmatprep.subr.bf16.mxu0 0
      %3082 = vmatpush1.bf16.msra.mxu0 0
      %3083 = vmatprep.subr.bf16.mxu0 0
      %3084 = vmatpush1.bf16.msra.mxu0 0
      %3085 = vmatprep.mubr.bf16.mxu0 0
      %3086 = vmatmul.mubr.bf16.gmra.mrb[0].mxu0 %v1405
      %v3087 = vpop.f32.mrb[0].mxu0
      %v3088 = vadd.f32 0.0, %v3087
      %v3089 = vpop.f32.mrb[0].mxu0
      %v3090 = vadd.f32 0.0, %v3089
      %v3091 = vpop.f32.mrb[0].mxu0
      %v3092 = vadd.f32 0.0, %v3091
      %v3093 = vpop.f32.mrb[0].mxu0
      %v3094 = vadd.f32 0.0, %v3093
      %3095 = vdwg.mxu0
      %3096 = vmatprep.subr.bf16.mxu0 %v2383
      %3097 = vmatpush1.bf16.msra.mxu0 %v2381
      %3098 = vmatprep.subr.bf16.mxu0 %v2459
      %3099 = vmatpush1.bf16.msra.mxu0 %v2456
      %3100 = vmatprep.subr.bf16.mxu0 %v2543
      %3101 = vmatpush1.bf16.msra.mxu0 %v2540
      %3102 = vmatprep.subr.bf16.mxu0 %v2607
      %3103 = vmatpush1.bf16.msra.mxu0 %v2605
      %3104 = vmatprep.subr.bf16.mxu0 %v2683
      %3105 = vmatpush1.bf16.msra.mxu0 %v2680
      %3106 = vmatprep.subr.bf16.mxu0 0
      %3107 = vmatpush1.bf16.msra.mxu0 0
      %3108 = vmatprep.subr.bf16.mxu0 0
      %3109 = vmatpush1.bf16.msra.mxu0 0
      %3110 = vmatprep.subr.bf16.mxu0 0
      %3111 = vmatpush1.bf16.msra.mxu0 0
      %3112 = vmatprep.subr.bf16.mxu0 0
      %3113 = vmatpush1.bf16.msra.mxu0 0
      %3114 = vmatprep.subr.bf16.mxu0 0
      %3115 = vmatpush1.bf16.msra.mxu0 0
      %3116 = vmatprep.subr.bf16.mxu0 0
      %3117 = vmatpush1.bf16.msra.mxu0 0
      %3118 = vmatprep.subr.bf16.mxu0 0
      %3119 = vmatpush1.bf16.msra.mxu0 0
      %3120 = vmatprep.subr.bf16.mxu0 0
      %3121 = vmatpush1.bf16.msra.mxu0 0
      %3122 = vmatprep.subr.bf16.mxu0 0
      %3123 = vmatpush1.bf16.msra.mxu0 0
      %3124 = vmatprep.subr.bf16.mxu0 0
      %3125 = vmatpush1.bf16.msra.mxu0 0
      %3126 = vmatprep.subr.bf16.mxu0 0
      %3127 = vmatpush1.bf16.msra.mxu0 0
      %3128 = vmatprep.mubr.bf16.mxu0 0
      %3129 = vmatmul.mubr.bf16.gmra.mrb[0].mxu0 %v1405
      %v3130 = vpop.f32.mrb[0].mxu0
      %v3131 = vadd.f32 0.0, %v3130
      %v3132 = vpop.f32.mrb[0].mxu0
      %v3133 = vadd.f32 0.0, %v3132
      %v3134 = vpop.f32.mrb[0].mxu0
      %v3135 = vadd.f32 0.0, %v3134
      %v3136 = vpop.f32.mrb[0].mxu0
      %v3137 = vadd.f32 0.0, %v3136
      %3138 = vdwg.mxu0
      %3139 = vmatprep.subr.bf16.mxu0 %v2387
      %3140 = vmatpush1.bf16.msra.mxu0 %v2385
      %3141 = vmatprep.subr.bf16.mxu0 %v2465
      %3142 = vmatpush1.bf16.msra.mxu0 %v2462
      %3143 = vmatprep.subr.bf16.mxu0 %v2549
      %3144 = vmatpush1.bf16.msra.mxu0 %v2546
      %3145 = vmatprep.subr.bf16.mxu0 %v2611
      %3146 = vmatpush1.bf16.msra.mxu0 %v2609
      %3147 = vmatprep.subr.bf16.mxu0 %v2689
      %3148 = vmatpush1.bf16.msra.mxu0 %v2686
      %3149 = vmatprep.subr.bf16.mxu0 0
      %3150 = vmatpush1.bf16.msra.mxu0 0
      %3151 = vmatprep.subr.bf16.mxu0 0
      %3152 = vmatpush1.bf16.msra.mxu0 0
      %3153 = vmatprep.subr.bf16.mxu0 0
      %3154 = vmatpush1.bf16.msra.mxu0 0
      %3155 = vmatprep.subr.bf16.mxu0 0
      %3156 = vmatpush1.bf16.msra.mxu0 0
      %3157 = vmatprep.subr.bf16.mxu0 0
      %3158 = vmatpush1.bf16.msra.mxu0 0
      %3159 = vmatprep.subr.bf16.mxu0 0
      %3160 = vmatpush1.bf16.msra.mxu0 0
      %3161 = vmatprep.subr.bf16.mxu0 0
      %3162 = vmatpush1.bf16.msra.mxu0 0
      %3163 = vmatprep.subr.bf16.mxu0 0
      %3164 = vmatpush1.bf16.msra.mxu0 0
      %3165 = vmatprep.subr.bf16.mxu0 0
      %3166 = vmatpush1.bf16.msra.mxu0 0
      %3167 = vmatprep.subr.bf16.mxu0 0
      %3168 = vmatpush1.bf16.msra.mxu0 0
      %3169 = vmatprep.subr.bf16.mxu0 0
      %3170 = vmatpush1.bf16.msra.mxu0 0
      %3171 = vmatprep.mubr.bf16.mxu0 0
      %3172 = vmatmul.mubr.bf16.gmra.mrb[0].mxu0 %v1405
      %v3173 = vpop.f32.mrb[0].mxu0
      %v3174 = vadd.f32 0.0, %v3173
      %v3175 = vpop.f32.mrb[0].mxu0
      %v3176 = vadd.f32 0.0, %v3175
      %v3177 = vpop.f32.mrb[0].mxu0
      %v3178 = vadd.f32 0.0, %v3177
      %v3179 = vpop.f32.mrb[0].mxu0
      %v3180 = vadd.f32 0.0, %v3179
      %3181 = vdwg.mxu0
      %3182 = vmatprep.subr.bf16.mxu0 %v2391
      %3183 = vmatpush1.bf16.msra.mxu0 %v2389
      %3184 = vmatprep.subr.bf16.mxu0 %v2471
      %3185 = vmatpush1.bf16.msra.mxu0 %v2468
      %3186 = vmatprep.subr.bf16.mxu0 %v2555
      %3187 = vmatpush1.bf16.msra.mxu0 %v2552
      %3188 = vmatprep.subr.bf16.mxu0 %v2615
      %3189 = vmatpush1.bf16.msra.mxu0 %v2613
      %3190 = vmatprep.subr.bf16.mxu0 %v2695
      %3191 = vmatpush1.bf16.msra.mxu0 %v2692
      %3192 = vmatprep.subr.bf16.mxu0 0
      %3193 = vmatpush1.bf16.msra.mxu0 0
      %3194 = vmatprep.subr.bf16.mxu0 0
      %3195 = vmatpush1.bf16.msra.mxu0 0
      %3196 = vmatprep.subr.bf16.mxu0 0
      %3197 = vmatpush1.bf16.msra.mxu0 0
      %3198 = vmatprep.subr.bf16.mxu0 0
      %3199 = vmatpush1.bf16.msra.mxu0 0
      %3200 = vmatprep.subr.bf16.mxu0 0
      %3201 = vmatpush1.bf16.msra.mxu0 0
      %3202 = vmatprep.subr.bf16.mxu0 0
      %3203 = vmatpush1.bf16.msra.mxu0 0
      %3204 = vmatprep.subr.bf16.mxu0 0
      %3205 = vmatpush1.bf16.msra.mxu0 0
      %3206 = vmatprep.subr.bf16.mxu0 0
      %3207 = vmatpush1.bf16.msra.mxu0 0
      %3208 = vmatprep.subr.bf16.mxu0 0
      %3209 = vmatpush1.bf16.msra.mxu0 0
      %3210 = vmatprep.subr.bf16.mxu0 0
      %3211 = vmatpush1.bf16.msra.mxu0 0
      %3212 = vmatprep.subr.bf16.mxu0 0
      %3213 = vmatpush1.bf16.msra.mxu0 0
      %3214 = vmatprep.mubr.bf16.mxu0 0
      %3215 = vmatmul.mubr.bf16.gmra.mrb[0].mxu0 %v1405
      %v3216 = vpop.f32.mrb[0].mxu0
      %v3217 = vadd.f32 0.0, %v3216
      %v3218 = vpop.f32.mrb[0].mxu0
      %v3219 = vadd.f32 0.0, %v3218
      %v3220 = vpop.f32.mrb[0].mxu0
      %v3221 = vadd.f32 0.0, %v3220
      %v3222 = vpop.f32.mrb[0].mxu0
      %v3223 = vadd.f32 0.0, %v3222
      %3224 = vdwg.mxu0
      %3225 = vmatprep.subr.bf16.mxu0 %v2395
      %3226 = vmatpush1.bf16.msra.mxu0 %v2393
      %3227 = vmatprep.subr.bf16.mxu0 %v2477
      %3228 = vmatpush1.bf16.msra.mxu0 %v2474
      %3229 = vmatprep.subr.bf16.mxu0 %v2561
      %3230 = vmatpush1.bf16.msra.mxu0 %v2558
      %3231 = vmatprep.subr.bf16.mxu0 %v2619
      %3232 = vmatpush1.bf16.msra.mxu0 %v2617
      %3233 = vmatprep.subr.bf16.mxu0 %v2701
      %3234 = vmatpush1.bf16.msra.mxu0 %v2698
      %3235 = vmatprep.subr.bf16.mxu0 0
      %3236 = vmatpush1.bf16.msra.mxu0 0
      %3237 = vmatprep.subr.bf16.mxu0 0
      %3238 = vmatpush1.bf16.msra.mxu0 0
      %3239 = vmatprep.subr.bf16.mxu0 0
      %3240 = vmatpush1.bf16.msra.mxu0 0
      %3241 = vmatprep.subr.bf16.mxu0 0
      %3242 = vmatpush1.bf16.msra.mxu0 0
      %3243 = vmatprep.subr.bf16.mxu0 0
      %3244 = vmatpush1.bf16.msra.mxu0 0
      %3245 = vmatprep.subr.bf16.mxu0 0
      %3246 = vmatpush1.bf16.msra.mxu0 0
      %3247 = vmatprep.subr.bf16.mxu0 0
      %3248 = vmatpush1.bf16.msra.mxu0 0
      %3249 = vmatprep.subr.bf16.mxu0 0
      %3250 = vmatpush1.bf16.msra.mxu0 0
      %3251 = vmatprep.subr.bf16.mxu0 0
      %3252 = vmatpush1.bf16.msra.mxu0 0
      %3253 = vmatprep.subr.bf16.mxu0 0
      %3254 = vmatpush1.bf16.msra.mxu0 0
      %3255 = vmatprep.subr.bf16.mxu0 0
      %3256 = vmatpush1.bf16.msra.mxu0 0
      %3257 = vmatprep.mubr.bf16.mxu0 0
      %3258 = vmatmul.mubr.bf16.gmra.mrb[0].mxu0 %v1405
      %v3259 = vpop.f32.mrb[0].mxu0
      %v3260 = vadd.f32 0.0, %v3259
      %v3261 = vpop.f32.mrb[0].mxu0
      %v3262 = vadd.f32 0.0, %v3261
      %v3263 = vpop.f32.mrb[0].mxu0
      %v3264 = vadd.f32 0.0, %v3263
      %v3265 = vpop.f32.mrb[0].mxu0
      %v3266 = vadd.f32 0.0, %v3265
      %3267 = vdwg.mxu0
      %3268 = vmatprep.subr.bf16.mxu0 %v2399
      %3269 = vmatpush1.bf16.msra.mxu0 %v2397
      %3270 = vmatprep.subr.bf16.mxu0 %v2483
      %3271 = vmatpush1.bf16.msra.mxu0 %v2480
      %3272 = vmatprep.subr.bf16.mxu0 %v2567
      %3273 = vmatpush1.bf16.msra.mxu0 %v2564
      %3274 = vmatprep.subr.bf16.mxu0 %v2623
      %3275 = vmatpush1.bf16.msra.mxu0 %v2621
      %3276 = vmatprep.subr.bf16.mxu0 %v2707
      %3277 = vmatpush1.bf16.msra.mxu0 %v2704
      %3278 = vmatprep.subr.bf16.mxu0 0
      %3279 = vmatpush1.bf16.msra.mxu0 0
      %3280 = vmatprep.subr.bf16.mxu0 0
      %3281 = vmatpush1.bf16.msra.mxu0 0
      %3282 = vmatprep.subr.bf16.mxu0 0
      %3283 = vmatpush1.bf16.msra.mxu0 0
      %3284 = vmatprep.subr.bf16.mxu0 0
      %3285 = vmatpush1.bf16.msra.mxu0 0
      %3286 = vmatprep.subr.bf16.mxu0 0
      %3287 = vmatpush1.bf16.msra.mxu0 0
      %3288 = vmatprep.subr.bf16.mxu0 0
      %3289 = vmatpush1.bf16.msra.mxu0 0
      %3290 = vmatprep.subr.bf16.mxu0 0
      %3291 = vmatpush1.bf16.msra.mxu0 0
      %3292 = vmatprep.subr.bf16.mxu0 0
      %3293 = vmatpush1.bf16.msra.mxu0 0
      %3294 = vmatprep.subr.bf16.mxu0 0
      %3295 = vmatpush1.bf16.msra.mxu0 0
      %3296 = vmatprep.subr.bf16.mxu0 0
      %3297 = vmatpush1.bf16.msra.mxu0 0
      %3298 = vmatprep.subr.bf16.mxu0 0
      %3299 = vmatpush1.bf16.msra.mxu0 0
      %3300 = vmatprep.mubr.bf16.mxu0 0
      %3301 = vmatmul.mubr.bf16.gmra.mrb[0].mxu0 %v1405
      %v3302 = vpop.f32.mrb[0].mxu0
      %v3303 = vadd.f32 0.0, %v3302
      %v3304 = vpop.f32.mrb[0].mxu0
      %v3305 = vadd.f32 0.0, %v3304
      %v3306 = vpop.f32.mrb[0].mxu0
      %v3307 = vadd.f32 0.0, %v3306
      %v3308 = vpop.f32.mrb[0].mxu0
      %v3309 = vadd.f32 0.0, %v3308
      %3310 = vdwg.mxu0
      %v3311 = vmax.f32 %v1526, %v2744
      %v3312 = vmax.f32 %v1528, %v2746
      %v3313 = vmax.f32 %v1569, %v2787
      %v3314 = vmax.f32 %v1571, %v2789
      %v3315 = vmax.f32 %v1612, %v2830
      %v3316 = vmax.f32 %v1614, %v2832
      %v3317 = vmax.f32 %v1655, %v2873
      %v3318 = vmax.f32 %v1657, %v2875
      %v3319 = vmax.f32 %v1698, %v2916
      %v3320 = vmax.f32 %v1700, %v2918
      %v3321 = vmax.f32 %v1741, %v2959
      %v3322 = vmax.f32 %v1743, %v2961
      %v3323 = vmax.f32 %v1784, %v3002
      %v3324 = vmax.f32 %v1786, %v3004
      %v3325 = vmax.f32 %v1827, %v3045
      %v3326 = vmax.f32 %v1829, %v3047
      %v3327 = vmax.f32 %v1870, %v3088
      %v3328 = vmax.f32 %v1872, %v3090
      %v3329 = vmax.f32 %v1913, %v3131
      %v3330 = vmax.f32 %v1915, %v3133
      %v3331 = vmax.f32 %v1956, %v3174
      %v3332 = vmax.f32 %v1958, %v3176
      %v3333 = vmax.f32 %v1999, %v3217
      %v3334 = vmax.f32 %v2001, %v3219
      %v3335 = vmax.f32 %v2042, %v3260
      %v3336 = vmax.f32 %v2044, %v3262
      %v3337 = vmax.f32 %v2085, %v3303
      %v3338 = vmax.f32 %v2087, %v3305
      %v3339 = vmax.f32 %v1530, %v2748
      %v3340 = vmax.f32 %v1532, %v2750
      %v3341 = vmax.f32 %v1573, %v2791
      %v3342 = vmax.f32 %v1575, %v2793
      %v3343 = vmax.f32 %v1616, %v2834
      %v3344 = vmax.f32 %v1618, %v2836
      %v3345 = vmax.f32 %v1659, %v2877
      %v3346 = vmax.f32 %v1661, %v2879
      %v3347 = vmax.f32 %v1702, %v2920
      %v3348 = vmax.f32 %v1704, %v2922
      %v3349 = vmax.f32 %v1745, %v2963
      %v3350 = vmax.f32 %v1747, %v2965
      %v3351 = vmax.f32 %v1788, %v3006
      %v3352 = vmax.f32 %v1790, %v3008
      %v3353 = vmax.f32 %v1831, %v3049
      %v3354 = vmax.f32 %v1833, %v3051
      %v3355 = vmax.f32 %v1874, %v3092
      %v3356 = vmax.f32 %v1876, %v3094
      %v3357 = vmax.f32 %v1917, %v3135
      %v3358 = vmax.f32 %v1919, %v3137
      %v3359 = vmax.f32 %v1960, %v3178
      %v3360 = vmax.f32 %v1962, %v3180
      %v3361 = vmax.f32 %v2003, %v3221
      %v3362 = vmax.f32 %v2005, %v3223
      %v3363 = vmax.f32 %v2046, %v3264
      %v3364 = vmax.f32 %v2048, %v3266
      %v3365 = vmax.f32 %v2089, %v3307
      %v3366 = vmax.f32 %v2091, %v3309
      %v3368 = vunpack.c.l.b16 %v216
      %v3369 = vpack.c.b16 %v3368, %v3368
      %3370 = vrot.lane.b32.xlu0 %v502, 68
      %v3371 = vpop.permute.xlu0 %3370
      %3372 = vrot.lane.b32.xlu0 %v503, 68
      %v3373 = vpop.permute.xlu0 %3372
      %3374 = vrot.lane.b32.xlu0 %v504, 68
      %v3375 = vpop.permute.xlu0 %3374
      %3376 = vrot.lane.b32.xlu0 %v505, 68
      %v3377 = vpop.permute.xlu0 %3376
      %3378 = vrot.lane.b32.xlu0 %v506, 68
      %v3379 = vpop.permute.xlu0 %3378
      %3380 = vrot.lane.b32.xlu0 %v507, 68
      %v3381 = vpop.permute.xlu0 %3380
      %3382 = vrot.lane.b32.xlu0 %v508, 68
      %v3383 = vpop.permute.xlu0 %3382
      %3384 = vrot.lane.b32.xlu0 %v509, 68
      %v3385 = vpop.permute.xlu0 %3384
      %3386 = vrot.lane.b32.xlu0 %v510, 68
      %v3387 = vpop.permute.xlu0 %3386
      %3388 = vrot.lane.b32.xlu0 %v511, 68
      %v3389 = vpop.permute.xlu0 %3388
      %3390 = vrot.lane.b32.xlu0 %v512, 68
      %v3391 = vpop.permute.xlu0 %3390
      %3392 = vrot.lane.b32.xlu0 %v513, 68
      %v3393 = vpop.permute.xlu0 %3392
      %3394 = vrot.lane.b32.xlu0 %v514, 68
      %v3395 = vpop.permute.xlu0 %3394
      %3396 = vrot.lane.b32.xlu0 %v515, 68
      %v3397 = vpop.permute.xlu0 %3396
      %3398 = vrot.lane.b32.xlu0 %v516, 68
      %v3399 = vpop.permute.xlu0 %3398
      %3400 = vrot.lane.b32.xlu0 %v517, 68
      %v3401 = vpop.permute.xlu0 %3400
      %3402 = vrot.lane.b32.xlu0 %v518, 68
      %v3403 = vpop.permute.xlu0 %3402
      %3404 = vrot.lane.b32.xlu0 %v519, 68
      %v3405 = vpop.permute.xlu0 %3404
      %3406 = vrot.lane.b32.xlu0 %v520, 68
      %v3407 = vpop.permute.xlu0 %3406
      %3408 = vrot.lane.b32.xlu0 %v521, 68
      %v3409 = vpop.permute.xlu0 %3408
      %3410 = vrot.lane.b32.xlu0 %v522, 68
      %v3411 = vpop.permute.xlu0 %3410
      %3412 = vrot.lane.b32.xlu0 %v523, 68
      %v3413 = vpop.permute.xlu0 %3412
      %3414 = vrot.lane.b32.xlu0 %v524, 68
      %v3415 = vpop.permute.xlu0 %3414
      %3416 = vrot.lane.b32.xlu0 %v525, 68
      %v3417 = vpop.permute.xlu0 %3416
      %3418 = vrot.lane.b32.xlu0 %v526, 68
      %v3419 = vpop.permute.xlu0 %3418
      %3420 = vrot.lane.b32.xlu0 %v527, 68
      %v3421 = vpop.permute.xlu0 %3420
      %3422 = vrot.lane.b32.xlu0 %v528, 68
      %v3423 = vpop.permute.xlu0 %3422
      %3424 = vrot.lane.b32.xlu0 %v529, 68
      %v3425 = vpop.permute.xlu0 %3424
      %3426 = vrot.lane.b32.xlu0 %v3369, 68
      %v3427 = vpop.permute.xlu0 %3426
      %v3428 = vsel %vm744, %v3371, %v3373
      %v3429 = vsel %vm744, %v3373, %v3375
      %v3430 = vsel %vm744, %v3375, %v3377
      %v3431 = vsel %vm744, %v3377, %v3379
      %v3432 = vsel %vm744, %v3379, %v3381
      %v3433 = vsel %vm744, %v3381, %v3383
      %v3434 = vsel %vm744, %v3383, %v3385
      %v3435 = vsel %vm744, %v3385, %v3387
      %v3436 = vsel %vm744, %v3387, %v3389
      %v3437 = vsel %vm744, %v3389, %v3391
      %v3438 = vsel %vm744, %v3391, %v3393
      %v3439 = vsel %vm744, %v3393, %v3395
      %v3440 = vsel %vm744, %v3395, %v3397
      %v3441 = vsel %vm744, %v3397, %v3399
      %v3442 = vsel %vm744, %v3399, %v3401
      %v3443 = vsel %vm744, %v3401, %v3403
      %v3444 = vsel %vm744, %v3403, %v3405
      %v3445 = vsel %vm744, %v3405, %v3407
      %v3446 = vsel %vm744, %v3407, %v3409
      %v3447 = vsel %vm744, %v3409, %v3411
      %v3448 = vsel %vm744, %v3411, %v3413
      %v3449 = vsel %vm744, %v3413, %v3415
      %v3450 = vsel %vm744, %v3415, %v3417
      %v3451 = vsel %vm744, %v3417, %v3419
      %v3452 = vsel %vm744, %v3419, %v3421
      %v3453 = vsel %vm744, %v3421, %v3423
      %v3454 = vsel %vm744, %v3423, %v3425
      %v3455 = vsel %vm744, %v3425, %v3427
      %v3457 = vunpack.c.l.b16 %v231
      %v3458 = vpack.c.b16 %v3457, %v3457
      %3459 = vrot.lane.b32.xlu0 %v572, 68
      %v3460 = vpop.permute.xlu0 %3459
      %3461 = vrot.lane.b32.xlu0 %v573, 68
      %v3462 = vpop.permute.xlu0 %3461
      %3463 = vrot.lane.b32.xlu0 %v574, 68
      %v3464 = vpop.permute.xlu0 %3463
      %3465 = vrot.lane.b32.xlu0 %v575, 68
      %v3466 = vpop.permute.xlu0 %3465
      %3467 = vrot.lane.b32.xlu0 %v576, 68
      %v3468 = vpop.permute.xlu0 %3467
      %3469 = vrot.lane.b32.xlu0 %v577, 68
      %v3470 = vpop.permute.xlu0 %3469
      %3471 = vrot.lane.b32.xlu0 %v578, 68
      %v3472 = vpop.permute.xlu0 %3471
      %3473 = vrot.lane.b32.xlu0 %v579, 68
      %v3474 = vpop.permute.xlu0 %3473
      %3475 = vrot.lane.b32.xlu0 %v580, 68
      %v3476 = vpop.permute.xlu0 %3475
      %3477 = vrot.lane.b32.xlu0 %v581, 68
      %v3478 = vpop.permute.xlu0 %3477
      %3479 = vrot.lane.b32.xlu0 %v582, 68
      %v3480 = vpop.permute.xlu0 %3479
      %3481 = vrot.lane.b32.xlu0 %v583, 68
      %v3482 = vpop.permute.xlu0 %3481
      %3483 = vrot.lane.b32.xlu0 %v584, 68
      %v3484 = vpop.permute.xlu0 %3483
      %3485 = vrot.lane.b32.xlu0 %v585, 68
      %v3486 = vpop.permute.xlu0 %3485
      %3487 = vrot.lane.b32.xlu0 %v586, 68
      %v3488 = vpop.permute.xlu0 %3487
      %3489 = vrot.lane.b32.xlu0 %v587, 68
      %v3490 = vpop.permute.xlu0 %3489
      %3491 = vrot.lane.b32.xlu0 %v588, 68
      %v3492 = vpop.permute.xlu0 %3491
      %3493 = vrot.lane.b32.xlu0 %v589, 68
      %v3494 = vpop.permute.xlu0 %3493
      %3495 = vrot.lane.b32.xlu0 %v590, 68
      %v3496 = vpop.permute.xlu0 %3495
      %3497 = vrot.lane.b32.xlu0 %v591, 68
      %v3498 = vpop.permute.xlu0 %3497
      %3499 = vrot.lane.b32.xlu0 %v592, 68
      %v3500 = vpop.permute.xlu0 %3499
      %3501 = vrot.lane.b32.xlu0 %v593, 68
      %v3502 = vpop.permute.xlu0 %3501
      %3503 = vrot.lane.b32.xlu0 %v594, 68
      %v3504 = vpop.permute.xlu0 %3503
      %3505 = vrot.lane.b32.xlu0 %v595, 68
      %v3506 = vpop.permute.xlu0 %3505
      %3507 = vrot.lane.b32.xlu0 %v596, 68
      %v3508 = vpop.permute.xlu0 %3507
      %3509 = vrot.lane.b32.xlu0 %v597, 68
      %v3510 = vpop.permute.xlu0 %3509
      %3511 = vrot.lane.b32.xlu0 %v598, 68
      %v3512 = vpop.permute.xlu0 %3511
      %3513 = vrot.lane.b32.xlu0 %v599, 68
      %v3514 = vpop.permute.xlu0 %3513
      %3515 = vrot.lane.b32.xlu0 %v3458, 68
      %v3516 = vpop.permute.xlu0 %3515
      %v3517 = vsel %vm744, %v3460, %v3462
      %v3518 = vsel %vm744, %v3462, %v3464
      %v3519 = vsel %vm744, %v3464, %v3466
      %v3520 = vsel %vm744, %v3466, %v3468
      %v3521 = vsel %vm744, %v3468, %v3470
      %v3522 = vsel %vm744, %v3470, %v3472
      %v3523 = vsel %vm744, %v3472, %v3474
      %v3524 = vsel %vm744, %v3474, %v3476
      %v3525 = vsel %vm744, %v3476, %v3478
      %v3526 = vsel %vm744, %v3478, %v3480
      %v3527 = vsel %vm744, %v3480, %v3482
      %v3528 = vsel %vm744, %v3482, %v3484
      %v3529 = vsel %vm744, %v3484, %v3486
      %v3530 = vsel %vm744, %v3486, %v3488
      %v3531 = vsel %vm744, %v3488, %v3490
      %v3532 = vsel %vm744, %v3490, %v3492
      %v3533 = vsel %vm744, %v3492, %v3494
      %v3534 = vsel %vm744, %v3494, %v3496
      %v3535 = vsel %vm744, %v3496, %v3498
      %v3536 = vsel %vm744, %v3498, %v3500
      %v3537 = vsel %vm744, %v3500, %v3502
      %v3538 = vsel %vm744, %v3502, %v3504
      %v3539 = vsel %vm744, %v3504, %v3506
      %v3540 = vsel %vm744, %v3506, %v3508
      %v3541 = vsel %vm744, %v3508, %v3510
      %v3542 = vsel %vm744, %v3510, %v3512
      %v3543 = vsel %vm744, %v3512, %v3514
      %v3544 = vsel %vm744, %v3514, %v3516
      %3545 = vrot.lane.b32.xlu0 %v502, 67
      %v3546 = vpop.permute.xlu0 %3545
      %3547 = vrot.lane.b32.xlu0 %v503, 67
      %v3548 = vpop.permute.xlu0 %3547
      %3549 = vrot.lane.b32.xlu0 %v504, 67
      %v3550 = vpop.permute.xlu0 %3549
      %3551 = vrot.lane.b32.xlu0 %v505, 67
      %v3552 = vpop.permute.xlu0 %3551
      %3553 = vrot.lane.b32.xlu0 %v506, 67
      %v3554 = vpop.permute.xlu0 %3553
      %3555 = vrot.lane.b32.xlu0 %v507, 67
      %v3556 = vpop.permute.xlu0 %3555
      %3557 = vrot.lane.b32.xlu0 %v508, 67
      %v3558 = vpop.permute.xlu0 %3557
      %3559 = vrot.lane.b32.xlu0 %v509, 67
      %v3560 = vpop.permute.xlu0 %3559
      %3561 = vrot.lane.b32.xlu0 %v510, 67
      %v3562 = vpop.permute.xlu0 %3561
      %3563 = vrot.lane.b32.xlu0 %v511, 67
      %v3564 = vpop.permute.xlu0 %3563
      %3565 = vrot.lane.b32.xlu0 %v512, 67
      %v3566 = vpop.permute.xlu0 %3565
      %3567 = vrot.lane.b32.xlu0 %v513, 67
      %v3568 = vpop.permute.xlu0 %3567
      %3569 = vrot.lane.b32.xlu0 %v514, 67
      %v3570 = vpop.permute.xlu0 %3569
      %3571 = vrot.lane.b32.xlu0 %v515, 67
      %v3572 = vpop.permute.xlu0 %3571
      %3573 = vrot.lane.b32.xlu0 %v516, 67
      %v3574 = vpop.permute.xlu0 %3573
      %3575 = vrot.lane.b32.xlu0 %v517, 67
      %v3576 = vpop.permute.xlu0 %3575
      %3577 = vrot.lane.b32.xlu0 %v518, 67
      %v3578 = vpop.permute.xlu0 %3577
      %3579 = vrot.lane.b32.xlu0 %v519, 67
      %v3580 = vpop.permute.xlu0 %3579
      %3581 = vrot.lane.b32.xlu0 %v520, 67
      %v3582 = vpop.permute.xlu0 %3581
      %3583 = vrot.lane.b32.xlu0 %v521, 67
      %v3584 = vpop.permute.xlu0 %3583
      %3585 = vrot.lane.b32.xlu0 %v522, 67
      %v3586 = vpop.permute.xlu0 %3585
      %3587 = vrot.lane.b32.xlu0 %v523, 67
      %v3588 = vpop.permute.xlu0 %3587
      %3589 = vrot.lane.b32.xlu0 %v524, 67
      %v3590 = vpop.permute.xlu0 %3589
      %3591 = vrot.lane.b32.xlu0 %v525, 67
      %v3592 = vpop.permute.xlu0 %3591
      %3593 = vrot.lane.b32.xlu0 %v526, 67
      %v3594 = vpop.permute.xlu0 %3593
      %3595 = vrot.lane.b32.xlu0 %v527, 67
      %v3596 = vpop.permute.xlu0 %3595
      %3597 = vrot.lane.b32.xlu0 %v528, 67
      %v3598 = vpop.permute.xlu0 %3597
      %3599 = vrot.lane.b32.xlu0 %v529, 67
      %v3600 = vpop.permute.xlu0 %3599
      %3601 = vrot.lane.b32.xlu0 %v3369, 67
      %v3602 = vpop.permute.xlu0 %3601
      %v3603 = vsel %vm920, %v3546, %v3548
      %v3604 = vsel %vm920, %v3548, %v3550
      %v3605 = vsel %vm920, %v3550, %v3552
      %v3606 = vsel %vm920, %v3552, %v3554
      %v3607 = vsel %vm920, %v3554, %v3556
      %v3608 = vsel %vm920, %v3556, %v3558
      %v3609 = vsel %vm920, %v3558, %v3560
      %v3610 = vsel %vm920, %v3560, %v3562
      %v3611 = vsel %vm920, %v3562, %v3564
      %v3612 = vsel %vm920, %v3564, %v3566
      %v3613 = vsel %vm920, %v3566, %v3568
      %v3614 = vsel %vm920, %v3568, %v3570
      %v3615 = vsel %vm920, %v3570, %v3572
      %v3616 = vsel %vm920, %v3572, %v3574
      %v3617 = vsel %vm920, %v3574, %v3576
      %v3618 = vsel %vm920, %v3576, %v3578
      %v3619 = vsel %vm920, %v3578, %v3580
      %v3620 = vsel %vm920, %v3580, %v3582
      %v3621 = vsel %vm920, %v3582, %v3584
      %v3622 = vsel %vm920, %v3584, %v3586
      %v3623 = vsel %vm920, %v3586, %v3588
      %v3624 = vsel %vm920, %v3588, %v3590
      %v3625 = vsel %vm920, %v3590, %v3592
      %v3626 = vsel %vm920, %v3592, %v3594
      %v3627 = vsel %vm920, %v3594, %v3596
      %v3628 = vsel %vm920, %v3596, %v3598
      %v3629 = vsel %vm920, %v3598, %v3600
      %v3630 = vsel %vm920, %v3600, %v3602
      %v3631 = vsel %vm949, %v502, %v572
      %v3633 = vsel %vm949, %v503, %v573
      %v3635 = vsel %vm949, %v504, %v574
      %v3637 = vsel %vm949, %v505, %v575
      %v3639 = vsel %vm949, %v506, %v576
      %v3641 = vsel %vm949, %v507, %v577
      %v3643 = vsel %vm949, %v508, %v578
      %v3645 = vsel %vm949, %v509, %v579
      %v3647 = vsel %vm949, %v510, %v580
      %v3649 = vsel %vm949, %v511, %v581
      %v3651 = vsel %vm949, %v512, %v582
      %v3653 = vsel %vm949, %v513, %v583
      %v3655 = vsel %vm949, %v514, %v584
      %v3657 = vsel %vm949, %v515, %v585
      %v3659 = vsel %vm949, %v516, %v586
      %v3661 = vsel %vm949, %v517, %v587
      %v3663 = vsel %vm949, %v518, %v588
      %v3665 = vsel %vm949, %v519, %v589
      %v3667 = vsel %vm949, %v520, %v590
      %v3669 = vsel %vm949, %v521, %v591
      %v3671 = vsel %vm949, %v522, %v592
      %v3673 = vsel %vm949, %v523, %v593
      %v3675 = vsel %vm949, %v524, %v594
      %v3677 = vsel %vm949, %v525, %v595
      %v3679 = vsel %vm949, %v526, %v596
      %v3681 = vsel %vm949, %v527, %v597
      %v3683 = vsel %vm949, %v528, %v598
      %v3685 = vsel %vm949, %v529, %v599
      %v3687 = vsel %vm949, %v656, %v745
      %v3689 = vsel %vm949, %v657, %v746
      %v3691 = vsel %vm949, %v658, %v747
      %v3693 = vsel %vm949, %v659, %v748
      %v3695 = vsel %vm949, %v660, %v749
      %v3697 = vsel %vm949, %v661, %v750
      %v3699 = vsel %vm949, %v662, %v751
      %v3701 = vsel %vm949, %v663, %v752
      %v3703 = vsel %vm949, %v664, %v753
      %v3705 = vsel %vm949, %v665, %v754
      %v3707 = vsel %vm949, %v666, %v755
      %v3709 = vsel %vm949, %v667, %v756
      %v3711 = vsel %vm949, %v668, %v757
      %v3713 = vsel %vm949, %v669, %v758
      %v3715 = vsel %vm949, %v670, %v759
      %v3717 = vsel %vm949, %v671, %v760
      %v3719 = vsel %vm949, %v672, %v761
      %v3721 = vsel %vm949, %v673, %v762
      %v3723 = vsel %vm949, %v674, %v763
      %v3725 = vsel %vm949, %v675, %v764
      %v3727 = vsel %vm949, %v676, %v765
      %v3729 = vsel %vm949, %v677, %v766
      %v3731 = vsel %vm949, %v678, %v767
      %v3733 = vsel %vm949, %v679, %v768
      %v3735 = vsel %vm949, %v680, %v769
      %v3737 = vsel %vm949, %v681, %v770
      %v3739 = vsel %vm949, %v682, %v771
      %v3741 = vsel %vm949, %v655, %v772
      %v3745 = vsel %vm949, %v3428, %v3517
      %v3749 = vsel %vm949, %v3429, %v3518
      %v3753 = vsel %vm949, %v3430, %v3519
      %v3757 = vsel %vm949, %v3431, %v3520
      %v3761 = vsel %vm949, %v3432, %v3521
      %v3765 = vsel %vm949, %v3433, %v3522
      %v3769 = vsel %vm949, %v3434, %v3523
      %v3773 = vsel %vm949, %v3435, %v3524
      %v3777 = vsel %vm949, %v3436, %v3525
      %v3781 = vsel %vm949, %v3437, %v3526
      %v3785 = vsel %vm949, %v3438, %v3527
      %v3789 = vsel %vm949, %v3439, %v3528
      %v3793 = vsel %vm949, %v3440, %v3529
      %v3797 = vsel %vm949, %v3441, %v3530
      %v3801 = vsel %vm949, %v3442, %v3531
      %v3805 = vsel %vm949, %v3443, %v3532
      %v3809 = vsel %vm949, %v3444, %v3533
      %v3813 = vsel %vm949, %v3445, %v3534
      %v3817 = vsel %vm949, %v3446, %v3535
      %v3821 = vsel %vm949, %v3447, %v3536
      %v3825 = vsel %vm949, %v3448, %v3537
      %v3829 = vsel %vm949, %v3449, %v3538
      %v3833 = vsel %vm949, %v3450, %v3539
      %v3837 = vsel %vm949, %v3451, %v3540
      %v3841 = vsel %vm949, %v3452, %v3541
      %v3845 = vsel %vm949, %v3453, %v3542
      %v3849 = vsel %vm949, %v3454, %v3543
      %v3853 = vsel %vm949, %v3455, %v3544
      %v3856 = vsel %vm949, %v3603, 0
      %v3859 = vsel %vm949, %v3604, 0
      %v3862 = vsel %vm949, %v3605, 0
      %v3865 = vsel %vm949, %v3606, 0
      %v3868 = vsel %vm949, %v3607, 0
      %v3871 = vsel %vm949, %v3608, 0
      %v3874 = vsel %vm949, %v3609, 0
      %v3877 = vsel %vm949, %v3610, 0
      %v3880 = vsel %vm949, %v3611, 0
      %v3883 = vsel %vm949, %v3612, 0
      %v3886 = vsel %vm949, %v3613, 0
      %v3889 = vsel %vm949, %v3614, 0
      %v3892 = vsel %vm949, %v3615, 0
      %v3895 = vsel %vm949, %v3616, 0
      %v3898 = vsel %vm949, %v3617, 0
      %v3901 = vsel %vm949, %v3618, 0
      %v3904 = vsel %vm949, %v3619, 0
      %v3907 = vsel %vm949, %v3620, 0
      %v3910 = vsel %vm949, %v3621, 0
      %v3913 = vsel %vm949, %v3622, 0
      %v3916 = vsel %vm949, %v3623, 0
      %v3919 = vsel %vm949, %v3624, 0
      %v3922 = vsel %vm949, %v3625, 0
      %v3925 = vsel %vm949, %v3626, 0
      %v3928 = vsel %vm949, %v3627, 0
      %v3931 = vsel %vm949, %v3628, 0
      %v3934 = vsel %vm949, %v3629, 0
      %v3937 = vsel %vm949, %v3630, 0
      %3939 = vmatprep.subr.bf16.mxu0 %v3633
      %3940 = vmatpush1.bf16.msra.mxu0 %v3631
      %3941 = vmatprep.subr.bf16.mxu0 %v3689
      %3942 = vmatpush1.bf16.msra.mxu0 %v3687
      %3943 = vmatprep.subr.bf16.mxu0 %v2571
      %3944 = vmatpush1.bf16.msra.mxu0 %v2569
      %3945 = vmatprep.subr.bf16.mxu0 %v3749
      %3946 = vmatpush1.bf16.msra.mxu0 %v3745
      %3947 = vmatprep.subr.bf16.mxu0 %v3859
      %3948 = vmatpush1.bf16.msra.mxu0 %v3856
      %3949 = vmatprep.subr.bf16.mxu0 0
      %3950 = vmatpush1.bf16.msra.mxu0 0
      %3951 = vmatprep.subr.bf16.mxu0 0
      %3952 = vmatpush1.bf16.msra.mxu0 0
      %3953 = vmatprep.subr.bf16.mxu0 0
      %3954 = vmatpush1.bf16.msra.mxu0 0
      %3955 = vmatprep.subr.bf16.mxu0 0
      %3956 = vmatpush1.bf16.msra.mxu0 0
      %3957 = vmatprep.subr.bf16.mxu0 0
      %3958 = vmatpush1.bf16.msra.mxu0 0
      %3959 = vmatprep.subr.bf16.mxu0 0
      %3960 = vmatpush1.bf16.msra.mxu0 0
      %3961 = vmatprep.subr.bf16.mxu0 0
      %3962 = vmatpush1.bf16.msra.mxu0 0
      %3963 = vmatprep.subr.bf16.mxu0 0
      %3964 = vmatpush1.bf16.msra.mxu0 0
      %3965 = vmatprep.subr.bf16.mxu0 0
      %3966 = vmatpush1.bf16.msra.mxu0 0
      %3967 = vmatprep.subr.bf16.mxu0 0
      %3968 = vmatpush1.bf16.msra.mxu0 0
      %3969 = vmatprep.subr.bf16.mxu0 0
      %3970 = vmatpush1.bf16.msra.mxu0 0
      %3971 = vmatprep.mubr.bf16.mxu0 0
      %3972 = vmatmul.mubr.bf16.gmra.mrb[0].mxu0 %v1405
      %v3973 = vpop.f32.mrb[0].mxu0
      %v3974 = vadd.f32 0.0, %v3973
      %v3975 = vpop.f32.mrb[0].mxu0
      %v3976 = vadd.f32 0.0, %v3975
      %v3977 = vpop.f32.mrb[0].mxu0
      %v3978 = vadd.f32 0.0, %v3977
      %v3979 = vpop.f32.mrb[0].mxu0
      %v3980 = vadd.f32 0.0, %v3979
      %3981 = vdwg.mxu0
      %3982 = vmatprep.subr.bf16.mxu0 %v3637
      %3983 = vmatpush1.bf16.msra.mxu0 %v3635
      %3984 = vmatprep.subr.bf16.mxu0 %v3693
      %3985 = vmatpush1.bf16.msra.mxu0 %v3691
      %3986 = vmatprep.subr.bf16.mxu0 %v2575
      %3987 = vmatpush1.bf16.msra.mxu0 %v2573
      %3988 = vmatprep.subr.bf16.mxu0 %v3757
      %3989 = vmatpush1.bf16.msra.mxu0 %v3753
      %3990 = vmatprep.subr.bf16.mxu0 %v3865
      %3991 = vmatpush1.bf16.msra.mxu0 %v3862
      %3992 = vmatprep.subr.bf16.mxu0 0
      %3993 = vmatpush1.bf16.msra.mxu0 0
      %3994 = vmatprep.subr.bf16.mxu0 0
      %3995 = vmatpush1.bf16.msra.mxu0 0
      %3996 = vmatprep.subr.bf16.mxu0 0
      %3997 = vmatpush1.bf16.msra.mxu0 0
      %3998 = vmatprep.subr.bf16.mxu0 0
      %3999 = vmatpush1.bf16.msra.mxu0 0
      %4000 = vmatprep.subr.bf16.mxu0 0
      %4001 = vmatpush1.bf16.msra.mxu0 0
      %4002 = vmatprep.subr.bf16.mxu0 0
      %4003 = vmatpush1.bf16.msra.mxu0 0
      %4004 = vmatprep.subr.bf16.mxu0 0
      %4005 = vmatpush1.bf16.msra.mxu0 0
      %4006 = vmatprep.subr.bf16.mxu0 0
      %4007 = vmatpush1.bf16.msra.mxu0 0
      %4008 = vmatprep.subr.bf16.mxu0 0
      %4009 = vmatpush1.bf16.msra.mxu0 0
      %4010 = vmatprep.subr.bf16.mxu0 0
      %4011 = vmatpush1.bf16.msra.mxu0 0
      %4012 = vmatprep.subr.bf16.mxu0 0
      %4013 = vmatpush1.bf16.msra.mxu0 0
      %4014 = vmatprep.mubr.bf16.mxu0 0
      %4015 = vmatmul.mubr.bf16.gmra.mrb[0].mxu0 %v1405
      %v4016 = vpop.f32.mrb[0].mxu0
      %v4017 = vadd.f32 0.0, %v4016
      %v4018 = vpop.f32.mrb[0].mxu0
      %v4019 = vadd.f32 0.0, %v4018
      %v4020 = vpop.f32.mrb[0].mxu0
      %v4021 = vadd.f32 0.0, %v4020
      %v4022 = vpop.f32.mrb[0].mxu0
      %v4023 = vadd.f32 0.0, %v4022
      %4024 = vdwg.mxu0
      %4025 = vmatprep.subr.bf16.mxu0 %v3641
      %4026 = vmatpush1.bf16.msra.mxu0 %v3639
      %4027 = vmatprep.subr.bf16.mxu0 %v3697
      %4028 = vmatpush1.bf16.msra.mxu0 %v3695
      %4029 = vmatprep.subr.bf16.mxu0 %v2579
      %4030 = vmatpush1.bf16.msra.mxu0 %v2577
      %4031 = vmatprep.subr.bf16.mxu0 %v3765
      %4032 = vmatpush1.bf16.msra.mxu0 %v3761
      %4033 = vmatprep.subr.bf16.mxu0 %v3871
      %4034 = vmatpush1.bf16.msra.mxu0 %v3868
      %4035 = vmatprep.subr.bf16.mxu0 0
      %4036 = vmatpush1.bf16.msra.mxu0 0
      %4037 = vmatprep.subr.bf16.mxu0 0
      %4038 = vmatpush1.bf16.msra.mxu0 0
      %4039 = vmatprep.subr.bf16.mxu0 0
      %4040 = vmatpush1.bf16.msra.mxu0 0
      %4041 = vmatprep.subr.bf16.mxu0 0
      %4042 = vmatpush1.bf16.msra.mxu0 0
      %4043 = vmatprep.subr.bf16.mxu0 0
      %4044 = vmatpush1.bf16.msra.mxu0 0
      %4045 = vmatprep.subr.bf16.mxu0 0
      %4046 = vmatpush1.bf16.msra.mxu0 0
      %4047 = vmatprep.subr.bf16.mxu0 0
      %4048 = vmatpush1.bf16.msra.mxu0 0
      %4049 = vmatprep.subr.bf16.mxu0 0
      %4050 = vmatpush1.bf16.msra.mxu0 0
      %4051 = vmatprep.subr.bf16.mxu0 0
      %4052 = vmatpush1.bf16.msra.mxu0 0
      %4053 = vmatprep.subr.bf16.mxu0 0
      %4054 = vmatpush1.bf16.msra.mxu0 0
      %4055 = vmatprep.subr.bf16.mxu0 0
      %4056 = vmatpush1.bf16.msra.mxu0 0
      %4057 = vmatprep.mubr.bf16.mxu0 0
      %4058 = vmatmul.mubr.bf16.gmra.mrb[0].mxu0 %v1405
      %v4059 = vpop.f32.mrb[0].mxu0
      %v4060 = vadd.f32 0.0, %v4059
      %v4061 = vpop.f32.mrb[0].mxu0
      %v4062 = vadd.f32 0.0, %v4061
      %v4063 = vpop.f32.mrb[0].mxu0
      %v4064 = vadd.f32 0.0, %v4063
      %v4065 = vpop.f32.mrb[0].mxu0
      %v4066 = vadd.f32 0.0, %v4065
      %4067 = vdwg.mxu0
      %4068 = vmatprep.subr.bf16.mxu0 %v3645
      %4069 = vmatpush1.bf16.msra.mxu0 %v3643
      %4070 = vmatprep.subr.bf16.mxu0 %v3701
      %4071 = vmatpush1.bf16.msra.mxu0 %v3699
      %4072 = vmatprep.subr.bf16.mxu0 %v2583
      %4073 = vmatpush1.bf16.msra.mxu0 %v2581
      %4074 = vmatprep.subr.bf16.mxu0 %v3773
      %4075 = vmatpush1.bf16.msra.mxu0 %v3769
      %4076 = vmatprep.subr.bf16.mxu0 %v3877
      %4077 = vmatpush1.bf16.msra.mxu0 %v3874
      %4078 = vmatprep.subr.bf16.mxu0 0
      %4079 = vmatpush1.bf16.msra.mxu0 0
      %4080 = vmatprep.subr.bf16.mxu0 0
      %4081 = vmatpush1.bf16.msra.mxu0 0
      %4082 = vmatprep.subr.bf16.mxu0 0
      %4083 = vmatpush1.bf16.msra.mxu0 0
      %4084 = vmatprep.subr.bf16.mxu0 0
      %4085 = vmatpush1.bf16.msra.mxu0 0
      %4086 = vmatprep.subr.bf16.mxu0 0
      %4087 = vmatpush1.bf16.msra.mxu0 0
      %4088 = vmatprep.subr.bf16.mxu0 0
      %4089 = vmatpush1.bf16.msra.mxu0 0
      %4090 = vmatprep.subr.bf16.mxu0 0
      %4091 = vmatpush1.bf16.msra.mxu0 0
      %4092 = vmatprep.subr.bf16.mxu0 0
      %4093 = vmatpush1.bf16.msra.mxu0 0
      %4094 = vmatprep.subr.bf16.mxu0 0
      %4095 = vmatpush1.bf16.msra.mxu0 0
      %4096 = vmatprep.subr.bf16.mxu0 0
      %4097 = vmatpush1.bf16.msra.mxu0 0
      %4098 = vmatprep.subr.bf16.mxu0 0
      %4099 = vmatpush1.bf16.msra.mxu0 0
      %4100 = vmatprep.mubr.bf16.mxu0 0
      %4101 = vmatmul.mubr.bf16.gmra.mrb[0].mxu0 %v1405
      %v4102 = vpop.f32.mrb[0].mxu0
      %v4103 = vadd.f32 0.0, %v4102
      %v4104 = vpop.f32.mrb[0].mxu0
      %v4105 = vadd.f32 0.0, %v4104
      %v4106 = vpop.f32.mrb[0].mxu0
      %v4107 = vadd.f32 0.0, %v4106
      %v4108 = vpop.f32.mrb[0].mxu0
      %v4109 = vadd.f32 0.0, %v4108
      %4110 = vdwg.mxu0
      %4111 = vmatprep.subr.bf16.mxu0 %v3649
      %4112 = vmatpush1.bf16.msra.mxu0 %v3647
      %4113 = vmatprep.subr.bf16.mxu0 %v3705
      %4114 = vmatpush1.bf16.msra.mxu0 %v3703
      %4115 = vmatprep.subr.bf16.mxu0 %v2587
      %4116 = vmatpush1.bf16.msra.mxu0 %v2585
      %4117 = vmatprep.subr.bf16.mxu0 %v3781
      %4118 = vmatpush1.bf16.msra.mxu0 %v3777
      %4119 = vmatprep.subr.bf16.mxu0 %v3883
      %4120 = vmatpush1.bf16.msra.mxu0 %v3880
      %4121 = vmatprep.subr.bf16.mxu0 0
      %4122 = vmatpush1.bf16.msra.mxu0 0
      %4123 = vmatprep.subr.bf16.mxu0 0
      %4124 = vmatpush1.bf16.msra.mxu0 0
      %4125 = vmatprep.subr.bf16.mxu0 0
      %4126 = vmatpush1.bf16.msra.mxu0 0
      %4127 = vmatprep.subr.bf16.mxu0 0
      %4128 = vmatpush1.bf16.msra.mxu0 0
      %4129 = vmatprep.subr.bf16.mxu0 0
      %4130 = vmatpush1.bf16.msra.mxu0 0
      %4131 = vmatprep.subr.bf16.mxu0 0
      %4132 = vmatpush1.bf16.msra.mxu0 0
      %4133 = vmatprep.subr.bf16.mxu0 0
      %4134 = vmatpush1.bf16.msra.mxu0 0
      %4135 = vmatprep.subr.bf16.mxu0 0
      %4136 = vmatpush1.bf16.msra.mxu0 0
      %4137 = vmatprep.subr.bf16.mxu0 0
      %4138 = vmatpush1.bf16.msra.mxu0 0
      %4139 = vmatprep.subr.bf16.mxu0 0
      %4140 = vmatpush1.bf16.msra.mxu0 0
      %4141 = vmatprep.subr.bf16.mxu0 0
      %4142 = vmatpush1.bf16.msra.mxu0 0
      %4143 = vmatprep.mubr.bf16.mxu0 0
      %4144 = vmatmul.mubr.bf16.gmra.mrb[0].mxu0 %v1405
      %v4145 = vpop.f32.mrb[0].mxu0
      %v4146 = vadd.f32 0.0, %v4145
      %v4147 = vpop.f32.mrb[0].mxu0
      %v4148 = vadd.f32 0.0, %v4147
      %v4149 = vpop.f32.mrb[0].mxu0
      %v4150 = vadd.f32 0.0, %v4149
      %v4151 = vpop.f32.mrb[0].mxu0
      %v4152 = vadd.f32 0.0, %v4151
      %4153 = vdwg.mxu0
      %4154 = vmatprep.subr.bf16.mxu0 %v3653
      %4155 = vmatpush1.bf16.msra.mxu0 %v3651
      %4156 = vmatprep.subr.bf16.mxu0 %v3709
      %4157 = vmatpush1.bf16.msra.mxu0 %v3707
      %4158 = vmatprep.subr.bf16.mxu0 %v2591
      %4159 = vmatpush1.bf16.msra.mxu0 %v2589
      %4160 = vmatprep.subr.bf16.mxu0 %v3789
      %4161 = vmatpush1.bf16.msra.mxu0 %v3785
      %4162 = vmatprep.subr.bf16.mxu0 %v3889
      %4163 = vmatpush1.bf16.msra.mxu0 %v3886
      %4164 = vmatprep.subr.bf16.mxu0 0
      %4165 = vmatpush1.bf16.msra.mxu0 0
      %4166 = vmatprep.subr.bf16.mxu0 0
      %4167 = vmatpush1.bf16.msra.mxu0 0
      %4168 = vmatprep.subr.bf16.mxu0 0
      %4169 = vmatpush1.bf16.msra.mxu0 0
      %4170 = vmatprep.subr.bf16.mxu0 0
      %4171 = vmatpush1.bf16.msra.mxu0 0
      %4172 = vmatprep.subr.bf16.mxu0 0
      %4173 = vmatpush1.bf16.msra.mxu0 0
      %4174 = vmatprep.subr.bf16.mxu0 0
      %4175 = vmatpush1.bf16.msra.mxu0 0
      %4176 = vmatprep.subr.bf16.mxu0 0
      %4177 = vmatpush1.bf16.msra.mxu0 0
      %4178 = vmatprep.subr.bf16.mxu0 0
      %4179 = vmatpush1.bf16.msra.mxu0 0
      %4180 = vmatprep.subr.bf16.mxu0 0
      %4181 = vmatpush1.bf16.msra.mxu0 0
      %4182 = vmatprep.subr.bf16.mxu0 0
      %4183 = vmatpush1.bf16.msra.mxu0 0
      %4184 = vmatprep.subr.bf16.mxu0 0
      %4185 = vmatpush1.bf16.msra.mxu0 0
      %4186 = vmatprep.mubr.bf16.mxu0 0
      %4187 = vmatmul.mubr.bf16.gmra.mrb[0].mxu0 %v1405
      %v4188 = vpop.f32.mrb[0].mxu0
      %v4189 = vadd.f32 0.0, %v4188
      %v4190 = vpop.f32.mrb[0].mxu0
      %v4191 = vadd.f32 0.0, %v4190
      %v4192 = vpop.f32.mrb[0].mxu0
      %v4193 = vadd.f32 0.0, %v4192
      %v4194 = vpop.f32.mrb[0].mxu0
      %v4195 = vadd.f32 0.0, %v4194
      %4196 = vdwg.mxu0
      %4197 = vmatprep.subr.bf16.mxu0 %v3657
      %4198 = vmatpush1.bf16.msra.mxu0 %v3655
      %4199 = vmatprep.subr.bf16.mxu0 %v3713
      %4200 = vmatpush1.bf16.msra.mxu0 %v3711
      %4201 = vmatprep.subr.bf16.mxu0 %v2595
      %4202 = vmatpush1.bf16.msra.mxu0 %v2593
      %4203 = vmatprep.subr.bf16.mxu0 %v3797
      %4204 = vmatpush1.bf16.msra.mxu0 %v3793
      %4205 = vmatprep.subr.bf16.mxu0 %v3895
      %4206 = vmatpush1.bf16.msra.mxu0 %v3892
      %4207 = vmatprep.subr.bf16.mxu0 0
      %4208 = vmatpush1.bf16.msra.mxu0 0
      %4209 = vmatprep.subr.bf16.mxu0 0
      %4210 = vmatpush1.bf16.msra.mxu0 0
      %4211 = vmatprep.subr.bf16.mxu0 0
      %4212 = vmatpush1.bf16.msra.mxu0 0
      %4213 = vmatprep.subr.bf16.mxu0 0
      %4214 = vmatpush1.bf16.msra.mxu0 0
      %4215 = vmatprep.subr.bf16.mxu0 0
      %4216 = vmatpush1.bf16.msra.mxu0 0
      %4217 = vmatprep.subr.bf16.mxu0 0
      %4218 = vmatpush1.bf16.msra.mxu0 0
      %4219 = vmatprep.subr.bf16.mxu0 0
      %4220 = vmatpush1.bf16.msra.mxu0 0
      %4221 = vmatprep.subr.bf16.mxu0 0
      %4222 = vmatpush1.bf16.msra.mxu0 0
      %4223 = vmatprep.subr.bf16.mxu0 0
      %4224 = vmatpush1.bf16.msra.mxu0 0
      %4225 = vmatprep.subr.bf16.mxu0 0
      %4226 = vmatpush1.bf16.msra.mxu0 0
      %4227 = vmatprep.subr.bf16.mxu0 0
      %4228 = vmatpush1.bf16.msra.mxu0 0
      %4229 = vmatprep.mubr.bf16.mxu0 0
      %4230 = vmatmul.mubr.bf16.gmra.mrb[0].mxu0 %v1405
      %v4231 = vpop.f32.mrb[0].mxu0
      %v4232 = vadd.f32 0.0, %v4231
      %v4233 = vpop.f32.mrb[0].mxu0
      %v4234 = vadd.f32 0.0, %v4233
      %v4235 = vpop.f32.mrb[0].mxu0
      %v4236 = vadd.f32 0.0, %v4235
      %v4237 = vpop.f32.mrb[0].mxu0
      %v4238 = vadd.f32 0.0, %v4237
      %4239 = vdwg.mxu0
      %4240 = vmatprep.subr.bf16.mxu0 %v3661
      %4241 = vmatpush1.bf16.msra.mxu0 %v3659
      %4242 = vmatprep.subr.bf16.mxu0 %v3717
      %4243 = vmatpush1.bf16.msra.mxu0 %v3715
      %4244 = vmatprep.subr.bf16.mxu0 %v2599
      %4245 = vmatpush1.bf16.msra.mxu0 %v2597
      %4246 = vmatprep.subr.bf16.mxu0 %v3805
      %4247 = vmatpush1.bf16.msra.mxu0 %v3801
      %4248 = vmatprep.subr.bf16.mxu0 %v3901
      %4249 = vmatpush1.bf16.msra.mxu0 %v3898
      %4250 = vmatprep.subr.bf16.mxu0 0
      %4251 = vmatpush1.bf16.msra.mxu0 0
      %4252 = vmatprep.subr.bf16.mxu0 0
      %4253 = vmatpush1.bf16.msra.mxu0 0
      %4254 = vmatprep.subr.bf16.mxu0 0
      %4255 = vmatpush1.bf16.msra.mxu0 0
      %4256 = vmatprep.subr.bf16.mxu0 0
      %4257 = vmatpush1.bf16.msra.mxu0 0
      %4258 = vmatprep.subr.bf16.mxu0 0
      %4259 = vmatpush1.bf16.msra.mxu0 0
      %4260 = vmatprep.subr.bf16.mxu0 0
      %4261 = vmatpush1.bf16.msra.mxu0 0
      %4262 = vmatprep.subr.bf16.mxu0 0
      %4263 = vmatpush1.bf16.msra.mxu0 0
      %4264 = vmatprep.subr.bf16.mxu0 0
      %4265 = vmatpush1.bf16.msra.mxu0 0
      %4266 = vmatprep.subr.bf16.mxu0 0
      %4267 = vmatpush1.bf16.msra.mxu0 0
      %4268 = vmatprep.subr.bf16.mxu0 0
      %4269 = vmatpush1.bf16.msra.mxu0 0
      %4270 = vmatprep.subr.bf16.mxu0 0
      %4271 = vmatpush1.bf16.msra.mxu0 0
      %4272 = vmatprep.mubr.bf16.mxu0 0
      %4273 = vmatmul.mubr.bf16.gmra.mrb[0].mxu0 %v1405
      %v4274 = vpop.f32.mrb[0].mxu0
      %v4275 = vadd.f32 0.0, %v4274
      %v4276 = vpop.f32.mrb[0].mxu0
      %v4277 = vadd.f32 0.0, %v4276
      %v4278 = vpop.f32.mrb[0].mxu0
      %v4279 = vadd.f32 0.0, %v4278
      %v4280 = vpop.f32.mrb[0].mxu0
      %v4281 = vadd.f32 0.0, %v4280
      %4282 = vdwg.mxu0
      %4283 = vmatprep.subr.bf16.mxu0 %v3665
      %4284 = vmatpush1.bf16.msra.mxu0 %v3663
      %4285 = vmatprep.subr.bf16.mxu0 %v3721
      %4286 = vmatpush1.bf16.msra.mxu0 %v3719
      %4287 = vmatprep.subr.bf16.mxu0 %v2603
      %4288 = vmatpush1.bf16.msra.mxu0 %v2601
      %4289 = vmatprep.subr.bf16.mxu0 %v3813
      %4290 = vmatpush1.bf16.msra.mxu0 %v3809
      %4291 = vmatprep.subr.bf16.mxu0 %v3907
      %4292 = vmatpush1.bf16.msra.mxu0 %v3904
      %4293 = vmatprep.subr.bf16.mxu0 0
      %4294 = vmatpush1.bf16.msra.mxu0 0
      %4295 = vmatprep.subr.bf16.mxu0 0
      %4296 = vmatpush1.bf16.msra.mxu0 0
      %4297 = vmatprep.subr.bf16.mxu0 0
      %4298 = vmatpush1.bf16.msra.mxu0 0
      %4299 = vmatprep.subr.bf16.mxu0 0
      %4300 = vmatpush1.bf16.msra.mxu0 0
      %4301 = vmatprep.subr.bf16.mxu0 0
      %4302 = vmatpush1.bf16.msra.mxu0 0
      %4303 = vmatprep.subr.bf16.mxu0 0
      %4304 = vmatpush1.bf16.msra.mxu0 0
      %4305 = vmatprep.subr.bf16.mxu0 0
      %4306 = vmatpush1.bf16.msra.mxu0 0
      %4307 = vmatprep.subr.bf16.mxu0 0
      %4308 = vmatpush1.bf16.msra.mxu0 0
      %4309 = vmatprep.subr.bf16.mxu0 0
      %4310 = vmatpush1.bf16.msra.mxu0 0
      %4311 = vmatprep.subr.bf16.mxu0 0
      %4312 = vmatpush1.bf16.msra.mxu0 0
      %4313 = vmatprep.subr.bf16.mxu0 0
      %4314 = vmatpush1.bf16.msra.mxu0 0
      %4315 = vmatprep.mubr.bf16.mxu0 0
      %4316 = vmatmul.mubr.bf16.gmra.mrb[0].mxu0 %v1405
      %v4317 = vpop.f32.mrb[0].mxu0
      %v4318 = vadd.f32 0.0, %v4317
      %v4319 = vpop.f32.mrb[0].mxu0
      %v4320 = vadd.f32 0.0, %v4319
      %v4321 = vpop.f32.mrb[0].mxu0
      %v4322 = vadd.f32 0.0, %v4321
      %v4323 = vpop.f32.mrb[0].mxu0
      %v4324 = vadd.f32 0.0, %v4323
      %4325 = vdwg.mxu0
      %4326 = vmatprep.subr.bf16.mxu0 %v3669
      %4327 = vmatpush1.bf16.msra.mxu0 %v3667
      %4328 = vmatprep.subr.bf16.mxu0 %v3725
      %4329 = vmatpush1.bf16.msra.mxu0 %v3723
      %4330 = vmatprep.subr.bf16.mxu0 %v2607
      %4331 = vmatpush1.bf16.msra.mxu0 %v2605
      %4332 = vmatprep.subr.bf16.mxu0 %v3821
      %4333 = vmatpush1.bf16.msra.mxu0 %v3817
      %4334 = vmatprep.subr.bf16.mxu0 %v3913
      %4335 = vmatpush1.bf16.msra.mxu0 %v3910
      %4336 = vmatprep.subr.bf16.mxu0 0
      %4337 = vmatpush1.bf16.msra.mxu0 0
      %4338 = vmatprep.subr.bf16.mxu0 0
      %4339 = vmatpush1.bf16.msra.mxu0 0
      %4340 = vmatprep.subr.bf16.mxu0 0
      %4341 = vmatpush1.bf16.msra.mxu0 0
      %4342 = vmatprep.subr.bf16.mxu0 0
      %4343 = vmatpush1.bf16.msra.mxu0 0
      %4344 = vmatprep.subr.bf16.mxu0 0
      %4345 = vmatpush1.bf16.msra.mxu0 0
      %4346 = vmatprep.subr.bf16.mxu0 0
      %4347 = vmatpush1.bf16.msra.mxu0 0
      %4348 = vmatprep.subr.bf16.mxu0 0
      %4349 = vmatpush1.bf16.msra.mxu0 0
      %4350 = vmatprep.subr.bf16.mxu0 0
      %4351 = vmatpush1.bf16.msra.mxu0 0
      %4352 = vmatprep.subr.bf16.mxu0 0
      %4353 = vmatpush1.bf16.msra.mxu0 0
      %4354 = vmatprep.subr.bf16.mxu0 0
      %4355 = vmatpush1.bf16.msra.mxu0 0
      %4356 = vmatprep.subr.bf16.mxu0 0
      %4357 = vmatpush1.bf16.msra.mxu0 0
      %4358 = vmatprep.mubr.bf16.mxu0 0
      %4359 = vmatmul.mubr.bf16.gmra.mrb[0].mxu0 %v1405
      %v4360 = vpop.f32.mrb[0].mxu0
      %v4361 = vadd.f32 0.0, %v4360
      %v4362 = vpop.f32.mrb[0].mxu0
      %v4363 = vadd.f32 0.0, %v4362
      %v4364 = vpop.f32.mrb[0].mxu0
      %v4365 = vadd.f32 0.0, %v4364
      %v4366 = vpop.f32.mrb[0].mxu0
      %v4367 = vadd.f32 0.0, %v4366
      %4368 = vdwg.mxu0
      %4369 = vmatprep.subr.bf16.mxu0 %v3673
      %4370 = vmatpush1.bf16.msra.mxu0 %v3671
      %4371 = vmatprep.subr.bf16.mxu0 %v3729
      %4372 = vmatpush1.bf16.msra.mxu0 %v3727
      %4373 = vmatprep.subr.bf16.mxu0 %v2611
      %4374 = vmatpush1.bf16.msra.mxu0 %v2609
      %4375 = vmatprep.subr.bf16.mxu0 %v3829
      %4376 = vmatpush1.bf16.msra.mxu0 %v3825
      %4377 = vmatprep.subr.bf16.mxu0 %v3919
      %4378 = vmatpush1.bf16.msra.mxu0 %v3916
      %4379 = vmatprep.subr.bf16.mxu0 0
      %4380 = vmatpush1.bf16.msra.mxu0 0
      %4381 = vmatprep.subr.bf16.mxu0 0
      %4382 = vmatpush1.bf16.msra.mxu0 0
      %4383 = vmatprep.subr.bf16.mxu0 0
      %4384 = vmatpush1.bf16.msra.mxu0 0
      %4385 = vmatprep.subr.bf16.mxu0 0
      %4386 = vmatpush1.bf16.msra.mxu0 0
      %4387 = vmatprep.subr.bf16.mxu0 0
      %4388 = vmatpush1.bf16.msra.mxu0 0
      %4389 = vmatprep.subr.bf16.mxu0 0
      %4390 = vmatpush1.bf16.msra.mxu0 0
      %4391 = vmatprep.subr.bf16.mxu0 0
      %4392 = vmatpush1.bf16.msra.mxu0 0
      %4393 = vmatprep.subr.bf16.mxu0 0
      %4394 = vmatpush1.bf16.msra.mxu0 0
      %4395 = vmatprep.subr.bf16.mxu0 0
      %4396 = vmatpush1.bf16.msra.mxu0 0
      %4397 = vmatprep.subr.bf16.mxu0 0
      %4398 = vmatpush1.bf16.msra.mxu0 0
      %4399 = vmatprep.subr.bf16.mxu0 0
      %4400 = vmatpush1.bf16.msra.mxu0 0
      %4401 = vmatprep.mubr.bf16.mxu0 0
      %4402 = vmatmul.mubr.bf16.gmra.mrb[0].mxu0 %v1405
      %v4403 = vpop.f32.mrb[0].mxu0
      %v4404 = vadd.f32 0.0, %v4403
      %v4405 = vpop.f32.mrb[0].mxu0
      %v4406 = vadd.f32 0.0, %v4405
      %v4407 = vpop.f32.mrb[0].mxu0
      %v4408 = vadd.f32 0.0, %v4407
      %v4409 = vpop.f32.mrb[0].mxu0
      %v4410 = vadd.f32 0.0, %v4409
      %4411 = vdwg.mxu0
      %4412 = vmatprep.subr.bf16.mxu0 %v3677
      %4413 = vmatpush1.bf16.msra.mxu0 %v3675
      %4414 = vmatprep.subr.bf16.mxu0 %v3733
      %4415 = vmatpush1.bf16.msra.mxu0 %v3731
      %4416 = vmatprep.subr.bf16.mxu0 %v2615
      %4417 = vmatpush1.bf16.msra.mxu0 %v2613
      %4418 = vmatprep.subr.bf16.mxu0 %v3837
      %4419 = vmatpush1.bf16.msra.mxu0 %v3833
      %4420 = vmatprep.subr.bf16.mxu0 %v3925
      %4421 = vmatpush1.bf16.msra.mxu0 %v3922
      %4422 = vmatprep.subr.bf16.mxu0 0
      %4423 = vmatpush1.bf16.msra.mxu0 0
      %4424 = vmatprep.subr.bf16.mxu0 0
      %4425 = vmatpush1.bf16.msra.mxu0 0
      %4426 = vmatprep.subr.bf16.mxu0 0
      %4427 = vmatpush1.bf16.msra.mxu0 0
      %4428 = vmatprep.subr.bf16.mxu0 0
      %4429 = vmatpush1.bf16.msra.mxu0 0
      %4430 = vmatprep.subr.bf16.mxu0 0
      %4431 = vmatpush1.bf16.msra.mxu0 0
      %4432 = vmatprep.subr.bf16.mxu0 0
      %4433 = vmatpush1.bf16.msra.mxu0 0
      %4434 = vmatprep.subr.bf16.mxu0 0
      %4435 = vmatpush1.bf16.msra.mxu0 0
      %4436 = vmatprep.subr.bf16.mxu0 0
      %4437 = vmatpush1.bf16.msra.mxu0 0
      %4438 = vmatprep.subr.bf16.mxu0 0
      %4439 = vmatpush1.bf16.msra.mxu0 0
      %4440 = vmatprep.subr.bf16.mxu0 0
      %4441 = vmatpush1.bf16.msra.mxu0 0
      %4442 = vmatprep.subr.bf16.mxu0 0
      %4443 = vmatpush1.bf16.msra.mxu0 0
      %4444 = vmatprep.mubr.bf16.mxu0 0
      %4445 = vmatmul.mubr.bf16.gmra.mrb[0].mxu0 %v1405
      %v4446 = vpop.f32.mrb[0].mxu0
      %v4447 = vadd.f32 0.0, %v4446
      %v4448 = vpop.f32.mrb[0].mxu0
      %v4449 = vadd.f32 0.0, %v4448
      %v4450 = vpop.f32.mrb[0].mxu0
      %v4451 = vadd.f32 0.0, %v4450
      %v4452 = vpop.f32.mrb[0].mxu0
      %v4453 = vadd.f32 0.0, %v4452
      %4454 = vdwg.mxu0
      %4455 = vmatprep.subr.bf16.mxu0 %v3681
      %4456 = vmatpush1.bf16.msra.mxu0 %v3679
      %4457 = vmatprep.subr.bf16.mxu0 %v3737
      %4458 = vmatpush1.bf16.msra.mxu0 %v3735
      %4459 = vmatprep.subr.bf16.mxu0 %v2619
      %4460 = vmatpush1.bf16.msra.mxu0 %v2617
      %4461 = vmatprep.subr.bf16.mxu0 %v3845
      %4462 = vmatpush1.bf16.msra.mxu0 %v3841
      %4463 = vmatprep.subr.bf16.mxu0 %v3931
      %4464 = vmatpush1.bf16.msra.mxu0 %v3928
      %4465 = vmatprep.subr.bf16.mxu0 0
      %4466 = vmatpush1.bf16.msra.mxu0 0
      %4467 = vmatprep.subr.bf16.mxu0 0
      %4468 = vmatpush1.bf16.msra.mxu0 0
      %4469 = vmatprep.subr.bf16.mxu0 0
      %4470 = vmatpush1.bf16.msra.mxu0 0
      %4471 = vmatprep.subr.bf16.mxu0 0
      %4472 = vmatpush1.bf16.msra.mxu0 0
      %4473 = vmatprep.subr.bf16.mxu0 0
      %4474 = vmatpush1.bf16.msra.mxu0 0
      %4475 = vmatprep.subr.bf16.mxu0 0
      %4476 = vmatpush1.bf16.msra.mxu0 0
      %4477 = vmatprep.subr.bf16.mxu0 0
      %4478 = vmatpush1.bf16.msra.mxu0 0
      %4479 = vmatprep.subr.bf16.mxu0 0
      %4480 = vmatpush1.bf16.msra.mxu0 0
      %4481 = vmatprep.subr.bf16.mxu0 0
      %4482 = vmatpush1.bf16.msra.mxu0 0
      %4483 = vmatprep.subr.bf16.mxu0 0
      %4484 = vmatpush1.bf16.msra.mxu0 0
      %4485 = vmatprep.subr.bf16.mxu0 0
      %4486 = vmatpush1.bf16.msra.mxu0 0
      %4487 = vmatprep.mubr.bf16.mxu0 0
      %4488 = vmatmul.mubr.bf16.gmra.mrb[0].mxu0 %v1405
      %v4489 = vpop.f32.mrb[0].mxu0
      %v4490 = vadd.f32 0.0, %v4489
      %v4491 = vpop.f32.mrb[0].mxu0
      %v4492 = vadd.f32 0.0, %v4491
      %v4493 = vpop.f32.mrb[0].mxu0
      %v4494 = vadd.f32 0.0, %v4493
      %v4495 = vpop.f32.mrb[0].mxu0
      %v4496 = vadd.f32 0.0, %v4495
      %4497 = vdwg.mxu0
      %4498 = vmatprep.subr.bf16.mxu0 %v3685
      %4499 = vmatpush1.bf16.msra.mxu0 %v3683
      %4500 = vmatprep.subr.bf16.mxu0 %v3741
      %4501 = vmatpush1.bf16.msra.mxu0 %v3739
      %4502 = vmatprep.subr.bf16.mxu0 %v2623
      %4503 = vmatpush1.bf16.msra.mxu0 %v2621
      %4504 = vmatprep.subr.bf16.mxu0 %v3853
      %4505 = vmatpush1.bf16.msra.mxu0 %v3849
      %4506 = vmatprep.subr.bf16.mxu0 %v3937
      %4507 = vmatpush1.bf16.msra.mxu0 %v3934
      %4508 = vmatprep.subr.bf16.mxu0 0
      %4509 = vmatpush1.bf16.msra.mxu0 0
      %4510 = vmatprep.subr.bf16.mxu0 0
      %4511 = vmatpush1.bf16.msra.mxu0 0
      %4512 = vmatprep.subr.bf16.mxu0 0
      %4513 = vmatpush1.bf16.msra.mxu0 0
      %4514 = vmatprep.subr.bf16.mxu0 0
      %4515 = vmatpush1.bf16.msra.mxu0 0
      %4516 = vmatprep.subr.bf16.mxu0 0
      %4517 = vmatpush1.bf16.msra.mxu0 0
      %4518 = vmatprep.subr.bf16.mxu0 0
      %4519 = vmatpush1.bf16.msra.mxu0 0
      %4520 = vmatprep.subr.bf16.mxu0 0
      %4521 = vmatpush1.bf16.msra.mxu0 0
      %4522 = vmatprep.subr.bf16.mxu0 0
      %4523 = vmatpush1.bf16.msra.mxu0 0
      %4524 = vmatprep.subr.bf16.mxu0 0
      %4525 = vmatpush1.bf16.msra.mxu0 0
      %4526 = vmatprep.subr.bf16.mxu0 0
      %4527 = vmatpush1.bf16.msra.mxu0 0
      %4528 = vmatprep.subr.bf16.mxu0 0
      %4529 = vmatpush1.bf16.msra.mxu0 0
      %4530 = vmatprep.mubr.bf16.mxu0 0
      %4531 = vmatmul.mubr.bf16.gmra.mrb[0].mxu0 %v1405
      %v4532 = vpop.f32.mrb[0].mxu0
      %v4533 = vadd.f32 0.0, %v4532
      %v4534 = vpop.f32.mrb[0].mxu0
      %v4535 = vadd.f32 0.0, %v4534
      %v4536 = vpop.f32.mrb[0].mxu0
      %v4537 = vadd.f32 0.0, %v4536
      %v4538 = vpop.f32.mrb[0].mxu0
      %v4539 = vadd.f32 0.0, %v4538
      %4540 = vdwg.mxu0
      %v4541 = vmax.f32 %v3311, %v3974
      %v4542 = vmax.f32 %v3312, %v3976
      %v4543 = vmax.f32 %v3313, %v4017
      %v4544 = vmax.f32 %v3314, %v4019
      %v4545 = vmax.f32 %v3315, %v4060
      %v4546 = vmax.f32 %v3316, %v4062
      %v4547 = vmax.f32 %v3317, %v4103
      %v4548 = vmax.f32 %v3318, %v4105
      %v4549 = vmax.f32 %v3319, %v4146
      %v4550 = vmax.f32 %v3320, %v4148
      %v4551 = vmax.f32 %v3321, %v4189
      %v4552 = vmax.f32 %v3322, %v4191
      %v4553 = vmax.f32 %v3323, %v4232
      %v4554 = vmax.f32 %v3324, %v4234
      %v4555 = vmax.f32 %v3325, %v4275
      %v4556 = vmax.f32 %v3326, %v4277
      %v4557 = vmax.f32 %v3327, %v4318
      %v4558 = vmax.f32 %v3328, %v4320
      %v4559 = vmax.f32 %v3329, %v4361
      %v4560 = vmax.f32 %v3330, %v4363
      %v4561 = vmax.f32 %v3331, %v4404
      %v4562 = vmax.f32 %v3332, %v4406
      %v4563 = vmax.f32 %v3333, %v4447
      %v4564 = vmax.f32 %v3334, %v4449
      %v4565 = vmax.f32 %v3335, %v4490
      %v4566 = vmax.f32 %v3336, %v4492
      %v4567 = vmax.f32 %v3337, %v4533
      %v4568 = vmax.f32 %v3338, %v4535
      %v4569 = vmax.f32 %v3339, %v3978
      %v4570 = vmax.f32 %v3340, %v3980
      %v4571 = vmax.f32 %v3341, %v4021
      %v4572 = vmax.f32 %v3342, %v4023
      %v4573 = vmax.f32 %v3343, %v4064
      %v4574 = vmax.f32 %v3344, %v4066
      %v4575 = vmax.f32 %v3345, %v4107
      %v4576 = vmax.f32 %v3346, %v4109
      %v4577 = vmax.f32 %v3347, %v4150
      %v4578 = vmax.f32 %v3348, %v4152
      %v4579 = vmax.f32 %v3349, %v4193
      %v4580 = vmax.f32 %v3350, %v4195
      %v4581 = vmax.f32 %v3351, %v4236
      %v4582 = vmax.f32 %v3352, %v4238
      %v4583 = vmax.f32 %v3353, %v4279
      %v4584 = vmax.f32 %v3354, %v4281
      %v4585 = vmax.f32 %v3355, %v4322
      %v4586 = vmax.f32 %v3356, %v4324
      %v4587 = vmax.f32 %v3357, %v4365
      %v4588 = vmax.f32 %v3358, %v4367
      %v4589 = vmax.f32 %v3359, %v4408
      %v4590 = vmax.f32 %v3360, %v4410
      %v4591 = vmax.f32 %v3361, %v4451
      %v4592 = vmax.f32 %v3362, %v4453
      %v4593 = vmax.f32 %v3363, %v4494
      %v4594 = vmax.f32 %v3364, %v4496
      %v4595 = vmax.f32 %v3365, %v4537
      %v4596 = vmax.f32 %v3366, %v4539
      %4597 = vrot.lane.b32.xlu0 %v572, 67
      %v4598 = vpop.permute.xlu0 %4597
      %4599 = vrot.lane.b32.xlu0 %v573, 67
      %v4600 = vpop.permute.xlu0 %4599
      %4601 = vrot.lane.b32.xlu0 %v574, 67
      %v4602 = vpop.permute.xlu0 %4601
      %4603 = vrot.lane.b32.xlu0 %v575, 67
      %v4604 = vpop.permute.xlu0 %4603
      %4605 = vrot.lane.b32.xlu0 %v576, 67
      %v4606 = vpop.permute.xlu0 %4605
      %4607 = vrot.lane.b32.xlu0 %v577, 67
      %v4608 = vpop.permute.xlu0 %4607
      %4609 = vrot.lane.b32.xlu0 %v578, 67
      %v4610 = vpop.permute.xlu0 %4609
      %4611 = vrot.lane.b32.xlu0 %v579, 67
      %v4612 = vpop.permute.xlu0 %4611
      %4613 = vrot.lane.b32.xlu0 %v580, 67
      %v4614 = vpop.permute.xlu0 %4613
      %4615 = vrot.lane.b32.xlu0 %v581, 67
      %v4616 = vpop.permute.xlu0 %4615
      %4617 = vrot.lane.b32.xlu0 %v582, 67
      %v4618 = vpop.permute.xlu0 %4617
      %4619 = vrot.lane.b32.xlu0 %v583, 67
      %v4620 = vpop.permute.xlu0 %4619
      %4621 = vrot.lane.b32.xlu0 %v584, 67
      %v4622 = vpop.permute.xlu0 %4621
      %4623 = vrot.lane.b32.xlu0 %v585, 67
      %v4624 = vpop.permute.xlu0 %4623
      %4625 = vrot.lane.b32.xlu0 %v586, 67
      %v4626 = vpop.permute.xlu0 %4625
      %4627 = vrot.lane.b32.xlu0 %v587, 67
      %v4628 = vpop.permute.xlu0 %4627
      %4629 = vrot.lane.b32.xlu0 %v588, 67
      %v4630 = vpop.permute.xlu0 %4629
      %4631 = vrot.lane.b32.xlu0 %v589, 67
      %v4632 = vpop.permute.xlu0 %4631
      %4633 = vrot.lane.b32.xlu0 %v590, 67
      %v4634 = vpop.permute.xlu0 %4633
      %4635 = vrot.lane.b32.xlu0 %v591, 67
      %v4636 = vpop.permute.xlu0 %4635
      %4637 = vrot.lane.b32.xlu0 %v592, 67
      %v4638 = vpop.permute.xlu0 %4637
      %4639 = vrot.lane.b32.xlu0 %v593, 67
      %v4640 = vpop.permute.xlu0 %4639
      %4641 = vrot.lane.b32.xlu0 %v594, 67
      %v4642 = vpop.permute.xlu0 %4641
      %4643 = vrot.lane.b32.xlu0 %v595, 67
      %v4644 = vpop.permute.xlu0 %4643
      %4645 = vrot.lane.b32.xlu0 %v596, 67
      %v4646 = vpop.permute.xlu0 %4645
      %4647 = vrot.lane.b32.xlu0 %v597, 67
      %v4648 = vpop.permute.xlu0 %4647
      %4649 = vrot.lane.b32.xlu0 %v598, 67
      %v4650 = vpop.permute.xlu0 %4649
      %4651 = vrot.lane.b32.xlu0 %v599, 67
      %v4652 = vpop.permute.xlu0 %4651
      %4653 = vrot.lane.b32.xlu0 %v3458, 67
      %v4654 = vpop.permute.xlu0 %4653
      %v4655 = vsel %vm920, %v4598, %v4600
      %v4656 = vsel %vm920, %v4600, %v4602
      %v4657 = vsel %vm920, %v4602, %v4604
      %v4658 = vsel %vm920, %v4604, %v4606
      %v4659 = vsel %vm920, %v4606, %v4608
      %v4660 = vsel %vm920, %v4608, %v4610
      %v4661 = vsel %vm920, %v4610, %v4612
      %v4662 = vsel %vm920, %v4612, %v4614
      %v4663 = vsel %vm920, %v4614, %v4616
      %v4664 = vsel %vm920, %v4616, %v4618
      %v4665 = vsel %vm920, %v4618, %v4620
      %v4666 = vsel %vm920, %v4620, %v4622
      %v4667 = vsel %vm920, %v4622, %v4624
      %v4668 = vsel %vm920, %v4624, %v4626
      %v4669 = vsel %vm920, %v4626, %v4628
      %v4670 = vsel %vm920, %v4628, %v4630
      %v4671 = vsel %vm920, %v4630, %v4632
      %v4672 = vsel %vm920, %v4632, %v4634
      %v4673 = vsel %vm920, %v4634, %v4636
      %v4674 = vsel %vm920, %v4636, %v4638
      %v4675 = vsel %vm920, %v4638, %v4640
      %v4676 = vsel %vm920, %v4640, %v4642
      %v4677 = vsel %vm920, %v4642, %v4644
      %v4678 = vsel %vm920, %v4644, %v4646
      %v4679 = vsel %vm920, %v4646, %v4648
      %v4680 = vsel %vm920, %v4648, %v4650
      %v4681 = vsel %vm920, %v4650, %v4652
      %v4682 = vsel %vm920, %v4652, %v4654
      %v4683 = vsel %vm949, %v2232, %v834
      %v4685 = vsel %vm949, %v2233, %v835
      %v4687 = vsel %vm949, %v2234, %v836
      %v4689 = vsel %vm949, %v2235, %v837
      %v4691 = vsel %vm949, %v2236, %v838
      %v4693 = vsel %vm949, %v2237, %v839
      %v4695 = vsel %vm949, %v2238, %v840
      %v4697 = vsel %vm949, %v2239, %v841
      %v4699 = vsel %vm949, %v2240, %v842
      %v4701 = vsel %vm949, %v2241, %v843
      %v4703 = vsel %vm949, %v2242, %v844
      %v4705 = vsel %vm949, %v2243, %v845
      %v4707 = vsel %vm949, %v2244, %v846
      %v4709 = vsel %vm949, %v2245, %v847
      %v4711 = vsel %vm949, %v2246, %v848
      %v4713 = vsel %vm949, %v2247, %v849
      %v4715 = vsel %vm949, %v2248, %v850
      %v4717 = vsel %vm949, %v2249, %v851
      %v4719 = vsel %vm949, %v2250, %v852
      %v4721 = vsel %vm949, %v2251, %v853
      %v4723 = vsel %vm949, %v2252, %v854
      %v4725 = vsel %vm949, %v2253, %v855
      %v4727 = vsel %vm949, %v2254, %v856
      %v4729 = vsel %vm949, %v2255, %v857
      %v4731 = vsel %vm949, %v2256, %v858
      %v4733 = vsel %vm949, %v2257, %v859
      %v4735 = vsel %vm949, %v2258, %v860
      %v4737 = vsel %vm949, %v2231, %v861
      %v4739 = vsel %vm949, %v921, %v2317
      %v4741 = vsel %vm949, %v922, %v2318
      %v4743 = vsel %vm949, %v923, %v2319
      %v4745 = vsel %vm949, %v924, %v2320
      %v4747 = vsel %vm949, %v925, %v2321
      %v4749 = vsel %vm949, %v926, %v2322
      %v4751 = vsel %vm949, %v927, %v2323
      %v4753 = vsel %vm949, %v928, %v2324
      %v4755 = vsel %vm949, %v929, %v2325
      %v4757 = vsel %vm949, %v930, %v2326
      %v4759 = vsel %vm949, %v931, %v2327
      %v4761 = vsel %vm949, %v932, %v2328
      %v4763 = vsel %vm949, %v933, %v2329
      %v4765 = vsel %vm949, %v934, %v2330
      %v4767 = vsel %vm949, %v935, %v2331
      %v4769 = vsel %vm949, %v936, %v2332
      %v4771 = vsel %vm949, %v937, %v2333
      %v4773 = vsel %vm949, %v938, %v2334
      %v4775 = vsel %vm949, %v939, %v2335
      %v4777 = vsel %vm949, %v940, %v2336
      %v4779 = vsel %vm949, %v941, %v2337
      %v4781 = vsel %vm949, %v942, %v2338
      %v4783 = vsel %vm949, %v943, %v2339
      %v4785 = vsel %vm949, %v944, %v2340
      %v4787 = vsel %vm949, %v945, %v2341
      %v4789 = vsel %vm949, %v946, %v2342
      %v4791 = vsel %vm949, %v947, %v2343
      %v4793 = vsel %vm949, %v948, %v2344
      %v4795 = vsel %vm949, %v3517, %v3603
      %v4797 = vsel %vm949, %v3518, %v3604
      %v4799 = vsel %vm949, %v3519, %v3605
      %v4801 = vsel %vm949, %v3520, %v3606
      %v4803 = vsel %vm949, %v3521, %v3607
      %v4805 = vsel %vm949, %v3522, %v3608
      %v4807 = vsel %vm949, %v3523, %v3609
      %v4809 = vsel %vm949, %v3524, %v3610
      %v4811 = vsel %vm949, %v3525, %v3611
      %v4813 = vsel %vm949, %v3526, %v3612
      %v4815 = vsel %vm949, %v3527, %v3613
      %v4817 = vsel %vm949, %v3528, %v3614
      %v4819 = vsel %vm949, %v3529, %v3615
      %v4821 = vsel %vm949, %v3530, %v3616
      %v4823 = vsel %vm949, %v3531, %v3617
      %v4825 = vsel %vm949, %v3532, %v3618
      %v4827 = vsel %vm949, %v3533, %v3619
      %v4829 = vsel %vm949, %v3534, %v3620
      %v4831 = vsel %vm949, %v3535, %v3621
      %v4833 = vsel %vm949, %v3536, %v3622
      %v4835 = vsel %vm949, %v3537, %v3623
      %v4837 = vsel %vm949, %v3538, %v3624
      %v4839 = vsel %vm949, %v3539, %v3625
      %v4841 = vsel %vm949, %v3540, %v3626
      %v4843 = vsel %vm949, %v3541, %v3627
      %v4845 = vsel %vm949, %v3542, %v3628
      %v4847 = vsel %vm949, %v3543, %v3629
      %v4849 = vsel %vm949, %v3544, %v3630
      %v4852 = vsel %vm949, %v4655, 0
      %v4855 = vsel %vm949, %v4656, 0
      %v4858 = vsel %vm949, %v4657, 0
      %v4861 = vsel %vm949, %v4658, 0
      %v4864 = vsel %vm949, %v4659, 0
      %v4867 = vsel %vm949, %v4660, 0
      %v4870 = vsel %vm949, %v4661, 0
      %v4873 = vsel %vm949, %v4662, 0
      %v4876 = vsel %vm949, %v4663, 0
      %v4879 = vsel %vm949, %v4664, 0
      %v4882 = vsel %vm949, %v4665, 0
      %v4885 = vsel %vm949, %v4666, 0
      %v4888 = vsel %vm949, %v4667, 0
      %v4891 = vsel %vm949, %v4668, 0
      %v4894 = vsel %vm949, %v4669, 0
      %v4897 = vsel %vm949, %v4670, 0
      %v4900 = vsel %vm949, %v4671, 0
      %v4903 = vsel %vm949, %v4672, 0
      %v4906 = vsel %vm949, %v4673, 0
      %v4909 = vsel %vm949, %v4674, 0
      %v4912 = vsel %vm949, %v4675, 0
      %v4915 = vsel %vm949, %v4676, 0
      %v4918 = vsel %vm949, %v4677, 0
      %v4921 = vsel %vm949, %v4678, 0
      %v4924 = vsel %vm949, %v4679, 0
      %v4927 = vsel %vm949, %v4680, 0
      %v4930 = vsel %vm949, %v4681, 0
      %v4933 = vsel %vm949, %v4682, 0
      %4935 = vmatprep.subr.bf16.mxu0 %v1180
      %4936 = vmatpush1.bf16.msra.mxu0 %v1176
      %4937 = vmatprep.subr.bf16.mxu0 %v4685
      %4938 = vmatpush1.bf16.msra.mxu0 %v4683
      %4939 = vmatprep.subr.bf16.mxu0 %v4741
      %4940 = vmatpush1.bf16.msra.mxu0 %v4739
      %4941 = vmatprep.subr.bf16.mxu0 %v4797
      %4942 = vmatpush1.bf16.msra.mxu0 %v4795
      %4943 = vmatprep.subr.bf16.mxu0 %v4855
      %4944 = vmatpush1.bf16.msra.mxu0 %v4852
      %4945 = vmatprep.subr.bf16.mxu0 0
      %4946 = vmatpush1.bf16.msra.mxu0 0
      %4947 = vmatprep.subr.bf16.mxu0 0
      %4948 = vmatpush1.bf16.msra.mxu0 0
      %4949 = vmatprep.subr.bf16.mxu0 0
      %4950 = vmatpush1.bf16.msra.mxu0 0
      %4951 = vmatprep.subr.bf16.mxu0 0
      %4952 = vmatpush1.bf16.msra.mxu0 0
      %4953 = vmatprep.subr.bf16.mxu0 0
      %4954 = vmatpush1.bf16.msra.mxu0 0
      %4955 = vmatprep.subr.bf16.mxu0 0
      %4956 = vmatpush1.bf16.msra.mxu0 0
      %4957 = vmatprep.subr.bf16.mxu0 0
      %4958 = vmatpush1.bf16.msra.mxu0 0
      %4959 = vmatprep.subr.bf16.mxu0 0
      %4960 = vmatpush1.bf16.msra.mxu0 0
      %4961 = vmatprep.subr.bf16.mxu0 0
      %4962 = vmatpush1.bf16.msra.mxu0 0
      %4963 = vmatprep.subr.bf16.mxu0 0
      %4964 = vmatpush1.bf16.msra.mxu0 0
      %4965 = vmatprep.subr.bf16.mxu0 0
      %4966 = vmatpush1.bf16.msra.mxu0 0
      %4967 = vmatprep.mubr.bf16.mxu0 0
      %4968 = vmatmul.mubr.bf16.gmra.mrb[0].mxu0 %v1405
      %v4969 = vpop.f32.mrb[0].mxu0
      %v4970 = vadd.f32 0.0, %v4969
      %v4971 = vpop.f32.mrb[0].mxu0
      %v4972 = vadd.f32 0.0, %v4971
      %v4973 = vpop.f32.mrb[0].mxu0
      %v4974 = vadd.f32 0.0, %v4973
      %v4975 = vpop.f32.mrb[0].mxu0
      %v4976 = vadd.f32 0.0, %v4975
      %4977 = vdwg.mxu0
      %4978 = vmatprep.subr.bf16.mxu0 %v1188
      %4979 = vmatpush1.bf16.msra.mxu0 %v1184
      %4980 = vmatprep.subr.bf16.mxu0 %v4689
      %4981 = vmatpush1.bf16.msra.mxu0 %v4687
      %4982 = vmatprep.subr.bf16.mxu0 %v4745
      %4983 = vmatpush1.bf16.msra.mxu0 %v4743
      %4984 = vmatprep.subr.bf16.mxu0 %v4801
      %4985 = vmatpush1.bf16.msra.mxu0 %v4799
      %4986 = vmatprep.subr.bf16.mxu0 %v4861
      %4987 = vmatpush1.bf16.msra.mxu0 %v4858
      %4988 = vmatprep.subr.bf16.mxu0 0
      %4989 = vmatpush1.bf16.msra.mxu0 0
      %4990 = vmatprep.subr.bf16.mxu0 0
      %4991 = vmatpush1.bf16.msra.mxu0 0
      %4992 = vmatprep.subr.bf16.mxu0 0
      %4993 = vmatpush1.bf16.msra.mxu0 0
      %4994 = vmatprep.subr.bf16.mxu0 0
      %4995 = vmatpush1.bf16.msra.mxu0 0
      %4996 = vmatprep.subr.bf16.mxu0 0
      %4997 = vmatpush1.bf16.msra.mxu0 0
      %4998 = vmatprep.subr.bf16.mxu0 0
      %4999 = vmatpush1.bf16.msra.mxu0 0
      %5000 = vmatprep.subr.bf16.mxu0 0
      %5001 = vmatpush1.bf16.msra.mxu0 0
      %5002 = vmatprep.subr.bf16.mxu0 0
      %5003 = vmatpush1.bf16.msra.mxu0 0
      %5004 = vmatprep.subr.bf16.mxu0 0
      %5005 = vmatpush1.bf16.msra.mxu0 0
      %5006 = vmatprep.subr.bf16.mxu0 0
      %5007 = vmatpush1.bf16.msra.mxu0 0
      %5008 = vmatprep.subr.bf16.mxu0 0
      %5009 = vmatpush1.bf16.msra.mxu0 0
      %5010 = vmatprep.mubr.bf16.mxu0 0
      %5011 = vmatmul.mubr.bf16.gmra.mrb[0].mxu0 %v1405
      %v5012 = vpop.f32.mrb[0].mxu0
      %v5013 = vadd.f32 0.0, %v5012
      %v5014 = vpop.f32.mrb[0].mxu0
      %v5015 = vadd.f32 0.0, %v5014
      %v5016 = vpop.f32.mrb[0].mxu0
      %v5017 = vadd.f32 0.0, %v5016
      %v5018 = vpop.f32.mrb[0].mxu0
      %v5019 = vadd.f32 0.0, %v5018
      %5020 = vdwg.mxu0
      %5021 = vmatprep.subr.bf16.mxu0 %v1196
      %5022 = vmatpush1.bf16.msra.mxu0 %v1192
      %5023 = vmatprep.subr.bf16.mxu0 %v4693
      %5024 = vmatpush1.bf16.msra.mxu0 %v4691
      %5025 = vmatprep.subr.bf16.mxu0 %v4749
      %5026 = vmatpush1.bf16.msra.mxu0 %v4747
      %5027 = vmatprep.subr.bf16.mxu0 %v4805
      %5028 = vmatpush1.bf16.msra.mxu0 %v4803
      %5029 = vmatprep.subr.bf16.mxu0 %v4867
      %5030 = vmatpush1.bf16.msra.mxu0 %v4864
      %5031 = vmatprep.subr.bf16.mxu0 0
      %5032 = vmatpush1.bf16.msra.mxu0 0
      %5033 = vmatprep.subr.bf16.mxu0 0
      %5034 = vmatpush1.bf16.msra.mxu0 0
      %5035 = vmatprep.subr.bf16.mxu0 0
      %5036 = vmatpush1.bf16.msra.mxu0 0
      %5037 = vmatprep.subr.bf16.mxu0 0
      %5038 = vmatpush1.bf16.msra.mxu0 0
      %5039 = vmatprep.subr.bf16.mxu0 0
      %5040 = vmatpush1.bf16.msra.mxu0 0
      %5041 = vmatprep.subr.bf16.mxu0 0
      %5042 = vmatpush1.bf16.msra.mxu0 0
      %5043 = vmatprep.subr.bf16.mxu0 0
      %5044 = vmatpush1.bf16.msra.mxu0 0
      %5045 = vmatprep.subr.bf16.mxu0 0
      %5046 = vmatpush1.bf16.msra.mxu0 0
      %5047 = vmatprep.subr.bf16.mxu0 0
      %5048 = vmatpush1.bf16.msra.mxu0 0
      %5049 = vmatprep.subr.bf16.mxu0 0
      %5050 = vmatpush1.bf16.msra.mxu0 0
      %5051 = vmatprep.subr.bf16.mxu0 0
      %5052 = vmatpush1.bf16.msra.mxu0 0
      %5053 = vmatprep.mubr.bf16.mxu0 0
      %5054 = vmatmul.mubr.bf16.gmra.mrb[0].mxu0 %v1405
      %v5055 = vpop.f32.mrb[0].mxu0
      %v5056 = vadd.f32 0.0, %v5055
      %v5057 = vpop.f32.mrb[0].mxu0
      %v5058 = vadd.f32 0.0, %v5057
      %v5059 = vpop.f32.mrb[0].mxu0
      %v5060 = vadd.f32 0.0, %v5059
      %v5061 = vpop.f32.mrb[0].mxu0
      %v5062 = vadd.f32 0.0, %v5061
      %5063 = vdwg.mxu0
      %5064 = vmatprep.subr.bf16.mxu0 %v1204
      %5065 = vmatpush1.bf16.msra.mxu0 %v1200
      %5066 = vmatprep.subr.bf16.mxu0 %v4697
      %5067 = vmatpush1.bf16.msra.mxu0 %v4695
      %5068 = vmatprep.subr.bf16.mxu0 %v4753
      %5069 = vmatpush1.bf16.msra.mxu0 %v4751
      %5070 = vmatprep.subr.bf16.mxu0 %v4809
      %5071 = vmatpush1.bf16.msra.mxu0 %v4807
      %5072 = vmatprep.subr.bf16.mxu0 %v4873
      %5073 = vmatpush1.bf16.msra.mxu0 %v4870
      %5074 = vmatprep.subr.bf16.mxu0 0
      %5075 = vmatpush1.bf16.msra.mxu0 0
      %5076 = vmatprep.subr.bf16.mxu0 0
      %5077 = vmatpush1.bf16.msra.mxu0 0
      %5078 = vmatprep.subr.bf16.mxu0 0
      %5079 = vmatpush1.bf16.msra.mxu0 0
      %5080 = vmatprep.subr.bf16.mxu0 0
      %5081 = vmatpush1.bf16.msra.mxu0 0
      %5082 = vmatprep.subr.bf16.mxu0 0
      %5083 = vmatpush1.bf16.msra.mxu0 0
      %5084 = vmatprep.subr.bf16.mxu0 0
      %5085 = vmatpush1.bf16.msra.mxu0 0
      %5086 = vmatprep.subr.bf16.mxu0 0
      %5087 = vmatpush1.bf16.msra.mxu0 0
      %5088 = vmatprep.subr.bf16.mxu0 0
      %5089 = vmatpush1.bf16.msra.mxu0 0
      %5090 = vmatprep.subr.bf16.mxu0 0
      %5091 = vmatpush1.bf16.msra.mxu0 0
      %5092 = vmatprep.subr.bf16.mxu0 0
      %5093 = vmatpush1.bf16.msra.mxu0 0
      %5094 = vmatprep.subr.bf16.mxu0 0
      %5095 = vmatpush1.bf16.msra.mxu0 0
      %5096 = vmatprep.mubr.bf16.mxu0 0
      %5097 = vmatmul.mubr.bf16.gmra.mrb[0].mxu0 %v1405
      %v5098 = vpop.f32.mrb[0].mxu0
      %v5099 = vadd.f32 0.0, %v5098
      %v5100 = vpop.f32.mrb[0].mxu0
      %v5101 = vadd.f32 0.0, %v5100
      %v5102 = vpop.f32.mrb[0].mxu0
      %v5103 = vadd.f32 0.0, %v5102
      %v5104 = vpop.f32.mrb[0].mxu0
      %v5105 = vadd.f32 0.0, %v5104
      %5106 = vdwg.mxu0
      %5107 = vmatprep.subr.bf16.mxu0 %v1212
      %5108 = vmatpush1.bf16.msra.mxu0 %v1208
      %5109 = vmatprep.subr.bf16.mxu0 %v4701
      %5110 = vmatpush1.bf16.msra.mxu0 %v4699
      %5111 = vmatprep.subr.bf16.mxu0 %v4757
      %5112 = vmatpush1.bf16.msra.mxu0 %v4755
      %5113 = vmatprep.subr.bf16.mxu0 %v4813
      %5114 = vmatpush1.bf16.msra.mxu0 %v4811
      %5115 = vmatprep.subr.bf16.mxu0 %v4879
      %5116 = vmatpush1.bf16.msra.mxu0 %v4876
      %5117 = vmatprep.subr.bf16.mxu0 0
      %5118 = vmatpush1.bf16.msra.mxu0 0
      %5119 = vmatprep.subr.bf16.mxu0 0
      %5120 = vmatpush1.bf16.msra.mxu0 0
      %5121 = vmatprep.subr.bf16.mxu0 0
      %5122 = vmatpush1.bf16.msra.mxu0 0
      %5123 = vmatprep.subr.bf16.mxu0 0
      %5124 = vmatpush1.bf16.msra.mxu0 0
      %5125 = vmatprep.subr.bf16.mxu0 0
      %5126 = vmatpush1.bf16.msra.mxu0 0
      %5127 = vmatprep.subr.bf16.mxu0 0
      %5128 = vmatpush1.bf16.msra.mxu0 0
      %5129 = vmatprep.subr.bf16.mxu0 0
      %5130 = vmatpush1.bf16.msra.mxu0 0
      %5131 = vmatprep.subr.bf16.mxu0 0
      %5132 = vmatpush1.bf16.msra.mxu0 0
      %5133 = vmatprep.subr.bf16.mxu0 0
      %5134 = vmatpush1.bf16.msra.mxu0 0
      %5135 = vmatprep.subr.bf16.mxu0 0
      %5136 = vmatpush1.bf16.msra.mxu0 0
      %5137 = vmatprep.subr.bf16.mxu0 0
      %5138 = vmatpush1.bf16.msra.mxu0 0
      %5139 = vmatprep.mubr.bf16.mxu0 0
      %5140 = vmatmul.mubr.bf16.gmra.mrb[0].mxu0 %v1405
      %v5141 = vpop.f32.mrb[0].mxu0
      %v5142 = vadd.f32 0.0, %v5141
      %v5143 = vpop.f32.mrb[0].mxu0
      %v5144 = vadd.f32 0.0, %v5143
      %v5145 = vpop.f32.mrb[0].mxu0
      %v5146 = vadd.f32 0.0, %v5145
      %v5147 = vpop.f32.mrb[0].mxu0
      %v5148 = vadd.f32 0.0, %v5147
      %5149 = vdwg.mxu0
      %5150 = vmatprep.subr.bf16.mxu0 %v1220
      %5151 = vmatpush1.bf16.msra.mxu0 %v1216
      %5152 = vmatprep.subr.bf16.mxu0 %v4705
      %5153 = vmatpush1.bf16.msra.mxu0 %v4703
      %5154 = vmatprep.subr.bf16.mxu0 %v4761
      %5155 = vmatpush1.bf16.msra.mxu0 %v4759
      %5156 = vmatprep.subr.bf16.mxu0 %v4817
      %5157 = vmatpush1.bf16.msra.mxu0 %v4815
      %5158 = vmatprep.subr.bf16.mxu0 %v4885
      %5159 = vmatpush1.bf16.msra.mxu0 %v4882
      %5160 = vmatprep.subr.bf16.mxu0 0
      %5161 = vmatpush1.bf16.msra.mxu0 0
      %5162 = vmatprep.subr.bf16.mxu0 0
      %5163 = vmatpush1.bf16.msra.mxu0 0
      %5164 = vmatprep.subr.bf16.mxu0 0
      %5165 = vmatpush1.bf16.msra.mxu0 0
      %5166 = vmatprep.subr.bf16.mxu0 0
      %5167 = vmatpush1.bf16.msra.mxu0 0
      %5168 = vmatprep.subr.bf16.mxu0 0
      %5169 = vmatpush1.bf16.msra.mxu0 0
      %5170 = vmatprep.subr.bf16.mxu0 0
      %5171 = vmatpush1.bf16.msra.mxu0 0
      %5172 = vmatprep.subr.bf16.mxu0 0
      %5173 = vmatpush1.bf16.msra.mxu0 0
      %5174 = vmatprep.subr.bf16.mxu0 0
      %5175 = vmatpush1.bf16.msra.mxu0 0
      %5176 = vmatprep.subr.bf16.mxu0 0
      %5177 = vmatpush1.bf16.msra.mxu0 0
      %5178 = vmatprep.subr.bf16.mxu0 0
      %5179 = vmatpush1.bf16.msra.mxu0 0
      %5180 = vmatprep.subr.bf16.mxu0 0
      %5181 = vmatpush1.bf16.msra.mxu0 0
      %5182 = vmatprep.mubr.bf16.mxu0 0
      %5183 = vmatmul.mubr.bf16.gmra.mrb[0].mxu0 %v1405
      %v5184 = vpop.f32.mrb[0].mxu0
      %v5185 = vadd.f32 0.0, %v5184
      %v5186 = vpop.f32.mrb[0].mxu0
      %v5187 = vadd.f32 0.0, %v5186
      %v5188 = vpop.f32.mrb[0].mxu0
      %v5189 = vadd.f32 0.0, %v5188
      %v5190 = vpop.f32.mrb[0].mxu0
      %v5191 = vadd.f32 0.0, %v5190
      %5192 = vdwg.mxu0
      %5193 = vmatprep.subr.bf16.mxu0 %v1228
      %5194 = vmatpush1.bf16.msra.mxu0 %v1224
      %5195 = vmatprep.subr.bf16.mxu0 %v4709
      %5196 = vmatpush1.bf16.msra.mxu0 %v4707
      %5197 = vmatprep.subr.bf16.mxu0 %v4765
      %5198 = vmatpush1.bf16.msra.mxu0 %v4763
      %5199 = vmatprep.subr.bf16.mxu0 %v4821
      %5200 = vmatpush1.bf16.msra.mxu0 %v4819
      %5201 = vmatprep.subr.bf16.mxu0 %v4891
      %5202 = vmatpush1.bf16.msra.mxu0 %v4888
      %5203 = vmatprep.subr.bf16.mxu0 0
      %5204 = vmatpush1.bf16.msra.mxu0 0
      %5205 = vmatprep.subr.bf16.mxu0 0
      %5206 = vmatpush1.bf16.msra.mxu0 0
      %5207 = vmatprep.subr.bf16.mxu0 0
      %5208 = vmatpush1.bf16.msra.mxu0 0
      %5209 = vmatprep.subr.bf16.mxu0 0
      %5210 = vmatpush1.bf16.msra.mxu0 0
      %5211 = vmatprep.subr.bf16.mxu0 0
      %5212 = vmatpush1.bf16.msra.mxu0 0
      %5213 = vmatprep.subr.bf16.mxu0 0
      %5214 = vmatpush1.bf16.msra.mxu0 0
      %5215 = vmatprep.subr.bf16.mxu0 0
      %5216 = vmatpush1.bf16.msra.mxu0 0
      %5217 = vmatprep.subr.bf16.mxu0 0
      %5218 = vmatpush1.bf16.msra.mxu0 0
      %5219 = vmatprep.subr.bf16.mxu0 0
      %5220 = vmatpush1.bf16.msra.mxu0 0
      %5221 = vmatprep.subr.bf16.mxu0 0
      %5222 = vmatpush1.bf16.msra.mxu0 0
      %5223 = vmatprep.subr.bf16.mxu0 0
      %5224 = vmatpush1.bf16.msra.mxu0 0
      %5225 = vmatprep.mubr.bf16.mxu0 0
      %5226 = vmatmul.mubr.bf16.gmra.mrb[0].mxu0 %v1405
      %v5227 = vpop.f32.mrb[0].mxu0
      %v5228 = vadd.f32 0.0, %v5227
      %v5229 = vpop.f32.mrb[0].mxu0
      %v5230 = vadd.f32 0.0, %v5229
      %v5231 = vpop.f32.mrb[0].mxu0
      %v5232 = vadd.f32 0.0, %v5231
      %v5233 = vpop.f32.mrb[0].mxu0
      %v5234 = vadd.f32 0.0, %v5233
      %5235 = vdwg.mxu0
      %5236 = vmatprep.subr.bf16.mxu0 %v1236
      %5237 = vmatpush1.bf16.msra.mxu0 %v1232
      %5238 = vmatprep.subr.bf16.mxu0 %v4713
      %5239 = vmatpush1.bf16.msra.mxu0 %v4711
      %5240 = vmatprep.subr.bf16.mxu0 %v4769
      %5241 = vmatpush1.bf16.msra.mxu0 %v4767
      %5242 = vmatprep.subr.bf16.mxu0 %v4825
      %5243 = vmatpush1.bf16.msra.mxu0 %v4823
      %5244 = vmatprep.subr.bf16.mxu0 %v4897
      %5245 = vmatpush1.bf16.msra.mxu0 %v4894
      %5246 = vmatprep.subr.bf16.mxu0 0
      %5247 = vmatpush1.bf16.msra.mxu0 0
      %5248 = vmatprep.subr.bf16.mxu0 0
      %5249 = vmatpush1.bf16.msra.mxu0 0
      %5250 = vmatprep.subr.bf16.mxu0 0
      %5251 = vmatpush1.bf16.msra.mxu0 0
      %5252 = vmatprep.subr.bf16.mxu0 0
      %5253 = vmatpush1.bf16.msra.mxu0 0
      %5254 = vmatprep.subr.bf16.mxu0 0
      %5255 = vmatpush1.bf16.msra.mxu0 0
      %5256 = vmatprep.subr.bf16.mxu0 0
      %5257 = vmatpush1.bf16.msra.mxu0 0
      %5258 = vmatprep.subr.bf16.mxu0 0
      %5259 = vmatpush1.bf16.msra.mxu0 0
      %5260 = vmatprep.subr.bf16.mxu0 0
      %5261 = vmatpush1.bf16.msra.mxu0 0
      %5262 = vmatprep.subr.bf16.mxu0 0
      %5263 = vmatpush1.bf16.msra.mxu0 0
      %5264 = vmatprep.subr.bf16.mxu0 0
      %5265 = vmatpush1.bf16.msra.mxu0 0
      %5266 = vmatprep.subr.bf16.mxu0 0
      %5267 = vmatpush1.bf16.msra.mxu0 0
      %5268 = vmatprep.mubr.bf16.mxu0 0
      %5269 = vmatmul.mubr.bf16.gmra.mrb[0].mxu0 %v1405
      %v5270 = vpop.f32.mrb[0].mxu0
      %v5271 = vadd.f32 0.0, %v5270
      %v5272 = vpop.f32.mrb[0].mxu0
      %v5273 = vadd.f32 0.0, %v5272
      %v5274 = vpop.f32.mrb[0].mxu0
      %v5275 = vadd.f32 0.0, %v5274
      %v5276 = vpop.f32.mrb[0].mxu0
      %v5277 = vadd.f32 0.0, %v5276
      %5278 = vdwg.mxu0
      %5279 = vmatprep.subr.bf16.mxu0 %v1244
      %5280 = vmatpush1.bf16.msra.mxu0 %v1240
      %5281 = vmatprep.subr.bf16.mxu0 %v4717
      %5282 = vmatpush1.bf16.msra.mxu0 %v4715
      %5283 = vmatprep.subr.bf16.mxu0 %v4773
      %5284 = vmatpush1.bf16.msra.mxu0 %v4771
      %5285 = vmatprep.subr.bf16.mxu0 %v4829
      %5286 = vmatpush1.bf16.msra.mxu0 %v4827
      %5287 = vmatprep.subr.bf16.mxu0 %v4903
      %5288 = vmatpush1.bf16.msra.mxu0 %v4900
      %5289 = vmatprep.subr.bf16.mxu0 0
      %5290 = vmatpush1.bf16.msra.mxu0 0
      %5291 = vmatprep.subr.bf16.mxu0 0
      %5292 = vmatpush1.bf16.msra.mxu0 0
      %5293 = vmatprep.subr.bf16.mxu0 0
      %5294 = vmatpush1.bf16.msra.mxu0 0
      %5295 = vmatprep.subr.bf16.mxu0 0
      %5296 = vmatpush1.bf16.msra.mxu0 0
      %5297 = vmatprep.subr.bf16.mxu0 0
      %5298 = vmatpush1.bf16.msra.mxu0 0
      %5299 = vmatprep.subr.bf16.mxu0 0
      %5300 = vmatpush1.bf16.msra.mxu0 0
      %5301 = vmatprep.subr.bf16.mxu0 0
      %5302 = vmatpush1.bf16.msra.mxu0 0
      %5303 = vmatprep.subr.bf16.mxu0 0
      %5304 = vmatpush1.bf16.msra.mxu0 0
      %5305 = vmatprep.subr.bf16.mxu0 0
      %5306 = vmatpush1.bf16.msra.mxu0 0
      %5307 = vmatprep.subr.bf16.mxu0 0
      %5308 = vmatpush1.bf16.msra.mxu0 0
      %5309 = vmatprep.subr.bf16.mxu0 0
      %5310 = vmatpush1.bf16.msra.mxu0 0
      %5311 = vmatprep.mubr.bf16.mxu0 0
      %5312 = vmatmul.mubr.bf16.gmra.mrb[0].mxu0 %v1405
      %v5313 = vpop.f32.mrb[0].mxu0
      %v5314 = vadd.f32 0.0, %v5313
      %v5315 = vpop.f32.mrb[0].mxu0
      %v5316 = vadd.f32 0.0, %v5315
      %v5317 = vpop.f32.mrb[0].mxu0
      %v5318 = vadd.f32 0.0, %v5317
      %v5319 = vpop.f32.mrb[0].mxu0
      %v5320 = vadd.f32 0.0, %v5319
      %5321 = vdwg.mxu0
      %5322 = vmatprep.subr.bf16.mxu0 %v1252
      %5323 = vmatpush1.bf16.msra.mxu0 %v1248
      %5324 = vmatprep.subr.bf16.mxu0 %v4721
      %5325 = vmatpush1.bf16.msra.mxu0 %v4719
      %5326 = vmatprep.subr.bf16.mxu0 %v4777
      %5327 = vmatpush1.bf16.msra.mxu0 %v4775
      %5328 = vmatprep.subr.bf16.mxu0 %v4833
      %5329 = vmatpush1.bf16.msra.mxu0 %v4831
      %5330 = vmatprep.subr.bf16.mxu0 %v4909
      %5331 = vmatpush1.bf16.msra.mxu0 %v4906
      %5332 = vmatprep.subr.bf16.mxu0 0
      %5333 = vmatpush1.bf16.msra.mxu0 0
      %5334 = vmatprep.subr.bf16.mxu0 0
      %5335 = vmatpush1.bf16.msra.mxu0 0
      %5336 = vmatprep.subr.bf16.mxu0 0
      %5337 = vmatpush1.bf16.msra.mxu0 0
      %5338 = vmatprep.subr.bf16.mxu0 0
      %5339 = vmatpush1.bf16.msra.mxu0 0
      %5340 = vmatprep.subr.bf16.mxu0 0
      %5341 = vmatpush1.bf16.msra.mxu0 0
      %5342 = vmatprep.subr.bf16.mxu0 0
      %5343 = vmatpush1.bf16.msra.mxu0 0
      %5344 = vmatprep.subr.bf16.mxu0 0
      %5345 = vmatpush1.bf16.msra.mxu0 0
      %5346 = vmatprep.subr.bf16.mxu0 0
      %5347 = vmatpush1.bf16.msra.mxu0 0
      %5348 = vmatprep.subr.bf16.mxu0 0
      %5349 = vmatpush1.bf16.msra.mxu0 0
      %5350 = vmatprep.subr.bf16.mxu0 0
      %5351 = vmatpush1.bf16.msra.mxu0 0
      %5352 = vmatprep.subr.bf16.mxu0 0
      %5353 = vmatpush1.bf16.msra.mxu0 0
      %5354 = vmatprep.mubr.bf16.mxu0 0
      %5355 = vmatmul.mubr.bf16.gmra.mrb[0].mxu0 %v1405
      %v5356 = vpop.f32.mrb[0].mxu0
      %v5357 = vadd.f32 0.0, %v5356
      %v5358 = vpop.f32.mrb[0].mxu0
      %v5359 = vadd.f32 0.0, %v5358
      %v5360 = vpop.f32.mrb[0].mxu0
      %v5361 = vadd.f32 0.0, %v5360
      %v5362 = vpop.f32.mrb[0].mxu0
      %v5363 = vadd.f32 0.0, %v5362
      %5364 = vdwg.mxu0
      %5365 = vmatprep.subr.bf16.mxu0 %v1260
      %5366 = vmatpush1.bf16.msra.mxu0 %v1256
      %5367 = vmatprep.subr.bf16.mxu0 %v4725
      %5368 = vmatpush1.bf16.msra.mxu0 %v4723
      %5369 = vmatprep.subr.bf16.mxu0 %v4781
      %5370 = vmatpush1.bf16.msra.mxu0 %v4779
      %5371 = vmatprep.subr.bf16.mxu0 %v4837
      %5372 = vmatpush1.bf16.msra.mxu0 %v4835
      %5373 = vmatprep.subr.bf16.mxu0 %v4915
      %5374 = vmatpush1.bf16.msra.mxu0 %v4912
      %5375 = vmatprep.subr.bf16.mxu0 0
      %5376 = vmatpush1.bf16.msra.mxu0 0
      %5377 = vmatprep.subr.bf16.mxu0 0
      %5378 = vmatpush1.bf16.msra.mxu0 0
      %5379 = vmatprep.subr.bf16.mxu0 0
      %5380 = vmatpush1.bf16.msra.mxu0 0
      %5381 = vmatprep.subr.bf16.mxu0 0
      %5382 = vmatpush1.bf16.msra.mxu0 0
      %5383 = vmatprep.subr.bf16.mxu0 0
      %5384 = vmatpush1.bf16.msra.mxu0 0
      %5385 = vmatprep.subr.bf16.mxu0 0
      %5386 = vmatpush1.bf16.msra.mxu0 0
      %5387 = vmatprep.subr.bf16.mxu0 0
      %5388 = vmatpush1.bf16.msra.mxu0 0
      %5389 = vmatprep.subr.bf16.mxu0 0
      %5390 = vmatpush1.bf16.msra.mxu0 0
      %5391 = vmatprep.subr.bf16.mxu0 0
      %5392 = vmatpush1.bf16.msra.mxu0 0
      %5393 = vmatprep.subr.bf16.mxu0 0
      %5394 = vmatpush1.bf16.msra.mxu0 0
      %5395 = vmatprep.subr.bf16.mxu0 0
      %5396 = vmatpush1.bf16.msra.mxu0 0
      %5397 = vmatprep.mubr.bf16.mxu0 0
      %5398 = vmatmul.mubr.bf16.gmra.mrb[0].mxu0 %v1405
      %v5399 = vpop.f32.mrb[0].mxu0
      %v5400 = vadd.f32 0.0, %v5399
      %v5401 = vpop.f32.mrb[0].mxu0
      %v5402 = vadd.f32 0.0, %v5401
      %v5403 = vpop.f32.mrb[0].mxu0
      %v5404 = vadd.f32 0.0, %v5403
      %v5405 = vpop.f32.mrb[0].mxu0
      %v5406 = vadd.f32 0.0, %v5405
      %5407 = vdwg.mxu0
      %5408 = vmatprep.subr.bf16.mxu0 %v1268
      %5409 = vmatpush1.bf16.msra.mxu0 %v1264
      %5410 = vmatprep.subr.bf16.mxu0 %v4729
      %5411 = vmatpush1.bf16.msra.mxu0 %v4727
      %5412 = vmatprep.subr.bf16.mxu0 %v4785
      %5413 = vmatpush1.bf16.msra.mxu0 %v4783
      %5414 = vmatprep.subr.bf16.mxu0 %v4841
      %5415 = vmatpush1.bf16.msra.mxu0 %v4839
      %5416 = vmatprep.subr.bf16.mxu0 %v4921
      %5417 = vmatpush1.bf16.msra.mxu0 %v4918
      %5418 = vmatprep.subr.bf16.mxu0 0
      %5419 = vmatpush1.bf16.msra.mxu0 0
      %5420 = vmatprep.subr.bf16.mxu0 0
      %5421 = vmatpush1.bf16.msra.mxu0 0
      %5422 = vmatprep.subr.bf16.mxu0 0
      %5423 = vmatpush1.bf16.msra.mxu0 0
      %5424 = vmatprep.subr.bf16.mxu0 0
      %5425 = vmatpush1.bf16.msra.mxu0 0
      %5426 = vmatprep.subr.bf16.mxu0 0
      %5427 = vmatpush1.bf16.msra.mxu0 0
      %5428 = vmatprep.subr.bf16.mxu0 0
      %5429 = vmatpush1.bf16.msra.mxu0 0
      %5430 = vmatprep.subr.bf16.mxu0 0
      %5431 = vmatpush1.bf16.msra.mxu0 0
      %5432 = vmatprep.subr.bf16.mxu0 0
      %5433 = vmatpush1.bf16.msra.mxu0 0
      %5434 = vmatprep.subr.bf16.mxu0 0
      %5435 = vmatpush1.bf16.msra.mxu0 0
      %5436 = vmatprep.subr.bf16.mxu0 0
      %5437 = vmatpush1.bf16.msra.mxu0 0
      %5438 = vmatprep.subr.bf16.mxu0 0
      %5439 = vmatpush1.bf16.msra.mxu0 0
      %5440 = vmatprep.mubr.bf16.mxu0 0
      %5441 = vmatmul.mubr.bf16.gmra.mrb[0].mxu0 %v1405
      %v5442 = vpop.f32.mrb[0].mxu0
      %v5443 = vadd.f32 0.0, %v5442
      %v5444 = vpop.f32.mrb[0].mxu0
      %v5445 = vadd.f32 0.0, %v5444
      %v5446 = vpop.f32.mrb[0].mxu0
      %v5447 = vadd.f32 0.0, %v5446
      %v5448 = vpop.f32.mrb[0].mxu0
      %v5449 = vadd.f32 0.0, %v5448
      %5450 = vdwg.mxu0
      %5451 = vmatprep.subr.bf16.mxu0 %v1276
      %5452 = vmatpush1.bf16.msra.mxu0 %v1272
      %5453 = vmatprep.subr.bf16.mxu0 %v4733
      %5454 = vmatpush1.bf16.msra.mxu0 %v4731
      %5455 = vmatprep.subr.bf16.mxu0 %v4789
      %5456 = vmatpush1.bf16.msra.mxu0 %v4787
      %5457 = vmatprep.subr.bf16.mxu0 %v4845
      %5458 = vmatpush1.bf16.msra.mxu0 %v4843
      %5459 = vmatprep.subr.bf16.mxu0 %v4927
      %5460 = vmatpush1.bf16.msra.mxu0 %v4924
      %5461 = vmatprep.subr.bf16.mxu0 0
      %5462 = vmatpush1.bf16.msra.mxu0 0
      %5463 = vmatprep.subr.bf16.mxu0 0
      %5464 = vmatpush1.bf16.msra.mxu0 0
      %5465 = vmatprep.subr.bf16.mxu0 0
      %5466 = vmatpush1.bf16.msra.mxu0 0
      %5467 = vmatprep.subr.bf16.mxu0 0
      %5468 = vmatpush1.bf16.msra.mxu0 0
      %5469 = vmatprep.subr.bf16.mxu0 0
      %5470 = vmatpush1.bf16.msra.mxu0 0
      %5471 = vmatprep.subr.bf16.mxu0 0
      %5472 = vmatpush1.bf16.msra.mxu0 0
      %5473 = vmatprep.subr.bf16.mxu0 0
      %5474 = vmatpush1.bf16.msra.mxu0 0
      %5475 = vmatprep.subr.bf16.mxu0 0
      %5476 = vmatpush1.bf16.msra.mxu0 0
      %5477 = vmatprep.subr.bf16.mxu0 0
      %5478 = vmatpush1.bf16.msra.mxu0 0
      %5479 = vmatprep.subr.bf16.mxu0 0
      %5480 = vmatpush1.bf16.msra.mxu0 0
      %5481 = vmatprep.subr.bf16.mxu0 0
      %5482 = vmatpush1.bf16.msra.mxu0 0
      %5483 = vmatprep.mubr.bf16.mxu0 0
      %5484 = vmatmul.mubr.bf16.gmra.mrb[0].mxu0 %v1405
      %v5485 = vpop.f32.mrb[0].mxu0
      %v5486 = vadd.f32 0.0, %v5485
      %v5487 = vpop.f32.mrb[0].mxu0
      %v5488 = vadd.f32 0.0, %v5487
      %v5489 = vpop.f32.mrb[0].mxu0
      %v5490 = vadd.f32 0.0, %v5489
      %v5491 = vpop.f32.mrb[0].mxu0
      %v5492 = vadd.f32 0.0, %v5491
      %5493 = vdwg.mxu0
      %5494 = vmatprep.subr.bf16.mxu0 %v1284
      %5495 = vmatpush1.bf16.msra.mxu0 %v1280
      %5496 = vmatprep.subr.bf16.mxu0 %v4737
      %5497 = vmatpush1.bf16.msra.mxu0 %v4735
      %5498 = vmatprep.subr.bf16.mxu0 %v4793
      %5499 = vmatpush1.bf16.msra.mxu0 %v4791
      %5500 = vmatprep.subr.bf16.mxu0 %v4849
      %5501 = vmatpush1.bf16.msra.mxu0 %v4847
      %5502 = vmatprep.subr.bf16.mxu0 %v4933
      %5503 = vmatpush1.bf16.msra.mxu0 %v4930
      %5504 = vmatprep.subr.bf16.mxu0 0
      %5505 = vmatpush1.bf16.msra.mxu0 0
      %5506 = vmatprep.subr.bf16.mxu0 0
      %5507 = vmatpush1.bf16.msra.mxu0 0
      %5508 = vmatprep.subr.bf16.mxu0 0
      %5509 = vmatpush1.bf16.msra.mxu0 0
      %5510 = vmatprep.subr.bf16.mxu0 0
      %5511 = vmatpush1.bf16.msra.mxu0 0
      %5512 = vmatprep.subr.bf16.mxu0 0
      %5513 = vmatpush1.bf16.msra.mxu0 0
      %5514 = vmatprep.subr.bf16.mxu0 0
      %5515 = vmatpush1.bf16.msra.mxu0 0
      %5516 = vmatprep.subr.bf16.mxu0 0
      %5517 = vmatpush1.bf16.msra.mxu0 0
      %5518 = vmatprep.subr.bf16.mxu0 0
      %5519 = vmatpush1.bf16.msra.mxu0 0
      %5520 = vmatprep.subr.bf16.mxu0 0
      %5521 = vmatpush1.bf16.msra.mxu0 0
      %5522 = vmatprep.subr.bf16.mxu0 0
      %5523 = vmatpush1.bf16.msra.mxu0 0
      %5524 = vmatprep.subr.bf16.mxu0 0
      %5525 = vmatpush1.bf16.msra.mxu0 0
      %5526 = vmatprep.mubr.bf16.mxu0 0
      %5527 = vmatmul.mubr.bf16.gmra.mrb[0].mxu0 %v1405
      %v5528 = vpop.f32.mrb[0].mxu0
      %v5529 = vadd.f32 0.0, %v5528
      %v5530 = vpop.f32.mrb[0].mxu0
      %v5531 = vadd.f32 0.0, %v5530
      %v5532 = vpop.f32.mrb[0].mxu0
      %v5533 = vadd.f32 0.0, %v5532
      %v5534 = vpop.f32.mrb[0].mxu0
      %v5535 = vadd.f32 0.0, %v5534
      %5536 = vdwg.mxu0
      %v5537 = vmax.f32 %v4541, %v4970
      %v5538 = vmax.f32 %v4542, %v4972
      %v5539 = vmax.f32 %v4543, %v5013
      %v5540 = vmax.f32 %v4544, %v5015
      %v5541 = vmax.f32 %v4545, %v5056
      %v5542 = vmax.f32 %v4546, %v5058
      %v5543 = vmax.f32 %v4547, %v5099
      %v5544 = vmax.f32 %v4548, %v5101
      %v5545 = vmax.f32 %v4549, %v5142
      %v5546 = vmax.f32 %v4550, %v5144
      %v5547 = vmax.f32 %v4551, %v5185
      %v5548 = vmax.f32 %v4552, %v5187
      %v5549 = vmax.f32 %v4553, %v5228
      %v5550 = vmax.f32 %v4554, %v5230
      %v5551 = vmax.f32 %v4555, %v5271
      %v5552 = vmax.f32 %v4556, %v5273
      %v5553 = vmax.f32 %v4557, %v5314
      %v5554 = vmax.f32 %v4558, %v5316
      %v5555 = vmax.f32 %v4559, %v5357
      %v5556 = vmax.f32 %v4560, %v5359
      %v5557 = vmax.f32 %v4561, %v5400
      %v5558 = vmax.f32 %v4562, %v5402
      %v5559 = vmax.f32 %v4563, %v5443
      %v5560 = vmax.f32 %v4564, %v5445
      %v5561 = vmax.f32 %v4565, %v5486
      %v5562 = vmax.f32 %v4566, %v5488
      %v5563 = vmax.f32 %v4567, %v5529
      %v5564 = vmax.f32 %v4568, %v5531
      %v5565 = vmax.f32 %v4569, %v4974
      %v5566 = vmax.f32 %v4570, %v4976
      %v5567 = vmax.f32 %v4571, %v5017
      %v5568 = vmax.f32 %v4572, %v5019
      %v5569 = vmax.f32 %v4573, %v5060
      %v5570 = vmax.f32 %v4574, %v5062
      %v5571 = vmax.f32 %v4575, %v5103
      %v5572 = vmax.f32 %v4576, %v5105
      %v5573 = vmax.f32 %v4577, %v5146
      %v5574 = vmax.f32 %v4578, %v5148
      %v5575 = vmax.f32 %v4579, %v5189
      %v5576 = vmax.f32 %v4580, %v5191
      %v5577 = vmax.f32 %v4581, %v5232
      %v5578 = vmax.f32 %v4582, %v5234
      %v5579 = vmax.f32 %v4583, %v5275
      %v5580 = vmax.f32 %v4584, %v5277
      %v5581 = vmax.f32 %v4585, %v5318
      %v5582 = vmax.f32 %v4586, %v5320
      %v5583 = vmax.f32 %v4587, %v5361
      %v5584 = vmax.f32 %v4588, %v5363
      %v5585 = vmax.f32 %v4589, %v5404
      %v5586 = vmax.f32 %v4590, %v5406
      %v5587 = vmax.f32 %v4591, %v5447
      %v5588 = vmax.f32 %v4592, %v5449
      %v5589 = vmax.f32 %v4593, %v5490
      %v5590 = vmax.f32 %v4594, %v5492
      %v5591 = vmax.f32 %v4595, %v5533
      %v5592 = vmax.f32 %v4596, %v5535
      %5594 = vset.pattern.permute.xlu0 0
      %5595 = vperm.xlu0 %5594, %v234
      %v5596 = vpop.permute.xlu0 %5595
      %5599 = vset.pattern.permute.xlu0 0
      %5600 = vperm.xlu0 %5599, %v235
      %v5601 = vpop.permute.xlu0 %5600
      %v5603 = vadd.f32 %v5537, %v5596
      %v5604 = vadd.f32 %v5538, %v5596
      %v5605 = vadd.f32 %v5539, %v5596
      %v5606 = vadd.f32 %v5540, %v5596
      %v5607 = vadd.f32 %v5541, %v5596
      %v5608 = vadd.f32 %v5542, %v5596
      %v5609 = vadd.f32 %v5543, %v5596
      %v5610 = vadd.f32 %v5544, %v5596
      %v5611 = vadd.f32 %v5545, %v5596
      %v5612 = vadd.f32 %v5546, %v5596
      %v5613 = vadd.f32 %v5547, %v5596
      %v5614 = vadd.f32 %v5548, %v5596
      %v5615 = vadd.f32 %v5549, %v5596
      %v5616 = vadd.f32 %v5550, %v5596
      %v5617 = vadd.f32 %v5551, %v5596
      %v5618 = vadd.f32 %v5552, %v5596
      %v5619 = vadd.f32 %v5553, %v5596
      %v5620 = vadd.f32 %v5554, %v5596
      %v5621 = vadd.f32 %v5555, %v5596
      %v5622 = vadd.f32 %v5556, %v5596
      %v5623 = vadd.f32 %v5557, %v5596
      %v5624 = vadd.f32 %v5558, %v5596
      %v5625 = vadd.f32 %v5559, %v5596
      %v5626 = vadd.f32 %v5560, %v5596
      %v5627 = vadd.f32 %v5561, %v5596
      %v5628 = vadd.f32 %v5562, %v5596
      %v5629 = vadd.f32 %v5563, %v5596
      %v5630 = vadd.f32 %v5564, %v5596
      %v5631 = vadd.f32 %v5565, %v5601
      %v5632 = vadd.f32 %v5566, %v5601
      %v5633 = vadd.f32 %v5567, %v5601
      %v5634 = vadd.f32 %v5568, %v5601
      %v5635 = vadd.f32 %v5569, %v5601
      %v5636 = vadd.f32 %v5570, %v5601
      %v5637 = vadd.f32 %v5571, %v5601
      %v5638 = vadd.f32 %v5572, %v5601
      %v5639 = vadd.f32 %v5573, %v5601
      %v5640 = vadd.f32 %v5574, %v5601
      %v5641 = vadd.f32 %v5575, %v5601
      %v5642 = vadd.f32 %v5576, %v5601
      %v5643 = vadd.f32 %v5577, %v5601
      %v5644 = vadd.f32 %v5578, %v5601
      %v5645 = vadd.f32 %v5579, %v5601
      %v5646 = vadd.f32 %v5580, %v5601
      %v5647 = vadd.f32 %v5581, %v5601
      %v5648 = vadd.f32 %v5582, %v5601
      %v5649 = vadd.f32 %v5583, %v5601
      %v5650 = vadd.f32 %v5584, %v5601
      %v5651 = vadd.f32 %v5585, %v5601
      %v5652 = vadd.f32 %v5586, %v5601
      %v5653 = vadd.f32 %v5587, %v5601
      %v5654 = vadd.f32 %v5588, %v5601
      %v5655 = vadd.f32 %v5589, %v5601
      %v5656 = vadd.f32 %v5590, %v5601
      %v5657 = vadd.f32 %v5591, %v5601
      %v5658 = vadd.f32 %v5592, %v5601
      %v5659 = vmax.f32 %v5603, 0.0
      %v5660 = vmax.f32 %v5604, 0.0
      %v5661 = vmax.f32 %v5605, 0.0
      %v5662 = vmax.f32 %v5606, 0.0
      %v5663 = vmax.f32 %v5607, 0.0
      %v5664 = vmax.f32 %v5608, 0.0
      %v5665 = vmax.f32 %v5609, 0.0
      %v5666 = vmax.f32 %v5610, 0.0
      %v5667 = vmax.f32 %v5611, 0.0
      %v5668 = vmax.f32 %v5612, 0.0
      %v5669 = vmax.f32 %v5613, 0.0
      %v5670 = vmax.f32 %v5614, 0.0
      %v5671 = vmax.f32 %v5615, 0.0
      %v5672 = vmax.f32 %v5616, 0.0
      %v5673 = vmax.f32 %v5617, 0.0
      %v5674 = vmax.f32 %v5618, 0.0
      %v5675 = vmax.f32 %v5619, 0.0
      %v5676 = vmax.f32 %v5620, 0.0
      %v5677 = vmax.f32 %v5621, 0.0
      %v5678 = vmax.f32 %v5622, 0.0
      %v5679 = vmax.f32 %v5623, 0.0
      %v5680 = vmax.f32 %v5624, 0.0
      %v5681 = vmax.f32 %v5625, 0.0
      %v5682 = vmax.f32 %v5626, 0.0
      %v5683 = vmax.f32 %v5627, 0.0
      %v5684 = vmax.f32 %v5628, 0.0
      %v5685 = vmax.f32 %v5629, 0.0
      %v5686 = vmax.f32 %v5630, 0.0
      %v5687 = vmax.f32 %v5631, 0.0
      %v5688 = vmax.f32 %v5632, 0.0
      %v5689 = vmax.f32 %v5633, 0.0
      %v5690 = vmax.f32 %v5634, 0.0
      %v5691 = vmax.f32 %v5635, 0.0
      %v5692 = vmax.f32 %v5636, 0.0
      %v5693 = vmax.f32 %v5637, 0.0
      %v5694 = vmax.f32 %v5638, 0.0
      %v5695 = vmax.f32 %v5639, 0.0
      %v5696 = vmax.f32 %v5640, 0.0
      %v5697 = vmax.f32 %v5641, 0.0
      %v5698 = vmax.f32 %v5642, 0.0
      %v5699 = vmax.f32 %v5643, 0.0
      %v5700 = vmax.f32 %v5644, 0.0
      %v5701 = vmax.f32 %v5645, 0.0
      %v5702 = vmax.f32 %v5646, 0.0
      %v5703 = vmax.f32 %v5647, 0.0
      %v5704 = vmax.f32 %v5648, 0.0
      %v5705 = vmax.f32 %v5649, 0.0
      %v5706 = vmax.f32 %v5650, 0.0
      %v5707 = vmax.f32 %v5651, 0.0
      %v5708 = vmax.f32 %v5652, 0.0
      %v5709 = vmax.f32 %v5653, 0.0
      %v5710 = vmax.f32 %v5654, 0.0
      %v5711 = vmax.f32 %v5655, 0.0
      %v5712 = vmax.f32 %v5656, 0.0
      %v5713 = vmax.f32 %v5657, 0.0
      %v5714 = vmax.f32 %v5658, 0.0
      %v5715 = vpack.c.bf16 %v5687, %v5659
      %v5716 = vpack.c.bf16 %v5688, %v5660
      %v5717 = vpack.c.bf16 %v5689, %v5661
      %v5718 = vpack.c.bf16 %v5690, %v5662
      %v5719 = vpack.c.bf16 %v5691, %v5663
      %v5720 = vpack.c.bf16 %v5692, %v5664
      %v5721 = vpack.c.bf16 %v5693, %v5665
      %v5722 = vpack.c.bf16 %v5694, %v5666
      %v5723 = vpack.c.bf16 %v5695, %v5667
      %v5724 = vpack.c.bf16 %v5696, %v5668
      %v5725 = vpack.c.bf16 %v5697, %v5669
      %v5726 = vpack.c.bf16 %v5698, %v5670
      %v5727 = vpack.c.bf16 %v5699, %v5671
      %v5728 = vpack.c.bf16 %v5700, %v5672
      %v5729 = vpack.c.bf16 %v5701, %v5673
      %v5730 = vpack.c.bf16 %v5702, %v5674
      %v5731 = vpack.c.bf16 %v5703, %v5675
      %v5732 = vpack.c.bf16 %v5704, %v5676
      %v5733 = vpack.c.bf16 %v5705, %v5677
      %v5734 = vpack.c.bf16 %v5706, %v5678
      %v5735 = vpack.c.bf16 %v5707, %v5679
      %v5736 = vpack.c.bf16 %v5708, %v5680
      %v5737 = vpack.c.bf16 %v5709, %v5681
      %v5738 = vpack.c.bf16 %v5710, %v5682
      %v5739 = vpack.c.bf16 %v5711, %v5683
      %v5740 = vpack.c.bf16 %v5712, %v5684
      %v5741 = vpack.c.bf16 %v5713, %v5685
      %v5742 = vpack.c.bf16 %v5714, %v5686
      %v5771 = vunpack.c.l.b16 %v5715
      %v5772 = vunpack.c.l.b16 %v5716
      %v5773 = vunpack.c.l.b16 %v5717
      %v5774 = vunpack.c.l.b16 %v5718
      %v5775 = vunpack.c.l.b16 %v5719
      %v5776 = vunpack.c.l.b16 %v5720
      %v5777 = vunpack.c.l.b16 %v5721
      %v5778 = vunpack.c.l.b16 %v5722
      %v5779 = vunpack.c.l.b16 %v5723
      %v5780 = vunpack.c.l.b16 %v5724
      %v5781 = vunpack.c.l.b16 %v5725
      %v5782 = vunpack.c.l.b16 %v5726
      %v5783 = vunpack.c.l.b16 %v5727
      %v5784 = vunpack.c.l.b16 %v5728
      %v5785 = vunpack.c.l.b16 %v5729
      %v5786 = vunpack.c.l.b16 %v5730
      %v5787 = vunpack.c.l.b16 %v5731
      %v5788 = vunpack.c.l.b16 %v5732
      %v5789 = vunpack.c.l.b16 %v5733
      %v5790 = vunpack.c.l.b16 %v5734
      %v5791 = vunpack.c.l.b16 %v5735
      %v5792 = vunpack.c.l.b16 %v5736
      %v5793 = vunpack.c.l.b16 %v5737
      %v5794 = vunpack.c.l.b16 %v5738
      %v5795 = vunpack.c.l.b16 %v5739
      %v5796 = vunpack.c.l.b16 %v5740
      %v5797 = vunpack.c.l.b16 %v5741
      %v5798 = vunpack.c.l.b16 %v5742
      %v5799 = vunpack.c.h.b16 %v5715
      %v5800 = vunpack.c.h.b16 %v5716
      %v5801 = vunpack.c.h.b16 %v5717
      %v5802 = vunpack.c.h.b16 %v5718
      %v5803 = vunpack.c.h.b16 %v5719
      %v5804 = vunpack.c.h.b16 %v5720
      %v5805 = vunpack.c.h.b16 %v5721
      %v5806 = vunpack.c.h.b16 %v5722
      %v5807 = vunpack.c.h.b16 %v5723
      %v5808 = vunpack.c.h.b16 %v5724
      %v5809 = vunpack.c.h.b16 %v5725
      %v5810 = vunpack.c.h.b16 %v5726
      %v5811 = vunpack.c.h.b16 %v5727
      %v5812 = vunpack.c.h.b16 %v5728
      %v5813 = vunpack.c.h.b16 %v5729
      %v5814 = vunpack.c.h.b16 %v5730
      %v5815 = vunpack.c.h.b16 %v5731
      %v5816 = vunpack.c.h.b16 %v5732
      %v5817 = vunpack.c.h.b16 %v5733
      %v5818 = vunpack.c.h.b16 %v5734
      %v5819 = vunpack.c.h.b16 %v5735
      %v5820 = vunpack.c.h.b16 %v5736
      %v5821 = vunpack.c.h.b16 %v5737
      %v5822 = vunpack.c.h.b16 %v5738
      %v5823 = vunpack.c.h.b16 %v5739
      %v5824 = vunpack.c.h.b16 %v5740
      %v5825 = vunpack.c.h.b16 %v5741
      %v5826 = vunpack.c.h.b16 %v5742
      %v5827 = vpack.c.b16 %v5772, %v5771
      %v5828 = vpack.c.b16 %v5774, %v5773
      %v5829 = vpack.c.b16 %v5776, %v5775
      %v5830 = vpack.c.b16 %v5778, %v5777
      %v5831 = vpack.c.b16 %v5780, %v5779
      %v5832 = vpack.c.b16 %v5782, %v5781
      %v5833 = vpack.c.b16 %v5784, %v5783
      %v5834 = vpack.c.b16 %v5786, %v5785
      %v5835 = vpack.c.b16 %v5788, %v5787
      %v5836 = vpack.c.b16 %v5790, %v5789
      %v5837 = vpack.c.b16 %v5792, %v5791
      %v5838 = vpack.c.b16 %v5794, %v5793
      %v5839 = vpack.c.b16 %v5796, %v5795
      %v5840 = vpack.c.b16 %v5798, %v5797
      %v5841 = vpack.c.b16 %v5800, %v5799
      %v5842 = vpack.c.b16 %v5802, %v5801
      %v5843 = vpack.c.b16 %v5804, %v5803
      %v5844 = vpack.c.b16 %v5806, %v5805
      %v5845 = vpack.c.b16 %v5808, %v5807
      %v5846 = vpack.c.b16 %v5810, %v5809
      %v5847 = vpack.c.b16 %v5812, %v5811
      %v5848 = vpack.c.b16 %v5814, %v5813
      %v5849 = vpack.c.b16 %v5816, %v5815
      %v5850 = vpack.c.b16 %v5818, %v5817
      %v5851 = vpack.c.b16 %v5820, %v5819
      %v5852 = vpack.c.b16 %v5822, %v5821
      %v5853 = vpack.c.b16 %v5824, %v5823
      %v5854 = vpack.c.b16 %v5826, %v5825
      %5883 = vst [vmem:[%s170] sm:$0xff] %v5827
      %5884 = vst [vmem:[%s170 + $0x8] sm:$0xff] %v5828
      %5885 = vst [vmem:[%s170 + $0x10] sm:$0xff] %v5829
      %5886 = vst [vmem:[%s170 + $0x18] sm:$0xff] %v5830
      %5887 = vst [vmem:[%s170 + $0x20] sm:$0xff] %v5831
      %5888 = vst [vmem:[%s170 + $0x28] sm:$0xff] %v5832
      %5889 = vst [vmem:[%s170 + $0x30] sm:$0xff] %v5833
      %5890 = vst [vmem:[%s170 + $0x38] sm:$0xff] %v5834
      %5891 = vst [vmem:[%s170 + $0x40] sm:$0xff] %v5835
      %5892 = vst [vmem:[%s170 + $0x48] sm:$0xff] %v5836
      %5893 = vst [vmem:[%s170 + $0x50] sm:$0xff] %v5837
      %5894 = vst [vmem:[%s170 + $0x58] sm:$0xff] %v5838
      %5895 = vst [vmem:[%s170 + $0x60] sm:$0xff] %v5839
      %vm5896 = vcmask 687108
      %vm5897 = vmor %vm5896, %vm949
      %5898 = vst.msk [vmem:[%s170 + $0x68] sm:$0xff] %vm5897, %v5840
      %5899 = vst [vmem:[%s170 + $0x70] sm:$0xff] %v5841
      %5900 = vst [vmem:[%s170 + $0x78] sm:$0xff] %v5842
      %5901 = vst [vmem:[%s170 + $0x80] sm:$0xff] %v5843
      %5902 = vst [vmem:[%s170 + $0x88] sm:$0xff] %v5844
      %5903 = vst [vmem:[%s170 + $0x90] sm:$0xff] %v5845
      %5904 = vst [vmem:[%s170 + $0x98] sm:$0xff] %v5846
      %5905 = vst [vmem:[%s170 + $0xa0] sm:$0xff] %v5847
      %5906 = vst [vmem:[%s170 + $0xa8] sm:$0xff] %v5848
      %5907 = vst [vmem:[%s170 + $0xb0] sm:$0xff] %v5849
      %5908 = vst [vmem:[%s170 + $0xb8] sm:$0xff] %v5850
      %5909 = vst [vmem:[%s170 + $0xc0] sm:$0xff] %v5851
      %5910 = vst [vmem:[%s170 + $0xc8] sm:$0xff] %v5852
      %5911 = vst [vmem:[%s170 + $0xd0] sm:$0xff] %v5853
      %5912 = vst.msk [vmem:[%s170 + $0xd8] sm:$0xff] %vm5897, %v5854
      %p5913 = scmp.lt.s32.totalorder %s14, 1
      %s5914 = scalar_select %p5913, %s14, 1
      %s5915 = smul.addr %s5914, 56
      %s5916 = smul.addr %s5915, 4
      %s5917 = scalar_lea.vmem %s3, %s5916
      // Predicated region
      $region33: #{cnn_forward.3} parent=31 // pred_check
        %p5918 = pneg %p100
      $region34: #{cnn_forward.3} parent=31 // pred_check_branch
        %5920 = sbr.rel (%p5918) target = $region36
      $region35: #{cnn_forward.3} parent=31 // pred_region
        _
      $region36: #{cnn_forward.3} parent=31 // pred_fallthru
        _
    $region32: #{cnn_forward.3} parent=5 // pred_fallthru
      _
    %p5921 = scmp.le.s32.totalorder 2, %s9
    // Predicated region
    $region37: #{cnn_forward.3} parent=5 // pred_check
      %p5922 = pneg %p5921
    $region38: #{cnn_forward.3} parent=5 // pred_check_branch
      %5924 = sbr.rel (%p5922) target = $region40
    $region39: #{cnn_forward.3} parent=5 // pred_region
      %s5925 = ssub.s32 %s9, 2
      // Predicated region
      $region41: #{cnn_forward.3} parent=39 // pred_check
        %p5926 = pneg %p106
      $region42: #{cnn_forward.3} parent=39 // pred_check_branch
        %5928 = sbr.rel (%p5926) target = $region44
      $region43: #{cnn_forward.3} parent=39 // pred_region
        %p5929 = scmp.lt.s32.totalorder %s15, 1
        %s5930 = scalar_select %p5929, %s15, 1
        %s5931 = smul.addr %s5930, 56
        %s5932 = smul.addr %s5931, 4
        %s5933 = scalar_lea.vmem %s3, %s5932
      $region44: #{cnn_forward.3} parent=39 // pred_fallthru
        _
    $region40: #{cnn_forward.3} parent=5 // pred_fallthru
      _
  $region6: #{cnn_forward.3} parent=0 // loop_footer
    %s13 = sadd.s32 1, %s9
  $region7: #{cnn_forward.3} parent=0 // loop_footer_branch
    %8 = sbr.rel target = $region3
  $region8: #{cnn_forward.3} parent=0 // loop_exit
    _

// kernel: cnn_forward.4
$region0: #{cnn_forward.4}
  #allocation0 [shape = 'u32[]', space=smem, size = 0x4, offset = 0x4, fixed_abs, tag = 'smem constant byte address 0x4 - core index']
  #allocation1 [shape = 'u32[144,128]{1,0:T(1,128)}', space=vmem, size = 0x12000, scoped, tag = 'internal scratch']
  %s0 = inlined_call_operand.vmem [shape: bf16[2,64,870], index: 0, kind: input, shape index: {}]
  %s1 = inlined_call_operand.vmem [shape: bf16[32,144], index: 1, kind: input, shape index: {}]
  %s2 = inlined_call_operand.vmem [shape: f32[32,1], index: 2, kind: input, shape index: {}]
  %s3 = inlined_call_operand.vmem [shape: bf16[2,32,812], index: 3, kind: output, shape index: {}]
  %s4 = sld [smem:[#allocation0]]
  $region45: #{cnn_forward.4} parent=0
    _
  %s6 = ssub.s32 1, %s4
  %s7 = scalar_select 0, %s6, %s4
  loop: start=0, step=1, limit=4
  $region2: #{cnn_forward.4} parent=0 // loop_pre_header
    _
  $region3: #{cnn_forward.4} parent=0 // loop_header
    %s9 = sphi 0, %s13
    %p10 = scmp.ge.s32.totalorder %s9, 4
    %s19 = sphi 0, %s21
    %s22 = sphi 0, %s19
    %s23 = sphi 0, %s22
    %s39 = sphi 0, %s23
    %s43 = sphi 0, %s43
    %s45 = sphi 0, %s43
    %s46 = sphi 0, %s45
    %s60 = sphi 0, %s46
    %s64 = sphi 0, %s64
    %s66 = sphi 0, %s64
    %s67 = sphi 0, %s66
    %s81 = sphi 0, %s67
    %s87 = sphi 0, %s89
    %s90 = sphi 0, %s87
    %s91 = sphi 0, %s90
    %s107 = sphi 0, %s91
  $region4: #{cnn_forward.4} parent=0 // loop_header_branch
    %12 = sbr.rel (%p10) target = $region8
  $region5: #{cnn_forward.4} parent=0 // loop_body
    %s14 = ssub.s32 %s9, 1
    %s15 = ssub.s32 %s9, 2
    %s16 = sadd.s32 %s9, 1
    %s17 = ssub.s32 %s9, %s16
    %p18 = scmp.eq.s32.totalorder %s17, 0
    %s20 = sadd.s32 %s19, 1
    %s21 = scalar_select %p18, %s19, %s20
    %p24 = pneg %p18
    %p25 = scmp.eq.s32.totalorder %s9, 1
    %p26 = por %p24, %p25
    %p27 = scmp.ne.s32.totalorder %s19, %s22
    %p28 = scmp.eq.s32.totalorder %s9, 0
    %p29 = por %p27, %p28
    %p30 = scmp.ne.s32.totalorder %s19, %s22
    %p31 = scmp.eq.s32.totalorder %s14, 1
    %p32 = por %p30, %p31
    %p33 = scmp.ne.s32.totalorder %s22, %s23
    %p34 = scmp.eq.s32.totalorder %s14, 0
    %p35 = por %p33, %p34
    %p36 = scmp.ne.s32.totalorder %s22, %s23
    %p37 = scmp.eq.s32.totalorder %s15, 1
    %p38 = por %p36, %p37
    %p40 = scmp.ne.s32.totalorder %s23, %s39
    %p41 = scmp.eq.s32.totalorder %s15, 0
    %p42 = por %p40, %p41
    %s44 = sadd.s32 %s43, 1
    %p47 = scmp.eq.s32.totalorder %s9, 1
    %p48 = scmp.ne.s32.totalorder %s43, %s45
    %p49 = scmp.eq.s32.totalorder %s9, 0
    %p50 = por %p48, %p49
    %p51 = scmp.ne.s32.totalorder %s43, %s45
    %p52 = scmp.eq.s32.totalorder %s14, 1
    %p53 = por %p51, %p52
    %p54 = scmp.ne.s32.totalorder %s45, %s46
    %p55 = scmp.eq.s32.totalorder %s14, 0
    %p56 = por %p54, %p55
    %p57 = scmp.ne.s32.totalorder %s45, %s46
    %p58 = scmp.eq.s32.totalorder %s15, 1
    %p59 = por %p57, %p58
    %p61 = scmp.ne.s32.totalorder %s46, %s60
    %p62 = scmp.eq.s32.totalorder %s15, 0
    %p63 = por %p61, %p62
    %s65 = sadd.s32 %s64, 1
    %p68 = scmp.eq.s32.totalorder %s9, 1
    %p69 = scmp.ne.s32.totalorder %s64, %s66
    %p70 = scmp.eq.s32.totalorder %s9, 0
    %p71 = por %p69, %p70
    %p72 = scmp.ne.s32.totalorder %s64, %s66
    %p73 = scmp.eq.s32.totalorder %s14, 1
    %p74 = por %p72, %p73
    %p75 = scmp.ne.s32.totalorder %s66, %s67
    %p76 = scmp.eq.s32.totalorder %s14, 0
    %p77 = por %p75, %p76
    %p78 = scmp.ne.s32.totalorder %s66, %s67
    %p79 = scmp.eq.s32.totalorder %s15, 1
    %p80 = por %p78, %p79
    %p82 = scmp.ne.s32.totalorder %s67, %s81
    %p83 = scmp.eq.s32.totalorder %s15, 0
    %p84 = por %p82, %p83
    %s85 = ssub.s32 %s9, %s16
    %p86 = scmp.eq.s32.totalorder %s85, 0
    %s88 = sadd.s32 %s87, 1
    %s89 = scalar_select %p86, %s87, %s88
    %p92 = pneg %p86
    %p93 = scmp.eq.s32.totalorder %s9, 1
    %p94 = por %p92, %p93
    %p95 = scmp.ne.s32.totalorder %s87, %s90
    %p96 = scmp.eq.s32.totalorder %s9, 0
    %p97 = por %p95, %p96
    %p98 = scmp.ne.s32.totalorder %s87, %s90
    %p99 = scmp.eq.s32.totalorder %s14, 1
    %p100 = por %p98, %p99
    %p101 = scmp.ne.s32.totalorder %s90, %s91
    %p102 = scmp.eq.s32.totalorder %s14, 0
    %p103 = por %p101, %p102
    %p104 = scmp.ne.s32.totalorder %s90, %s91
    %p105 = scmp.eq.s32.totalorder %s15, 1
    %p106 = por %p104, %p105
    %p108 = scmp.ne.s32.totalorder %s91, %s107
    %p109 = scmp.eq.s32.totalorder %s15, 0
    %p110 = por %p108, %p109
    %p111 = scmp.le.s32.totalorder 1, %s9
    %p112 = scmp.lt.s32.totalorder %s9, 3
    %p113 = pnand %p111, %p112
    %p114 = pneg %p113
    // Predicated region
    $region9: #{cnn_forward.4} parent=5 // pred_check
      _
    $region10: #{cnn_forward.4} parent=5 // pred_check_branch
      %116 = sbr.rel (%p113) target = $region12
    $region11: #{cnn_forward.4} parent=5 // pred_region
      %s117 = ssub.s32 %s9, 1
      // Predicated region
      $region13: #{cnn_forward.4} parent=11 // pred_check
        %p118 = pneg %p56
      $region14: #{cnn_forward.4} parent=11 // pred_check_branch
        %120 = sbr.rel (%p118) target = $region16
      $region15: #{cnn_forward.4} parent=11 // pred_region
        _
      $region16: #{cnn_forward.4} parent=11 // pred_fallthru
        _
      // Predicated region
      $region17: #{cnn_forward.4} parent=11 // pred_check
        %p121 = pneg %p77
      $region18: #{cnn_forward.4} parent=11 // pred_check_branch
        %123 = sbr.rel (%p121) target = $region20
      $region19: #{cnn_forward.4} parent=11 // pred_region
        _
      $region20: #{cnn_forward.4} parent=11 // pred_fallthru
        _
    $region12: #{cnn_forward.4} parent=5 // pred_fallthru
      _
    %p124 = scmp.lt.s32.totalorder %s9, 2
    // Predicated region
    $region21: #{cnn_forward.4} parent=5 // pred_check
      %p125 = pneg %p124
    $region22: #{cnn_forward.4} parent=5 // pred_check_branch
      %127 = sbr.rel (%p125) target = $region24
    $region23: #{cnn_forward.4} parent=5 // pred_region
      // Predicated region
      $region25: #{cnn_forward.4} parent=23 // pred_check
        %p128 = pneg %p29
      $region26: #{cnn_forward.4} parent=23 // pred_check_branch
        %130 = sbr.rel (%p128) target = $region28
      $region27: #{cnn_forward.4} parent=23 // pred_region
        %p131 = scmp.lt.s32.totalorder %s9, 1
        %s132 = scalar_select %p131, %s9, 1
        %s133 = smul.addr %s132, 56
        %s134 = smul.addr %s133, 4
        %s135 = scalar_lea.vmem %s0, %s134
      $region28: #{cnn_forward.4} parent=23 // pred_fallthru
        _
    $region24: #{cnn_forward.4} parent=5 // pred_fallthru
      _
    %p136 = scmp.le.s32.totalorder 1, %s9
    %p137 = scmp.lt.s32.totalorder %s9, 3
    %p138 = pnand %p136, %p137
    %p139 = pneg %p138
    // Predicated region
    $region29: #{cnn_forward.4} parent=5 // pred_check
      _
    $region30: #{cnn_forward.4} parent=5 // pred_check_branch
      %141 = sbr.rel (%p138) target = $region32
    $region31: #{cnn_forward.4} parent=5 // pred_region
      %s142 = ssub.s32 %s9, 1
      %p143 = scmp.lt.s32.totalorder %s14, 1
      %s144 = scalar_select %p143, %s14, 1
      %s145 = smul.addr %s144, 56
      %s146 = smul.addr %s145, 4
      %s147 = scalar_lea.vmem %s0, %s146
      %p148 = pneg %p35
      %p149 = pneg %p32
      %p150 = pneg %p56
      %p151 = pneg %p53
      %p152 = pneg %p77
      %p153 = pneg %p74
      %p154 = pneg %p103
      %p155 = pneg %p100
      %p156 = scmp.lt.s32.totalorder %s14, 1
      %s157 = scalar_select %p156, %s14, 1
      %s158 = smul.addr %s157, 28
      %s159 = smul.addr %s158, 4
      %s160 = scalar_lea.vmem %s3, %s159
      %p161 = scmp.lt.s32.totalorder %s14, 1
      %s162 = scalar_select %p161, %s14, 1
      %s163 = smul.addr %s162, 56
      %s164 = smul.addr %s163, 4
      %s165 = scalar_lea.vmem %s0, %s164
      %p166 = scmp.lt.s32.totalorder %s14, 1
      %s167 = scalar_select %p166, %s14, 1
      %s168 = smul.addr %s167, 28
      %s169 = smul.addr %s168, 4
      %s170 = scalar_lea.vmem %s3, %s169
      %v172 = vld [vmem:[%s165] sm:$0xff]
      %v173 = vld [vmem:[%s165 + $0x8] sm:$0xff]
      %v174 = vld [vmem:[%s165 + $0x10] sm:$0xff]
      %v175 = vld [vmem:[%s165 + $0x18] sm:$0xf]
      %v176 = vld [vmem:[%s165 + $0x1c] sm:$0xff]
      %v177 = vld [vmem:[%s165 + $0x24] sm:$0xff]
      %v178 = vld [vmem:[%s165 + $0x2c] sm:$0xff]
      %v179 = vld [vmem:[%s165 + $0x34] sm:$0xf]
      %v180 = vld [vmem:[%s165 + $0x38] sm:$0xff]
      %v181 = vld [vmem:[%s165 + $0x40] sm:$0xff]
      %v182 = vld [vmem:[%s165 + $0x48] sm:$0xff]
      %v183 = vld [vmem:[%s165 + $0x50] sm:$0xf]
      %v184 = vld [vmem:[%s165 + $0x54] sm:$0xff]
      %v185 = vld [vmem:[%s165 + $0x5c] sm:$0xff]
      %v186 = vld [vmem:[%s165 + $0x64] sm:$0xff]
      %v187 = vld [vmem:[%s165 + $0x6c] sm:$0xf]
      %v188 = vld [vmem:[%s165 + $0x70] sm:$0xff]
      %v189 = vld [vmem:[%s165 + $0x78] sm:$0xff]
      %v190 = vld [vmem:[%s165 + $0x80] sm:$0xff]
      %v191 = vld [vmem:[%s165 + $0x88] sm:$0xf]
      %v192 = vld [vmem:[%s165 + $0x8c] sm:$0xff]
      %v193 = vld [vmem:[%s165 + $0x94] sm:$0xff]
      %v194 = vld [vmem:[%s165 + $0x9c] sm:$0xff]
      %v195 = vld [vmem:[%s165 + $0xa4] sm:$0xf]
      %v196 = vld [vmem:[%s165 + $0xa8] sm:$0xff]
      %v197 = vld [vmem:[%s165 + $0xb0] sm:$0xff]
      %v198 = vld [vmem:[%s165 + $0xb8] sm:$0xff]
      %v199 = vld [vmem:[%s165 + $0xc0] sm:$0xf]
      %v200 = vld [vmem:[%s165 + $0xc4] sm:$0xff]
      %v201 = vld [vmem:[%s165 + $0xcc] sm:$0xff]
      %v202 = vld [vmem:[%s165 + $0xd4] sm:$0xff]
      %v203 = vld [vmem:[%s165 + $0xdc] sm:$0xf]
      %v204 = vld [vmem:[%s1] sm:$0xff]
      %v205 = vld [vmem:[%s1 + $0x8] sm:$0xff]
      %v206 = vld [vmem:[%s1 + $0x10] sm:$0xff]
      %v207 = vld [vmem:[%s1 + $0x18] sm:$0xff]
      %v208 = vld [vmem:[%s2] sm:$0xff]
      %v209 = vld [vmem:[%s2 + $0x8] sm:$0xff]
      %v210 = vld [vmem:[%s2 + $0x10] sm:$0xff]
      %v211 = vld [vmem:[%s2 + $0x18] sm:$0xff]
      %v220 = vunpack.c.l.b16 %v172
      %v221 = vunpack.c.h.b16 %v172
      %v222 = vunpack.c.l.b16 %v173
      %v223 = vunpack.c.h.b16 %v173
      %v224 = vunpack.c.l.b16 %v174
      %v225 = vunpack.c.h.b16 %v174
      %v226 = vunpack.c.l.b16 %v175
      %v227 = vunpack.c.l.b16 %v176
      %v228 = vunpack.c.h.b16 %v176
      %v229 = vunpack.c.l.b16 %v177
      %v230 = vunpack.c.h.b16 %v177
      %v231 = vunpack.c.l.b16 %v178
      %v232 = vunpack.c.h.b16 %v178
      %v233 = vunpack.c.l.b16 %v179
      %v234 = vpack.c.b16 %v227, %v220
      %v235 = vpack.c.b16 %v228, %v221
      %v236 = vpack.c.b16 %v229, %v222
      %v237 = vpack.c.b16 %v230, %v223
      %v238 = vpack.c.b16 %v231, %v224
      %v239 = vpack.c.b16 %v232, %v225
      %v240 = vpack.c.b16 %v233, %v226
      %v256 = vunpack.c.l.b16 %v180
      %v257 = vunpack.c.h.b16 %v180
      %v258 = vunpack.c.l.b16 %v181
      %v259 = vunpack.c.h.b16 %v181
      %v260 = vunpack.c.l.b16 %v182
      %v261 = vunpack.c.h.b16 %v182
      %v262 = vunpack.c.l.b16 %v183
      %v263 = vunpack.c.l.b16 %v184
      %v264 = vunpack.c.h.b16 %v184
      %v265 = vunpack.c.l.b16 %v185
      %v266 = vunpack.c.h.b16 %v185
      %v267 = vunpack.c.l.b16 %v186
      %v268 = vunpack.c.h.b16 %v186
      %v269 = vunpack.c.l.b16 %v187
      %v270 = vpack.c.b16 %v263, %v256
      %v271 = vpack.c.b16 %v264, %v257
      %v272 = vpack.c.b16 %v265, %v258
      %v273 = vpack.c.b16 %v266, %v259
      %v274 = vpack.c.b16 %v267, %v260
      %v275 = vpack.c.b16 %v268, %v261
      %v276 = vpack.c.b16 %v269, %v262
      %284 = vrot.lane.b32.xlu0 %v234, 127
      %v285 = vpop.permute.xlu0 %284
      %286 = vrot.lane.b32.xlu0 %v235, 127
      %v287 = vpop.permute.xlu0 %286
      %288 = vrot.lane.b32.xlu0 %v236, 127
      %v289 = vpop.permute.xlu0 %288
      %290 = vrot.lane.b32.xlu0 %v237, 127
      %v291 = vpop.permute.xlu0 %290
      %292 = vrot.lane.b32.xlu0 %v238, 127
      %v293 = vpop.permute.xlu0 %292
      %294 = vrot.lane.b32.xlu0 %v239, 127
      %v295 = vpop.permute.xlu0 %294
      %296 = vrot.lane.b32.xlu0 %v240, 127
      %v297 = vpop.permute.xlu0 %296
      %vm298 = vcmask 1039360
      %v299 = vsel %vm298, %v285, %v287
      %v300 = vsel %vm298, %v287, %v289
      %v301 = vsel %vm298, %v289, %v291
      %v302 = vsel %vm298, %v291, %v293
      %v303 = vsel %vm298, %v293, %v295
      %v304 = vsel %vm298, %v295, %v297
      %v320 = vunpack.c.l.b16 %v188
      %v321 = vunpack.c.h.b16 %v188
      %v322 = vunpack.c.l.b16 %v189
      %v323 = vunpack.c.h.b16 %v189
      %v324 = vunpack.c.l.b16 %v190
      %v325 = vunpack.c.h.b16 %v190
      %v326 = vunpack.c.l.b16 %v191
      %v327 = vunpack.c.l.b16 %v192
      %v328 = vunpack.c.h.b16 %v192
      %v329 = vunpack.c.l.b16 %v193
      %v330 = vunpack.c.h.b16 %v193
      %v331 = vunpack.c.l.b16 %v194
      %v332 = vunpack.c.h.b16 %v194
      %v333 = vunpack.c.l.b16 %v195
      %v334 = vpack.c.b16 %v327, %v320
      %v335 = vpack.c.b16 %v328, %v321
      %v336 = vpack.c.b16 %v329, %v322
      %v337 = vpack.c.b16 %v330, %v323
      %v338 = vpack.c.b16 %v331, %v324
      %v339 = vpack.c.b16 %v332, %v325
      %v340 = vpack.c.b16 %v333, %v326
      %v356 = vunpack.c.l.b16 %v196
      %v357 = vunpack.c.h.b16 %v196
      %v358 = vunpack.c.l.b16 %v197
      %v359 = vunpack.c.h.b16 %v197
      %v360 = vunpack.c.l.b16 %v198
      %v361 = vunpack.c.h.b16 %v198
      %v362 = vunpack.c.l.b16 %v199
      %v363 = vunpack.c.l.b16 %v200
      %v364 = vunpack.c.h.b16 %v200
      %v365 = vunpack.c.l.b16 %v201
      %v366 = vunpack.c.h.b16 %v201
      %v367 = vunpack.c.l.b16 %v202
      %v368 = vunpack.c.h.b16 %v202
      %v369 = vunpack.c.l.b16 %v203
      %v370 = vpack.c.b16 %v363, %v356
      %v371 = vpack.c.b16 %v364, %v357
      %v372 = vpack.c.b16 %v365, %v358
      %v373 = vpack.c.b16 %v366, %v359
      %v374 = vpack.c.b16 %v367, %v360
      %v375 = vpack.c.b16 %v368, %v361
      %v376 = vpack.c.b16 %v369, %v362
      %384 = vrot.lane.b32.xlu0 %v334, 127
      %v385 = vpop.permute.xlu0 %384
      %386 = vrot.lane.b32.xlu0 %v335, 127
      %v387 = vpop.permute.xlu0 %386
      %388 = vrot.lane.b32.xlu0 %v336, 127
      %v389 = vpop.permute.xlu0 %388
      %390 = vrot.lane.b32.xlu0 %v337, 127
      %v391 = vpop.permute.xlu0 %390
      %392 = vrot.lane.b32.xlu0 %v338, 127
      %v393 = vpop.permute.xlu0 %392
      %394 = vrot.lane.b32.xlu0 %v339, 127
      %v395 = vpop.permute.xlu0 %394
      %396 = vrot.lane.b32.xlu0 %v340, 127
      %v397 = vpop.permute.xlu0 %396
      %v398 = vsel %vm298, %v385, %v387
      %v399 = vsel %vm298, %v387, %v389
      %v400 = vsel %vm298, %v389, %v391
      %v401 = vsel %vm298, %v391, %v393
      %v402 = vsel %vm298, %v393, %v395
      %v403 = vsel %vm298, %v395, %v397
      %411 = vrot.lane.b32.xlu0 %v234, 99
      %v412 = vpop.permute.xlu0 %411
      %413 = vrot.lane.b32.xlu0 %v235, 99
      %v414 = vpop.permute.xlu0 %413
      %415 = vrot.lane.b32.xlu0 %v236, 99
      %v416 = vpop.permute.xlu0 %415
      %417 = vrot.lane.b32.xlu0 %v237, 99
      %v418 = vpop.permute.xlu0 %417
      %419 = vrot.lane.b32.xlu0 %v238, 99
      %v420 = vpop.permute.xlu0 %419
      %421 = vrot.lane.b32.xlu0 %v239, 99
      %v422 = vpop.permute.xlu0 %421
      %423 = vrot.lane.b32.xlu0 %v240, 99
      %v424 = vpop.permute.xlu0 %423
      %vm425 = vcmask 809984
      %v426 = vsel %vm425, %v412, %v414
      %v427 = vsel %vm425, %v414, %v416
      %v428 = vsel %vm425, %v416, %v418
      %v429 = vsel %vm425, %v418, %v420
      %v430 = vsel %vm425, %v420, %v422
      %v431 = vsel %vm425, %v422, %v424
      %439 = vrot.lane.b32.xlu0 %v270, 99
      %v440 = vpop.permute.xlu0 %439
      %441 = vrot.lane.b32.xlu0 %v271, 99
      %v442 = vpop.permute.xlu0 %441
      %443 = vrot.lane.b32.xlu0 %v272, 99
      %v444 = vpop.permute.xlu0 %443
      %445 = vrot.lane.b32.xlu0 %v273, 99
      %v446 = vpop.permute.xlu0 %445
      %447 = vrot.lane.b32.xlu0 %v274, 99
      %v448 = vpop.permute.xlu0 %447
      %449 = vrot.lane.b32.xlu0 %v275, 99
      %v450 = vpop.permute.xlu0 %449
      %451 = vrot.lane.b32.xlu0 %v276, 99
      %v452 = vpop.permute.xlu0 %451
      %v453 = vsel %vm425, %v440, %v442
      %v454 = vsel %vm425, %v442, %v444
      %v455 = vsel %vm425, %v444, %v446
      %v456 = vsel %vm425, %v446, %v448
      %v457 = vsel %vm425, %v448, %v450
      %v458 = vsel %vm425, %v450, %v452
      %466 = vrot.lane.b32.xlu0 %v234, 98
      %v467 = vpop.permute.xlu0 %466
      %468 = vrot.lane.b32.xlu0 %v235, 98
      %v469 = vpop.permute.xlu0 %468
      %470 = vrot.lane.b32.xlu0 %v236, 98
      %v471 = vpop.permute.xlu0 %470
      %472 = vrot.lane.b32.xlu0 %v237, 98
      %v473 = vpop.permute.xlu0 %472
      %474 = vrot.lane.b32.xlu0 %v238, 98
      %v475 = vpop.permute.xlu0 %474
      %476 = vrot.lane.b32.xlu0 %v239, 98
      %v477 = vpop.permute.xlu0 %476
      %478 = vrot.lane.b32.xlu0 %v240, 98
      %v479 = vpop.permute.xlu0 %478
      %vm480 = vcmask 801792
      %v481 = vsel %vm480, %v467, %v469
      %v482 = vsel %vm480, %v469, %v471
      %v483 = vsel %vm480, %v471, %v473
      %v484 = vsel %vm480, %v473, %v475
      %v485 = vsel %vm480, %v475, %v477
      %v486 = vsel %vm480, %v477, %v479
      %v498 = vunpack.c.l.b16 %v204
      %v499 = vunpack.c.h.b16 %v204
      %v500 = vunpack.c.l.b16 %v205
      %v501 = vunpack.c.h.b16 %v205
      %v502 = vunpack.c.l.b16 %v206
      %v503 = vunpack.c.h.b16 %v206
      %v504 = vunpack.c.l.b16 %v207
      %v505 = vunpack.c.h.b16 %v207
      %v506 = vpack.c.b16 %v500, %v498
      %v507 = vpack.c.b16 %v501, %v499
      %v508 = vpack.c.b16 %v504, %v502
      %v509 = vpack.c.b16 %v505, %v503
      %vm512 = vcmask 130048
      %v514 = vsel %vm512, %v507, 0
      %v517 = vsel %vm512, %v509, 0
      %519 = vmatprep.subr.bf16.mxu0 %v235
      %520 = vmatpush1.bf16.msra.mxu0 %v234
      %521 = vmatprep.subr.bf16.mxu0 %v271
      %522 = vmatpush1.bf16.msra.mxu0 %v270
      %523 = vmatprep.subr.bf16.mxu0 %v300
      %524 = vmatpush1.bf16.msra.mxu0 %v299
      %525 = vmatprep.subr.bf16.mxu0 %v335
      %526 = vmatpush1.bf16.msra.mxu0 %v334
      %527 = vmatprep.subr.bf16.mxu0 %v371
      %528 = vmatpush1.bf16.msra.mxu0 %v370
      %529 = vmatprep.subr.bf16.mxu0 %v399
      %530 = vmatpush1.bf16.msra.mxu0 %v398
      %531 = vmatprep.subr.bf16.mxu0 %v427
      %532 = vmatpush1.bf16.msra.mxu0 %v426
      %533 = vmatprep.subr.bf16.mxu0 %v454
      %534 = vmatpush1.bf16.msra.mxu0 %v453
      %535 = vmatprep.subr.bf16.mxu0 %v482
      %536 = vmatpush1.bf16.msra.mxu0 %v481
      %537 = vmatprep.subr.bf16.mxu0 0
      %538 = vmatpush1.bf16.msra.mxu0 0
      %539 = vmatprep.subr.bf16.mxu0 0
      %540 = vmatpush1.bf16.msra.mxu0 0
      %541 = vmatprep.subr.bf16.mxu0 0
      %542 = vmatpush1.bf16.msra.mxu0 0
      %543 = vmatprep.subr.bf16.mxu0 0
      %544 = vmatpush1.bf16.msra.mxu0 0
      %545 = vmatprep.subr.bf16.mxu0 0
      %546 = vmatpush1.bf16.msra.mxu0 0
      %547 = vmatprep.subr.bf16.mxu0 0
      %548 = vmatpush1.bf16.msra.mxu0 0
      %549 = vmatprep.subr.bf16.mxu0 0
      %550 = vmatpush1.bf16.msra.mxu0 0
      %551 = vmatprep.mubr.bf16.mxu0 %v514
      %552 = vmatmul.mubr.bf16.gmra.mrb[0].mxu0 %v506
      %v553 = vpop.f32.mrb[0].mxu0
      %v554 = vadd.f32 0.0, %v553
      %v555 = vpop.f32.mrb[0].mxu0
      %v556 = vadd.f32 0.0, %v555
      %v557 = vpop.f32.mrb[0].mxu0
      %v558 = vadd.f32 0.0, %v557
      %v559 = vpop.f32.mrb[0].mxu0
      %v560 = vadd.f32 0.0, %v559
      %561 = vmatprep.mubr.bf16.mxu0 %v517
      %562 = vmatmul.mubr.bf16.gmra.mrb[0].mxu0 %v508
      %v563 = vpop.f32.mrb[0].mxu0
      %v564 = vadd.f32 0.0, %v563
      %v565 = vpop.f32.mrb[0].mxu0
      %v566 = vadd.f32 0.0, %v565
      %v567 = vpop.f32.mrb[0].mxu0
      %v568 = vadd.f32 0.0, %v567
      %v569 = vpop.f32.mrb[0].mxu0
      %v570 = vadd.f32 0.0, %v569
      %571 = vdwg.mxu0
      %572 = vmatprep.subr.bf16.mxu0 %v237
      %573 = vmatpush1.bf16.msra.mxu0 %v236
      %574 = vmatprep.subr.bf16.mxu0 %v273
      %575 = vmatpush1.bf16.msra.mxu0 %v272
      %576 = vmatprep.subr.bf16.mxu0 %v302
      %577 = vmatpush1.bf16.msra.mxu0 %v301
      %578 = vmatprep.subr.bf16.mxu0 %v337
      %579 = vmatpush1.bf16.msra.mxu0 %v336
      %580 = vmatprep.subr.bf16.mxu0 %v373
      %581 = vmatpush1.bf16.msra.mxu0 %v372
      %582 = vmatprep.subr.bf16.mxu0 %v401
      %583 = vmatpush1.bf16.msra.mxu0 %v400
      %584 = vmatprep.subr.bf16.mxu0 %v429
      %585 = vmatpush1.bf16.msra.mxu0 %v428
      %586 = vmatprep.subr.bf16.mxu0 %v456
      %587 = vmatpush1.bf16.msra.mxu0 %v455
      %588 = vmatprep.subr.bf16.mxu0 %v484
      %589 = vmatpush1.bf16.msra.mxu0 %v483
      %590 = vmatprep.subr.bf16.mxu0 0
      %591 = vmatpush1.bf16.msra.mxu0 0
      %592 = vmatprep.subr.bf16.mxu0 0
      %593 = vmatpush1.bf16.msra.mxu0 0
      %594 = vmatprep.subr.bf16.mxu0 0
      %595 = vmatpush1.bf16.msra.mxu0 0
      %596 = vmatprep.subr.bf16.mxu0 0
      %597 = vmatpush1.bf16.msra.mxu0 0
      %598 = vmatprep.subr.bf16.mxu0 0
      %599 = vmatpush1.bf16.msra.mxu0 0
      %600 = vmatprep.subr.bf16.mxu0 0
      %601 = vmatpush1.bf16.msra.mxu0 0
      %602 = vmatprep.subr.bf16.mxu0 0
      %603 = vmatpush1.bf16.msra.mxu0 0
      %604 = vmatprep.mubr.bf16.mxu0 %v514
      %605 = vmatmul.mubr.bf16.gmra.mrb[0].mxu0 %v506
      %v606 = vpop.f32.mrb[0].mxu0
      %v607 = vadd.f32 0.0, %v606
      %v608 = vpop.f32.mrb[0].mxu0
      %v609 = vadd.f32 0.0, %v608
      %v610 = vpop.f32.mrb[0].mxu0
      %v611 = vadd.f32 0.0, %v610
      %v612 = vpop.f32.mrb[0].mxu0
      %v613 = vadd.f32 0.0, %v612
      %614 = vmatprep.mubr.bf16.mxu0 %v517
      %615 = vmatmul.mubr.bf16.gmra.mrb[0].mxu0 %v508
      %v616 = vpop.f32.mrb[0].mxu0
      %v617 = vadd.f32 0.0, %v616
      %v618 = vpop.f32.mrb[0].mxu0
      %v619 = vadd.f32 0.0, %v618
      %v620 = vpop.f32.mrb[0].mxu0
      %v621 = vadd.f32 0.0, %v620
      %v622 = vpop.f32.mrb[0].mxu0
      %v623 = vadd.f32 0.0, %v622
      %624 = vdwg.mxu0
      %625 = vmatprep.subr.bf16.mxu0 %v239
      %626 = vmatpush1.bf16.msra.mxu0 %v238
      %627 = vmatprep.subr.bf16.mxu0 %v275
      %628 = vmatpush1.bf16.msra.mxu0 %v274
      %629 = vmatprep.subr.bf16.mxu0 %v304
      %630 = vmatpush1.bf16.msra.mxu0 %v303
      %631 = vmatprep.subr.bf16.mxu0 %v339
      %632 = vmatpush1.bf16.msra.mxu0 %v338
      %633 = vmatprep.subr.bf16.mxu0 %v375
      %634 = vmatpush1.bf16.msra.mxu0 %v374
      %635 = vmatprep.subr.bf16.mxu0 %v403
      %636 = vmatpush1.bf16.msra.mxu0 %v402
      %637 = vmatprep.subr.bf16.mxu0 %v431
      %638 = vmatpush1.bf16.msra.mxu0 %v430
      %639 = vmatprep.subr.bf16.mxu0 %v458
      %640 = vmatpush1.bf16.msra.mxu0 %v457
      %641 = vmatprep.subr.bf16.mxu0 %v486
      %642 = vmatpush1.bf16.msra.mxu0 %v485
      %643 = vmatprep.subr.bf16.mxu0 0
      %644 = vmatpush1.bf16.msra.mxu0 0
      %645 = vmatprep.subr.bf16.mxu0 0
      %646 = vmatpush1.bf16.msra.mxu0 0
      %647 = vmatprep.subr.bf16.mxu0 0
      %648 = vmatpush1.bf16.msra.mxu0 0
      %649 = vmatprep.subr.bf16.mxu0 0
      %650 = vmatpush1.bf16.msra.mxu0 0
      %651 = vmatprep.subr.bf16.mxu0 0
      %652 = vmatpush1.bf16.msra.mxu0 0
      %653 = vmatprep.subr.bf16.mxu0 0
      %654 = vmatpush1.bf16.msra.mxu0 0
      %655 = vmatprep.subr.bf16.mxu0 0
      %656 = vmatpush1.bf16.msra.mxu0 0
      %657 = vmatprep.mubr.bf16.mxu0 %v514
      %658 = vmatmul.mubr.bf16.gmra.mrb[0].mxu0 %v506
      %v659 = vpop.f32.mrb[0].mxu0
      %v660 = vadd.f32 0.0, %v659
      %v661 = vpop.f32.mrb[0].mxu0
      %v662 = vadd.f32 0.0, %v661
      %v663 = vpop.f32.mrb[0].mxu0
      %v664 = vadd.f32 0.0, %v663
      %v665 = vpop.f32.mrb[0].mxu0
      %v666 = vadd.f32 0.0, %v665
      %667 = vmatprep.mubr.bf16.mxu0 %v517
      %668 = vmatmul.mubr.bf16.gmra.mrb[0].mxu0 %v508
      %v669 = vpop.f32.mrb[0].mxu0
      %v670 = vadd.f32 0.0, %v669
      %v671 = vpop.f32.mrb[0].mxu0
      %v672 = vadd.f32 0.0, %v671
      %v673 = vpop.f32.mrb[0].mxu0
      %v674 = vadd.f32 0.0, %v673
      %v675 = vpop.f32.mrb[0].mxu0
      %v676 = vadd.f32 0.0, %v675
      %677 = vdwg.mxu0
      %678 = vmatprep.subr.bf16.mxu0 0
      %679 = vmatpush1.bf16.msra.mxu0 %v240
      %680 = vmatprep.subr.bf16.mxu0 0
      %681 = vmatpush1.bf16.msra.mxu0 %v276
      %682 = vmatprep.subr.bf16.mxu0 0
      %683 = vmatpush1.bf16.msra.mxu0 %v297
      %684 = vmatprep.subr.bf16.mxu0 0
      %685 = vmatpush1.bf16.msra.mxu0 %v340
      %686 = vmatprep.subr.bf16.mxu0 0
      %687 = vmatpush1.bf16.msra.mxu0 %v376
      %688 = vmatprep.subr.bf16.mxu0 0
      %689 = vmatpush1.bf16.msra.mxu0 %v397
      %690 = vmatprep.subr.bf16.mxu0 0
      %691 = vmatpush1.bf16.msra.mxu0 %v424
      %692 = vmatprep.subr.bf16.mxu0 0
      %693 = vmatpush1.bf16.msra.mxu0 %v452
      %694 = vmatprep.subr.bf16.mxu0 0
      %695 = vmatpush1.bf16.msra.mxu0 %v479
      %696 = vmatprep.subr.bf16.mxu0 0
      %697 = vmatpush1.bf16.msra.mxu0 0
      %698 = vmatprep.subr.bf16.mxu0 0
      %699 = vmatpush1.bf16.msra.mxu0 0
      %700 = vmatprep.subr.bf16.mxu0 0
      %701 = vmatpush1.bf16.msra.mxu0 0
      %702 = vmatprep.subr.bf16.mxu0 0
      %703 = vmatpush1.bf16.msra.mxu0 0
      %704 = vmatprep.subr.bf16.mxu0 0
      %705 = vmatpush1.bf16.msra.mxu0 0
      %706 = vmatprep.subr.bf16.mxu0 0
      %707 = vmatpush1.bf16.msra.mxu0 0
      %708 = vmatprep.subr.bf16.mxu0 0
      %709 = vmatpush1.bf16.msra.mxu0 0
      %710 = vmatprep.mubr.bf16.mxu0 %v514
      %711 = vmatmul.mubr.bf16.gmra.mrb[0].mxu0 %v506
      %v712 = vpop.f32.mrb[0].mxu0
      %v713 = vadd.f32 0.0, %v712
      %v714 = vpop.f32.mrb[0].mxu0
      %v715 = vpop.f32.mrb[0].mxu0
      %v716 = vadd.f32 0.0, %v715
      %v717 = vpop.f32.mrb[0].mxu0
      %718 = vmatprep.mubr.bf16.mxu0 %v517
      %719 = vmatmul.mubr.bf16.gmra.mrb[0].mxu0 %v508
      %v720 = vpop.f32.mrb[0].mxu0
      %v721 = vadd.f32 0.0, %v720
      %v722 = vpop.f32.mrb[0].mxu0
      %v723 = vpop.f32.mrb[0].mxu0
      %v724 = vadd.f32 0.0, %v723
      %v725 = vpop.f32.mrb[0].mxu0
      %726 = vdwg.mxu0
      %727 = vrot.lane.b32.xlu0 %v270, 127
      %v728 = vpop.permute.xlu0 %727
      %729 = vrot.lane.b32.xlu0 %v271, 127
      %v730 = vpop.permute.xlu0 %729
      %731 = vrot.lane.b32.xlu0 %v272, 127
      %v732 = vpop.permute.xlu0 %731
      %733 = vrot.lane.b32.xlu0 %v273, 127
      %v734 = vpop.permute.xlu0 %733
      %735 = vrot.lane.b32.xlu0 %v274, 127
      %v736 = vpop.permute.xlu0 %735
      %737 = vrot.lane.b32.xlu0 %v275, 127
      %v738 = vpop.permute.xlu0 %737
      %739 = vrot.lane.b32.xlu0 %v276, 127
      %v740 = vpop.permute.xlu0 %739
      %v741 = vsel %vm298, %v728, %v730
      %v742 = vsel %vm298, %v730, %v732
      %v743 = vsel %vm298, %v732, %v734
      %v744 = vsel %vm298, %v734, %v736
      %v745 = vsel %vm298, %v736, %v738
      %v746 = vsel %vm298, %v738, %v740
      %754 = vrot.lane.b32.xlu0 %v370, 127
      %v755 = vpop.permute.xlu0 %754
      %756 = vrot.lane.b32.xlu0 %v371, 127
      %v757 = vpop.permute.xlu0 %756
      %758 = vrot.lane.b32.xlu0 %v372, 127
      %v759 = vpop.permute.xlu0 %758
      %760 = vrot.lane.b32.xlu0 %v373, 127
      %v761 = vpop.permute.xlu0 %760
      %762 = vrot.lane.b32.xlu0 %v374, 127
      %v763 = vpop.permute.xlu0 %762
      %764 = vrot.lane.b32.xlu0 %v375, 127
      %v765 = vpop.permute.xlu0 %764
      %766 = vrot.lane.b32.xlu0 %v376, 127
      %v767 = vpop.permute.xlu0 %766
      %v768 = vsel %vm298, %v755, %v757
      %v769 = vsel %vm298, %v757, %v759
      %v770 = vsel %vm298, %v759, %v761
      %v771 = vsel %vm298, %v761, %v763
      %v772 = vsel %vm298, %v763, %v765
      %v773 = vsel %vm298, %v765, %v767
      %781 = vrot.lane.b32.xlu0 %v270, 98
      %v782 = vpop.permute.xlu0 %781
      %783 = vrot.lane.b32.xlu0 %v271, 98
      %v784 = vpop.permute.xlu0 %783
      %785 = vrot.lane.b32.xlu0 %v272, 98
      %v786 = vpop.permute.xlu0 %785
      %787 = vrot.lane.b32.xlu0 %v273, 98
      %v788 = vpop.permute.xlu0 %787
      %789 = vrot.lane.b32.xlu0 %v274, 98
      %v790 = vpop.permute.xlu0 %789
      %791 = vrot.lane.b32.xlu0 %v275, 98
      %v792 = vpop.permute.xlu0 %791
      %793 = vrot.lane.b32.xlu0 %v276, 98
      %v794 = vpop.permute.xlu0 %793
      %v795 = vsel %vm480, %v782, %v784
      %v796 = vsel %vm480, %v784, %v786
      %v797 = vsel %vm480, %v786, %v788
      %v798 = vsel %vm480, %v788, %v790
      %v799 = vsel %vm480, %v790, %v792
      %v800 = vsel %vm480, %v792, %v794
      %808 = vmatprep.subr.bf16.mxu0 %v271
      %809 = vmatpush1.bf16.msra.mxu0 %v270
      %810 = vmatprep.subr.bf16.mxu0 %v300
      %811 = vmatpush1.bf16.msra.mxu0 %v299
      %812 = vmatprep.subr.bf16.mxu0 %v742
      %813 = vmatpush1.bf16.msra.mxu0 %v741
      %814 = vmatprep.subr.bf16.mxu0 %v371
      %815 = vmatpush1.bf16.msra.mxu0 %v370
      %816 = vmatprep.subr.bf16.mxu0 %v399
      %817 = vmatpush1.bf16.msra.mxu0 %v398
      %818 = vmatprep.subr.bf16.mxu0 %v769
      %819 = vmatpush1.bf16.msra.mxu0 %v768
      %820 = vmatprep.subr.bf16.mxu0 %v454
      %821 = vmatpush1.bf16.msra.mxu0 %v453
      %822 = vmatprep.subr.bf16.mxu0 %v482
      %823 = vmatpush1.bf16.msra.mxu0 %v481
      %824 = vmatprep.subr.bf16.mxu0 %v796
      %825 = vmatpush1.bf16.msra.mxu0 %v795
      %826 = vmatprep.subr.bf16.mxu0 0
      %827 = vmatpush1.bf16.msra.mxu0 0
      %828 = vmatprep.subr.bf16.mxu0 0
      %829 = vmatpush1.bf16.msra.mxu0 0
      %830 = vmatprep.subr.bf16.mxu0 0
      %831 = vmatpush1.bf16.msra.mxu0 0
      %832 = vmatprep.subr.bf16.mxu0 0
      %833 = vmatpush1.bf16.msra.mxu0 0
      %834 = vmatprep.subr.bf16.mxu0 0
      %835 = vmatpush1.bf16.msra.mxu0 0
      %836 = vmatprep.subr.bf16.mxu0 0
      %837 = vmatpush1.bf16.msra.mxu0 0
      %838 = vmatprep.subr.bf16.mxu0 0
      %839 = vmatpush1.bf16.msra.mxu0 0
      %840 = vmatprep.mubr.bf16.mxu0 %v514
      %841 = vmatmul.mubr.bf16.gmra.mrb[0].mxu0 %v506
      %v842 = vpop.f32.mrb[0].mxu0
      %v843 = vadd.f32 0.0, %v842
      %v844 = vpop.f32.mrb[0].mxu0
      %v845 = vadd.f32 0.0, %v844
      %v846 = vpop.f32.mrb[0].mxu0
      %v847 = vadd.f32 0.0, %v846
      %v848 = vpop.f32.mrb[0].mxu0
      %v849 = vadd.f32 0.0, %v848
      %850 = vmatprep.mubr.bf16.mxu0 %v517
      %851 = vmatmul.mubr.bf16.gmra.mrb[0].mxu0 %v508
      %v852 = vpop.f32.mrb[0].mxu0
      %v853 = vadd.f32 0.0, %v852
      %v854 = vpop.f32.mrb[0].mxu0
      %v855 = vadd.f32 0.0, %v854
      %v856 = vpop.f32.mrb[0].mxu0
      %v857 = vadd.f32 0.0, %v856
      %v858 = vpop.f32.mrb[0].mxu0
      %v859 = vadd.f32 0.0, %v858
      %860 = vdwg.mxu0
      %861 = vmatprep.subr.bf16.mxu0 %v273
      %862 = vmatpush1.bf16.msra.mxu0 %v272
      %863 = vmatprep.subr.bf16.mxu0 %v302
      %864 = vmatpush1.bf16.msra.mxu0 %v301
      %865 = vmatprep.subr.bf16.mxu0 %v744
      %866 = vmatpush1.bf16.msra.mxu0 %v743
      %867 = vmatprep.subr.bf16.mxu0 %v373
      %868 = vmatpush1.bf16.msra.mxu0 %v372
      %869 = vmatprep.subr.bf16.mxu0 %v401
      %870 = vmatpush1.bf16.msra.mxu0 %v400
      %871 = vmatprep.subr.bf16.mxu0 %v771
      %872 = vmatpush1.bf16.msra.mxu0 %v770
      %873 = vmatprep.subr.bf16.mxu0 %v456
      %874 = vmatpush1.bf16.msra.mxu0 %v455
      %875 = vmatprep.subr.bf16.mxu0 %v484
      %876 = vmatpush1.bf16.msra.mxu0 %v483
      %877 = vmatprep.subr.bf16.mxu0 %v798
      %878 = vmatpush1.bf16.msra.mxu0 %v797
      %879 = vmatprep.subr.bf16.mxu0 0
      %880 = vmatpush1.bf16.msra.mxu0 0
      %881 = vmatprep.subr.bf16.mxu0 0
      %882 = vmatpush1.bf16.msra.mxu0 0
      %883 = vmatprep.subr.bf16.mxu0 0
      %884 = vmatpush1.bf16.msra.mxu0 0
      %885 = vmatprep.subr.bf16.mxu0 0
      %886 = vmatpush1.bf16.msra.mxu0 0
      %887 = vmatprep.subr.bf16.mxu0 0
      %888 = vmatpush1.bf16.msra.mxu0 0
      %889 = vmatprep.subr.bf16.mxu0 0
      %890 = vmatpush1.bf16.msra.mxu0 0
      %891 = vmatprep.subr.bf16.mxu0 0
      %892 = vmatpush1.bf16.msra.mxu0 0
      %893 = vmatprep.mubr.bf16.mxu0 %v514
      %894 = vmatmul.mubr.bf16.gmra.mrb[0].mxu0 %v506
      %v895 = vpop.f32.mrb[0].mxu0
      %v896 = vadd.f32 0.0, %v895
      %v897 = vpop.f32.mrb[0].mxu0
      %v898 = vadd.f32 0.0, %v897
      %v899 = vpop.f32.mrb[0].mxu0
      %v900 = vadd.f32 0.0, %v899
      %v901 = vpop.f32.mrb[0].mxu0
      %v902 = vadd.f32 0.0, %v901
      %903 = vmatprep.mubr.bf16.mxu0 %v517
      %904 = vmatmul.mubr.bf16.gmra.mrb[0].mxu0 %v508
      %v905 = vpop.f32.mrb[0].mxu0
      %v906 = vadd.f32 0.0, %v905
      %v907 = vpop.f32.mrb[0].mxu0
      %v908 = vadd.f32 0.0, %v907
      %v909 = vpop.f32.mrb[0].mxu0
      %v910 = vadd.f32 0.0, %v909
      %v911 = vpop.f32.mrb[0].mxu0
      %v912 = vadd.f32 0.0, %v911
      %913 = vdwg.mxu0
      %914 = vmatprep.subr.bf16.mxu0 %v275
      %915 = vmatpush1.bf16.msra.mxu0 %v274
      %916 = vmatprep.subr.bf16.mxu0 %v304
      %917 = vmatpush1.bf16.msra.mxu0 %v303
      %918 = vmatprep.subr.bf16.mxu0 %v746
      %919 = vmatpush1.bf16.msra.mxu0 %v745
      %920 = vmatprep.subr.bf16.mxu0 %v375
      %921 = vmatpush1.bf16.msra.mxu0 %v374
      %922 = vmatprep.subr.bf16.mxu0 %v403
      %923 = vmatpush1.bf16.msra.mxu0 %v402
      %924 = vmatprep.subr.bf16.mxu0 %v773
      %925 = vmatpush1.bf16.msra.mxu0 %v772
      %926 = vmatprep.subr.bf16.mxu0 %v458
      %927 = vmatpush1.bf16.msra.mxu0 %v457
      %928 = vmatprep.subr.bf16.mxu0 %v486
      %929 = vmatpush1.bf16.msra.mxu0 %v485
      %930 = vmatprep.subr.bf16.mxu0 %v800
      %931 = vmatpush1.bf16.msra.mxu0 %v799
      %932 = vmatprep.subr.bf16.mxu0 0
      %933 = vmatpush1.bf16.msra.mxu0 0
      %934 = vmatprep.subr.bf16.mxu0 0
      %935 = vmatpush1.bf16.msra.mxu0 0
      %936 = vmatprep.subr.bf16.mxu0 0
      %937 = vmatpush1.bf16.msra.mxu0 0
      %938 = vmatprep.subr.bf16.mxu0 0
      %939 = vmatpush1.bf16.msra.mxu0 0
      %940 = vmatprep.subr.bf16.mxu0 0
      %941 = vmatpush1.bf16.msra.mxu0 0
      %942 = vmatprep.subr.bf16.mxu0 0
      %943 = vmatpush1.bf16.msra.mxu0 0
      %944 = vmatprep.subr.bf16.mxu0 0
      %945 = vmatpush1.bf16.msra.mxu0 0
      %946 = vmatprep.mubr.bf16.mxu0 %v514
      %947 = vmatmul.mubr.bf16.gmra.mrb[0].mxu0 %v506
      %v948 = vpop.f32.mrb[0].mxu0
      %v949 = vadd.f32 0.0, %v948
      %v950 = vpop.f32.mrb[0].mxu0
      %v951 = vadd.f32 0.0, %v950
      %v952 = vpop.f32.mrb[0].mxu0
      %v953 = vadd.f32 0.0, %v952
      %v954 = vpop.f32.mrb[0].mxu0
      %v955 = vadd.f32 0.0, %v954
      %956 = vmatprep.mubr.bf16.mxu0 %v517
      %957 = vmatmul.mubr.bf16.gmra.mrb[0].mxu0 %v508
      %v958 = vpop.f32.mrb[0].mxu0
      %v959 = vadd.f32 0.0, %v958
      %v960 = vpop.f32.mrb[0].mxu0
      %v961 = vadd.f32 0.0, %v960
      %v962 = vpop.f32.mrb[0].mxu0
      %v963 = vadd.f32 0.0, %v962
      %v964 = vpop.f32.mrb[0].mxu0
      %v965 = vadd.f32 0.0, %v964
      %966 = vdwg.mxu0
      %967 = vmatprep.subr.bf16.mxu0 0
      %968 = vmatpush1.bf16.msra.mxu0 %v276
      %969 = vmatprep.subr.bf16.mxu0 0
      %970 = vmatpush1.bf16.msra.mxu0 %v297
      %971 = vmatprep.subr.bf16.mxu0 0
      %972 = vmatpush1.bf16.msra.mxu0 %v740
      %973 = vmatprep.subr.bf16.mxu0 0
      %974 = vmatpush1.bf16.msra.mxu0 %v376
      %975 = vmatprep.subr.bf16.mxu0 0
      %976 = vmatpush1.bf16.msra.mxu0 %v397
      %977 = vmatprep.subr.bf16.mxu0 0
      %978 = vmatpush1.bf16.msra.mxu0 %v767
      %979 = vmatprep.subr.bf16.mxu0 0
      %980 = vmatpush1.bf16.msra.mxu0 %v452
      %981 = vmatprep.subr.bf16.mxu0 0
      %982 = vmatpush1.bf16.msra.mxu0 %v479
      %983 = vmatprep.subr.bf16.mxu0 0
      %984 = vmatpush1.bf16.msra.mxu0 %v794
      %985 = vmatprep.subr.bf16.mxu0 0
      %986 = vmatpush1.bf16.msra.mxu0 0
      %987 = vmatprep.subr.bf16.mxu0 0
      %988 = vmatpush1.bf16.msra.mxu0 0
      %989 = vmatprep.subr.bf16.mxu0 0
      %990 = vmatpush1.bf16.msra.mxu0 0
      %991 = vmatprep.subr.bf16.mxu0 0
      %992 = vmatpush1.bf16.msra.mxu0 0
      %993 = vmatprep.subr.bf16.mxu0 0
      %994 = vmatpush1.bf16.msra.mxu0 0
      %995 = vmatprep.subr.bf16.mxu0 0
      %996 = vmatpush1.bf16.msra.mxu0 0
      %997 = vmatprep.subr.bf16.mxu0 0
      %998 = vmatpush1.bf16.msra.mxu0 0
      %999 = vmatprep.mubr.bf16.mxu0 %v514
      %1000 = vmatmul.mubr.bf16.gmra.mrb[0].mxu0 %v506
      %v1001 = vpop.f32.mrb[0].mxu0
      %v1002 = vadd.f32 0.0, %v1001
      %v1003 = vpop.f32.mrb[0].mxu0
      %v1004 = vpop.f32.mrb[0].mxu0
      %v1005 = vadd.f32 0.0, %v1004
      %v1006 = vpop.f32.mrb[0].mxu0
      %1007 = vmatprep.mubr.bf16.mxu0 %v517
      %1008 = vmatmul.mubr.bf16.gmra.mrb[0].mxu0 %v508
      %v1009 = vpop.f32.mrb[0].mxu0
      %v1010 = vadd.f32 0.0, %v1009
      %v1011 = vpop.f32.mrb[0].mxu0
      %v1012 = vpop.f32.mrb[0].mxu0
      %v1013 = vadd.f32 0.0, %v1012
      %v1014 = vpop.f32.mrb[0].mxu0
      %1015 = vdwg.mxu0
      %v1016 = vmax.f32 %v554, %v843
      %v1017 = vmax.f32 %v556, %v845
      %v1018 = vmax.f32 %v607, %v896
      %v1019 = vmax.f32 %v609, %v898
      %v1020 = vmax.f32 %v660, %v949
      %v1021 = vmax.f32 %v662, %v951
      %v1022 = vmax.f32 %v713, %v1002
      %v1023 = vmax.f32 %v558, %v847
      %v1024 = vmax.f32 %v560, %v849
      %v1025 = vmax.f32 %v611, %v900
      %v1026 = vmax.f32 %v613, %v902
      %v1027 = vmax.f32 %v664, %v953
      %v1028 = vmax.f32 %v666, %v955
      %v1029 = vmax.f32 %v716, %v1005
      %v1030 = vmax.f32 %v564, %v853
      %v1031 = vmax.f32 %v566, %v855
      %v1032 = vmax.f32 %v617, %v906
      %v1033 = vmax.f32 %v619, %v908
      %v1034 = vmax.f32 %v670, %v959
      %v1035 = vmax.f32 %v672, %v961
      %v1036 = vmax.f32 %v721, %v1010
      %v1037 = vmax.f32 %v568, %v857
      %v1038 = vmax.f32 %v570, %v859
      %v1039 = vmax.f32 %v621, %v910
      %v1040 = vmax.f32 %v623, %v912
      %v1041 = vmax.f32 %v674, %v963
      %v1042 = vmax.f32 %v676, %v965
      %v1043 = vmax.f32 %v724, %v1013
      %1044 = vrot.lane.b32.xlu0 %v334, 99
      %v1045 = vpop.permute.xlu0 %1044
      %1046 = vrot.lane.b32.xlu0 %v335, 99
      %v1047 = vpop.permute.xlu0 %1046
      %1048 = vrot.lane.b32.xlu0 %v336, 99
      %v1049 = vpop.permute.xlu0 %1048
      %1050 = vrot.lane.b32.xlu0 %v337, 99
      %v1051 = vpop.permute.xlu0 %1050
      %1052 = vrot.lane.b32.xlu0 %v338, 99
      %v1053 = vpop.permute.xlu0 %1052
      %1054 = vrot.lane.b32.xlu0 %v339, 99
      %v1055 = vpop.permute.xlu0 %1054
      %1056 = vrot.lane.b32.xlu0 %v340, 99
      %v1057 = vpop.permute.xlu0 %1056
      %v1058 = vsel %vm425, %v1045, %v1047
      %v1059 = vsel %vm425, %v1047, %v1049
      %v1060 = vsel %vm425, %v1049, %v1051
      %v1061 = vsel %vm425, %v1051, %v1053
      %v1062 = vsel %vm425, %v1053, %v1055
      %v1063 = vsel %vm425, %v1055, %v1057
      %1071 = vrot.lane.b32.xlu0 %v370, 99
      %v1072 = vpop.permute.xlu0 %1071
      %1073 = vrot.lane.b32.xlu0 %v371, 99
      %v1074 = vpop.permute.xlu0 %1073
      %1075 = vrot.lane.b32.xlu0 %v372, 99
      %v1076 = vpop.permute.xlu0 %1075
      %1077 = vrot.lane.b32.xlu0 %v373, 99
      %v1078 = vpop.permute.xlu0 %1077
      %1079 = vrot.lane.b32.xlu0 %v374, 99
      %v1080 = vpop.permute.xlu0 %1079
      %1081 = vrot.lane.b32.xlu0 %v375, 99
      %v1082 = vpop.permute.xlu0 %1081
      %1083 = vrot.lane.b32.xlu0 %v376, 99
      %v1084 = vpop.permute.xlu0 %1083
      %v1085 = vsel %vm425, %v1072, %v1074
      %v1086 = vsel %vm425, %v1074, %v1076
      %v1087 = vsel %vm425, %v1076, %v1078
      %v1088 = vsel %vm425, %v1078, %v1080
      %v1089 = vsel %vm425, %v1080, %v1082
      %v1090 = vsel %vm425, %v1082, %v1084
      %1098 = vrot.lane.b32.xlu0 %v334, 98
      %v1099 = vpop.permute.xlu0 %1098
      %1100 = vrot.lane.b32.xlu0 %v335, 98
      %v1101 = vpop.permute.xlu0 %1100
      %1102 = vrot.lane.b32.xlu0 %v336, 98
      %v1103 = vpop.permute.xlu0 %1102
      %1104 = vrot.lane.b32.xlu0 %v337, 98
      %v1105 = vpop.permute.xlu0 %1104
      %1106 = vrot.lane.b32.xlu0 %v338, 98
      %v1107 = vpop.permute.xlu0 %1106
      %1108 = vrot.lane.b32.xlu0 %v339, 98
      %v1109 = vpop.permute.xlu0 %1108
      %1110 = vrot.lane.b32.xlu0 %v340, 98
      %v1111 = vpop.permute.xlu0 %1110
      %v1112 = vsel %vm480, %v1099, %v1101
      %v1113 = vsel %vm480, %v1101, %v1103
      %v1114 = vsel %vm480, %v1103, %v1105
      %v1115 = vsel %vm480, %v1105, %v1107
      %v1116 = vsel %vm480, %v1107, %v1109
      %v1117 = vsel %vm480, %v1109, %v1111
      %1125 = vmatprep.subr.bf16.mxu0 %v335
      %1126 = vmatpush1.bf16.msra.mxu0 %v334
      %1127 = vmatprep.subr.bf16.mxu0 %v371
      %1128 = vmatpush1.bf16.msra.mxu0 %v370
      %1129 = vmatprep.subr.bf16.mxu0 %v399
      %1130 = vmatpush1.bf16.msra.mxu0 %v398
      %1131 = vmatprep.subr.bf16.mxu0 %v427
      %1132 = vmatpush1.bf16.msra.mxu0 %v426
      %1133 = vmatprep.subr.bf16.mxu0 %v454
      %1134 = vmatpush1.bf16.msra.mxu0 %v453
      %1135 = vmatprep.subr.bf16.mxu0 %v482
      %1136 = vmatpush1.bf16.msra.mxu0 %v481
      %1137 = vmatprep.subr.bf16.mxu0 %v1059
      %1138 = vmatpush1.bf16.msra.mxu0 %v1058
      %1139 = vmatprep.subr.bf16.mxu0 %v1086
      %1140 = vmatpush1.bf16.msra.mxu0 %v1085
      %1141 = vmatprep.subr.bf16.mxu0 %v1113
      %1142 = vmatpush1.bf16.msra.mxu0 %v1112
      %1143 = vmatprep.subr.bf16.mxu0 0
      %1144 = vmatpush1.bf16.msra.mxu0 0
      %1145 = vmatprep.subr.bf16.mxu0 0
      %1146 = vmatpush1.bf16.msra.mxu0 0
      %1147 = vmatprep.subr.bf16.mxu0 0
      %1148 = vmatpush1.bf16.msra.mxu0 0
      %1149 = vmatprep.subr.bf16.mxu0 0
      %1150 = vmatpush1.bf16.msra.mxu0 0
      %1151 = vmatprep.subr.bf16.mxu0 0
      %1152 = vmatpush1.bf16.msra.mxu0 0
      %1153 = vmatprep.subr.bf16.mxu0 0
      %1154 = vmatpush1.bf16.msra.mxu0 0
      %1155 = vmatprep.subr.bf16.mxu0 0
      %1156 = vmatpush1.bf16.msra.mxu0 0
      %1157 = vmatprep.mubr.bf16.mxu0 %v514
      %1158 = vmatmul.mubr.bf16.gmra.mrb[0].mxu0 %v506
      %v1159 = vpop.f32.mrb[0].mxu0
      %v1160 = vadd.f32 0.0, %v1159
      %v1161 = vpop.f32.mrb[0].mxu0
      %v1162 = vadd.f32 0.0, %v1161
      %v1163 = vpop.f32.mrb[0].mxu0
      %v1164 = vadd.f32 0.0, %v1163
      %v1165 = vpop.f32.mrb[0].mxu0
      %v1166 = vadd.f32 0.0, %v1165
      %1167 = vmatprep.mubr.bf16.mxu0 %v517
      %1168 = vmatmul.mubr.bf16.gmra.mrb[0].mxu0 %v508
      %v1169 = vpop.f32.mrb[0].mxu0
      %v1170 = vadd.f32 0.0, %v1169
      %v1171 = vpop.f32.mrb[0].mxu0
      %v1172 = vadd.f32 0.0, %v1171
      %v1173 = vpop.f32.mrb[0].mxu0
      %v1174 = vadd.f32 0.0, %v1173
      %v1175 = vpop.f32.mrb[0].mxu0
      %v1176 = vadd.f32 0.0, %v1175
      %1177 = vdwg.mxu0
      %1178 = vmatprep.subr.bf16.mxu0 %v337
      %1179 = vmatpush1.bf16.msra.mxu0 %v336
      %1180 = vmatprep.subr.bf16.mxu0 %v373
      %1181 = vmatpush1.bf16.msra.mxu0 %v372
      %1182 = vmatprep.subr.bf16.mxu0 %v401
      %1183 = vmatpush1.bf16.msra.mxu0 %v400
      %1184 = vmatprep.subr.bf16.mxu0 %v429
      %1185 = vmatpush1.bf16.msra.mxu0 %v428
      %1186 = vmatprep.subr.bf16.mxu0 %v456
      %1187 = vmatpush1.bf16.msra.mxu0 %v455
      %1188 = vmatprep.subr.bf16.mxu0 %v484
      %1189 = vmatpush1.bf16.msra.mxu0 %v483
      %1190 = vmatprep.subr.bf16.mxu0 %v1061
      %1191 = vmatpush1.bf16.msra.mxu0 %v1060
      %1192 = vmatprep.subr.bf16.mxu0 %v1088
      %1193 = vmatpush1.bf16.msra.mxu0 %v1087
      %1194 = vmatprep.subr.bf16.mxu0 %v1115
      %1195 = vmatpush1.bf16.msra.mxu0 %v1114
      %1196 = vmatprep.subr.bf16.mxu0 0
      %1197 = vmatpush1.bf16.msra.mxu0 0
      %1198 = vmatprep.subr.bf16.mxu0 0
      %1199 = vmatpush1.bf16.msra.mxu0 0
      %1200 = vmatprep.subr.bf16.mxu0 0
      %1201 = vmatpush1.bf16.msra.mxu0 0
      %1202 = vmatprep.subr.bf16.mxu0 0
      %1203 = vmatpush1.bf16.msra.mxu0 0
      %1204 = vmatprep.subr.bf16.mxu0 0
      %1205 = vmatpush1.bf16.msra.mxu0 0
      %1206 = vmatprep.subr.bf16.mxu0 0
      %1207 = vmatpush1.bf16.msra.mxu0 0
      %1208 = vmatprep.subr.bf16.mxu0 0
      %1209 = vmatpush1.bf16.msra.mxu0 0
      %1210 = vmatprep.mubr.bf16.mxu0 %v514
      %1211 = vmatmul.mubr.bf16.gmra.mrb[0].mxu0 %v506
      %v1212 = vpop.f32.mrb[0].mxu0
      %v1213 = vadd.f32 0.0, %v1212
      %v1214 = vpop.f32.mrb[0].mxu0
      %v1215 = vadd.f32 0.0, %v1214
      %v1216 = vpop.f32.mrb[0].mxu0
      %v1217 = vadd.f32 0.0, %v1216
      %v1218 = vpop.f32.mrb[0].mxu0
      %v1219 = vadd.f32 0.0, %v1218
      %1220 = vmatprep.mubr.bf16.mxu0 %v517
      %1221 = vmatmul.mubr.bf16.gmra.mrb[0].mxu0 %v508
      %v1222 = vpop.f32.mrb[0].mxu0
      %v1223 = vadd.f32 0.0, %v1222
      %v1224 = vpop.f32.mrb[0].mxu0
      %v1225 = vadd.f32 0.0, %v1224
      %v1226 = vpop.f32.mrb[0].mxu0
      %v1227 = vadd.f32 0.0, %v1226
      %v1228 = vpop.f32.mrb[0].mxu0
      %v1229 = vadd.f32 0.0, %v1228
      %1230 = vdwg.mxu0
      %1231 = vmatprep.subr.bf16.mxu0 %v339
      %1232 = vmatpush1.bf16.msra.mxu0 %v338
      %1233 = vmatprep.subr.bf16.mxu0 %v375
      %1234 = vmatpush1.bf16.msra.mxu0 %v374
      %1235 = vmatprep.subr.bf16.mxu0 %v403
      %1236 = vmatpush1.bf16.msra.mxu0 %v402
      %1237 = vmatprep.subr.bf16.mxu0 %v431
      %1238 = vmatpush1.bf16.msra.mxu0 %v430
      %1239 = vmatprep.subr.bf16.mxu0 %v458
      %1240 = vmatpush1.bf16.msra.mxu0 %v457
      %1241 = vmatprep.subr.bf16.mxu0 %v486
      %1242 = vmatpush1.bf16.msra.mxu0 %v485
      %1243 = vmatprep.subr.bf16.mxu0 %v1063
      %1244 = vmatpush1.bf16.msra.mxu0 %v1062
      %1245 = vmatprep.subr.bf16.mxu0 %v1090
      %1246 = vmatpush1.bf16.msra.mxu0 %v1089
      %1247 = vmatprep.subr.bf16.mxu0 %v1117
      %1248 = vmatpush1.bf16.msra.mxu0 %v1116
      %1249 = vmatprep.subr.bf16.mxu0 0
      %1250 = vmatpush1.bf16.msra.mxu0 0
      %1251 = vmatprep.subr.bf16.mxu0 0
      %1252 = vmatpush1.bf16.msra.mxu0 0
      %1253 = vmatprep.subr.bf16.mxu0 0
      %1254 = vmatpush1.bf16.msra.mxu0 0
      %1255 = vmatprep.subr.bf16.mxu0 0
      %1256 = vmatpush1.bf16.msra.mxu0 0
      %1257 = vmatprep.subr.bf16.mxu0 0
      %1258 = vmatpush1.bf16.msra.mxu0 0
      %1259 = vmatprep.subr.bf16.mxu0 0
      %1260 = vmatpush1.bf16.msra.mxu0 0
      %1261 = vmatprep.subr.bf16.mxu0 0
      %1262 = vmatpush1.bf16.msra.mxu0 0
      %1263 = vmatprep.mubr.bf16.mxu0 %v514
      %1264 = vmatmul.mubr.bf16.gmra.mrb[0].mxu0 %v506
      %v1265 = vpop.f32.mrb[0].mxu0
      %v1266 = vadd.f32 0.0, %v1265
      %v1267 = vpop.f32.mrb[0].mxu0
      %v1268 = vadd.f32 0.0, %v1267
      %v1269 = vpop.f32.mrb[0].mxu0
      %v1270 = vadd.f32 0.0, %v1269
      %v1271 = vpop.f32.mrb[0].mxu0
      %v1272 = vadd.f32 0.0, %v1271
      %1273 = vmatprep.mubr.bf16.mxu0 %v517
      %1274 = vmatmul.mubr.bf16.gmra.mrb[0].mxu0 %v508
      %v1275 = vpop.f32.mrb[0].mxu0
      %v1276 = vadd.f32 0.0, %v1275
      %v1277 = vpop.f32.mrb[0].mxu0
      %v1278 = vadd.f32 0.0, %v1277
      %v1279 = vpop.f32.mrb[0].mxu0
      %v1280 = vadd.f32 0.0, %v1279
      %v1281 = vpop.f32.mrb[0].mxu0
      %v1282 = vadd.f32 0.0, %v1281
      %1283 = vdwg.mxu0
      %1284 = vmatprep.subr.bf16.mxu0 0
      %1285 = vmatpush1.bf16.msra.mxu0 %v340
      %1286 = vmatprep.subr.bf16.mxu0 0
      %1287 = vmatpush1.bf16.msra.mxu0 %v376
      %1288 = vmatprep.subr.bf16.mxu0 0
      %1289 = vmatpush1.bf16.msra.mxu0 %v397
      %1290 = vmatprep.subr.bf16.mxu0 0
      %1291 = vmatpush1.bf16.msra.mxu0 %v424
      %1292 = vmatprep.subr.bf16.mxu0 0
      %1293 = vmatpush1.bf16.msra.mxu0 %v452
      %1294 = vmatprep.subr.bf16.mxu0 0
      %1295 = vmatpush1.bf16.msra.mxu0 %v479
      %1296 = vmatprep.subr.bf16.mxu0 0
      %1297 = vmatpush1.bf16.msra.mxu0 %v1057
      %1298 = vmatprep.subr.bf16.mxu0 0
      %1299 = vmatpush1.bf16.msra.mxu0 %v1084
      %1300 = vmatprep.subr.bf16.mxu0 0
      %1301 = vmatpush1.bf16.msra.mxu0 %v1111
      %1302 = vmatprep.subr.bf16.mxu0 0
      %1303 = vmatpush1.bf16.msra.mxu0 0
      %1304 = vmatprep.subr.bf16.mxu0 0
      %1305 = vmatpush1.bf16.msra.mxu0 0
      %1306 = vmatprep.subr.bf16.mxu0 0
      %1307 = vmatpush1.bf16.msra.mxu0 0
      %1308 = vmatprep.subr.bf16.mxu0 0
      %1309 = vmatpush1.bf16.msra.mxu0 0
      %1310 = vmatprep.subr.bf16.mxu0 0
      %1311 = vmatpush1.bf16.msra.mxu0 0
      %1312 = vmatprep.subr.bf16.mxu0 0
      %1313 = vmatpush1.bf16.msra.mxu0 0
      %1314 = vmatprep.subr.bf16.mxu0 0
      %1315 = vmatpush1.bf16.msra.mxu0 0
      %1316 = vmatprep.mubr.bf16.mxu0 %v514
      %1317 = vmatmul.mubr.bf16.gmra.mrb[0].mxu0 %v506
      %v1318 = vpop.f32.mrb[0].mxu0
      %v1319 = vadd.f32 0.0, %v1318
      %v1320 = vpop.f32.mrb[0].mxu0
      %v1321 = vpop.f32.mrb[0].mxu0
      %v1322 = vadd.f32 0.0, %v1321
      %v1323 = vpop.f32.mrb[0].mxu0
      %1324 = vmatprep.mubr.bf16.mxu0 %v517
      %1325 = vmatmul.mubr.bf16.gmra.mrb[0].mxu0 %v508
      %v1326 = vpop.f32.mrb[0].mxu0
      %v1327 = vadd.f32 0.0, %v1326
      %v1328 = vpop.f32.mrb[0].mxu0
      %v1329 = vpop.f32.mrb[0].mxu0
      %v1330 = vadd.f32 0.0, %v1329
      %v1331 = vpop.f32.mrb[0].mxu0
      %1332 = vdwg.mxu0
      %v1333 = vmax.f32 %v1016, %v1160
      %v1334 = vmax.f32 %v1017, %v1162
      %v1335 = vmax.f32 %v1018, %v1213
      %v1336 = vmax.f32 %v1019, %v1215
      %v1337 = vmax.f32 %v1020, %v1266
      %v1338 = vmax.f32 %v1021, %v1268
      %v1339 = vmax.f32 %v1022, %v1319
      %v1340 = vmax.f32 %v1023, %v1164
      %v1341 = vmax.f32 %v1024, %v1166
      %v1342 = vmax.f32 %v1025, %v1217
      %v1343 = vmax.f32 %v1026, %v1219
      %v1344 = vmax.f32 %v1027, %v1270
      %v1345 = vmax.f32 %v1028, %v1272
      %v1346 = vmax.f32 %v1029, %v1322
      %v1347 = vmax.f32 %v1030, %v1170
      %v1348 = vmax.f32 %v1031, %v1172
      %v1349 = vmax.f32 %v1032, %v1223
      %v1350 = vmax.f32 %v1033, %v1225
      %v1351 = vmax.f32 %v1034, %v1276
      %v1352 = vmax.f32 %v1035, %v1278
      %v1353 = vmax.f32 %v1036, %v1327
      %v1354 = vmax.f32 %v1037, %v1174
      %v1355 = vmax.f32 %v1038, %v1176
      %v1356 = vmax.f32 %v1039, %v1227
      %v1357 = vmax.f32 %v1040, %v1229
      %v1358 = vmax.f32 %v1041, %v1280
      %v1359 = vmax.f32 %v1042, %v1282
      %v1360 = vmax.f32 %v1043, %v1330
      %1361 = vrot.lane.b32.xlu0 %v370, 98
      %v1362 = vpop.permute.xlu0 %1361
      %1363 = vrot.lane.b32.xlu0 %v371, 98
      %v1364 = vpop.permute.xlu0 %1363
      %1365 = vrot.lane.b32.xlu0 %v372, 98
      %v1366 = vpop.permute.xlu0 %1365
      %1367 = vrot.lane.b32.xlu0 %v373, 98
      %v1368 = vpop.permute.xlu0 %1367
      %1369 = vrot.lane.b32.xlu0 %v374, 98
      %v1370 = vpop.permute.xlu0 %1369
      %1371 = vrot.lane.b32.xlu0 %v375, 98
      %v1372 = vpop.permute.xlu0 %1371
      %1373 = vrot.lane.b32.xlu0 %v376, 98
      %v1374 = vpop.permute.xlu0 %1373
      %v1375 = vsel %vm480, %v1362, %v1364
      %v1376 = vsel %vm480, %v1364, %v1366
      %v1377 = vsel %vm480, %v1366, %v1368
      %v1378 = vsel %vm480, %v1368, %v1370
      %v1379 = vsel %vm480, %v1370, %v1372
      %v1380 = vsel %vm480, %v1372, %v1374
      %1388 = vmatprep.subr.bf16.mxu0 %v371
      %1389 = vmatpush1.bf16.msra.mxu0 %v370
      %1390 = vmatprep.subr.bf16.mxu0 %v399
      %1391 = vmatpush1.bf16.msra.mxu0 %v398
      %1392 = vmatprep.subr.bf16.mxu0 %v769
      %1393 = vmatpush1.bf16.msra.mxu0 %v768
      %1394 = vmatprep.subr.bf16.mxu0 %v454
      %1395 = vmatpush1.bf16.msra.mxu0 %v453
      %1396 = vmatprep.subr.bf16.mxu0 %v482
      %1397 = vmatpush1.bf16.msra.mxu0 %v481
      %1398 = vmatprep.subr.bf16.mxu0 %v796
      %1399 = vmatpush1.bf16.msra.mxu0 %v795
      %1400 = vmatprep.subr.bf16.mxu0 %v1086
      %1401 = vmatpush1.bf16.msra.mxu0 %v1085
      %1402 = vmatprep.subr.bf16.mxu0 %v1113
      %1403 = vmatpush1.bf16.msra.mxu0 %v1112
      %1404 = vmatprep.subr.bf16.mxu0 %v1376
      %1405 = vmatpush1.bf16.msra.mxu0 %v1375
      %1406 = vmatprep.subr.bf16.mxu0 0
      %1407 = vmatpush1.bf16.msra.mxu0 0
      %1408 = vmatprep.subr.bf16.mxu0 0
      %1409 = vmatpush1.bf16.msra.mxu0 0
      %1410 = vmatprep.subr.bf16.mxu0 0
      %1411 = vmatpush1.bf16.msra.mxu0 0
      %1412 = vmatprep.subr.bf16.mxu0 0
      %1413 = vmatpush1.bf16.msra.mxu0 0
      %1414 = vmatprep.subr.bf16.mxu0 0
      %1415 = vmatpush1.bf16.msra.mxu0 0
      %1416 = vmatprep.subr.bf16.mxu0 0
      %1417 = vmatpush1.bf16.msra.mxu0 0
      %1418 = vmatprep.subr.bf16.mxu0 0
      %1419 = vmatpush1.bf16.msra.mxu0 0
      %1420 = vmatprep.mubr.bf16.mxu0 %v514
      %1421 = vmatmul.mubr.bf16.gmra.mrb[0].mxu0 %v506
      %v1422 = vpop.f32.mrb[0].mxu0
      %v1423 = vadd.f32 0.0, %v1422
      %v1424 = vpop.f32.mrb[0].mxu0
      %v1425 = vadd.f32 0.0, %v1424
      %v1426 = vpop.f32.mrb[0].mxu0
      %v1427 = vadd.f32 0.0, %v1426
      %v1428 = vpop.f32.mrb[0].mxu0
      %v1429 = vadd.f32 0.0, %v1428
      %1430 = vmatprep.mubr.bf16.mxu0 %v517
      %1431 = vmatmul.mubr.bf16.gmra.mrb[0].mxu0 %v508
      %v1432 = vpop.f32.mrb[0].mxu0
      %v1433 = vadd.f32 0.0, %v1432
      %v1434 = vpop.f32.mrb[0].mxu0
      %v1435 = vadd.f32 0.0, %v1434
      %v1436 = vpop.f32.mrb[0].mxu0
      %v1437 = vadd.f32 0.0, %v1436
      %v1438 = vpop.f32.mrb[0].mxu0
      %v1439 = vadd.f32 0.0, %v1438
      %1440 = vdwg.mxu0
      %1441 = vmatprep.subr.bf16.mxu0 %v373
      %1442 = vmatpush1.bf16.msra.mxu0 %v372
      %1443 = vmatprep.subr.bf16.mxu0 %v401
      %1444 = vmatpush1.bf16.msra.mxu0 %v400
      %1445 = vmatprep.subr.bf16.mxu0 %v771
      %1446 = vmatpush1.bf16.msra.mxu0 %v770
      %1447 = vmatprep.subr.bf16.mxu0 %v456
      %1448 = vmatpush1.bf16.msra.mxu0 %v455
      %1449 = vmatprep.subr.bf16.mxu0 %v484
      %1450 = vmatpush1.bf16.msra.mxu0 %v483
      %1451 = vmatprep.subr.bf16.mxu0 %v798
      %1452 = vmatpush1.bf16.msra.mxu0 %v797
      %1453 = vmatprep.subr.bf16.mxu0 %v1088
      %1454 = vmatpush1.bf16.msra.mxu0 %v1087
      %1455 = vmatprep.subr.bf16.mxu0 %v1115
      %1456 = vmatpush1.bf16.msra.mxu0 %v1114
      %1457 = vmatprep.subr.bf16.mxu0 %v1378
      %1458 = vmatpush1.bf16.msra.mxu0 %v1377
      %1459 = vmatprep.subr.bf16.mxu0 0
      %1460 = vmatpush1.bf16.msra.mxu0 0
      %1461 = vmatprep.subr.bf16.mxu0 0
      %1462 = vmatpush1.bf16.msra.mxu0 0
      %1463 = vmatprep.subr.bf16.mxu0 0
      %1464 = vmatpush1.bf16.msra.mxu0 0
      %1465 = vmatprep.subr.bf16.mxu0 0
      %1466 = vmatpush1.bf16.msra.mxu0 0
      %1467 = vmatprep.subr.bf16.mxu0 0
      %1468 = vmatpush1.bf16.msra.mxu0 0
      %1469 = vmatprep.subr.bf16.mxu0 0
      %1470 = vmatpush1.bf16.msra.mxu0 0
      %1471 = vmatprep.subr.bf16.mxu0 0
      %1472 = vmatpush1.bf16.msra.mxu0 0
      %1473 = vmatprep.mubr.bf16.mxu0 %v514
      %1474 = vmatmul.mubr.bf16.gmra.mrb[0].mxu0 %v506
      %v1475 = vpop.f32.mrb[0].mxu0
      %v1476 = vadd.f32 0.0, %v1475
      %v1477 = vpop.f32.mrb[0].mxu0
      %v1478 = vadd.f32 0.0, %v1477
      %v1479 = vpop.f32.mrb[0].mxu0
      %v1480 = vadd.f32 0.0, %v1479
      %v1481 = vpop.f32.mrb[0].mxu0
      %v1482 = vadd.f32 0.0, %v1481
      %1483 = vmatprep.mubr.bf16.mxu0 %v517
      %1484 = vmatmul.mubr.bf16.gmra.mrb[0].mxu0 %v508
      %v1485 = vpop.f32.mrb[0].mxu0
      %v1486 = vadd.f32 0.0, %v1485
      %v1487 = vpop.f32.mrb[0].mxu0
      %v1488 = vadd.f32 0.0, %v1487
      %v1489 = vpop.f32.mrb[0].mxu0
      %v1490 = vadd.f32 0.0, %v1489
      %v1491 = vpop.f32.mrb[0].mxu0
      %v1492 = vadd.f32 0.0, %v1491
      %1493 = vdwg.mxu0
      %1494 = vmatprep.subr.bf16.mxu0 %v375
      %1495 = vmatpush1.bf16.msra.mxu0 %v374
      %1496 = vmatprep.subr.bf16.mxu0 %v403
      %1497 = vmatpush1.bf16.msra.mxu0 %v402
      %1498 = vmatprep.subr.bf16.mxu0 %v773
      %1499 = vmatpush1.bf16.msra.mxu0 %v772
      %1500 = vmatprep.subr.bf16.mxu0 %v458
      %1501 = vmatpush1.bf16.msra.mxu0 %v457
      %1502 = vmatprep.subr.bf16.mxu0 %v486
      %1503 = vmatpush1.bf16.msra.mxu0 %v485
      %1504 = vmatprep.subr.bf16.mxu0 %v800
      %1505 = vmatpush1.bf16.msra.mxu0 %v799
      %1506 = vmatprep.subr.bf16.mxu0 %v1090
      %1507 = vmatpush1.bf16.msra.mxu0 %v1089
      %1508 = vmatprep.subr.bf16.mxu0 %v1117
      %1509 = vmatpush1.bf16.msra.mxu0 %v1116
      %1510 = vmatprep.subr.bf16.mxu0 %v1380
      %1511 = vmatpush1.bf16.msra.mxu0 %v1379
      %1512 = vmatprep.subr.bf16.mxu0 0
      %1513 = vmatpush1.bf16.msra.mxu0 0
      %1514 = vmatprep.subr.bf16.mxu0 0
      %1515 = vmatpush1.bf16.msra.mxu0 0
      %1516 = vmatprep.subr.bf16.mxu0 0
      %1517 = vmatpush1.bf16.msra.mxu0 0
      %1518 = vmatprep.subr.bf16.mxu0 0
      %1519 = vmatpush1.bf16.msra.mxu0 0
      %1520 = vmatprep.subr.bf16.mxu0 0
      %1521 = vmatpush1.bf16.msra.mxu0 0
      %1522 = vmatprep.subr.bf16.mxu0 0
      %1523 = vmatpush1.bf16.msra.mxu0 0
      %1524 = vmatprep.subr.bf16.mxu0 0
      %1525 = vmatpush1.bf16.msra.mxu0 0
      %1526 = vmatprep.mubr.bf16.mxu0 %v514
      %1527 = vmatmul.mubr.bf16.gmra.mrb[0].mxu0 %v506
      %v1528 = vpop.f32.mrb[0].mxu0
      %v1529 = vadd.f32 0.0, %v1528
      %v1530 = vpop.f32.mrb[0].mxu0
      %v1531 = vadd.f32 0.0, %v1530
      %v1532 = vpop.f32.mrb[0].mxu0
      %v1533 = vadd.f32 0.0, %v1532
      %v1534 = vpop.f32.mrb[0].mxu0
      %v1535 = vadd.f32 0.0, %v1534
      %1536 = vmatprep.mubr.bf16.mxu0 %v517
      %1537 = vmatmul.mubr.bf16.gmra.mrb[0].mxu0 %v508
      %v1538 = vpop.f32.mrb[0].mxu0
      %v1539 = vadd.f32 0.0, %v1538
      %v1540 = vpop.f32.mrb[0].mxu0
      %v1541 = vadd.f32 0.0, %v1540
      %v1542 = vpop.f32.mrb[0].mxu0
      %v1543 = vadd.f32 0.0, %v1542
      %v1544 = vpop.f32.mrb[0].mxu0
      %v1545 = vadd.f32 0.0, %v1544
      %1546 = vdwg.mxu0
      %1547 = vmatprep.subr.bf16.mxu0 0
      %1548 = vmatpush1.bf16.msra.mxu0 %v376
      %1549 = vmatprep.subr.bf16.mxu0 0
      %1550 = vmatpush1.bf16.msra.mxu0 %v397
      %1551 = vmatprep.subr.bf16.mxu0 0
      %1552 = vmatpush1.bf16.msra.mxu0 %v767
      %1553 = vmatprep.subr.bf16.mxu0 0
      %1554 = vmatpush1.bf16.msra.mxu0 %v452
      %1555 = vmatprep.subr.bf16.mxu0 0
      %1556 = vmatpush1.bf16.msra.mxu0 %v479
      %1557 = vmatprep.subr.bf16.mxu0 0
      %1558 = vmatpush1.bf16.msra.mxu0 %v794
      %1559 = vmatprep.subr.bf16.mxu0 0
      %1560 = vmatpush1.bf16.msra.mxu0 %v1084
      %1561 = vmatprep.subr.bf16.mxu0 0
      %1562 = vmatpush1.bf16.msra.mxu0 %v1111
      %1563 = vmatprep.subr.bf16.mxu0 0
      %1564 = vmatpush1.bf16.msra.mxu0 %v1374
      %1565 = vmatprep.subr.bf16.mxu0 0
      %1566 = vmatpush1.bf16.msra.mxu0 0
      %1567 = vmatprep.subr.bf16.mxu0 0
      %1568 = vmatpush1.bf16.msra.mxu0 0
      %1569 = vmatprep.subr.bf16.mxu0 0
      %1570 = vmatpush1.bf16.msra.mxu0 0
      %1571 = vmatprep.subr.bf16.mxu0 0
      %1572 = vmatpush1.bf16.msra.mxu0 0
      %1573 = vmatprep.subr.bf16.mxu0 0
      %1574 = vmatpush1.bf16.msra.mxu0 0
      %1575 = vmatprep.subr.bf16.mxu0 0
      %1576 = vmatpush1.bf16.msra.mxu0 0
      %1577 = vmatprep.subr.bf16.mxu0 0
      %1578 = vmatpush1.bf16.msra.mxu0 0
      %1579 = vmatprep.mubr.bf16.mxu0 %v514
      %1580 = vmatmul.mubr.bf16.gmra.mrb[0].mxu0 %v506
      %v1581 = vpop.f32.mrb[0].mxu0
      %v1582 = vadd.f32 0.0, %v1581
      %v1583 = vpop.f32.mrb[0].mxu0
      %v1584 = vpop.f32.mrb[0].mxu0
      %v1585 = vadd.f32 0.0, %v1584
      %v1586 = vpop.f32.mrb[0].mxu0
      %1587 = vmatprep.mubr.bf16.mxu0 %v517
      %1588 = vmatmul.mubr.bf16.gmra.mrb[0].mxu0 %v508
      %v1589 = vpop.f32.mrb[0].mxu0
      %v1590 = vadd.f32 0.0, %v1589
      %v1591 = vpop.f32.mrb[0].mxu0
      %v1592 = vpop.f32.mrb[0].mxu0
      %v1593 = vadd.f32 0.0, %v1592
      %v1594 = vpop.f32.mrb[0].mxu0
      %1595 = vdwg.mxu0
      %v1596 = vmax.f32 %v1333, %v1423
      %v1597 = vmax.f32 %v1334, %v1425
      %v1598 = vmax.f32 %v1335, %v1476
      %v1599 = vmax.f32 %v1336, %v1478
      %v1600 = vmax.f32 %v1337, %v1529
      %v1601 = vmax.f32 %v1338, %v1531
      %v1602 = vmax.f32 %v1339, %v1582
      %v1603 = vmax.f32 %v1340, %v1427
      %v1604 = vmax.f32 %v1341, %v1429
      %v1605 = vmax.f32 %v1342, %v1480
      %v1606 = vmax.f32 %v1343, %v1482
      %v1607 = vmax.f32 %v1344, %v1533
      %v1608 = vmax.f32 %v1345, %v1535
      %v1609 = vmax.f32 %v1346, %v1585
      %v1610 = vmax.f32 %v1347, %v1433
      %v1611 = vmax.f32 %v1348, %v1435
      %v1612 = vmax.f32 %v1349, %v1486
      %v1613 = vmax.f32 %v1350, %v1488
      %v1614 = vmax.f32 %v1351, %v1539
      %v1615 = vmax.f32 %v1352, %v1541
      %v1616 = vmax.f32 %v1353, %v1590
      %v1617 = vmax.f32 %v1354, %v1437
      %v1618 = vmax.f32 %v1355, %v1439
      %v1619 = vmax.f32 %v1356, %v1490
      %v1620 = vmax.f32 %v1357, %v1492
      %v1621 = vmax.f32 %v1358, %v1543
      %v1622 = vmax.f32 %v1359, %v1545
      %v1623 = vmax.f32 %v1360, %v1593
      %1625 = vset.pattern.permute.xlu0 0
      %1626 = vperm.xlu0 %1625, %v208
      %v1627 = vpop.permute.xlu0 %1626
      %1630 = vset.pattern.permute.xlu0 0
      %1631 = vperm.xlu0 %1630, %v209
      %v1632 = vpop.permute.xlu0 %1631
      %1635 = vset.pattern.permute.xlu0 0
      %1636 = vperm.xlu0 %1635, %v210
      %v1637 = vpop.permute.xlu0 %1636
      %1640 = vset.pattern.permute.xlu0 0
      %1641 = vperm.xlu0 %1640, %v211
      %v1642 = vpop.permute.xlu0 %1641
      %v1644 = vadd.f32 %v1596, %v1627
      %v1645 = vadd.f32 %v1597, %v1627
      %v1646 = vadd.f32 %v1598, %v1627
      %v1647 = vadd.f32 %v1599, %v1627
      %v1648 = vadd.f32 %v1600, %v1627
      %v1649 = vadd.f32 %v1601, %v1627
      %v1650 = vadd.f32 %v1602, %v1627
      %v1651 = vadd.f32 %v1603, %v1632
      %v1652 = vadd.f32 %v1604, %v1632
      %v1653 = vadd.f32 %v1605, %v1632
      %v1654 = vadd.f32 %v1606, %v1632
      %v1655 = vadd.f32 %v1607, %v1632
      %v1656 = vadd.f32 %v1608, %v1632
      %v1657 = vadd.f32 %v1609, %v1632
      %v1658 = vadd.f32 %v1610, %v1637
      %v1659 = vadd.f32 %v1611, %v1637
      %v1660 = vadd.f32 %v1612, %v1637
      %v1661 = vadd.f32 %v1613, %v1637
      %v1662 = vadd.f32 %v1614, %v1637
      %v1663 = vadd.f32 %v1615, %v1637
      %v1664 = vadd.f32 %v1616, %v1637
      %v1665 = vadd.f32 %v1617, %v1642
      %v1666 = vadd.f32 %v1618, %v1642
      %v1667 = vadd.f32 %v1619, %v1642
      %v1668 = vadd.f32 %v1620, %v1642
      %v1669 = vadd.f32 %v1621, %v1642
      %v1670 = vadd.f32 %v1622, %v1642
      %v1671 = vadd.f32 %v1623, %v1642
      %v1672 = vmax.f32 %v1644, 0.0
      %v1673 = vmax.f32 %v1645, 0.0
      %v1674 = vmax.f32 %v1646, 0.0
      %v1675 = vmax.f32 %v1647, 0.0
      %v1676 = vmax.f32 %v1648, 0.0
      %v1677 = vmax.f32 %v1649, 0.0
      %v1678 = vmax.f32 %v1650, 0.0
      %v1679 = vmax.f32 %v1651, 0.0
      %v1680 = vmax.f32 %v1652, 0.0
      %v1681 = vmax.f32 %v1653, 0.0
      %v1682 = vmax.f32 %v1654, 0.0
      %v1683 = vmax.f32 %v1655, 0.0
      %v1684 = vmax.f32 %v1656, 0.0
      %v1685 = vmax.f32 %v1657, 0.0
      %v1686 = vmax.f32 %v1658, 0.0
      %v1687 = vmax.f32 %v1659, 0.0
      %v1688 = vmax.f32 %v1660, 0.0
      %v1689 = vmax.f32 %v1661, 0.0
      %v1690 = vmax.f32 %v1662, 0.0
      %v1691 = vmax.f32 %v1663, 0.0
      %v1692 = vmax.f32 %v1664, 0.0
      %v1693 = vmax.f32 %v1665, 0.0
      %v1694 = vmax.f32 %v1666, 0.0
      %v1695 = vmax.f32 %v1667, 0.0
      %v1696 = vmax.f32 %v1668, 0.0
      %v1697 = vmax.f32 %v1669, 0.0
      %v1698 = vmax.f32 %v1670, 0.0
      %v1699 = vmax.f32 %v1671, 0.0
      %v1700 = vpack.c.bf16 %v1679, %v1672
      %v1701 = vpack.c.bf16 %v1680, %v1673
      %v1702 = vpack.c.bf16 %v1681, %v1674
      %v1703 = vpack.c.bf16 %v1682, %v1675
      %v1704 = vpack.c.bf16 %v1683, %v1676
      %v1705 = vpack.c.bf16 %v1684, %v1677
      %v1706 = vpack.c.bf16 %v1685, %v1678
      %v1707 = vpack.c.bf16 %v1693, %v1686
      %v1708 = vpack.c.bf16 %v1694, %v1687
      %v1709 = vpack.c.bf16 %v1695, %v1688
      %v1710 = vpack.c.bf16 %v1696, %v1689
      %v1711 = vpack.c.bf16 %v1697, %v1690
      %v1712 = vpack.c.bf16 %v1698, %v1691
      %v1713 = vpack.c.bf16 %v1699, %v1692
      %v1728 = vunpack.c.l.b16 %v1700
      %v1729 = vunpack.c.l.b16 %v1701
      %v1730 = vunpack.c.l.b16 %v1702
      %v1731 = vunpack.c.l.b16 %v1703
      %v1732 = vunpack.c.l.b16 %v1704
      %v1733 = vunpack.c.l.b16 %v1705
      %v1734 = vunpack.c.l.b16 %v1706
      %v1735 = vunpack.c.h.b16 %v1700
      %v1736 = vunpack.c.h.b16 %v1701
      %v1737 = vunpack.c.h.b16 %v1702
      %v1738 = vunpack.c.h.b16 %v1703
      %v1739 = vunpack.c.h.b16 %v1704
      %v1740 = vunpack.c.h.b16 %v1705
      %v1741 = vunpack.c.h.b16 %v1706
      %v1742 = vunpack.c.l.b16 %v1707
      %v1743 = vunpack.c.l.b16 %v1708
      %v1744 = vunpack.c.l.b16 %v1709
      %v1745 = vunpack.c.l.b16 %v1710
      %v1746 = vunpack.c.l.b16 %v1711
      %v1747 = vunpack.c.l.b16 %v1712
      %v1748 = vunpack.c.l.b16 %v1713
      %v1749 = vunpack.c.h.b16 %v1707
      %v1750 = vunpack.c.h.b16 %v1708
      %v1751 = vunpack.c.h.b16 %v1709
      %v1752 = vunpack.c.h.b16 %v1710
      %v1753 = vunpack.c.h.b16 %v1711
      %v1754 = vunpack.c.h.b16 %v1712
      %v1755 = vunpack.c.h.b16 %v1713
      %v1756 = vpack.c.b16 %v1729, %v1728
      %v1757 = vpack.c.b16 %v1731, %v1730
      %v1758 = vpack.c.b16 %v1733, %v1732
      %v1759 = vpack.c.b16 %v1734, %v1734
      %v1760 = vpack.c.b16 %v1736, %v1735
      %v1761 = vpack.c.b16 %v1738, %v1737
      %v1762 = vpack.c.b16 %v1740, %v1739
      %v1763 = vpack.c.b16 %v1741, %v1741
      %v1764 = vpack.c.b16 %v1743, %v1742
      %v1765 = vpack.c.b16 %v1745, %v1744
      %v1766 = vpack.c.b16 %v1747, %v1746
      %v1767 = vpack.c.b16 %v1748, %v1748
      %v1768 = vpack.c.b16 %v1750, %v1749
      %v1769 = vpack.c.b16 %v1752, %v1751
      %v1770 = vpack.c.b16 %v1754, %v1753
      %v1771 = vpack.c.b16 %v1755, %v1755
      %1788 = vst [vmem:[%s170] sm:$0xff] %v1756
      %1789 = vst [vmem:[%s170 + $0x8] sm:$0xff] %v1757
      %1790 = vst [vmem:[%s170 + $0x10] sm:$0xff] %v1758
      %vm1791 = vcmask 355328
      %1792 = vst.msk [vmem:[%s170 + $0x18] sm:$0xf] %vm1791, %v1759
      %1793 = vst [vmem:[%s170 + $0x1c] sm:$0xff] %v1760
      %1794 = vst [vmem:[%s170 + $0x24] sm:$0xff] %v1761
      %1795 = vst [vmem:[%s170 + $0x2c] sm:$0xff] %v1762
      %1796 = vst.msk [vmem:[%s170 + $0x34] sm:$0xf] %vm1791, %v1763
      %1797 = vst [vmem:[%s170 + $0x38] sm:$0xff] %v1764
      %1798 = vst [vmem:[%s170 + $0x40] sm:$0xff] %v1765
      %1799 = vst [vmem:[%s170 + $0x48] sm:$0xff] %v1766
      %1800 = vst.msk [vmem:[%s170 + $0x50] sm:$0xf] %vm1791, %v1767
      %1801 = vst [vmem:[%s170 + $0x54] sm:$0xff] %v1768
      %1802 = vst [vmem:[%s170 + $0x5c] sm:$0xff] %v1769
      %1803 = vst [vmem:[%s170 + $0x64] sm:$0xff] %v1770
      %1804 = vst.msk [vmem:[%s170 + $0x6c] sm:$0xf] %vm1791, %v1771
      %p1805 = scmp.lt.s32.totalorder %s14, 1
      %s1806 = scalar_select %p1805, %s14, 1
      %s1807 = smul.addr %s1806, 28
      %s1808 = smul.addr %s1807, 4
      %s1809 = scalar_lea.vmem %s3, %s1808
      // Predicated region
      $region33: #{cnn_forward.4} parent=31 // pred_check
        %p1810 = pneg %p100
      $region34: #{cnn_forward.4} parent=31 // pred_check_branch
        %1812 = sbr.rel (%p1810) target = $region36
      $region35: #{cnn_forward.4} parent=31 // pred_region
        _
      $region36: #{cnn_forward.4} parent=31 // pred_fallthru
        _
    $region32: #{cnn_forward.4} parent=5 // pred_fallthru
      _
    %p1813 = scmp.le.s32.totalorder 2, %s9
    // Predicated region
    $region37: #{cnn_forward.4} parent=5 // pred_check
      %p1814 = pneg %p1813
    $region38: #{cnn_forward.4} parent=5 // pred_check_branch
      %1816 = sbr.rel (%p1814) target = $region40
    $region39: #{cnn_forward.4} parent=5 // pred_region
      %s1817 = ssub.s32 %s9, 2
      // Predicated region
      $region41: #{cnn_forward.4} parent=39 // pred_check
        %p1818 = pneg %p106
      $region42: #{cnn_forward.4} parent=39 // pred_check_branch
        %1820 = sbr.rel (%p1818) target = $region44
      $region43: #{cnn_forward.4} parent=39 // pred_region
        %p1821 = scmp.lt.s32.totalorder %s15, 1
        %s1822 = scalar_select %p1821, %s15, 1
        %s1823 = smul.addr %s1822, 28
        %s1824 = smul.addr %s1823, 4
        %s1825 = scalar_lea.vmem %s3, %s1824
      $region44: #{cnn_forward.4} parent=39 // pred_fallthru
        _
    $region40: #{cnn_forward.4} parent=5 // pred_fallthru
      _
  $region6: #{cnn_forward.4} parent=0 // loop_footer
    %s13 = sadd.s32 1, %s9
  $region7: #{cnn_forward.4} parent=0 // loop_footer_branch
    %8 = sbr.rel target = $region3
  $region8: #{cnn_forward.4} parent=0 // loop_exit
    _

// kernel: cnn_forward.5
$region0: #{cnn_forward.5}
  #allocation0 [shape = 'u32[]', space=smem, size = 0x4, offset = 0x4, fixed_abs, tag = 'smem constant byte address 0x4 - core index']
  #allocation1 [shape = 'u32[144,128]{1,0:T(1,128)}', space=vmem, size = 0x12000, scoped, tag = 'internal scratch']
  %s0 = inlined_call_operand.vmem [shape: bf16[2,128,210], index: 0, kind: input, shape index: {}]
  %s1 = inlined_call_operand.vmem [shape: bf16[64,288], index: 1, kind: input, shape index: {}]
  %s2 = inlined_call_operand.vmem [shape: f32[64,1], index: 2, kind: input, shape index: {}]
  %s3 = inlined_call_operand.vmem [shape: bf16[5,64,182], index: 3, kind: input, shape index: {}]
  %s4 = inlined_call_operand.vmem [shape: f32[5,1], index: 4, kind: input, shape index: {}]
  %s5 = inlined_call_operand.vmem [shape: f32[2,5,1], index: 5, kind: output, shape index: {}]
  %s6 = sld [smem:[#allocation0]]
  $region53: #{cnn_forward.5} parent=0
    _
  %s8 = ssub.s32 1, %s6
  %s9 = scalar_select 0, %s8, %s6
  loop: start=0, step=1, limit=4
  $region2: #{cnn_forward.5} parent=0 // loop_pre_header
    _
  $region3: #{cnn_forward.5} parent=0 // loop_header
    %s11 = sphi 0, %s15
    %p12 = scmp.ge.s32.totalorder %s11, 4
    %s21 = sphi 0, %s23
    %s24 = sphi 0, %s21
    %s25 = sphi 0, %s24
    %s41 = sphi 0, %s25
    %s45 = sphi 0, %s45
    %s47 = sphi 0, %s45
    %s48 = sphi 0, %s47
    %s62 = sphi 0, %s48
    %s66 = sphi 0, %s66
    %s68 = sphi 0, %s66
    %s69 = sphi 0, %s68
    %s83 = sphi 0, %s69
    %s87 = sphi 0, %s87
    %s89 = sphi 0, %s87
    %s90 = sphi 0, %s89
    %s104 = sphi 0, %s90
    %s108 = sphi 0, %s108
    %s110 = sphi 0, %s108
    %s111 = sphi 0, %s110
    %s125 = sphi 0, %s111
    %s131 = sphi 0, %s133
    %s134 = sphi 0, %s131
    %s135 = sphi 0, %s134
    %s151 = sphi 0, %s135
  $region4: #{cnn_forward.5} parent=0 // loop_header_branch
    %14 = sbr.rel (%p12) target = $region8
  $region5: #{cnn_forward.5} parent=0 // loop_body
    %s16 = ssub.s32 %s11, 1
    %s17 = ssub.s32 %s11, 2
    %s18 = sadd.s32 %s11, 1
    %s19 = ssub.s32 %s11, %s18
    %p20 = scmp.eq.s32.totalorder %s19, 0
    %s22 = sadd.s32 %s21, 1
    %s23 = scalar_select %p20, %s21, %s22
    %p26 = pneg %p20
    %p27 = scmp.eq.s32.totalorder %s11, 1
    %p28 = por %p26, %p27
    %p29 = scmp.ne.s32.totalorder %s21, %s24
    %p30 = scmp.eq.s32.totalorder %s11, 0
    %p31 = por %p29, %p30
    %p32 = scmp.ne.s32.totalorder %s21, %s24
    %p33 = scmp.eq.s32.totalorder %s16, 1
    %p34 = por %p32, %p33
    %p35 = scmp.ne.s32.totalorder %s24, %s25
    %p36 = scmp.eq.s32.totalorder %s16, 0
    %p37 = por %p35, %p36
    %p38 = scmp.ne.s32.totalorder %s24, %s25
    %p39 = scmp.eq.s32.totalorder %s17, 1
    %p40 = por %p38, %p39
    %p42 = scmp.ne.s32.totalorder %s25, %s41
    %p43 = scmp.eq.s32.totalorder %s17, 0
    %p44 = por %p42, %p43
    %s46 = sadd.s32 %s45, 1
    %p49 = scmp.eq.s32.totalorder %s11, 1
    %p50 = scmp.ne.s32.totalorder %s45, %s47
    %p51 = scmp.eq.s32.totalorder %s11, 0
    %p52 = por %p50, %p51
    %p53 = scmp.ne.s32.totalorder %s45, %s47
    %p54 = scmp.eq.s32.totalorder %s16, 1
    %p55 = por %p53, %p54
    %p56 = scmp.ne.s32.totalorder %s47, %s48
    %p57 = scmp.eq.s32.totalorder %s16, 0
    %p58 = por %p56, %p57
    %p59 = scmp.ne.s32.totalorder %s47, %s48
    %p60 = scmp.eq.s32.totalorder %s17, 1
    %p61 = por %p59, %p60
    %p63 = scmp.ne.s32.totalorder %s48, %s62
    %p64 = scmp.eq.s32.totalorder %s17, 0
    %p65 = por %p63, %p64
    %s67 = sadd.s32 %s66, 1
    %p70 = scmp.eq.s32.totalorder %s11, 1
    %p71 = scmp.ne.s32.totalorder %s66, %s68
    %p72 = scmp.eq.s32.totalorder %s11, 0
    %p73 = por %p71, %p72
    %p74 = scmp.ne.s32.totalorder %s66, %s68
    %p75 = scmp.eq.s32.totalorder %s16, 1
    %p76 = por %p74, %p75
    %p77 = scmp.ne.s32.totalorder %s68, %s69
    %p78 = scmp.eq.s32.totalorder %s16, 0
    %p79 = por %p77, %p78
    %p80 = scmp.ne.s32.totalorder %s68, %s69
    %p81 = scmp.eq.s32.totalorder %s17, 1
    %p82 = por %p80, %p81
    %p84 = scmp.ne.s32.totalorder %s69, %s83
    %p85 = scmp.eq.s32.totalorder %s17, 0
    %p86 = por %p84, %p85
    %s88 = sadd.s32 %s87, 1
    %p91 = scmp.eq.s32.totalorder %s11, 1
    %p92 = scmp.ne.s32.totalorder %s87, %s89
    %p93 = scmp.eq.s32.totalorder %s11, 0
    %p94 = por %p92, %p93
    %p95 = scmp.ne.s32.totalorder %s87, %s89
    %p96 = scmp.eq.s32.totalorder %s16, 1
    %p97 = por %p95, %p96
    %p98 = scmp.ne.s32.totalorder %s89, %s90
    %p99 = scmp.eq.s32.totalorder %s16, 0
    %p100 = por %p98, %p99
    %p101 = scmp.ne.s32.totalorder %s89, %s90
    %p102 = scmp.eq.s32.totalorder %s17, 1
    %p103 = por %p101, %p102
    %p105 = scmp.ne.s32.totalorder %s90, %s104
    %p106 = scmp.eq.s32.totalorder %s17, 0
    %p107 = por %p105, %p106
    %s109 = sadd.s32 %s108, 1
    %p112 = scmp.eq.s32.totalorder %s11, 1
    %p113 = scmp.ne.s32.totalorder %s108, %s110
    %p114 = scmp.eq.s32.totalorder %s11, 0
    %p115 = por %p113, %p114
    %p116 = scmp.ne.s32.totalorder %s108, %s110
    %p117 = scmp.eq.s32.totalorder %s16, 1
    %p118 = por %p116, %p117
    %p119 = scmp.ne.s32.totalorder %s110, %s111
    %p120 = scmp.eq.s32.totalorder %s16, 0
    %p121 = por %p119, %p120
    %p122 = scmp.ne.s32.totalorder %s110, %s111
    %p123 = scmp.eq.s32.totalorder %s17, 1
    %p124 = por %p122, %p123
    %p126 = scmp.ne.s32.totalorder %s111, %s125
    %p127 = scmp.eq.s32.totalorder %s17, 0
    %p128 = por %p126, %p127
    %s129 = ssub.s32 %s11, %s18
    %p130 = scmp.eq.s32.totalorder %s129, 0
    %s132 = sadd.s32 %s131, 1
    %s133 = scalar_select %p130, %s131, %s132
    %p136 = pneg %p130
    %p137 = scmp.eq.s32.totalorder %s11, 1
    %p138 = por %p136, %p137
    %p139 = scmp.ne.s32.totalorder %s131, %s134
    %p140 = scmp.eq.s32.totalorder %s11, 0
    %p141 = por %p139, %p140
    %p142 = scmp.ne.s32.totalorder %s131, %s134
    %p143 = scmp.eq.s32.totalorder %s16, 1
    %p144 = por %p142, %p143
    %p145 = scmp.ne.s32.totalorder %s134, %s135
    %p146 = scmp.eq.s32.totalorder %s16, 0
    %p147 = por %p145, %p146
    %p148 = scmp.ne.s32.totalorder %s134, %s135
    %p149 = scmp.eq.s32.totalorder %s17, 1
    %p150 = por %p148, %p149
    %p152 = scmp.ne.s32.totalorder %s135, %s151
    %p153 = scmp.eq.s32.totalorder %s17, 0
    %p154 = por %p152, %p153
    %p155 = scmp.le.s32.totalorder 1, %s11
    %p156 = scmp.lt.s32.totalorder %s11, 3
    %p157 = pnand %p155, %p156
    %p158 = pneg %p157
    // Predicated region
    $region9: #{cnn_forward.5} parent=5 // pred_check
      _
    $region10: #{cnn_forward.5} parent=5 // pred_check_branch
      %160 = sbr.rel (%p157) target = $region12
    $region11: #{cnn_forward.5} parent=5 // pred_region
      %s161 = ssub.s32 %s11, 1
      // Predicated region
      $region13: #{cnn_forward.5} parent=11 // pred_check
        %p162 = pneg %p58
      $region14: #{cnn_forward.5} parent=11 // pred_check_branch
        %164 = sbr.rel (%p162) target = $region16
      $region15: #{cnn_forward.5} parent=11 // pred_region
        _
      $region16: #{cnn_forward.5} parent=11 // pred_fallthru
        _
      // Predicated region
      $region17: #{cnn_forward.5} parent=11 // pred_check
        %p165 = pneg %p79
      $region18: #{cnn_forward.5} parent=11 // pred_check_branch
        %167 = sbr.rel (%p165) target = $region20
      $region19: #{cnn_forward.5} parent=11 // pred_region
        _
      $region20: #{cnn_forward.5} parent=11 // pred_fallthru
        _
      // Predicated region
      $region21: #{cnn_forward.5} parent=11 // pred_check
        %p168 = pneg %p100
      $region22: #{cnn_forward.5} parent=11 // pred_check_branch
        %170 = sbr.rel (%p168) target = $region24
      $region23: #{cnn_forward.5} parent=11 // pred_region
        _
      $region24: #{cnn_forward.5} parent=11 // pred_fallthru
        _
      // Predicated region
      $region25: #{cnn_forward.5} parent=11 // pred_check
        %p171 = pneg %p121
      $region26: #{cnn_forward.5} parent=11 // pred_check_branch
        %173 = sbr.rel (%p171) target = $region28
      $region27: #{cnn_forward.5} parent=11 // pred_region
        _
      $region28: #{cnn_forward.5} parent=11 // pred_fallthru
        _
    $region12: #{cnn_forward.5} parent=5 // pred_fallthru
      _
    %p174 = scmp.lt.s32.totalorder %s11, 2
    // Predicated region
    $region29: #{cnn_forward.5} parent=5 // pred_check
      %p175 = pneg %p174
    $region30: #{cnn_forward.5} parent=5 // pred_check_branch
      %177 = sbr.rel (%p175) target = $region32
    $region31: #{cnn_forward.5} parent=5 // pred_region
      // Predicated region
      $region33: #{cnn_forward.5} parent=31 // pred_check
        %p178 = pneg %p31
      $region34: #{cnn_forward.5} parent=31 // pred_check_branch
        %180 = sbr.rel (%p178) target = $region36
      $region35: #{cnn_forward.5} parent=31 // pred_region
        %p181 = scmp.lt.s32.totalorder %s11, 1
        %s182 = scalar_select %p181, %s11, 1
        %s183 = smul.addr %s182, 32
        %s184 = smul.addr %s183, 4
        %s185 = scalar_lea.vmem %s0, %s184
      $region36: #{cnn_forward.5} parent=31 // pred_fallthru
        _
    $region32: #{cnn_forward.5} parent=5 // pred_fallthru
      _
    %p186 = scmp.le.s32.totalorder 1, %s11
    %p187 = scmp.lt.s32.totalorder %s11, 3
    %p188 = pnand %p186, %p187
    %p189 = pneg %p188
    // Predicated region
    $region37: #{cnn_forward.5} parent=5 // pred_check
      _
    $region38: #{cnn_forward.5} parent=5 // pred_check_branch
      %191 = sbr.rel (%p188) target = $region40
    $region39: #{cnn_forward.5} parent=5 // pred_region
      %s192 = ssub.s32 %s11, 1
      %p193 = scmp.lt.s32.totalorder %s16, 1
      %s194 = scalar_select %p193, %s16, 1
      %s195 = smul.addr %s194, 32
      %s196 = smul.addr %s195, 4
      %s197 = scalar_lea.vmem %s0, %s196
      %p198 = pneg %p37
      %p199 = pneg %p34
      %p200 = pneg %p58
      %p201 = pneg %p55
      %p202 = pneg %p79
      %p203 = pneg %p76
      %p204 = pneg %p100
      %p205 = pneg %p97
      %p206 = pneg %p121
      %p207 = pneg %p118
      %p208 = pneg %p147
      %p209 = pneg %p144
      %p210 = scmp.lt.s32.totalorder %s16, 1
      %s211 = scalar_select %p210, %s16, 1
      %s212 = smul.addr %s211, 8
      %s213 = scalar_lea.vmem %s5, %s212
      %p214 = scmp.lt.s32.totalorder %s16, 1
      %s215 = scalar_select %p214, %s16, 1
      %s216 = smul.addr %s215, 32
      %s217 = smul.addr %s216, 4
      %s218 = scalar_lea.vmem %s0, %s217
      %p219 = scmp.lt.s32.totalorder %s16, 1
      %s220 = scalar_select %p219, %s16, 1
      %s221 = smul.addr %s220, 8
      %s222 = scalar_lea.vmem %s5, %s221
      %v224 = vld [vmem:[%s218] sm:$0xff]
      %v225 = vld [vmem:[%s218 + $0x8] sm:$0xff]
      %v226 = vld [vmem:[%s218 + $0x10] sm:$0xff]
      %v227 = vld [vmem:[%s218 + $0x18] sm:$0xff]
      %v228 = vld [vmem:[%s218 + $0x20] sm:$0xff]
      %v229 = vld [vmem:[%s218 + $0x28] sm:$0xff]
      %v230 = vld [vmem:[%s218 + $0x30] sm:$0xff]
      %v231 = vld [vmem:[%s218 + $0x38] sm:$0xff]
      %v232 = vld [vmem:[%s218 + $0x40] sm:$0xff]
      %v233 = vld [vmem:[%s218 + $0x48] sm:$0xff]
      %v234 = vld [vmem:[%s218 + $0x50] sm:$0xff]
      %v235 = vld [vmem:[%s218 + $0x58] sm:$0xff]
      %v236 = vld [vmem:[%s218 + $0x60] sm:$0xff]
      %v237 = vld [vmem:[%s218 + $0x68] sm:$0xff]
      %v238 = vld [vmem:[%s218 + $0x70] sm:$0xff]
      %v239 = vld [vmem:[%s218 + $0x78] sm:$0xff]
      %v240 = vld [vmem:[%s1] sm:$0xff]
      %v241 = vld [vmem:[%s1 + $0x8] sm:$0xf]
      %v242 = vld [vmem:[%s1 + $0xc] sm:$0xff]
      %v243 = vld [vmem:[%s1 + $0x14] sm:$0xf]
      %v244 = vld [vmem:[%s1 + $0x18] sm:$0xff]
      %v245 = vld [vmem:[%s1 + $0x20] sm:$0xf]
      %v246 = vld [vmem:[%s1 + $0x24] sm:$0xff]
      %v247 = vld [vmem:[%s1 + $0x2c] sm:$0xf]
      %v248 = vld [vmem:[%s1 + $0x30] sm:$0xff]
      %v249 = vld [vmem:[%s1 + $0x38] sm:$0xf]
      %v250 = vld [vmem:[%s1 + $0x3c] sm:$0xff]
      %v251 = vld [vmem:[%s1 + $0x44] sm:$0xf]
      %v252 = vld [vmem:[%s1 + $0x48] sm:$0xff]
      %v253 = vld [vmem:[%s1 + $0x50] sm:$0xf]
      %v254 = vld [vmem:[%s1 + $0x54] sm:$0xff]
      %v255 = vld [vmem:[%s1 + $0x5c] sm:$0xf]
      %v256 = vld [vmem:[%s2] sm:$0xff]
      %v257 = vld [vmem:[%s2 + $0x8] sm:$0xff]
      %v258 = vld [vmem:[%s2 + $0x10] sm:$0xff]
      %v259 = vld [vmem:[%s2 + $0x18] sm:$0xff]
      %v260 = vld [vmem:[%s2 + $0x20] sm:$0xff]
      %v261 = vld [vmem:[%s2 + $0x28] sm:$0xff]
      %v262 = vld [vmem:[%s2 + $0x30] sm:$0xff]
      %v263 = vld [vmem:[%s2 + $0x38] sm:$0xff]
      %v268 = vunpack.c.l.b16 %v224
      %v269 = vunpack.c.h.b16 %v224
      %v270 = vunpack.c.l.b16 %v225
      %v271 = vunpack.c.h.b16 %v225
      %v272 = vunpack.c.l.b16 %v226
      %v273 = vunpack.c.h.b16 %v226
      %v274 = vunpack.c.l.b16 %v227
      %v275 = vunpack.c.h.b16 %v227
      %v276 = vpack.c.b16 %v270, %v268
      %v277 = vpack.c.b16 %v271, %v269
      %v278 = vpack.c.b16 %v274, %v272
      %v279 = vpack.c.b16 %v275, %v273
      %v288 = vunpack.c.l.b16 %v228
      %v289 = vunpack.c.h.b16 %v228
      %v290 = vunpack.c.l.b16 %v229
      %v291 = vunpack.c.h.b16 %v229
      %v292 = vunpack.c.l.b16 %v230
      %v293 = vunpack.c.h.b16 %v230
      %v294 = vunpack.c.l.b16 %v231
      %v295 = vunpack.c.h.b16 %v231
      %v296 = vpack.c.b16 %v290, %v288
      %v297 = vpack.c.b16 %v291, %v289
      %v298 = vpack.c.b16 %v294, %v292
      %v299 = vpack.c.b16 %v295, %v293
      %304 = vrot.lane.b32.xlu0 %v276, 127
      %v305 = vpop.permute.xlu0 %304
      %306 = vrot.lane.b32.xlu0 %v277, 127
      %v307 = vpop.permute.xlu0 %306
      %308 = vrot.lane.b32.xlu0 %v278, 127
      %v309 = vpop.permute.xlu0 %308
      %310 = vrot.lane.b32.xlu0 %v279, 127
      %v311 = vpop.permute.xlu0 %310
      %vm312 = vcmask 1039360
      %v313 = vsel %vm312, %v305, %v307
      %v314 = vsel %vm312, %v309, %v311
      %v323 = vunpack.c.l.b16 %v232
      %v324 = vunpack.c.h.b16 %v232
      %v325 = vunpack.c.l.b16 %v233
      %v326 = vunpack.c.h.b16 %v233
      %v327 = vunpack.c.l.b16 %v234
      %v328 = vunpack.c.h.b16 %v234
      %v329 = vunpack.c.l.b16 %v235
      %v330 = vunpack.c.h.b16 %v235
      %v331 = vpack.c.b16 %v325, %v323
      %v332 = vpack.c.b16 %v326, %v324
      %v333 = vpack.c.b16 %v329, %v327
      %v334 = vpack.c.b16 %v330, %v328
      %v343 = vunpack.c.l.b16 %v236
      %v344 = vunpack.c.h.b16 %v236
      %v345 = vunpack.c.l.b16 %v237
      %v346 = vunpack.c.h.b16 %v237
      %v347 = vunpack.c.l.b16 %v238
      %v348 = vunpack.c.h.b16 %v238
      %v349 = vunpack.c.l.b16 %v239
      %v350 = vunpack.c.h.b16 %v239
      %v351 = vpack.c.b16 %v345, %v343
      %v352 = vpack.c.b16 %v346, %v344
      %v353 = vpack.c.b16 %v349, %v347
      %v354 = vpack.c.b16 %v350, %v348
      %359 = vrot.lane.b32.xlu0 %v331, 127
      %v360 = vpop.permute.xlu0 %359
      %361 = vrot.lane.b32.xlu0 %v332, 127
      %v362 = vpop.permute.xlu0 %361
      %363 = vrot.lane.b32.xlu0 %v333, 127
      %v364 = vpop.permute.xlu0 %363
      %365 = vrot.lane.b32.xlu0 %v334, 127
      %v366 = vpop.permute.xlu0 %365
      %v367 = vsel %vm312, %v360, %v362
      %v368 = vsel %vm312, %v364, %v366
      %373 = vrot.lane.b32.xlu0 %v276, 114
      %v374 = vpop.permute.xlu0 %373
      %375 = vrot.lane.b32.xlu0 %v277, 114
      %v376 = vpop.permute.xlu0 %375
      %377 = vrot.lane.b32.xlu0 %v278, 114
      %v378 = vpop.permute.xlu0 %377
      %379 = vrot.lane.b32.xlu0 %v279, 114
      %v380 = vpop.permute.xlu0 %379
      %vm381 = vcmask 932864
      %v382 = vsel %vm381, %v374, %v376
      %v383 = vsel %vm381, %v378, %v380
      %388 = vrot.lane.b32.xlu0 %v296, 114
      %v389 = vpop.permute.xlu0 %388
      %390 = vrot.lane.b32.xlu0 %v297, 114
      %v391 = vpop.permute.xlu0 %390
      %392 = vrot.lane.b32.xlu0 %v298, 114
      %v393 = vpop.permute.xlu0 %392
      %394 = vrot.lane.b32.xlu0 %v299, 114
      %v395 = vpop.permute.xlu0 %394
      %v396 = vsel %vm381, %v389, %v391
      %v397 = vsel %vm381, %v393, %v395
      %402 = vrot.lane.b32.xlu0 %v276, 113
      %v403 = vpop.permute.xlu0 %402
      %404 = vrot.lane.b32.xlu0 %v277, 113
      %v405 = vpop.permute.xlu0 %404
      %406 = vrot.lane.b32.xlu0 %v278, 113
      %v407 = vpop.permute.xlu0 %406
      %408 = vrot.lane.b32.xlu0 %v279, 113
      %v409 = vpop.permute.xlu0 %408
      %vm410 = vcmask 924672
      %v411 = vsel %vm410, %v403, %v405
      %v412 = vsel %vm410, %v407, %v409
      %v433 = vunpack.c.l.b16 %v240
      %v434 = vunpack.c.h.b16 %v240
      %v435 = vunpack.c.l.b16 %v241
      %v436 = vunpack.c.l.b16 %v242
      %v437 = vunpack.c.h.b16 %v242
      %v438 = vunpack.c.l.b16 %v243
      %v439 = vunpack.c.l.b16 %v244
      %v440 = vunpack.c.h.b16 %v244
      %v441 = vunpack.c.l.b16 %v245
      %v442 = vunpack.c.l.b16 %v246
      %v443 = vunpack.c.h.b16 %v246
      %v444 = vunpack.c.l.b16 %v247
      %v445 = vunpack.c.l.b16 %v248
      %v446 = vunpack.c.h.b16 %v248
      %v447 = vunpack.c.l.b16 %v249
      %v448 = vunpack.c.l.b16 %v250
      %v449 = vunpack.c.h.b16 %v250
      %v450 = vunpack.c.l.b16 %v251
      %v451 = vunpack.c.l.b16 %v252
      %v452 = vunpack.c.h.b16 %v252
      %v453 = vunpack.c.l.b16 %v253
      %v454 = vunpack.c.l.b16 %v254
      %v455 = vunpack.c.h.b16 %v254
      %v456 = vunpack.c.l.b16 %v255
      %v457 = vpack.c.b16 %v436, %v433
      %v458 = vpack.c.b16 %v437, %v434
      %v459 = vpack.c.b16 %v438, %v435
      %v460 = vpack.c.b16 %v442, %v439
      %v461 = vpack.c.b16 %v443, %v440
      %v462 = vpack.c.b16 %v444, %v441
      %v463 = vpack.c.b16 %v448, %v445
      %v464 = vpack.c.b16 %v449, %v446
      %v465 = vpack.c.b16 %v450, %v447
      %v466 = vpack.c.b16 %v454, %v451
      %v467 = vpack.c.b16 %v455, %v452
      %v468 = vpack.c.b16 %v456, %v453
      %vm477 = vcmask 261120
      %v479 = vsel %vm477, %v459, 0
      %v482 = vsel %vm477, %v462, 0
      %v485 = vsel %vm477, %v465, 0
      %v488 = vsel %vm477, %v468, 0
      %490 = vmatprep.subr.bf16.mxu0 %v277
      %491 = vmatpush1.bf16.msra.mxu0 %v276
      %492 = vmatprep.subr.bf16.mxu0 %v279
      %493 = vmatpush1.bf16.msra.mxu0 %v278
      %494 = vmatprep.subr.bf16.mxu0 %v297
      %495 = vmatpush1.bf16.msra.mxu0 %v296
      %496 = vmatprep.subr.bf16.mxu0 %v299
      %497 = vmatpush1.bf16.msra.mxu0 %v298
      %498 = vmatprep.subr.bf16.mxu0 %v307
      %499 = vmatpush1.bf16.msra.mxu0 %v313
      %500 = vmatprep.subr.bf16.mxu0 %v311
      %501 = vmatpush1.bf16.msra.mxu0 %v314
      %502 = vmatprep.subr.bf16.mxu0 %v332
      %503 = vmatpush1.bf16.msra.mxu0 %v331
      %504 = vmatprep.subr.bf16.mxu0 %v334
      %505 = vmatpush1.bf16.msra.mxu0 %v333
      %506 = vmatprep.subr.bf16.mxu0 %v352
      %507 = vmatpush1.bf16.msra.mxu0 %v351
      %508 = vmatprep.subr.bf16.mxu0 %v354
      %509 = vmatpush1.bf16.msra.mxu0 %v353
      %510 = vmatprep.subr.bf16.mxu0 %v362
      %511 = vmatpush1.bf16.msra.mxu0 %v367
      %512 = vmatprep.subr.bf16.mxu0 %v366
      %513 = vmatpush1.bf16.msra.mxu0 %v368
      %514 = vmatprep.subr.bf16.mxu0 %v376
      %515 = vmatpush1.bf16.msra.mxu0 %v382
      %516 = vmatprep.subr.bf16.mxu0 %v380
      %517 = vmatpush1.bf16.msra.mxu0 %v383
      %518 = vmatprep.subr.bf16.mxu0 %v391
      %519 = vmatpush1.bf16.msra.mxu0 %v396
      %520 = vmatprep.subr.bf16.mxu0 %v395
      %521 = vmatpush1.bf16.msra.mxu0 %v397
      %522 = vmatprep.mubr.bf16.mxu0 %v458
      %523 = vmatmul.mubr.bf16.gmra.mrb[0].mxu0 %v457
      %v524 = vpop.f32.mrb[0].mxu0
      %v525 = vadd.f32 0.0, %v524
      %v526 = vpop.f32.mrb[0].mxu0
      %v527 = vadd.f32 0.0, %v526
      %v528 = vpop.f32.mrb[0].mxu0
      %v529 = vadd.f32 0.0, %v528
      %v530 = vpop.f32.mrb[0].mxu0
      %v531 = vadd.f32 0.0, %v530
      %532 = vmatprep.mubr.bf16.mxu0 %v461
      %533 = vmatmul.mubr.bf16.gmra.mrb[0].mxu0 %v460
      %v534 = vpop.f32.mrb[0].mxu0
      %v535 = vadd.f32 0.0, %v534
      %v536 = vpop.f32.mrb[0].mxu0
      %v537 = vadd.f32 0.0, %v536
      %v538 = vpop.f32.mrb[0].mxu0
      %v539 = vadd.f32 0.0, %v538
      %v540 = vpop.f32.mrb[0].mxu0
      %v541 = vadd.f32 0.0, %v540
      %542 = vmatprep.mubr.bf16.mxu0 %v464
      %543 = vmatmul.mubr.bf16.gmra.mrb[0].mxu0 %v463
      %v544 = vpop.f32.mrb[0].mxu0
      %v545 = vadd.f32 0.0, %v544
      %v546 = vpop.f32.mrb[0].mxu0
      %v547 = vadd.f32 0.0, %v546
      %v548 = vpop.f32.mrb[0].mxu0
      %v549 = vadd.f32 0.0, %v548
      %v550 = vpop.f32.mrb[0].mxu0
      %v551 = vadd.f32 0.0, %v550
      %552 = vmatprep.mubr.bf16.mxu0 %v467
      %553 = vmatmul.mubr.bf16.gmra.mrb[0].mxu0 %v466
      %v554 = vpop.f32.mrb[0].mxu0
      %v555 = vadd.f32 0.0, %v554
      %v556 = vpop.f32.mrb[0].mxu0
      %v557 = vadd.f32 0.0, %v556
      %v558 = vpop.f32.mrb[0].mxu0
      %v559 = vadd.f32 0.0, %v558
      %v560 = vpop.f32.mrb[0].mxu0
      %v561 = vadd.f32 0.0, %v560
      %562 = vdwg.mxu0
      %563 = vmatprep.subr.bf16.mxu0 %v405
      %564 = vmatpush1.bf16.msra.mxu0 %v411
      %565 = vmatprep.subr.bf16.mxu0 %v409
      %566 = vmatpush1.bf16.msra.mxu0 %v412
      %567 = vmatprep.subr.bf16.mxu0 0
      %568 = vmatpush1.bf16.msra.mxu0 0
      %569 = vmatprep.subr.bf16.mxu0 0
      %570 = vmatpush1.bf16.msra.mxu0 0
      %571 = vmatprep.subr.bf16.mxu0 0
      %572 = vmatpush1.bf16.msra.mxu0 0
      %573 = vmatprep.subr.bf16.mxu0 0
      %574 = vmatpush1.bf16.msra.mxu0 0
      %575 = vmatprep.subr.bf16.mxu0 0
      %576 = vmatpush1.bf16.msra.mxu0 0
      %577 = vmatprep.subr.bf16.mxu0 0
      %578 = vmatpush1.bf16.msra.mxu0 0
      %579 = vmatprep.subr.bf16.mxu0 0
      %580 = vmatpush1.bf16.msra.mxu0 0
      %581 = vmatprep.subr.bf16.mxu0 0
      %582 = vmatpush1.bf16.msra.mxu0 0
      %583 = vmatprep.subr.bf16.mxu0 0
      %584 = vmatpush1.bf16.msra.mxu0 0
      %585 = vmatprep.subr.bf16.mxu0 0
      %586 = vmatpush1.bf16.msra.mxu0 0
      %587 = vmatprep.subr.bf16.mxu0 0
      %588 = vmatpush1.bf16.msra.mxu0 0
      %589 = vmatprep.subr.bf16.mxu0 0
      %590 = vmatpush1.bf16.msra.mxu0 0
      %591 = vmatprep.subr.bf16.mxu0 0
      %592 = vmatpush1.bf16.msra.mxu0 0
      %593 = vmatprep.subr.bf16.mxu0 0
      %594 = vmatpush1.bf16.msra.mxu0 0
      %595 = vmatprep.mubr.bf16.mxu0 0
      %596 = vmatmul.mubr.bf16.gmra.mrb[0].mxu0 %v479
      %v597 = vpop.f32.mrb[0].mxu0
      %v598 = vadd.f32 %v525, %v597
      %v599 = vpop.f32.mrb[0].mxu0
      %v600 = vadd.f32 %v527, %v599
      %v601 = vpop.f32.mrb[0].mxu0
      %v602 = vadd.f32 %v529, %v601
      %v603 = vpop.f32.mrb[0].mxu0
      %v604 = vadd.f32 %v531, %v603
      %605 = vmatprep.mubr.bf16.mxu0 0
      %606 = vmatmul.mubr.bf16.gmra.mrb[0].mxu0 %v482
      %v607 = vpop.f32.mrb[0].mxu0
      %v608 = vadd.f32 %v535, %v607
      %v609 = vpop.f32.mrb[0].mxu0
      %v610 = vadd.f32 %v537, %v609
      %v611 = vpop.f32.mrb[0].mxu0
      %v612 = vadd.f32 %v539, %v611
      %v613 = vpop.f32.mrb[0].mxu0
      %v614 = vadd.f32 %v541, %v613
      %615 = vmatprep.mubr.bf16.mxu0 0
      %616 = vmatmul.mubr.bf16.gmra.mrb[0].mxu0 %v485
      %v617 = vpop.f32.mrb[0].mxu0
      %v618 = vadd.f32 %v545, %v617
      %v619 = vpop.f32.mrb[0].mxu0
      %v620 = vadd.f32 %v547, %v619
      %v621 = vpop.f32.mrb[0].mxu0
      %v622 = vadd.f32 %v549, %v621
      %v623 = vpop.f32.mrb[0].mxu0
      %v624 = vadd.f32 %v551, %v623
      %625 = vmatprep.mubr.bf16.mxu0 0
      %626 = vmatmul.mubr.bf16.gmra.mrb[0].mxu0 %v488
      %v627 = vpop.f32.mrb[0].mxu0
      %v628 = vadd.f32 %v555, %v627
      %v629 = vpop.f32.mrb[0].mxu0
      %v630 = vadd.f32 %v557, %v629
      %v631 = vpop.f32.mrb[0].mxu0
      %v632 = vadd.f32 %v559, %v631
      %v633 = vpop.f32.mrb[0].mxu0
      %v634 = vadd.f32 %v561, %v633
      %635 = vdwg.mxu0
      %636 = vrot.lane.b32.xlu0 %v296, 127
      %v637 = vpop.permute.xlu0 %636
      %638 = vrot.lane.b32.xlu0 %v297, 127
      %v639 = vpop.permute.xlu0 %638
      %640 = vrot.lane.b32.xlu0 %v298, 127
      %v641 = vpop.permute.xlu0 %640
      %642 = vrot.lane.b32.xlu0 %v299, 127
      %v643 = vpop.permute.xlu0 %642
      %v644 = vsel %vm312, %v637, %v639
      %v645 = vsel %vm312, %v641, %v643
      %650 = vrot.lane.b32.xlu0 %v351, 127
      %v651 = vpop.permute.xlu0 %650
      %652 = vrot.lane.b32.xlu0 %v352, 127
      %v653 = vpop.permute.xlu0 %652
      %654 = vrot.lane.b32.xlu0 %v353, 127
      %v655 = vpop.permute.xlu0 %654
      %656 = vrot.lane.b32.xlu0 %v354, 127
      %v657 = vpop.permute.xlu0 %656
      %v658 = vsel %vm312, %v651, %v653
      %v659 = vsel %vm312, %v655, %v657
      %664 = vrot.lane.b32.xlu0 %v296, 113
      %v665 = vpop.permute.xlu0 %664
      %666 = vrot.lane.b32.xlu0 %v297, 113
      %v667 = vpop.permute.xlu0 %666
      %668 = vrot.lane.b32.xlu0 %v298, 113
      %v669 = vpop.permute.xlu0 %668
      %670 = vrot.lane.b32.xlu0 %v299, 113
      %v671 = vpop.permute.xlu0 %670
      %v672 = vsel %vm410, %v665, %v667
      %v673 = vsel %vm410, %v669, %v671
      %678 = vmatprep.subr.bf16.mxu0 %v297
      %679 = vmatpush1.bf16.msra.mxu0 %v296
      %680 = vmatprep.subr.bf16.mxu0 %v299
      %681 = vmatpush1.bf16.msra.mxu0 %v298
      %682 = vmatprep.subr.bf16.mxu0 %v307
      %683 = vmatpush1.bf16.msra.mxu0 %v313
      %684 = vmatprep.subr.bf16.mxu0 %v311
      %685 = vmatpush1.bf16.msra.mxu0 %v314
      %686 = vmatprep.subr.bf16.mxu0 %v639
      %687 = vmatpush1.bf16.msra.mxu0 %v644
      %688 = vmatprep.subr.bf16.mxu0 %v643
      %689 = vmatpush1.bf16.msra.mxu0 %v645
      %690 = vmatprep.subr.bf16.mxu0 %v352
      %691 = vmatpush1.bf16.msra.mxu0 %v351
      %692 = vmatprep.subr.bf16.mxu0 %v354
      %693 = vmatpush1.bf16.msra.mxu0 %v353
      %694 = vmatprep.subr.bf16.mxu0 %v362
      %695 = vmatpush1.bf16.msra.mxu0 %v367
      %696 = vmatprep.subr.bf16.mxu0 %v366
      %697 = vmatpush1.bf16.msra.mxu0 %v368
      %698 = vmatprep.subr.bf16.mxu0 %v653
      %699 = vmatpush1.bf16.msra.mxu0 %v658
      %700 = vmatprep.subr.bf16.mxu0 %v657
      %701 = vmatpush1.bf16.msra.mxu0 %v659
      %702 = vmatprep.subr.bf16.mxu0 %v391
      %703 = vmatpush1.bf16.msra.mxu0 %v396
      %704 = vmatprep.subr.bf16.mxu0 %v395
      %705 = vmatpush1.bf16.msra.mxu0 %v397
      %706 = vmatprep.subr.bf16.mxu0 %v405
      %707 = vmatpush1.bf16.msra.mxu0 %v411
      %708 = vmatprep.subr.bf16.mxu0 %v409
      %709 = vmatpush1.bf16.msra.mxu0 %v412
      %710 = vmatprep.mubr.bf16.mxu0 %v458
      %711 = vmatmul.mubr.bf16.gmra.mrb[0].mxu0 %v457
      %v712 = vpop.f32.mrb[0].mxu0
      %v713 = vadd.f32 0.0, %v712
      %v714 = vpop.f32.mrb[0].mxu0
      %v715 = vadd.f32 0.0, %v714
      %v716 = vpop.f32.mrb[0].mxu0
      %v717 = vadd.f32 0.0, %v716
      %v718 = vpop.f32.mrb[0].mxu0
      %v719 = vadd.f32 0.0, %v718
      %720 = vmatprep.mubr.bf16.mxu0 %v461
      %721 = vmatmul.mubr.bf16.gmra.mrb[0].mxu0 %v460
      %v722 = vpop.f32.mrb[0].mxu0
      %v723 = vadd.f32 0.0, %v722
      %v724 = vpop.f32.mrb[0].mxu0
      %v725 = vadd.f32 0.0, %v724
      %v726 = vpop.f32.mrb[0].mxu0
      %v727 = vadd.f32 0.0, %v726
      %v728 = vpop.f32.mrb[0].mxu0
      %v729 = vadd.f32 0.0, %v728
      %730 = vmatprep.mubr.bf16.mxu0 %v464
      %731 = vmatmul.mubr.bf16.gmra.mrb[0].mxu0 %v463
      %v732 = vpop.f32.mrb[0].mxu0
      %v733 = vadd.f32 0.0, %v732
      %v734 = vpop.f32.mrb[0].mxu0
      %v735 = vadd.f32 0.0, %v734
      %v736 = vpop.f32.mrb[0].mxu0
      %v737 = vadd.f32 0.0, %v736
      %v738 = vpop.f32.mrb[0].mxu0
      %v739 = vadd.f32 0.0, %v738
      %740 = vmatprep.mubr.bf16.mxu0 %v467
      %741 = vmatmul.mubr.bf16.gmra.mrb[0].mxu0 %v466
      %v742 = vpop.f32.mrb[0].mxu0
      %v743 = vadd.f32 0.0, %v742
      %v744 = vpop.f32.mrb[0].mxu0
      %v745 = vadd.f32 0.0, %v744
      %v746 = vpop.f32.mrb[0].mxu0
      %v747 = vadd.f32 0.0, %v746
      %v748 = vpop.f32.mrb[0].mxu0
      %v749 = vadd.f32 0.0, %v748
      %750 = vdwg.mxu0
      %751 = vmatprep.subr.bf16.mxu0 %v667
      %752 = vmatpush1.bf16.msra.mxu0 %v672
      %753 = vmatprep.subr.bf16.mxu0 %v671
      %754 = vmatpush1.bf16.msra.mxu0 %v673
      %755 = vmatprep.subr.bf16.mxu0 0
      %756 = vmatpush1.bf16.msra.mxu0 0
      %757 = vmatprep.subr.bf16.mxu0 0
      %758 = vmatpush1.bf16.msra.mxu0 0
      %759 = vmatprep.subr.bf16.mxu0 0
      %760 = vmatpush1.bf16.msra.mxu0 0
      %761 = vmatprep.subr.bf16.mxu0 0
      %762 = vmatpush1.bf16.msra.mxu0 0
      %763 = vmatprep.subr.bf16.mxu0 0
      %764 = vmatpush1.bf16.msra.mxu0 0
      %765 = vmatprep.subr.bf16.mxu0 0
      %766 = vmatpush1.bf16.msra.mxu0 0
      %767 = vmatprep.subr.bf16.mxu0 0
      %768 = vmatpush1.bf16.msra.mxu0 0
      %769 = vmatprep.subr.bf16.mxu0 0
      %770 = vmatpush1.bf16.msra.mxu0 0
      %771 = vmatprep.subr.bf16.mxu0 0
      %772 = vmatpush1.bf16.msra.mxu0 0
      %773 = vmatprep.subr.bf16.mxu0 0
      %774 = vmatpush1.bf16.msra.mxu0 0
      %775 = vmatprep.subr.bf16.mxu0 0
      %776 = vmatpush1.bf16.msra.mxu0 0
      %777 = vmatprep.subr.bf16.mxu0 0
      %778 = vmatpush1.bf16.msra.mxu0 0
      %779 = vmatprep.subr.bf16.mxu0 0
      %780 = vmatpush1.bf16.msra.mxu0 0
      %781 = vmatprep.subr.bf16.mxu0 0
      %782 = vmatpush1.bf16.msra.mxu0 0
      %783 = vmatprep.mubr.bf16.mxu0 0
      %784 = vmatmul.mubr.bf16.gmra.mrb[0].mxu0 %v479
      %v785 = vpop.f32.mrb[0].mxu0
      %v786 = vadd.f32 %v713, %v785
      %v787 = vpop.f32.mrb[0].mxu0
      %v788 = vadd.f32 %v715, %v787
      %v789 = vpop.f32.mrb[0].mxu0
      %v790 = vadd.f32 %v717, %v789
      %v791 = vpop.f32.mrb[0].mxu0
      %v792 = vadd.f32 %v719, %v791
      %793 = vmatprep.mubr.bf16.mxu0 0
      %794 = vmatmul.mubr.bf16.gmra.mrb[0].mxu0 %v482
      %v795 = vpop.f32.mrb[0].mxu0
      %v796 = vadd.f32 %v723, %v795
      %v797 = vpop.f32.mrb[0].mxu0
      %v798 = vadd.f32 %v725, %v797
      %v799 = vpop.f32.mrb[0].mxu0
      %v800 = vadd.f32 %v727, %v799
      %v801 = vpop.f32.mrb[0].mxu0
      %v802 = vadd.f32 %v729, %v801
      %803 = vmatprep.mubr.bf16.mxu0 0
      %804 = vmatmul.mubr.bf16.gmra.mrb[0].mxu0 %v485
      %v805 = vpop.f32.mrb[0].mxu0
      %v806 = vadd.f32 %v733, %v805
      %v807 = vpop.f32.mrb[0].mxu0
      %v808 = vadd.f32 %v735, %v807
      %v809 = vpop.f32.mrb[0].mxu0
      %v810 = vadd.f32 %v737, %v809
      %v811 = vpop.f32.mrb[0].mxu0
      %v812 = vadd.f32 %v739, %v811
      %813 = vmatprep.mubr.bf16.mxu0 0
      %814 = vmatmul.mubr.bf16.gmra.mrb[0].mxu0 %v488
      %v815 = vpop.f32.mrb[0].mxu0
      %v816 = vadd.f32 %v743, %v815
      %v817 = vpop.f32.mrb[0].mxu0
      %v818 = vadd.f32 %v745, %v817
      %v819 = vpop.f32.mrb[0].mxu0
      %v820 = vadd.f32 %v747, %v819
      %v821 = vpop.f32.mrb[0].mxu0
      %v822 = vadd.f32 %v749, %v821
      %823 = vdwg.mxu0
      %v824 = vmax.f32 %v598, %v786
      %v825 = vmax.f32 %v600, %v788
      %v826 = vmax.f32 %v602, %v790
      %v827 = vmax.f32 %v604, %v792
      %v828 = vmax.f32 %v608, %v796
      %v829 = vmax.f32 %v610, %v798
      %v830 = vmax.f32 %v612, %v800
      %v831 = vmax.f32 %v614, %v802
      %v832 = vmax.f32 %v618, %v806
      %v833 = vmax.f32 %v620, %v808
      %v834 = vmax.f32 %v622, %v810
      %v835 = vmax.f32 %v624, %v812
      %v836 = vmax.f32 %v628, %v816
      %v837 = vmax.f32 %v630, %v818
      %v838 = vmax.f32 %v632, %v820
      %v839 = vmax.f32 %v634, %v822
      %840 = vrot.lane.b32.xlu0 %v331, 114
      %v841 = vpop.permute.xlu0 %840
      %842 = vrot.lane.b32.xlu0 %v332, 114
      %v843 = vpop.permute.xlu0 %842
      %844 = vrot.lane.b32.xlu0 %v333, 114
      %v845 = vpop.permute.xlu0 %844
      %846 = vrot.lane.b32.xlu0 %v334, 114
      %v847 = vpop.permute.xlu0 %846
      %v848 = vsel %vm381, %v841, %v843
      %v849 = vsel %vm381, %v845, %v847
      %854 = vrot.lane.b32.xlu0 %v351, 114
      %v855 = vpop.permute.xlu0 %854
      %856 = vrot.lane.b32.xlu0 %v352, 114
      %v857 = vpop.permute.xlu0 %856
      %858 = vrot.lane.b32.xlu0 %v353, 114
      %v859 = vpop.permute.xlu0 %858
      %860 = vrot.lane.b32.xlu0 %v354, 114
      %v861 = vpop.permute.xlu0 %860
      %v862 = vsel %vm381, %v855, %v857
      %v863 = vsel %vm381, %v859, %v861
      %868 = vrot.lane.b32.xlu0 %v331, 113
      %v869 = vpop.permute.xlu0 %868
      %870 = vrot.lane.b32.xlu0 %v332, 113
      %v871 = vpop.permute.xlu0 %870
      %872 = vrot.lane.b32.xlu0 %v333, 113
      %v873 = vpop.permute.xlu0 %872
      %874 = vrot.lane.b32.xlu0 %v334, 113
      %v875 = vpop.permute.xlu0 %874
      %v876 = vsel %vm410, %v869, %v871
      %v877 = vsel %vm410, %v873, %v875
      %882 = vmatprep.subr.bf16.mxu0 %v332
      %883 = vmatpush1.bf16.msra.mxu0 %v331
      %884 = vmatprep.subr.bf16.mxu0 %v334
      %885 = vmatpush1.bf16.msra.mxu0 %v333
      %886 = vmatprep.subr.bf16.mxu0 %v352
      %887 = vmatpush1.bf16.msra.mxu0 %v351
      %888 = vmatprep.subr.bf16.mxu0 %v354
      %889 = vmatpush1.bf16.msra.mxu0 %v353
      %890 = vmatprep.subr.bf16.mxu0 %v362
      %891 = vmatpush1.bf16.msra.mxu0 %v367
      %892 = vmatprep.subr.bf16.mxu0 %v366
      %893 = vmatpush1.bf16.msra.mxu0 %v368
      %894 = vmatprep.subr.bf16.mxu0 %v376
      %895 = vmatpush1.bf16.msra.mxu0 %v382
      %896 = vmatprep.subr.bf16.mxu0 %v380
      %897 = vmatpush1.bf16.msra.mxu0 %v383
      %898 = vmatprep.subr.bf16.mxu0 %v391
      %899 = vmatpush1.bf16.msra.mxu0 %v396
      %900 = vmatprep.subr.bf16.mxu0 %v395
      %901 = vmatpush1.bf16.msra.mxu0 %v397
      %902 = vmatprep.subr.bf16.mxu0 %v405
      %903 = vmatpush1.bf16.msra.mxu0 %v411
      %904 = vmatprep.subr.bf16.mxu0 %v409
      %905 = vmatpush1.bf16.msra.mxu0 %v412
      %906 = vmatprep.subr.bf16.mxu0 %v843
      %907 = vmatpush1.bf16.msra.mxu0 %v848
      %908 = vmatprep.subr.bf16.mxu0 %v847
      %909 = vmatpush1.bf16.msra.mxu0 %v849
      %910 = vmatprep.subr.bf16.mxu0 %v857
      %911 = vmatpush1.bf16.msra.mxu0 %v862
      %912 = vmatprep.subr.bf16.mxu0 %v861
      %913 = vmatpush1.bf16.msra.mxu0 %v863
      %914 = vmatprep.mubr.bf16.mxu0 %v458
      %915 = vmatmul.mubr.bf16.gmra.mrb[0].mxu0 %v457
      %v916 = vpop.f32.mrb[0].mxu0
      %v917 = vadd.f32 0.0, %v916
      %v918 = vpop.f32.mrb[0].mxu0
      %v919 = vadd.f32 0.0, %v918
      %v920 = vpop.f32.mrb[0].mxu0
      %v921 = vadd.f32 0.0, %v920
      %v922 = vpop.f32.mrb[0].mxu0
      %v923 = vadd.f32 0.0, %v922
      %924 = vmatprep.mubr.bf16.mxu0 %v461
      %925 = vmatmul.mubr.bf16.gmra.mrb[0].mxu0 %v460
      %v926 = vpop.f32.mrb[0].mxu0
      %v927 = vadd.f32 0.0, %v926
      %v928 = vpop.f32.mrb[0].mxu0
      %v929 = vadd.f32 0.0, %v928
      %v930 = vpop.f32.mrb[0].mxu0
      %v931 = vadd.f32 0.0, %v930
      %v932 = vpop.f32.mrb[0].mxu0
      %v933 = vadd.f32 0.0, %v932
      %934 = vmatprep.mubr.bf16.mxu0 %v464
      %935 = vmatmul.mubr.bf16.gmra.mrb[0].mxu0 %v463
      %v936 = vpop.f32.mrb[0].mxu0
      %v937 = vadd.f32 0.0, %v936
      %v938 = vpop.f32.mrb[0].mxu0
      %v939 = vadd.f32 0.0, %v938
      %v940 = vpop.f32.mrb[0].mxu0
      %v941 = vadd.f32 0.0, %v940
      %v942 = vpop.f32.mrb[0].mxu0
      %v943 = vadd.f32 0.0, %v942
      %944 = vmatprep.mubr.bf16.mxu0 %v467
      %945 = vmatmul.mubr.bf16.gmra.mrb[0].mxu0 %v466
      %v946 = vpop.f32.mrb[0].mxu0
      %v947 = vadd.f32 0.0, %v946
      %v948 = vpop.f32.mrb[0].mxu0
      %v949 = vadd.f32 0.0, %v948
      %v950 = vpop.f32.mrb[0].mxu0
      %v951 = vadd.f32 0.0, %v950
      %v952 = vpop.f32.mrb[0].mxu0
      %v953 = vadd.f32 0.0, %v952
      %954 = vdwg.mxu0
      %955 = vmatprep.subr.bf16.mxu0 %v871
      %956 = vmatpush1.bf16.msra.mxu0 %v876
      %957 = vmatprep.subr.bf16.mxu0 %v875
      %958 = vmatpush1.bf16.msra.mxu0 %v877
      %959 = vmatprep.subr.bf16.mxu0 0
      %960 = vmatpush1.bf16.msra.mxu0 0
      %961 = vmatprep.subr.bf16.mxu0 0
      %962 = vmatpush1.bf16.msra.mxu0 0
      %963 = vmatprep.subr.bf16.mxu0 0
      %964 = vmatpush1.bf16.msra.mxu0 0
      %965 = vmatprep.subr.bf16.mxu0 0
      %966 = vmatpush1.bf16.msra.mxu0 0
      %967 = vmatprep.subr.bf16.mxu0 0
      %968 = vmatpush1.bf16.msra.mxu0 0
      %969 = vmatprep.subr.bf16.mxu0 0
      %970 = vmatpush1.bf16.msra.mxu0 0
      %971 = vmatprep.subr.bf16.mxu0 0
      %972 = vmatpush1.bf16.msra.mxu0 0
      %973 = vmatprep.subr.bf16.mxu0 0
      %974 = vmatpush1.bf16.msra.mxu0 0
      %975 = vmatprep.subr.bf16.mxu0 0
      %976 = vmatpush1.bf16.msra.mxu0 0
      %977 = vmatprep.subr.bf16.mxu0 0
      %978 = vmatpush1.bf16.msra.mxu0 0
      %979 = vmatprep.subr.bf16.mxu0 0
      %980 = vmatpush1.bf16.msra.mxu0 0
      %981 = vmatprep.subr.bf16.mxu0 0
      %982 = vmatpush1.bf16.msra.mxu0 0
      %983 = vmatprep.subr.bf16.mxu0 0
      %984 = vmatpush1.bf16.msra.mxu0 0
      %985 = vmatprep.subr.bf16.mxu0 0
      %986 = vmatpush1.bf16.msra.mxu0 0
      %987 = vmatprep.mubr.bf16.mxu0 0
      %988 = vmatmul.mubr.bf16.gmra.mrb[0].mxu0 %v479
      %v989 = vpop.f32.mrb[0].mxu0
      %v990 = vadd.f32 %v917, %v989
      %v991 = vpop.f32.mrb[0].mxu0
      %v992 = vadd.f32 %v919, %v991
      %v993 = vpop.f32.mrb[0].mxu0
      %v994 = vadd.f32 %v921, %v993
      %v995 = vpop.f32.mrb[0].mxu0
      %v996 = vadd.f32 %v923, %v995
      %997 = vmatprep.mubr.bf16.mxu0 0
      %998 = vmatmul.mubr.bf16.gmra.mrb[0].mxu0 %v482
      %v999 = vpop.f32.mrb[0].mxu0
      %v1000 = vadd.f32 %v927, %v999
      %v1001 = vpop.f32.mrb[0].mxu0
      %v1002 = vadd.f32 %v929, %v1001
      %v1003 = vpop.f32.mrb[0].mxu0
      %v1004 = vadd.f32 %v931, %v1003
      %v1005 = vpop.f32.mrb[0].mxu0
      %v1006 = vadd.f32 %v933, %v1005
      %1007 = vmatprep.mubr.bf16.mxu0 0
      %1008 = vmatmul.mubr.bf16.gmra.mrb[0].mxu0 %v485
      %v1009 = vpop.f32.mrb[0].mxu0
      %v1010 = vadd.f32 %v937, %v1009
      %v1011 = vpop.f32.mrb[0].mxu0
      %v1012 = vadd.f32 %v939, %v1011
      %v1013 = vpop.f32.mrb[0].mxu0
      %v1014 = vadd.f32 %v941, %v1013
      %v1015 = vpop.f32.mrb[0].mxu0
      %v1016 = vadd.f32 %v943, %v1015
      %1017 = vmatprep.mubr.bf16.mxu0 0
      %1018 = vmatmul.mubr.bf16.gmra.mrb[0].mxu0 %v488
      %v1019 = vpop.f32.mrb[0].mxu0
      %v1020 = vadd.f32 %v947, %v1019
      %v1021 = vpop.f32.mrb[0].mxu0
      %v1022 = vadd.f32 %v949, %v1021
      %v1023 = vpop.f32.mrb[0].mxu0
      %v1024 = vadd.f32 %v951, %v1023
      %v1025 = vpop.f32.mrb[0].mxu0
      %v1026 = vadd.f32 %v953, %v1025
      %1027 = vdwg.mxu0
      %v1028 = vmax.f32 %v824, %v990
      %v1029 = vmax.f32 %v825, %v992
      %v1030 = vmax.f32 %v826, %v994
      %v1031 = vmax.f32 %v827, %v996
      %v1032 = vmax.f32 %v828, %v1000
      %v1033 = vmax.f32 %v829, %v1002
      %v1034 = vmax.f32 %v830, %v1004
      %v1035 = vmax.f32 %v831, %v1006
      %v1036 = vmax.f32 %v832, %v1010
      %v1037 = vmax.f32 %v833, %v1012
      %v1038 = vmax.f32 %v834, %v1014
      %v1039 = vmax.f32 %v835, %v1016
      %v1040 = vmax.f32 %v836, %v1020
      %v1041 = vmax.f32 %v837, %v1022
      %v1042 = vmax.f32 %v838, %v1024
      %v1043 = vmax.f32 %v839, %v1026
      %1044 = vrot.lane.b32.xlu0 %v351, 113
      %v1045 = vpop.permute.xlu0 %1044
      %1046 = vrot.lane.b32.xlu0 %v352, 113
      %v1047 = vpop.permute.xlu0 %1046
      %1048 = vrot.lane.b32.xlu0 %v353, 113
      %v1049 = vpop.permute.xlu0 %1048
      %1050 = vrot.lane.b32.xlu0 %v354, 113
      %v1051 = vpop.permute.xlu0 %1050
      %v1052 = vsel %vm410, %v1045, %v1047
      %v1053 = vsel %vm410, %v1049, %v1051
      %1058 = vmatprep.subr.bf16.mxu0 %v352
      %1059 = vmatpush1.bf16.msra.mxu0 %v351
      %1060 = vmatprep.subr.bf16.mxu0 %v354
      %1061 = vmatpush1.bf16.msra.mxu0 %v353
      %1062 = vmatprep.subr.bf16.mxu0 %v362
      %1063 = vmatpush1.bf16.msra.mxu0 %v367
      %1064 = vmatprep.subr.bf16.mxu0 %v366
      %1065 = vmatpush1.bf16.msra.mxu0 %v368
      %1066 = vmatprep.subr.bf16.mxu0 %v653
      %1067 = vmatpush1.bf16.msra.mxu0 %v658
      %1068 = vmatprep.subr.bf16.mxu0 %v657
      %1069 = vmatpush1.bf16.msra.mxu0 %v659
      %1070 = vmatprep.subr.bf16.mxu0 %v391
      %1071 = vmatpush1.bf16.msra.mxu0 %v396
      %1072 = vmatprep.subr.bf16.mxu0 %v395
      %1073 = vmatpush1.bf16.msra.mxu0 %v397
      %1074 = vmatprep.subr.bf16.mxu0 %v405
      %1075 = vmatpush1.bf16.msra.mxu0 %v411
      %1076 = vmatprep.subr.bf16.mxu0 %v409
      %1077 = vmatpush1.bf16.msra.mxu0 %v412
      %1078 = vmatprep.subr.bf16.mxu0 %v667
      %1079 = vmatpush1.bf16.msra.mxu0 %v672
      %1080 = vmatprep.subr.bf16.mxu0 %v671
      %1081 = vmatpush1.bf16.msra.mxu0 %v673
      %1082 = vmatprep.subr.bf16.mxu0 %v857
      %1083 = vmatpush1.bf16.msra.mxu0 %v862
      %1084 = vmatprep.subr.bf16.mxu0 %v861
      %1085 = vmatpush1.bf16.msra.mxu0 %v863
      %1086 = vmatprep.subr.bf16.mxu0 %v871
      %1087 = vmatpush1.bf16.msra.mxu0 %v876
      %1088 = vmatprep.subr.bf16.mxu0 %v875
      %1089 = vmatpush1.bf16.msra.mxu0 %v877
      %1090 = vmatprep.mubr.bf16.mxu0 %v458
      %1091 = vmatmul.mubr.bf16.gmra.mrb[0].mxu0 %v457
      %v1092 = vpop.f32.mrb[0].mxu0
      %v1093 = vadd.f32 0.0, %v1092
      %v1094 = vpop.f32.mrb[0].mxu0
      %v1095 = vadd.f32 0.0, %v1094
      %v1096 = vpop.f32.mrb[0].mxu0
      %v1097 = vadd.f32 0.0, %v1096
      %v1098 = vpop.f32.mrb[0].mxu0
      %v1099 = vadd.f32 0.0, %v1098
      %1100 = vmatprep.mubr.bf16.mxu0 %v461
      %1101 = vmatmul.mubr.bf16.gmra.mrb[0].mxu0 %v460
      %v1102 = vpop.f32.mrb[0].mxu0
      %v1103 = vadd.f32 0.0, %v1102
      %v1104 = vpop.f32.mrb[0].mxu0
      %v1105 = vadd.f32 0.0, %v1104
      %v1106 = vpop.f32.mrb[0].mxu0
      %v1107 = vadd.f32 0.0, %v1106
      %v1108 = vpop.f32.mrb[0].mxu0
      %v1109 = vadd.f32 0.0, %v1108
      %1110 = vmatprep.mubr.bf16.mxu0 %v464
      %1111 = vmatmul.mubr.bf16.gmra.mrb[0].mxu0 %v463
      %v1112 = vpop.f32.mrb[0].mxu0
      %v1113 = vadd.f32 0.0, %v1112
      %v1114 = vpop.f32.mrb[0].mxu0
      %v1115 = vadd.f32 0.0, %v1114
      %v1116 = vpop.f32.mrb[0].mxu0
      %v1117 = vadd.f32 0.0, %v1116
      %v1118 = vpop.f32.mrb[0].mxu0
      %v1119 = vadd.f32 0.0, %v1118
      %1120 = vmatprep.mubr.bf16.mxu0 %v467
      %1121 = vmatmul.mubr.bf16.gmra.mrb[0].mxu0 %v466
      %v1122 = vpop.f32.mrb[0].mxu0
      %v1123 = vadd.f32 0.0, %v1122
      %v1124 = vpop.f32.mrb[0].mxu0
      %v1125 = vadd.f32 0.0, %v1124
      %v1126 = vpop.f32.mrb[0].mxu0
      %v1127 = vadd.f32 0.0, %v1126
      %v1128 = vpop.f32.mrb[0].mxu0
      %v1129 = vadd.f32 0.0, %v1128
      %1130 = vdwg.mxu0
      %1131 = vmatprep.subr.bf16.mxu0 %v1047
      %1132 = vmatpush1.bf16.msra.mxu0 %v1052
      %1133 = vmatprep.subr.bf16.mxu0 %v1051
      %1134 = vmatpush1.bf16.msra.mxu0 %v1053
      %1135 = vmatprep.subr.bf16.mxu0 0
      %1136 = vmatpush1.bf16.msra.mxu0 0
      %1137 = vmatprep.subr.bf16.mxu0 0
      %1138 = vmatpush1.bf16.msra.mxu0 0
      %1139 = vmatprep.subr.bf16.mxu0 0
      %1140 = vmatpush1.bf16.msra.mxu0 0
      %1141 = vmatprep.subr.bf16.mxu0 0
      %1142 = vmatpush1.bf16.msra.mxu0 0
      %1143 = vmatprep.subr.bf16.mxu0 0
      %1144 = vmatpush1.bf16.msra.mxu0 0
      %1145 = vmatprep.subr.bf16.mxu0 0
      %1146 = vmatpush1.bf16.msra.mxu0 0
      %1147 = vmatprep.subr.bf16.mxu0 0
      %1148 = vmatpush1.bf16.msra.mxu0 0
      %1149 = vmatprep.subr.bf16.mxu0 0
      %1150 = vmatpush1.bf16.msra.mxu0 0
      %1151 = vmatprep.subr.bf16.mxu0 0
      %1152 = vmatpush1.bf16.msra.mxu0 0
      %1153 = vmatprep.subr.bf16.mxu0 0
      %1154 = vmatpush1.bf16.msra.mxu0 0
      %1155 = vmatprep.subr.bf16.mxu0 0
      %1156 = vmatpush1.bf16.msra.mxu0 0
      %1157 = vmatprep.subr.bf16.mxu0 0
      %1158 = vmatpush1.bf16.msra.mxu0 0
      %1159 = vmatprep.subr.bf16.mxu0 0
      %1160 = vmatpush1.bf16.msra.mxu0 0
      %1161 = vmatprep.subr.bf16.mxu0 0
      %1162 = vmatpush1.bf16.msra.mxu0 0
      %1163 = vmatprep.mubr.bf16.mxu0 0
      %1164 = vmatmul.mubr.bf16.gmra.mrb[0].mxu0 %v479
      %v1165 = vpop.f32.mrb[0].mxu0
      %v1166 = vadd.f32 %v1093, %v1165
      %v1167 = vpop.f32.mrb[0].mxu0
      %v1168 = vadd.f32 %v1095, %v1167
      %v1169 = vpop.f32.mrb[0].mxu0
      %v1170 = vadd.f32 %v1097, %v1169
      %v1171 = vpop.f32.mrb[0].mxu0
      %v1172 = vadd.f32 %v1099, %v1171
      %1173 = vmatprep.mubr.bf16.mxu0 0
      %1174 = vmatmul.mubr.bf16.gmra.mrb[0].mxu0 %v482
      %v1175 = vpop.f32.mrb[0].mxu0
      %v1176 = vadd.f32 %v1103, %v1175
      %v1177 = vpop.f32.mrb[0].mxu0
      %v1178 = vadd.f32 %v1105, %v1177
      %v1179 = vpop.f32.mrb[0].mxu0
      %v1180 = vadd.f32 %v1107, %v1179
      %v1181 = vpop.f32.mrb[0].mxu0
      %v1182 = vadd.f32 %v1109, %v1181
      %1183 = vmatprep.mubr.bf16.mxu0 0
      %1184 = vmatmul.mubr.bf16.gmra.mrb[0].mxu0 %v485
      %v1185 = vpop.f32.mrb[0].mxu0
      %v1186 = vadd.f32 %v1113, %v1185
      %v1187 = vpop.f32.mrb[0].mxu0
      %v1188 = vadd.f32 %v1115, %v1187
      %v1189 = vpop.f32.mrb[0].mxu0
      %v1190 = vadd.f32 %v1117, %v1189
      %v1191 = vpop.f32.mrb[0].mxu0
      %v1192 = vadd.f32 %v1119, %v1191
      %1193 = vmatprep.mubr.bf16.mxu0 0
      %1194 = vmatmul.mubr.bf16.gmra.mrb[0].mxu0 %v488
      %v1195 = vpop.f32.mrb[0].mxu0
      %v1196 = vadd.f32 %v1123, %v1195
      %v1197 = vpop.f32.mrb[0].mxu0
      %v1198 = vadd.f32 %v1125, %v1197
      %v1199 = vpop.f32.mrb[0].mxu0
      %v1200 = vadd.f32 %v1127, %v1199
      %v1201 = vpop.f32.mrb[0].mxu0
      %v1202 = vadd.f32 %v1129, %v1201
      %1203 = vdwg.mxu0
      %v1204 = vmax.f32 %v1028, %v1166
      %v1205 = vmax.f32 %v1029, %v1168
      %v1206 = vmax.f32 %v1030, %v1170
      %v1207 = vmax.f32 %v1031, %v1172
      %v1208 = vmax.f32 %v1032, %v1176
      %v1209 = vmax.f32 %v1033, %v1178
      %v1210 = vmax.f32 %v1034, %v1180
      %v1211 = vmax.f32 %v1035, %v1182
      %v1212 = vmax.f32 %v1036, %v1186
      %v1213 = vmax.f32 %v1037, %v1188
      %v1214 = vmax.f32 %v1038, %v1190
      %v1215 = vmax.f32 %v1039, %v1192
      %v1216 = vmax.f32 %v1040, %v1196
      %v1217 = vmax.f32 %v1041, %v1198
      %v1218 = vmax.f32 %v1042, %v1200
      %v1219 = vmax.f32 %v1043, %v1202
      %1221 = vset.pattern.permute.xlu0 0
      %1222 = vperm.xlu0 %1221, %v256
      %v1223 = vpop.permute.xlu0 %1222
      %1226 = vset.pattern.permute.xlu0 0
      %1227 = vperm.xlu0 %1226, %v257
      %v1228 = vpop.permute.xlu0 %1227
      %1231 = vset.pattern.permute.xlu0 0
      %1232 = vperm.xlu0 %1231, %v258
      %v1233 = vpop.permute.xlu0 %1232
      %1236 = vset.pattern.permute.xlu0 0
      %1237 = vperm.xlu0 %1236, %v259
      %v1238 = vpop.permute.xlu0 %1237
      %1241 = vset.pattern.permute.xlu0 0
      %1242 = vperm.xlu0 %1241, %v260
      %v1243 = vpop.permute.xlu0 %1242
      %1246 = vset.pattern.permute.xlu0 0
      %1247 = vperm.xlu0 %1246, %v261
      %v1248 = vpop.permute.xlu0 %1247
      %1251 = vset.pattern.permute.xlu0 0
      %1252 = vperm.xlu0 %1251, %v262
      %v1253 = vpop.permute.xlu0 %1252
      %1256 = vset.pattern.permute.xlu0 0
      %1257 = vperm.xlu0 %1256, %v263
      %v1258 = vpop.permute.xlu0 %1257
      %v1260 = vadd.f32 %v1204, %v1223
      %v1261 = vadd.f32 %v1205, %v1223
      %v1262 = vadd.f32 %v1206, %v1228
      %v1263 = vadd.f32 %v1207, %v1228
      %v1264 = vadd.f32 %v1208, %v1233
      %v1265 = vadd.f32 %v1209, %v1233
      %v1266 = vadd.f32 %v1210, %v1238
      %v1267 = vadd.f32 %v1211, %v1238
      %v1268 = vadd.f32 %v1212, %v1243
      %v1269 = vadd.f32 %v1213, %v1243
      %v1270 = vadd.f32 %v1214, %v1248
      %v1271 = vadd.f32 %v1215, %v1248
      %v1272 = vadd.f32 %v1216, %v1253
      %v1273 = vadd.f32 %v1217, %v1253
      %v1274 = vadd.f32 %v1218, %v1258
      %v1275 = vadd.f32 %v1219, %v1258
      %v1276 = vmax.f32 %v1260, 0.0
      %v1277 = vmax.f32 %v1261, 0.0
      %v1278 = vmax.f32 %v1262, 0.0
      %v1279 = vmax.f32 %v1263, 0.0
      %v1280 = vmax.f32 %v1264, 0.0
      %v1281 = vmax.f32 %v1265, 0.0
      %v1282 = vmax.f32 %v1266, 0.0
      %v1283 = vmax.f32 %v1267, 0.0
      %v1284 = vmax.f32 %v1268, 0.0
      %v1285 = vmax.f32 %v1269, 0.0
      %v1286 = vmax.f32 %v1270, 0.0
      %v1287 = vmax.f32 %v1271, 0.0
      %v1288 = vmax.f32 %v1272, 0.0
      %v1289 = vmax.f32 %v1273, 0.0
      %v1290 = vmax.f32 %v1274, 0.0
      %v1291 = vmax.f32 %v1275, 0.0
      %v1292 = vld [vmem:[%s3] sm:$0xff]
      %v1293 = vld [vmem:[%s3 + $0x8] sm:$0xff]
      %v1294 = vld [vmem:[%s3 + $0x10] sm:$0xff]
      %v1295 = vld [vmem:[%s3 + $0x18] sm:$0xff]
      %v1296 = vld [vmem:[%s3 + $0x20] sm:$0xff]
      %v1297 = vld [vmem:[%s3 + $0x28] sm:$0xff]
      %v1298 = vld [vmem:[%s3 + $0x30] sm:$0xff]
      %v1299 = vld [vmem:[%s3 + $0x38] sm:$0xff]
      %v1300 = vld [vmem:[%s3 + $0x40] sm:$0xff]
      %v1301 = vld [vmem:[%s3 + $0x48] sm:$0xff]
      %v1302 = vld [vmem:[%s3 + $0x50] sm:$0xff]
      %v1303 = vld [vmem:[%s3 + $0x58] sm:$0xff]
      %v1304 = vld [vmem:[%s3 + $0x60] sm:$0xff]
      %v1305 = vld [vmem:[%s3 + $0x68] sm:$0xff]
      %v1306 = vld [vmem:[%s3 + $0x70] sm:$0xff]
      %v1307 = vld [vmem:[%s3 + $0x78] sm:$0xff]
      %v1308 = vld [vmem:[%s3 + $0x80] sm:$0xff]
      %v1309 = vld [vmem:[%s3 + $0x88] sm:$0xff]
      %v1310 = vld [vmem:[%s3 + $0x90] sm:$0xff]
      %v1311 = vld [vmem:[%s3 + $0x98] sm:$0xff]
      %v1312 = vld [vmem:[%s3 + $0xa0] sm:$0xff]
      %v1313 = vld [vmem:[%s3 + $0xa8] sm:$0xff]
      %v1314 = vld [vmem:[%s3 + $0xb0] sm:$0xff]
      %v1315 = vld [vmem:[%s3 + $0xb8] sm:$0xff]
      %v1316 = vld [vmem:[%s3 + $0xc0] sm:$0xff]
      %v1317 = vld [vmem:[%s3 + $0xc8] sm:$0xff]
      %v1318 = vld [vmem:[%s3 + $0xd0] sm:$0xff]
      %v1319 = vld [vmem:[%s3 + $0xd8] sm:$0xff]
      %v1320 = vld [vmem:[%s3 + $0xe0] sm:$0xff]
      %v1321 = vld [vmem:[%s3 + $0xe8] sm:$0xff]
      %v1322 = vld [vmem:[%s3 + $0xf0] sm:$0xff]
      %v1323 = vld [vmem:[%s3 + $0xf8] sm:$0xff]
      %v1324 = vld [vmem:[%s3 + $0x100] sm:$0xff]
      %v1325 = vld [vmem:[%s3 + $0x108] sm:$0xff]
      %v1326 = vld [vmem:[%s3 + $0x110] sm:$0xff]
      %v1327 = vld [vmem:[%s3 + $0x118] sm:$0xff]
      %v1328 = vld [vmem:[%s3 + $0x120] sm:$0xff]
      %v1329 = vld [vmem:[%s3 + $0x128] sm:$0xff]
      %v1330 = vld [vmem:[%s3 + $0x130] sm:$0xff]
      %v1331 = vld [vmem:[%s3 + $0x138] sm:$0xff]
      %v1332 = vunpack.c.l.bf16 %v1292
      %v1333 = vunpack.c.h.bf16 %v1292
      %v1334 = vunpack.c.l.bf16 %v1293
      %v1335 = vunpack.c.h.bf16 %v1293
      %v1336 = vunpack.c.l.bf16 %v1294
      %v1337 = vunpack.c.h.bf16 %v1294
      %v1338 = vunpack.c.l.bf16 %v1295
      %v1339 = vunpack.c.h.bf16 %v1295
      %v1340 = vunpack.c.l.bf16 %v1296
      %v1341 = vunpack.c.h.bf16 %v1296
      %v1342 = vunpack.c.l.bf16 %v1297
      %v1343 = vunpack.c.h.bf16 %v1297
      %v1344 = vunpack.c.l.bf16 %v1298
      %v1345 = vunpack.c.h.bf16 %v1298
      %v1346 = vunpack.c.l.bf16 %v1299
      %v1347 = vunpack.c.h.bf16 %v1299
      %v1348 = vunpack.c.l.bf16 %v1300
      %v1349 = vunpack.c.h.bf16 %v1300
      %v1350 = vunpack.c.l.bf16 %v1301
      %v1351 = vunpack.c.h.bf16 %v1301
      %v1352 = vunpack.c.l.bf16 %v1302
      %v1353 = vunpack.c.h.bf16 %v1302
      %v1354 = vunpack.c.l.bf16 %v1303
      %v1355 = vunpack.c.h.bf16 %v1303
      %v1356 = vunpack.c.l.bf16 %v1304
      %v1357 = vunpack.c.h.bf16 %v1304
      %v1358 = vunpack.c.l.bf16 %v1305
      %v1359 = vunpack.c.h.bf16 %v1305
      %v1360 = vunpack.c.l.bf16 %v1306
      %v1361 = vunpack.c.h.bf16 %v1306
      %v1362 = vunpack.c.l.bf16 %v1307
      %v1363 = vunpack.c.h.bf16 %v1307
      %v1364 = vunpack.c.l.bf16 %v1308
      %v1365 = vunpack.c.h.bf16 %v1308
      %v1366 = vunpack.c.l.bf16 %v1309
      %v1367 = vunpack.c.h.bf16 %v1309
      %v1368 = vunpack.c.l.bf16 %v1310
      %v1369 = vunpack.c.h.bf16 %v1310
      %v1370 = vunpack.c.l.bf16 %v1311
      %v1371 = vunpack.c.h.bf16 %v1311
      %v1372 = vunpack.c.l.bf16 %v1312
      %v1373 = vunpack.c.h.bf16 %v1312
      %v1374 = vunpack.c.l.bf16 %v1313
      %v1375 = vunpack.c.h.bf16 %v1313
      %v1376 = vunpack.c.l.bf16 %v1314
      %v1377 = vunpack.c.h.bf16 %v1314
      %v1378 = vunpack.c.l.bf16 %v1315
      %v1379 = vunpack.c.h.bf16 %v1315
      %v1380 = vunpack.c.l.bf16 %v1316
      %v1381 = vunpack.c.h.bf16 %v1316
      %v1382 = vunpack.c.l.bf16 %v1317
      %v1383 = vunpack.c.h.bf16 %v1317
      %v1384 = vunpack.c.l.bf16 %v1318
      %v1385 = vunpack.c.h.bf16 %v1318
      %v1386 = vunpack.c.l.bf16 %v1319
      %v1387 = vunpack.c.h.bf16 %v1319
      %v1388 = vunpack.c.l.bf16 %v1320
      %v1389 = vunpack.c.h.bf16 %v1320
      %v1390 = vunpack.c.l.bf16 %v1321
      %v1391 = vunpack.c.h.bf16 %v1321
      %v1392 = vunpack.c.l.bf16 %v1322
      %v1393 = vunpack.c.h.bf16 %v1322
      %v1394 = vunpack.c.l.bf16 %v1323
      %v1395 = vunpack.c.h.bf16 %v1323
      %v1396 = vunpack.c.l.bf16 %v1324
      %v1397 = vunpack.c.h.bf16 %v1324
      %v1398 = vunpack.c.l.bf16 %v1325
      %v1399 = vunpack.c.h.bf16 %v1325
      %v1400 = vunpack.c.l.bf16 %v1326
      %v1401 = vunpack.c.h.bf16 %v1326
      %v1402 = vunpack.c.l.bf16 %v1327
      %v1403 = vunpack.c.h.bf16 %v1327
      %v1404 = vunpack.c.l.bf16 %v1328
      %v1405 = vunpack.c.h.bf16 %v1328
      %v1406 = vunpack.c.l.bf16 %v1329
      %v1407 = vunpack.c.h.bf16 %v1329
      %v1408 = vunpack.c.l.bf16 %v1330
      %v1409 = vunpack.c.h.bf16 %v1330
      %v1410 = vunpack.c.l.bf16 %v1331
      %v1411 = vunpack.c.h.bf16 %v1331
      %v1412 = vmul.f32 %v1332, %v1276
      %v1413 = vmul.f32 %v1333, %v1277
      %v1414 = vmul.f32 %v1334, %v1278
      %v1415 = vmul.f32 %v1335, %v1279
      %v1416 = vmul.f32 %v1336, %v1280
      %v1417 = vmul.f32 %v1337, %v1281
      %v1418 = vmul.f32 %v1338, %v1282
      %v1419 = vmul.f32 %v1339, %v1283
      %v1420 = vmul.f32 %v1340, %v1284
      %v1421 = vmul.f32 %v1341, %v1285
      %v1422 = vmul.f32 %v1342, %v1286
      %v1423 = vmul.f32 %v1343, %v1287
      %v1424 = vmul.f32 %v1344, %v1288
      %v1425 = vmul.f32 %v1345, %v1289
      %v1426 = vmul.f32 %v1346, %v1290
      %v1427 = vmul.f32 %v1347, %v1291
      %v1428 = vmul.f32 %v1348, %v1276
      %v1429 = vmul.f32 %v1349, %v1277
      %v1430 = vmul.f32 %v1350, %v1278
      %v1431 = vmul.f32 %v1351, %v1279
      %v1432 = vmul.f32 %v1352, %v1280
      %v1433 = vmul.f32 %v1353, %v1281
      %v1434 = vmul.f32 %v1354, %v1282
      %v1435 = vmul.f32 %v1355, %v1283
      %v1436 = vmul.f32 %v1356, %v1284
      %v1437 = vmul.f32 %v1357, %v1285
      %v1438 = vmul.f32 %v1358, %v1286
      %v1439 = vmul.f32 %v1359, %v1287
      %v1440 = vmul.f32 %v1360, %v1288
      %v1441 = vmul.f32 %v1361, %v1289
      %v1442 = vmul.f32 %v1362, %v1290
      %v1443 = vmul.f32 %v1363, %v1291
      %v1444 = vmul.f32 %v1364, %v1276
      %v1445 = vmul.f32 %v1365, %v1277
      %v1446 = vmul.f32 %v1366, %v1278
      %v1447 = vmul.f32 %v1367, %v1279
      %v1448 = vmul.f32 %v1368, %v1280
      %v1449 = vmul.f32 %v1369, %v1281
      %v1450 = vmul.f32 %v1370, %v1282
      %v1451 = vmul.f32 %v1371, %v1283
      %v1452 = vmul.f32 %v1372, %v1284
      %v1453 = vmul.f32 %v1373, %v1285
      %v1454 = vmul.f32 %v1374, %v1286
      %v1455 = vmul.f32 %v1375, %v1287
      %v1456 = vmul.f32 %v1376, %v1288
      %v1457 = vmul.f32 %v1377, %v1289
      %v1458 = vmul.f32 %v1378, %v1290
      %v1459 = vmul.f32 %v1379, %v1291
      %v1460 = vmul.f32 %v1380, %v1276
      %v1461 = vmul.f32 %v1381, %v1277
      %v1462 = vmul.f32 %v1382, %v1278
      %v1463 = vmul.f32 %v1383, %v1279
      %v1464 = vmul.f32 %v1384, %v1280
      %v1465 = vmul.f32 %v1385, %v1281
      %v1466 = vmul.f32 %v1386, %v1282
      %v1467 = vmul.f32 %v1387, %v1283
      %v1468 = vmul.f32 %v1388, %v1284
      %v1469 = vmul.f32 %v1389, %v1285
      %v1470 = vmul.f32 %v1390, %v1286
      %v1471 = vmul.f32 %v1391, %v1287
      %v1472 = vmul.f32 %v1392, %v1288
      %v1473 = vmul.f32 %v1393, %v1289
      %v1474 = vmul.f32 %v1394, %v1290
      %v1475 = vmul.f32 %v1395, %v1291
      %v1476 = vmul.f32 %v1396, %v1276
      %v1477 = vmul.f32 %v1397, %v1277
      %v1478 = vmul.f32 %v1398, %v1278
      %v1479 = vmul.f32 %v1399, %v1279
      %v1480 = vmul.f32 %v1400, %v1280
      %v1481 = vmul.f32 %v1401, %v1281
      %v1482 = vmul.f32 %v1402, %v1282
      %v1483 = vmul.f32 %v1403, %v1283
      %v1484 = vmul.f32 %v1404, %v1284
      %v1485 = vmul.f32 %v1405, %v1285
      %v1486 = vmul.f32 %v1406, %v1286
      %v1487 = vmul.f32 %v1407, %v1287
      %v1488 = vmul.f32 %v1408, %v1288
      %v1489 = vmul.f32 %v1409, %v1289
      %v1490 = vmul.f32 %v1410, %v1290
      %v1491 = vmul.f32 %v1411, %v1291
      %vm1492 = vcmask 441344
      %v1493 = vsel %vm1492, %v1413, 0.0
      %v1494 = vadd.f32 %v1412, %v1493
      %1495 = vadd.xlane.f32.xlu0 %v1494
      %v1496 = vpop.xlane.xlu0 %1495
      %v1497 = vsel %vm1492, %v1415, 0.0
      %v1498 = vadd.f32 %v1414, %v1497
      %1499 = vadd.xlane.f32.xlu0 %v1498
      %v1500 = vpop.xlane.xlu0 %1499
      %v1501 = vsel %vm1492, %v1417, 0.0
      %v1502 = vadd.f32 %v1416, %v1501
      %1503 = vadd.xlane.f32.xlu0 %v1502
      %v1504 = vpop.xlane.xlu0 %1503
      %v1505 = vsel %vm1492, %v1419, 0.0
      %v1506 = vadd.f32 %v1418, %v1505
      %1507 = vadd.xlane.f32.xlu0 %v1506
      %v1508 = vpop.xlane.xlu0 %1507
      %v1509 = vsel %vm1492, %v1421, 0.0
      %v1510 = vadd.f32 %v1420, %v1509
      %1511 = vadd.xlane.f32.xlu0 %v1510
      %v1512 = vpop.xlane.xlu0 %1511
      %v1513 = vsel %vm1492, %v1423, 0.0
      %v1514 = vadd.f32 %v1422, %v1513
      %1515 = vadd.xlane.f32.xlu0 %v1514
      %v1516 = vpop.xlane.xlu0 %1515
      %v1517 = vsel %vm1492, %v1425, 0.0
      %v1518 = vadd.f32 %v1424, %v1517
      %1519 = vadd.xlane.f32.xlu0 %v1518
      %v1520 = vpop.xlane.xlu0 %1519
      %v1521 = vsel %vm1492, %v1427, 0.0
      %v1522 = vadd.f32 %v1426, %v1521
      %1523 = vadd.xlane.f32.xlu0 %v1522
      %v1524 = vpop.xlane.xlu0 %1523
      %v1525 = vsel %vm1492, %v1429, 0.0
      %v1526 = vadd.f32 %v1428, %v1525
      %1527 = vadd.xlane.f32.xlu0 %v1526
      %v1528 = vpop.xlane.xlu0 %1527
      %v1529 = vsel %vm1492, %v1431, 0.0
      %v1530 = vadd.f32 %v1430, %v1529
      %1531 = vadd.xlane.f32.xlu0 %v1530
      %v1532 = vpop.xlane.xlu0 %1531
      %v1533 = vsel %vm1492, %v1433, 0.0
      %v1534 = vadd.f32 %v1432, %v1533
      %1535 = vadd.xlane.f32.xlu0 %v1534
      %v1536 = vpop.xlane.xlu0 %1535
      %v1537 = vsel %vm1492, %v1435, 0.0
      %v1538 = vadd.f32 %v1434, %v1537
      %1539 = vadd.xlane.f32.xlu0 %v1538
      %v1540 = vpop.xlane.xlu0 %1539
      %v1541 = vsel %vm1492, %v1437, 0.0
      %v1542 = vadd.f32 %v1436, %v1541
      %1543 = vadd.xlane.f32.xlu0 %v1542
      %v1544 = vpop.xlane.xlu0 %1543
      %v1545 = vsel %vm1492, %v1439, 0.0
      %v1546 = vadd.f32 %v1438, %v1545
      %1547 = vadd.xlane.f32.xlu0 %v1546
      %v1548 = vpop.xlane.xlu0 %1547
      %v1549 = vsel %vm1492, %v1441, 0.0
      %v1550 = vadd.f32 %v1440, %v1549
      %1551 = vadd.xlane.f32.xlu0 %v1550
      %v1552 = vpop.xlane.xlu0 %1551
      %v1553 = vsel %vm1492, %v1443, 0.0
      %v1554 = vadd.f32 %v1442, %v1553
      %1555 = vadd.xlane.f32.xlu0 %v1554
      %v1556 = vpop.xlane.xlu0 %1555
      %v1557 = vsel %vm1492, %v1445, 0.0
      %v1558 = vadd.f32 %v1444, %v1557
      %1559 = vadd.xlane.f32.xlu0 %v1558
      %v1560 = vpop.xlane.xlu0 %1559
      %v1561 = vsel %vm1492, %v1447, 0.0
      %v1562 = vadd.f32 %v1446, %v1561
      %1563 = vadd.xlane.f32.xlu0 %v1562
      %v1564 = vpop.xlane.xlu0 %1563
      %v1565 = vsel %vm1492, %v1449, 0.0
      %v1566 = vadd.f32 %v1448, %v1565
      %1567 = vadd.xlane.f32.xlu0 %v1566
      %v1568 = vpop.xlane.xlu0 %1567
      %v1569 = vsel %vm1492, %v1451, 0.0
      %v1570 = vadd.f32 %v1450, %v1569
      %1571 = vadd.xlane.f32.xlu0 %v1570
      %v1572 = vpop.xlane.xlu0 %1571
      %v1573 = vsel %vm1492, %v1453, 0.0
      %v1574 = vadd.f32 %v1452, %v1573
      %1575 = vadd.xlane.f32.xlu0 %v1574
      %v1576 = vpop.xlane.xlu0 %1575
      %v1577 = vsel %vm1492, %v1455, 0.0
      %v1578 = vadd.f32 %v1454, %v1577
      %1579 = vadd.xlane.f32.xlu0 %v1578
      %v1580 = vpop.xlane.xlu0 %1579
      %v1581 = vsel %vm1492, %v1457, 0.0
      %v1582 = vadd.f32 %v1456, %v1581
      %1583 = vadd.xlane.f32.xlu0 %v1582
      %v1584 = vpop.xlane.xlu0 %1583
      %v1585 = vsel %vm1492, %v1459, 0.0
      %v1586 = vadd.f32 %v1458, %v1585
      %1587 = vadd.xlane.f32.xlu0 %v1586
      %v1588 = vpop.xlane.xlu0 %1587
      %v1589 = vsel %vm1492, %v1461, 0.0
      %v1590 = vadd.f32 %v1460, %v1589
      %1591 = vadd.xlane.f32.xlu0 %v1590
      %v1592 = vpop.xlane.xlu0 %1591
      %v1593 = vsel %vm1492, %v1463, 0.0
      %v1594 = vadd.f32 %v1462, %v1593
      %1595 = vadd.xlane.f32.xlu0 %v1594
      %v1596 = vpop.xlane.xlu0 %1595
      %v1597 = vsel %vm1492, %v1465, 0.0
      %v1598 = vadd.f32 %v1464, %v1597
      %1599 = vadd.xlane.f32.xlu0 %v1598
      %v1600 = vpop.xlane.xlu0 %1599
      %v1601 = vsel %vm1492, %v1467, 0.0
      %v1602 = vadd.f32 %v1466, %v1601
      %1603 = vadd.xlane.f32.xlu0 %v1602
      %v1604 = vpop.xlane.xlu0 %1603
      %v1605 = vsel %vm1492, %v1469, 0.0
      %v1606 = vadd.f32 %v1468, %v1605
      %1607 = vadd.xlane.f32.xlu0 %v1606
      %v1608 = vpop.xlane.xlu0 %1607
      %v1609 = vsel %vm1492, %v1471, 0.0
      %v1610 = vadd.f32 %v1470, %v1609
      %1611 = vadd.xlane.f32.xlu0 %v1610
      %v1612 = vpop.xlane.xlu0 %1611
      %v1613 = vsel %vm1492, %v1473, 0.0
      %v1614 = vadd.f32 %v1472, %v1613
      %1615 = vadd.xlane.f32.xlu0 %v1614
      %v1616 = vpop.xlane.xlu0 %1615
      %v1617 = vsel %vm1492, %v1475, 0.0
      %v1618 = vadd.f32 %v1474, %v1617
      %1619 = vadd.xlane.f32.xlu0 %v1618
      %v1620 = vpop.xlane.xlu0 %1619
      %v1621 = vsel %vm1492, %v1477, 0.0
      %v1622 = vadd.f32 %v1476, %v1621
      %1623 = vadd.xlane.f32.xlu0 %v1622
      %v1624 = vpop.xlane.xlu0 %1623
      %v1625 = vsel %vm1492, %v1479, 0.0
      %v1626 = vadd.f32 %v1478, %v1625
      %1627 = vadd.xlane.f32.xlu0 %v1626
      %v1628 = vpop.xlane.xlu0 %1627
      %v1629 = vsel %vm1492, %v1481, 0.0
      %v1630 = vadd.f32 %v1480, %v1629
      %1631 = vadd.xlane.f32.xlu0 %v1630
      %v1632 = vpop.xlane.xlu0 %1631
      %v1633 = vsel %vm1492, %v1483, 0.0
      %v1634 = vadd.f32 %v1482, %v1633
      %1635 = vadd.xlane.f32.xlu0 %v1634
      %v1636 = vpop.xlane.xlu0 %1635
      %v1637 = vsel %vm1492, %v1485, 0.0
      %v1638 = vadd.f32 %v1484, %v1637
      %1639 = vadd.xlane.f32.xlu0 %v1638
      %v1640 = vpop.xlane.xlu0 %1639
      %v1641 = vsel %vm1492, %v1487, 0.0
      %v1642 = vadd.f32 %v1486, %v1641
      %1643 = vadd.xlane.f32.xlu0 %v1642
      %v1644 = vpop.xlane.xlu0 %1643
      %v1645 = vsel %vm1492, %v1489, 0.0
      %v1646 = vadd.f32 %v1488, %v1645
      %1647 = vadd.xlane.f32.xlu0 %v1646
      %v1648 = vpop.xlane.xlu0 %1647
      %v1649 = vsel %vm1492, %v1491, 0.0
      %v1650 = vadd.f32 %v1490, %v1649
      %1651 = vadd.xlane.f32.xlu0 %v1650
      %v1652 = vpop.xlane.xlu0 %1651
      %v1693 = vlaneseq
      %v1694 = vand.u32 %v1693, 127
      %v1695 = vlaneseq
      %v1696 = vshrl.u32 %v1695, 7
      %v1697 = vsub.s32 %v1694, %v1696
      %v1698 = vrot.slane %v1496, %v1697
      %v1699 = vadd.s32 %v1694, 4294967288
      %v1700 = vlaneseq
      %v1701 = vshrl.u32 %v1700, 7
      %v1702 = vsub.s32 %v1699, %v1701
      %v1703 = vrot.slane %v1500, %v1702
      %vm1704 = vcmask 130112
      %v1705 = vsel %vm1704, %v1703, %v1698
      %v1706 = vadd.s32 %v1694, 4294967280
      %v1707 = vlaneseq
      %v1708 = vshrl.u32 %v1707, 7
      %v1709 = vsub.s32 %v1706, %v1708
      %v1710 = vrot.slane %v1504, %v1709
      %vm1711 = vcmask 195712
      %v1712 = vsel %vm1711, %v1710, %v1705
      %v1713 = vadd.s32 %v1694, 4294967272
      %v1714 = vlaneseq
      %v1715 = vshrl.u32 %v1714, 7
      %v1716 = vsub.s32 %v1713, %v1715
      %v1717 = vrot.slane %v1508, %v1716
      %vm1718 = vcmask 261312
      %v1719 = vsel %vm1718, %v1717, %v1712
      %v1720 = vadd.s32 %v1694, 4294967264
      %v1721 = vlaneseq
      %v1722 = vshrl.u32 %v1721, 7
      %v1723 = vsub.s32 %v1720, %v1722
      %v1724 = vrot.slane %v1512, %v1723
      %vm1725 = vcmask 326912
      %v1726 = vsel %vm1725, %v1724, %v1719
      %v1727 = vadd.s32 %v1694, 4294967256
      %v1728 = vlaneseq
      %v1729 = vshrl.u32 %v1728, 7
      %v1730 = vsub.s32 %v1727, %v1729
      %v1731 = vrot.slane %v1516, %v1730
      %vm1732 = vcmask 392512
      %v1733 = vsel %vm1732, %v1731, %v1726
      %v1734 = vadd.s32 %v1694, 4294967248
      %v1735 = vlaneseq
      %v1736 = vshrl.u32 %v1735, 7
      %v1737 = vsub.s32 %v1734, %v1736
      %v1738 = vrot.slane %v1520, %v1737
      %vm1739 = vcmask 458112
      %v1740 = vsel %vm1739, %v1738, %v1733
      %v1741 = vadd.s32 %v1694, 4294967240
      %v1742 = vlaneseq
      %v1743 = vshrl.u32 %v1742, 7
      %v1744 = vsub.s32 %v1741, %v1743
      %v1745 = vrot.slane %v1524, %v1744
      %vm1746 = vcmask 523712
      %v1747 = vsel %vm1746, %v1745, %v1740
      %v1748 = vlaneseq
      %v1749 = vshrl.u32 %v1748, 7
      %v1750 = vsub.s32 %v1694, %v1749
      %v1751 = vrot.slane %v1528, %v1750
      %v1752 = vlaneseq
      %v1753 = vshrl.u32 %v1752, 7
      %v1754 = vsub.s32 %v1699, %v1753
      %v1755 = vrot.slane %v1532, %v1754
      %v1756 = vsel %vm1704, %v1755, %v1751
      %v1757 = vlaneseq
      %v1758 = vshrl.u32 %v1757, 7
      %v1759 = vsub.s32 %v1706, %v1758
      %v1760 = vrot.slane %v1536, %v1759
      %v1761 = vsel %vm1711, %v1760, %v1756
      %v1762 = vlaneseq
      %v1763 = vshrl.u32 %v1762, 7
      %v1764 = vsub.s32 %v1713, %v1763
      %v1765 = vrot.slane %v1540, %v1764
      %v1766 = vsel %vm1718, %v1765, %v1761
      %v1767 = vlaneseq
      %v1768 = vshrl.u32 %v1767, 7
      %v1769 = vsub.s32 %v1720, %v1768
      %v1770 = vrot.slane %v1544, %v1769
      %v1771 = vsel %vm1725, %v1770, %v1766
      %v1772 = vlaneseq
      %v1773 = vshrl.u32 %v1772, 7
      %v1774 = vsub.s32 %v1727, %v1773
      %v1775 = vrot.slane %v1548, %v1774
      %v1776 = vsel %vm1732, %v1775, %v1771
      %v1777 = vlaneseq
      %v1778 = vshrl.u32 %v1777, 7
      %v1779 = vsub.s32 %v1734, %v1778
      %v1780 = vrot.slane %v1552, %v1779
      %v1781 = vsel %vm1739, %v1780, %v1776
      %v1782 = vlaneseq
      %v1783 = vshrl.u32 %v1782, 7
      %v1784 = vsub.s32 %v1741, %v1783
      %v1785 = vrot.slane %v1556, %v1784
      %v1786 = vsel %vm1746, %v1785, %v1781
      %v1787 = vlaneseq
      %v1788 = vshrl.u32 %v1787, 7
      %v1789 = vsub.s32 %v1694, %v1788
      %v1790 = vrot.slane %v1560, %v1789
      %v1791 = vlaneseq
      %v1792 = vshrl.u32 %v1791, 7
      %v1793 = vsub.s32 %v1699, %v1792
      %v1794 = vrot.slane %v1564, %v1793
      %v1795 = vsel %vm1704, %v1794, %v1790
      %v1796 = vlaneseq
      %v1797 = vshrl.u32 %v1796, 7
      %v1798 = vsub.s32 %v1706, %v1797
      %v1799 = vrot.slane %v1568, %v1798
      %v1800 = vsel %vm1711, %v1799, %v1795
      %v1801 = vlaneseq
      %v1802 = vshrl.u32 %v1801, 7
      %v1803 = vsub.s32 %v1713, %v1802
      %v1804 = vrot.slane %v1572, %v1803
      %v1805 = vsel %vm1718, %v1804, %v1800
      %v1806 = vlaneseq
      %v1807 = vshrl.u32 %v1806, 7
      %v1808 = vsub.s32 %v1720, %v1807
      %v1809 = vrot.slane %v1576, %v1808
      %v1810 = vsel %vm1725, %v1809, %v1805
      %v1811 = vlaneseq
      %v1812 = vshrl.u32 %v1811, 7
      %v1813 = vsub.s32 %v1727, %v1812
      %v1814 = vrot.slane %v1580, %v1813
      %v1815 = vsel %vm1732, %v1814, %v1810
      %v1816 = vlaneseq
      %v1817 = vshrl.u32 %v1816, 7
      %v1818 = vsub.s32 %v1734, %v1817
      %v1819 = vrot.slane %v1584, %v1818
      %v1820 = vsel %vm1739, %v1819, %v1815
      %v1821 = vlaneseq
      %v1822 = vshrl.u32 %v1821, 7
      %v1823 = vsub.s32 %v1741, %v1822
      %v1824 = vrot.slane %v1588, %v1823
      %v1825 = vsel %vm1746, %v1824, %v1820
      %v1826 = vlaneseq
      %v1827 = vshrl.u32 %v1826, 7
      %v1828 = vsub.s32 %v1694, %v1827
      %v1829 = vrot.slane %v1592, %v1828
      %v1830 = vlaneseq
      %v1831 = vshrl.u32 %v1830, 7
      %v1832 = vsub.s32 %v1699, %v1831
      %v1833 = vrot.slane %v1596, %v1832
      %v1834 = vsel %vm1704, %v1833, %v1829
      %v1835 = vlaneseq
      %v1836 = vshrl.u32 %v1835, 7
      %v1837 = vsub.s32 %v1706, %v1836
      %v1838 = vrot.slane %v1600, %v1837
      %v1839 = vsel %vm1711, %v1838, %v1834
      %v1840 = vlaneseq
      %v1841 = vshrl.u32 %v1840, 7
      %v1842 = vsub.s32 %v1713, %v1841
      %v1843 = vrot.slane %v1604, %v1842
      %v1844 = vsel %vm1718, %v1843, %v1839
      %v1845 = vlaneseq
      %v1846 = vshrl.u32 %v1845, 7
      %v1847 = vsub.s32 %v1720, %v1846
      %v1848 = vrot.slane %v1608, %v1847
      %v1849 = vsel %vm1725, %v1848, %v1844
      %v1850 = vlaneseq
      %v1851 = vshrl.u32 %v1850, 7
      %v1852 = vsub.s32 %v1727, %v1851
      %v1853 = vrot.slane %v1612, %v1852
      %v1854 = vsel %vm1732, %v1853, %v1849
      %v1855 = vlaneseq
      %v1856 = vshrl.u32 %v1855, 7
      %v1857 = vsub.s32 %v1734, %v1856
      %v1858 = vrot.slane %v1616, %v1857
      %v1859 = vsel %vm1739, %v1858, %v1854
      %v1860 = vlaneseq
      %v1861 = vshrl.u32 %v1860, 7
      %v1862 = vsub.s32 %v1741, %v1861
      %v1863 = vrot.slane %v1620, %v1862
      %v1864 = vsel %vm1746, %v1863, %v1859
      %v1865 = vlaneseq
      %v1866 = vshrl.u32 %v1865, 7
      %v1867 = vsub.s32 %v1694, %v1866
      %v1868 = vrot.slane %v1624, %v1867
      %v1869 = vlaneseq
      %v1870 = vshrl.u32 %v1869, 7
      %v1871 = vsub.s32 %v1699, %v1870
      %v1872 = vrot.slane %v1628, %v1871
      %v1873 = vsel %vm1704, %v1872, %v1868
      %v1874 = vlaneseq
      %v1875 = vshrl.u32 %v1874, 7
      %v1876 = vsub.s32 %v1706, %v1875
      %v1877 = vrot.slane %v1632, %v1876
      %v1878 = vsel %vm1711, %v1877, %v1873
      %v1879 = vlaneseq
      %v1880 = vshrl.u32 %v1879, 7
      %v1881 = vsub.s32 %v1713, %v1880
      %v1882 = vrot.slane %v1636, %v1881
      %v1883 = vsel %vm1718, %v1882, %v1878
      %v1884 = vlaneseq
      %v1885 = vshrl.u32 %v1884, 7
      %v1886 = vsub.s32 %v1720, %v1885
      %v1887 = vrot.slane %v1640, %v1886
      %v1888 = vsel %vm1725, %v1887, %v1883
      %v1889 = vlaneseq
      %v1890 = vshrl.u32 %v1889, 7
      %v1891 = vsub.s32 %v1727, %v1890
      %v1892 = vrot.slane %v1644, %v1891
      %v1893 = vsel %vm1732, %v1892, %v1888
      %v1894 = vlaneseq
      %v1895 = vshrl.u32 %v1894, 7
      %v1896 = vsub.s32 %v1734, %v1895
      %v1897 = vrot.slane %v1648, %v1896
      %v1898 = vsel %vm1739, %v1897, %v1893
      %v1899 = vlaneseq
      %v1900 = vshrl.u32 %v1899, 7
      %v1901 = vsub.s32 %v1741, %v1900
      %v1902 = vrot.slane %v1652, %v1901
      %v1903 = vsel %vm1746, %v1902, %v1898
      %vm1904 = vcmask 1041409
      %v1905 = vsel %vm1904, %v1786, %v1747
      %vm1906 = vcmask 1042434
      %v1907 = vsel %vm1906, %v1825, %v1905
      %vm1908 = vcmask 1043459
      %v1909 = vsel %vm1908, %v1864, %v1907
      %vm1910 = vcmask 1044484
      %v1911 = vsel %vm1910, %v1903, %v1909
      %vm1913 = vcmask 520192
      %v1914 = vsel %vm1913, %v1911, 0.0
      %1915 = vadd.xlane.f32.xlu0 %v1914
      %v1916 = vpop.xlane.xlu0 %1915
      %v1917 = vld [vmem:[%s4] sm:$0x1f]
      %v1918 = vadd.f32 %v1916, %v1917
      %vm1919 = vcmask 4096
      %1920 = vst.msk [vmem:[%s222] sm:$0x1f] %vm1919, %v1918
      %p1921 = scmp.lt.s32.totalorder %s16, 1
      %s1922 = scalar_select %p1921, %s16, 1
      %s1923 = smul.addr %s1922, 8
      %s1924 = scalar_lea.vmem %s5, %s1923
      // Predicated region
      $region41: #{cnn_forward.5} parent=39 // pred_check
        %p1925 = pneg %p144
      $region42: #{cnn_forward.5} parent=39 // pred_check_branch
        %1927 = sbr.rel (%p1925) target = $region44
      $region43: #{cnn_forward.5} parent=39 // pred_region
        _
      $region44: #{cnn_forward.5} parent=39 // pred_fallthru
        _
    $region40: #{cnn_forward.5} parent=5 // pred_fallthru
      _
    %p1928 = scmp.le.s32.totalorder 2, %s11
    // Predicated region
    $region45: #{cnn_forward.5} parent=5 // pred_check
      %p1929 = pneg %p1928
    $region46: #{cnn_forward.5} parent=5 // pred_check_branch
      %1931 = sbr.rel (%p1929) target = $region48
    $region47: #{cnn_forward.5} parent=5 // pred_region
      %s1932 = ssub.s32 %s11, 2
      // Predicated region
      $region49: #{cnn_forward.5} parent=47 // pred_check
        %p1933 = pneg %p150
      $region50: #{cnn_forward.5} parent=47 // pred_check_branch
        %1935 = sbr.rel (%p1933) target = $region52
      $region51: #{cnn_forward.5} parent=47 // pred_region
        %p1936 = scmp.lt.s32.totalorder %s17, 1
        %s1937 = scalar_select %p1936, %s17, 1
        %s1938 = smul.addr %s1937, 8
        %s1939 = scalar_lea.vmem %s5, %s1938
      $region52: #{cnn_forward.5} parent=47 // pred_fallthru
        _
    $region48: #{cnn_forward.5} parent=5 // pred_fallthru
      _
  $region6: #{cnn_forward.5} parent=0 // loop_footer
    %s15 = sadd.s32 1, %s11
  $region7: #{cnn_forward.5} parent=0 // loop_footer_branch
    %10 = sbr.rel target = $region3
  $region8: #{cnn_forward.5} parent=0 // loop_exit
    _

</llo_original>
